<compile_context>
chip_gen: v7x
topology: tpu7x:2x2x1
jax: 0.10.0
libtpu: 0.0.40
codegen_flags: <defaults>
</compile_context>

<pallas_src>
import functools

import jax
import jax.numpy as jnp
from jax import lax
from jax.experimental import pallas as pl
from jax.experimental.pallas import tpu as pltpu


# ------------------------------ fused kernel --------------------------------

def _layernorm_f32(x, gamma, beta):
    # One-pass LayerNorm: var = E[x^2] - mu^2 (PyTorch biased var, eps=1e-5).
    mu = jnp.mean(x, axis=-1, keepdims=True)
    msq = jnp.mean(x * x, axis=-1, keepdims=True)
    var = msq - mu * mu
    return (x - mu) * lax.rsqrt(var + 1e-5) * gamma + beta


def _mxu(a_f32, w_bf16):
    # Cast activations to the weight dtype (bf16) at the MXU boundary,
    # accumulate in f32.
    return jnp.dot(a_f32.astype(w_bf16.dtype), w_bf16,
                   preferred_element_type=jnp.float32)


def _fused_transformer_kernel(
        x_ref,                                   # (G, S, D)   f32 embeddings
        ipw_ref, ipb_ref,                        # (L, D, 3D) bf16 / (L, 1, 3D) f32
        opw_ref, opb_ref,                        # (L, D, D)  bf16 / (L, 1, D)  f32
        ln1g_ref, ln1b_ref,                      # (L, 1, D)  f32
        l1w_ref, l1b_ref,                        # (L, D, H)  bf16 / (L, 1, H)  f32
        l2w_ref, l2b_ref,                        # (L, H, D)  bf16 / (L, 1, D)  f32
        ln2g_ref, ln2b_ref,                      # (L, 1, D)  f32
        fcw_ref, fcb_ref,                        # (D, Vp)    bf16 / (1, Vp)    f32
        o_ref,                                   # (G, S, Vp) f32
        *, num_layers):
    G, S, D = x_ref.shape
    Vp = fcw_ref.shape[-1]
    # Residual stream as one (G*S, D) slab -> all dense matmuls see M = G*S.
    x = x_ref[...].astype(jnp.float32).reshape(G * S, D)

    # Additive causal mask (0 / -1e30), built once per grid step, shared by
    # every layer: a single VPU add per layer instead of a bool select.
    row = lax.broadcasted_iota(jnp.int32, (S, S), 0)
    col = lax.broadcasted_iota(jnp.int32, (S, S), 1)
    causal_add = jnp.where(col <= row, 0.0, -1e30).astype(jnp.float32)

    # TODO(synk): before S grows past ~1-2k this dense per-sequence (S,S)
    # score path must become flash-style online softmax over KV tiles
    # (q tiles 128-256, kv tiles 256-512, running max/sum in VMEM scratch,
    # tile-local iota masks); at S=4096 the f32 scores alone are 64 MiB/seq.
    for l in range(num_layers):
        # ---- single-head causal self-attention (1/sqrt(D) folded into W_q) --
        qkv = _mxu(x, ipw_ref[l]) + ipb_ref[l]              # (G*S, 3D) f32
        qkv = qkv.reshape(G, S, 3 * D)
        q = qkv[:, :, :D]                                   # 128-aligned slices
        k = qkv[:, :, D:2 * D]
        v = qkv[:, :, 2 * D:]

        s = jnp.einsum('bqd,bkd->bqk', q.astype(jnp.bfloat16),
                       k.astype(jnp.bfloat16),
                       preferred_element_type=jnp.float32)   # (G, S, S)
        s = s + causal_add                                   # broadcast add
        m = jnp.max(s, axis=-1, keepdims=True)
        p = jnp.exp(s - m)
        p = p * pl.reciprocal(jnp.sum(p, axis=-1, keepdims=True), approx=True)

        attn = jnp.einsum('bqk,bkd->bqd', p.astype(jnp.bfloat16),
                          v.astype(jnp.bfloat16),
                          preferred_element_type=jnp.float32)  # (G, S, D)
        attn = _mxu(attn.reshape(G * S, D), opw_ref[l]) + opb_ref[l]

        x = _layernorm_f32(x + attn, ln1g_ref[l], ln1b_ref[l])   # norm1 (post-LN)

        # ---- feed-forward (ReLU) --------------------------------------------
        h = jnp.maximum(_mxu(x, l1w_ref[l]) + l1b_ref[l], 0.0)   # (G*S, H)
        h = _mxu(h, l2w_ref[l]) + l2b_ref[l]                     # (G*S, D)
        x = _layernorm_f32(x + h, ln2g_ref[l], ln2b_ref[l])      # norm2

    # ---- vocab head (lane-dense padded width) --------------------------------
    logits = _mxu(x, fcw_ref[...]) + fcb_ref[...]                # (G*S, Vp)
    o_ref[...] = logits.reshape(G, S, Vp).astype(o_ref.dtype)


# ------------------------------ model wrapper --------------------------------

_WEIGHT_ORDER = ("in_proj_w", "in_proj_b", "out_proj_w", "out_proj_b",
                 "ln1_g", "ln1_b", "lin1_w", "lin1_b", "lin2_w", "lin2_b",
                 "ln2_g", "ln2_b", "fc_w", "fc_b")


def simple_transformer_forward(params, tokens):
    B, S = tokens.shape
    V, D = params["embed"].shape                 # true (unpadded) vocab size
    Vp = params["fc_w"].shape[1]                 # padded vocab (multiple of 128)
    L = params["in_proj_w"].shape[0]

    # Embedding gather + positional embedding: plain-JAX glue, kept in f32 so
    # the in-kernel residual stream starts from unrounded values.
    x = jnp.take(params["embed"], tokens, axis=0) + params["pos_embed"][:, :S, :]

    # Batch G sequences per grid step so dense matmuls see M = G*S rows
    # (~256-row target).  Pad the batch up to a multiple of G; padded rows are
    # computed on zeros (finite everywhere) and sliced off afterwards.
    G = max(1, min(B, 256 // max(S, 1)))
    Bp = -(-B // G) * G
    if Bp != B:
        x = jnp.pad(x, ((0, Bp - B), (0, 0), (0, 0)))

    weights = [params[name] for name in _WEIGHT_ORDER]

    # NOTE: weight index maps are constant across the grid; once activation
    # tiles grow, pipeline_mode=pl.Buffered(1) on these specs would halve
    # their VMEM footprint (left at default here - grid is only Bp//G steps).
    def full_spec(arr):
        nd = arr.ndim
        return pl.BlockSpec(arr.shape, lambda b, _nd=nd: (0,) * _nd)

    kernel = functools.partial(_fused_transformer_kernel, num_layers=L)

    logits_padded = pl.pallas_call(
        kernel,
        out_shape=jax.ShapeDtypeStruct((Bp, S, Vp), jnp.float32),
        grid=(Bp // G,),
        in_specs=[pl.BlockSpec((G, S, D), lambda b: (b, 0, 0))]
                 + [full_spec(w) for w in weights],
        out_specs=pl.BlockSpec((G, S, Vp), lambda b: (b, 0, 0)),
        compiler_params=pltpu.CompilerParams(
            dimension_semantics=("parallel",)),
    )(x, *weights)

    return logits_padded[:B, :, :V]              # drop batch + vocab padding


# ------------------------------ initialization -------------------------------

def init_params(key, vocab_size=257, embed_dim=128, hidden_dim=512,
                num_layers=4, max_len=4096):
    vpad = ((vocab_size + 127) // 128) * 128     # 257 -> 384
    keys = jax.random.split(key, 2 + num_layers)
    scale = 0.02
    attn_scale = 1.0 / (embed_dim ** 0.5)        # folded into the Q projection
    wdt = jnp.bfloat16                           # MXU-native weight matrices

    layers = []
    for l in range(num_layers):
        lk = jax.random.split(keys[2 + l], 4)
        ipw = jax.random.normal(lk[0], (embed_dim, 3 * embed_dim),
                                jnp.float32) * scale
        # Fold 1/sqrt(D) into the Q block (PyTorch scales q after projection,
        # so the Q bias block takes the same factor; it's zeros here).
        ipw = ipw.at[:, :embed_dim].multiply(attn_scale)
        ipb = jnp.zeros((1, 3 * embed_dim), jnp.float32)
        ipb = ipb.at[:, :embed_dim].multiply(attn_scale)
        layers.append(dict(
            in_proj_w=ipw.astype(wdt),
            in_proj_b=ipb,
            out_proj_w=(jax.random.normal(lk[1], (embed_dim, embed_dim),
                                          jnp.float32) * scale).astype(wdt),
            out_proj_b=jnp.zeros((1, embed_dim), jnp.float32),
            ln1_g=jnp.ones((1, embed_dim), jnp.float32),
            ln1_b=jnp.zeros((1, embed_dim), jnp.float32),
            lin1_w=(jax.random.normal(lk[2], (embed_dim, hidden_dim),
                                      jnp.float32) * scale).astype(wdt),
            lin1_b=jnp.zeros((1, hidden_dim), jnp.float32),
            lin2_w=(jax.random.normal(lk[3], (hidden_dim, embed_dim),
                                      jnp.float32) * scale).astype(wdt),
            lin2_b=jnp.zeros((1, embed_dim), jnp.float32),
            ln2_g=jnp.ones((1, embed_dim), jnp.float32),
            ln2_b=jnp.zeros((1, embed_dim), jnp.float32),
        ))
    stacked = {k: jnp.stack([ly[k] for ly in layers], axis=0)
               for k in layers[0]}

    fc_w = jax.random.normal(keys[1], (embed_dim, vocab_size), jnp.float32) * scale
    fc_w = jnp.pad(fc_w, ((0, 0), (0, vpad - vocab_size))).astype(wdt)
    fc_b = jnp.zeros((1, vpad), jnp.float32)

    params = dict(
        embed=jax.random.normal(keys[0], (vocab_size, embed_dim),
                                jnp.float32) * scale,
        pos_embed=jnp.zeros((1, max_len, embed_dim), jnp.float32),  # torch: zeros
        fc_w=fc_w, fc_b=fc_b,
        **stacked,
    )
    return params


# ---------------------------------- main --------------------------------------

if __name__ == "__main__":
    key = jax.random.PRNGKey(0)
    pkey, dkey = jax.random.split(key)

    VOCAB, EMBED, HIDDEN, LAYERS, MAX_LEN = 257, 128, 512, 4, 4096
    B, S = 2, 16

    params = init_params(pkey, vocab_size=VOCAB, embed_dim=EMBED,
                         hidden_dim=HIDDEN, num_layers=LAYERS, max_len=MAX_LEN)
    tokens = jax.random.randint(dkey, (B, S), 0, VOCAB, dtype=jnp.int32)

    logits = jax.jit(simple_transformer_forward)(params, tokens)
    logits = jax.block_until_ready(logits)

    assert logits.shape == (B, S, VOCAB), logits.shape
    assert jnp.all(jnp.isfinite(logits)), "non-finite logits"
    print("KERNEL_OK")
</pallas_src>

<mosaic_0001>
module attributes {stable_mosaic.version = 11 : i64} {
  func.func @_fused_transformer_kernel(%arg0: i32, %arg1: memref<2x16x128xf32, #tpu.memory_space<vmem>>, %arg2: memref<4x128x384xbf16, #tpu.memory_space<vmem>>, %arg3: memref<4x1x384xf32, #tpu.memory_space<vmem>>, %arg4: memref<4x128x128xbf16, #tpu.memory_space<vmem>>, %arg5: memref<4x1x128xf32, #tpu.memory_space<vmem>>, %arg6: memref<4x1x128xf32, #tpu.memory_space<vmem>>, %arg7: memref<4x1x128xf32, #tpu.memory_space<vmem>>, %arg8: memref<4x128x512xbf16, #tpu.memory_space<vmem>>, %arg9: memref<4x1x512xf32, #tpu.memory_space<vmem>>, %arg10: memref<4x512x128xbf16, #tpu.memory_space<vmem>>, %arg11: memref<4x1x128xf32, #tpu.memory_space<vmem>>, %arg12: memref<4x1x128xf32, #tpu.memory_space<vmem>>, %arg13: memref<4x1x128xf32, #tpu.memory_space<vmem>>, %arg14: memref<128x384xbf16, #tpu.memory_space<vmem>>, %arg15: memref<1x384xf32, #tpu.memory_space<vmem>>, %arg16: memref<2x16x384xf32, #tpu.memory_space<vmem>>) attributes {dimension_semantics = [#tpu.dimension_semantics<parallel>], iteration_bounds = array<i64: 1>, scalar_prefetch = 0 : i64, scratch_operands = 0 : i64, tpu.core_type = #tpu.core_type<tc>, window_params = [{transform_indices = @transform_0, window_bounds = array<i64: 2, 16, 128>}, {pipeline_mode = #tpu.pipeline_mode<synchronous>, transform_indices = @transform_1, window_bounds = array<i64: 4, 128, 384>}, {pipeline_mode = #tpu.pipeline_mode<synchronous>, transform_indices = @transform_2, window_bounds = array<i64: 4, 1, 384>}, {pipeline_mode = #tpu.pipeline_mode<synchronous>, transform_indices = @transform_3, window_bounds = array<i64: 4, 128, 128>}, {pipeline_mode = #tpu.pipeline_mode<synchronous>, transform_indices = @transform_4, window_bounds = array<i64: 4, 1, 128>}, {pipeline_mode = #tpu.pipeline_mode<synchronous>, transform_indices = @transform_5, window_bounds = array<i64: 4, 1, 128>}, {pipeline_mode = #tpu.pipeline_mode<synchronous>, transform_indices = @transform_6, window_bounds = array<i64: 4, 1, 128>}, {pipeline_mode = #tpu.pipeline_mode<synchronous>, transform_indices = @transform_7, window_bounds = array<i64: 4, 128, 512>}, {pipeline_mode = #tpu.pipeline_mode<synchronous>, transform_indices = @transform_8, window_bounds = array<i64: 4, 1, 512>}, {pipeline_mode = #tpu.pipeline_mode<synchronous>, transform_indices = @transform_9, window_bounds = array<i64: 4, 512, 128>}, {pipeline_mode = #tpu.pipeline_mode<synchronous>, transform_indices = @transform_10, window_bounds = array<i64: 4, 1, 128>}, {pipeline_mode = #tpu.pipeline_mode<synchronous>, transform_indices = @transform_11, window_bounds = array<i64: 4, 1, 128>}, {pipeline_mode = #tpu.pipeline_mode<synchronous>, transform_indices = @transform_12, window_bounds = array<i64: 4, 1, 128>}, {pipeline_mode = #tpu.pipeline_mode<synchronous>, transform_indices = @transform_13, window_bounds = array<i64: 128, 384>}, {pipeline_mode = #tpu.pipeline_mode<synchronous>, transform_indices = @transform_14, window_bounds = array<i64: 1, 384>}, {transform_indices = @transform_15, window_bounds = array<i64: 2, 16, 384>}]} {
    %c0 = arith.constant 0 : index
    %c0_0 = arith.constant 0 : index
    %c0_1 = arith.constant 0 : index
    %0 = vector.load %arg1[%c0, %c0_0, %c0_1] : memref<2x16x128xf32, #tpu.memory_space<vmem>>, vector<2x16x128xf32>
    %1 = vector.shape_cast %0 : vector<2x16x128xf32> to vector<32x128xf32>
    %2 = tpu.iota {dimensions = array<i32: 0>} : vector<16x16xi32>
    %3 = tpu.iota {dimensions = array<i32: 1>} : vector<16x16xi32>
    %4 = arith.cmpi sle, %3, %2 : vector<16x16xi32>
    %cst = arith.constant 0.000000e+00 : f32
    %cst_2 = arith.constant -1.000000e+30 : f32
    %5 = vector.broadcast %cst : f32 to vector<16x16xf32>
    %6 = vector.broadcast %cst_2 : f32 to vector<16x16xf32>
    %7 = arith.select %4, %5, %6 : vector<16x16xi1>, vector<16x16xf32>
    %c0_3 = arith.constant 0 : index
    %c0_4 = arith.constant 0 : index
    %c0_5 = arith.constant 0 : index
    %8 = vector.load %arg2[%c0_3, %c0_4, %c0_5] : memref<4x128x384xbf16, #tpu.memory_space<vmem>>, vector<1x128x384xbf16>
    %9 = vector.shape_cast %8 : vector<1x128x384xbf16> to vector<128x384xbf16>
    %10 = arith.truncf %1 : vector<32x128xf32> to vector<32x128xbf16>
    %cst_6 = arith.constant dense<0.000000e+00> : vector<32x384xf32>
    %11 = tpu.matmul %10, %9, %cst_6 {dimension_numbers = #tpu.dot_dimension_numbers<[1], [0], [0], [1], [0, 0, 1, 1], [], []>} : vector<32x128xbf16>, vector<128x384xbf16>, vector<32x384xf32> -> vector<32x384xf32>
    %c0_7 = arith.constant 0 : index
    %c0_8 = arith.constant 0 : index
    %c0_9 = arith.constant 0 : index
    %12 = vector.load %arg3[%c0_7, %c0_8, %c0_9] : memref<4x1x384xf32, #tpu.memory_space<vmem>>, vector<1x1x384xf32>
    %13 = vector.shape_cast %12 : vector<1x1x384xf32> to vector<1x384xf32>
    %14 = vector.broadcast %13 : vector<1x384xf32> to vector<32x384xf32>
    %15 = arith.addf %11, %14 : vector<32x384xf32>
    %16 = vector.shape_cast %15 : vector<32x384xf32> to vector<2x16x384xf32>
    %17 = vector.extract_strided_slice %16 {offsets = [0, 0, 0], sizes = [2, 16, 128], strides = [1, 1, 1]} : vector<2x16x384xf32> to vector<2x16x128xf32>
    %18 = vector.extract_strided_slice %16 {offsets = [0, 0, 128], sizes = [2, 16, 128], strides = [1, 1, 1]} : vector<2x16x384xf32> to vector<2x16x128xf32>
    %19 = vector.extract_strided_slice %16 {offsets = [0, 0, 256], sizes = [2, 16, 128], strides = [1, 1, 1]} : vector<2x16x384xf32> to vector<2x16x128xf32>
    %20 = arith.truncf %17 : vector<2x16x128xf32> to vector<2x16x128xbf16>
    %21 = arith.truncf %18 : vector<2x16x128xf32> to vector<2x16x128xbf16>
    "tpu.trace_start"() <{level = 10 : i32, message = "bqd,bkd->bqk"}> : () -> ()
    %cst_10 = arith.constant dense<0.000000e+00> : vector<2x16x16xf32>
    %22 = tpu.matmul %20, %21, %cst_10 {dimension_numbers = #tpu.dot_dimension_numbers<[2], [2], [1], [1], [0, 0, 0, 1, 1, 1], [0], [0]>} : vector<2x16x128xbf16>, vector<2x16x128xbf16>, vector<2x16x16xf32> -> vector<2x16x16xf32>
    "tpu.trace_stop"() : () -> ()
    %23 = vector.shape_cast %7 : vector<16x16xf32> to vector<1x16x16xf32>
    %24 = vector.broadcast %23 : vector<1x16x16xf32> to vector<2x16x16xf32>
    %25 = arith.addf %22, %24 : vector<2x16x16xf32>
    %cst_11 = arith.constant dense<0xFF800000> : vector<2x16xf32>
    %26 = vector.multi_reduction <maximumf>, %25, %cst_11 [2] : vector<2x16x16xf32> to vector<2x16xf32>
    %27 = vector.shape_cast %26 : vector<2x16xf32> to vector<2x16x1xf32>
    %28 = vector.broadcast %27 : vector<2x16x1xf32> to vector<2x16x16xf32>
    %29 = arith.subf %25, %28 : vector<2x16x16xf32>
    %30 = math.exp %29 : vector<2x16x16xf32>
    %cst_12 = arith.constant dense<0.000000e+00> : vector<2x16xf32>
    %31 = vector.multi_reduction <add>, %30, %cst_12 [2] : vector<2x16x16xf32> to vector<2x16xf32>
    %32 = vector.shape_cast %31 : vector<2x16xf32> to vector<2x16x1xf32>
    %33 = tpu.reciprocal %32 {approx = true} : vector<2x16x1xf32> -> vector<2x16x1xf32>
    %34 = vector.broadcast %33 : vector<2x16x1xf32> to vector<2x16x16xf32>
    %35 = arith.mulf %30, %34 : vector<2x16x16xf32>
    %36 = arith.truncf %35 : vector<2x16x16xf32> to vector<2x16x16xbf16>
    %37 = arith.truncf %19 : vector<2x16x128xf32> to vector<2x16x128xbf16>
    "tpu.trace_start"() <{level = 10 : i32, message = "bqk,bkd->bqd"}> : () -> ()
    %cst_13 = arith.constant dense<0.000000e+00> : vector<2x16x128xf32>
    %38 = tpu.matmul %36, %37, %cst_13 {dimension_numbers = #tpu.dot_dimension_numbers<[2], [1], [1], [2], [0, 0, 0, 1, 1, 2], [0], [0]>} : vector<2x16x16xbf16>, vector<2x16x128xbf16>, vector<2x16x128xf32> -> vector<2x16x128xf32>
    "tpu.trace_stop"() : () -> ()
    %39 = vector.shape_cast %38 : vector<2x16x128xf32> to vector<32x128xf32>
    %c0_14 = arith.constant 0 : index
    %c0_15 = arith.constant 0 : index
    %c0_16 = arith.constant 0 : index
    %40 = vector.load %arg4[%c0_14, %c0_15, %c0_16] : memref<4x128x128xbf16, #tpu.memory_space<vmem>>, vector<1x128x128xbf16>
    %41 = vector.shape_cast %40 : vector<1x128x128xbf16> to vector<128x128xbf16>
    %42 = arith.truncf %39 : vector<32x128xf32> to vector<32x128xbf16>
    %cst_17 = arith.constant dense<0.000000e+00> : vector<32x128xf32>
    %43 = tpu.matmul %42, %41, %cst_17 {dimension_numbers = #tpu.dot_dimension_numbers<[1], [0], [0], [1], [0, 0, 1, 1], [], []>} : vector<32x128xbf16>, vector<128x128xbf16>, vector<32x128xf32> -> vector<32x128xf32>
    %c0_18 = arith.constant 0 : index
    %c0_19 = arith.constant 0 : index
    %c0_20 = arith.constant 0 : index
    %44 = vector.load %arg5[%c0_18, %c0_19, %c0_20] : memref<4x1x128xf32, #tpu.memory_space<vmem>>, vector<1x1x128xf32>
    %45 = vector.shape_cast %44 : vector<1x1x128xf32> to vector<1x128xf32>
    %46 = vector.broadcast %45 : vector<1x128xf32> to vector<32x128xf32>
    %47 = arith.addf %43, %46 : vector<32x128xf32>
    %48 = arith.addf %1, %47 : vector<32x128xf32>
    %c0_21 = arith.constant 0 : index
    %c0_22 = arith.constant 0 : index
    %c0_23 = arith.constant 0 : index
    %49 = vector.load %arg6[%c0_21, %c0_22, %c0_23] : memref<4x1x128xf32, #tpu.memory_space<vmem>>, vector<1x1x128xf32>
    %50 = vector.shape_cast %49 : vector<1x1x128xf32> to vector<1x128xf32>
    %c0_24 = arith.constant 0 : index
    %c0_25 = arith.constant 0 : index
    %c0_26 = arith.constant 0 : index
    %51 = vector.load %arg7[%c0_24, %c0_25, %c0_26] : memref<4x1x128xf32, #tpu.memory_space<vmem>>, vector<1x1x128xf32>
    %52 = vector.shape_cast %51 : vector<1x1x128xf32> to vector<1x128xf32>
    %cst_27 = arith.constant dense<0.000000e+00> : vector<32xf32>
    %53 = vector.multi_reduction <add>, %48, %cst_27 [1] : vector<32x128xf32> to vector<32xf32>
    %54 = vector.shape_cast %53 : vector<32xf32> to vector<32x1xf32>
    %cst_28 = arith.constant 1.280000e+02 : f32
    %55 = vector.broadcast %cst_28 : f32 to vector<32x1xf32>
    %56 = arith.divf %54, %55 : vector<32x1xf32>
    %57 = arith.mulf %48, %48 : vector<32x128xf32>
    %cst_29 = arith.constant dense<0.000000e+00> : vector<32xf32>
    %58 = vector.multi_reduction <add>, %57, %cst_29 [1] : vector<32x128xf32> to vector<32xf32>
    %59 = vector.shape_cast %58 : vector<32xf32> to vector<32x1xf32>
    %cst_30 = arith.constant 1.280000e+02 : f32
    %60 = vector.broadcast %cst_30 : f32 to vector<32x1xf32>
    %61 = arith.divf %59, %60 : vector<32x1xf32>
    %62 = arith.mulf %56, %56 : vector<32x1xf32>
    %63 = arith.subf %61, %62 : vector<32x1xf32>
    %64 = vector.broadcast %56 : vector<32x1xf32> to vector<32x128xf32>
    %65 = arith.subf %48, %64 : vector<32x128xf32>
    %cst_31 = arith.constant 9.99999974E-6 : f32
    %66 = vector.broadcast %cst_31 : f32 to vector<32x1xf32>
    %67 = arith.addf %63, %66 : vector<32x1xf32>
    %68 = math.rsqrt %67 : vector<32x1xf32>
    %69 = vector.broadcast %68 : vector<32x1xf32> to vector<32x128xf32>
    %70 = arith.mulf %65, %69 : vector<32x128xf32>
    %71 = vector.broadcast %50 : vector<1x128xf32> to vector<32x128xf32>
    %72 = arith.mulf %70, %71 : vector<32x128xf32>
    %73 = vector.broadcast %52 : vector<1x128xf32> to vector<32x128xf32>
    %74 = arith.addf %72, %73 : vector<32x128xf32>
    %c0_32 = arith.constant 0 : index
    %c0_33 = arith.constant 0 : index
    %c0_34 = arith.constant 0 : index
    %75 = vector.load %arg8[%c0_32, %c0_33, %c0_34] : memref<4x128x512xbf16, #tpu.memory_space<vmem>>, vector<1x128x512xbf16>
    %76 = vector.shape_cast %75 : vector<1x128x512xbf16> to vector<128x512xbf16>
    %77 = arith.truncf %74 : vector<32x128xf32> to vector<32x128xbf16>
    %cst_35 = arith.constant dense<0.000000e+00> : vector<32x512xf32>
    %78 = tpu.matmul %77, %76, %cst_35 {dimension_numbers = #tpu.dot_dimension_numbers<[1], [0], [0], [1], [0, 0, 1, 1], [], []>} : vector<32x128xbf16>, vector<128x512xbf16>, vector<32x512xf32> -> vector<32x512xf32>
    %c0_36 = arith.constant 0 : index
    %c0_37 = arith.constant 0 : index
    %c0_38 = arith.constant 0 : index
    %79 = vector.load %arg9[%c0_36, %c0_37, %c0_38] : memref<4x1x512xf32, #tpu.memory_space<vmem>>, vector<1x1x512xf32>
    %80 = vector.shape_cast %79 : vector<1x1x512xf32> to vector<1x512xf32>
    %81 = vector.broadcast %80 : vector<1x512xf32> to vector<32x512xf32>
    %82 = arith.addf %78, %81 : vector<32x512xf32>
    %cst_39 = arith.constant 0.000000e+00 : f32
    %83 = vector.broadcast %cst_39 : f32 to vector<32x512xf32>
    %84 = arith.maximumf %82, %83 : vector<32x512xf32>
    %c0_40 = arith.constant 0 : index
    %c0_41 = arith.constant 0 : index
    %c0_42 = arith.constant 0 : index
    %85 = vector.load %arg10[%c0_40, %c0_41, %c0_42] : memref<4x512x128xbf16, #tpu.memory_space<vmem>>, vector<1x512x128xbf16>
    %86 = vector.shape_cast %85 : vector<1x512x128xbf16> to vector<512x128xbf16>
    %87 = arith.truncf %84 : vector<32x512xf32> to vector<32x512xbf16>
    %cst_43 = arith.constant dense<0.000000e+00> : vector<32x128xf32>
    %88 = tpu.matmul %87, %86, %cst_43 {dimension_numbers = #tpu.dot_dimension_numbers<[1], [0], [0], [1], [0, 0, 1, 1], [], []>} : vector<32x512xbf16>, vector<512x128xbf16>, vector<32x128xf32> -> vector<32x128xf32>
    %c0_44 = arith.constant 0 : index
    %c0_45 = arith.constant 0 : index
    %c0_46 = arith.constant 0 : index
    %89 = vector.load %arg11[%c0_44, %c0_45, %c0_46] : memref<4x1x128xf32, #tpu.memory_space<vmem>>, vector<1x1x128xf32>
    %90 = vector.shape_cast %89 : vector<1x1x128xf32> to vector<1x128xf32>
    %91 = vector.broadcast %90 : vector<1x128xf32> to vector<32x128xf32>
    %92 = arith.addf %88, %91 : vector<32x128xf32>
    %93 = arith.addf %74, %92 : vector<32x128xf32>
    %c0_47 = arith.constant 0 : index
    %c0_48 = arith.constant 0 : index
    %c0_49 = arith.constant 0 : index
    %94 = vector.load %arg12[%c0_47, %c0_48, %c0_49] : memref<4x1x128xf32, #tpu.memory_space<vmem>>, vector<1x1x128xf32>
    %95 = vector.shape_cast %94 : vector<1x1x128xf32> to vector<1x128xf32>
    %c0_50 = arith.constant 0 : index
    %c0_51 = arith.constant 0 : index
    %c0_52 = arith.constant 0 : index
    %96 = vector.load %arg13[%c0_50, %c0_51, %c0_52] : memref<4x1x128xf32, #tpu.memory_space<vmem>>, vector<1x1x128xf32>
    %97 = vector.shape_cast %96 : vector<1x1x128xf32> to vector<1x128xf32>
    %cst_53 = arith.constant dense<0.000000e+00> : vector<32xf32>
    %98 = vector.multi_reduction <add>, %93, %cst_53 [1] : vector<32x128xf32> to vector<32xf32>
    %99 = vector.shape_cast %98 : vector<32xf32> to vector<32x1xf32>
    %cst_54 = arith.constant 1.280000e+02 : f32
    %100 = vector.broadcast %cst_54 : f32 to vector<32x1xf32>
    %101 = arith.divf %99, %100 : vector<32x1xf32>
    %102 = arith.mulf %93, %93 : vector<32x128xf32>
    %cst_55 = arith.constant dense<0.000000e+00> : vector<32xf32>
    %103 = vector.multi_reduction <add>, %102, %cst_55 [1] : vector<32x128xf32> to vector<32xf32>
    %104 = vector.shape_cast %103 : vector<32xf32> to vector<32x1xf32>
    %cst_56 = arith.constant 1.280000e+02 : f32
    %105 = vector.broadcast %cst_56 : f32 to vector<32x1xf32>
    %106 = arith.divf %104, %105 : vector<32x1xf32>
    %107 = arith.mulf %101, %101 : vector<32x1xf32>
    %108 = arith.subf %106, %107 : vector<32x1xf32>
    %109 = vector.broadcast %101 : vector<32x1xf32> to vector<32x128xf32>
    %110 = arith.subf %93, %109 : vector<32x128xf32>
    %cst_57 = arith.constant 9.99999974E-6 : f32
    %111 = vector.broadcast %cst_57 : f32 to vector<32x1xf32>
    %112 = arith.addf %108, %111 : vector<32x1xf32>
    %113 = math.rsqrt %112 : vector<32x1xf32>
    %114 = vector.broadcast %113 : vector<32x1xf32> to vector<32x128xf32>
    %115 = arith.mulf %110, %114 : vector<32x128xf32>
    %116 = vector.broadcast %95 : vector<1x128xf32> to vector<32x128xf32>
    %117 = arith.mulf %115, %116 : vector<32x128xf32>
    %118 = vector.broadcast %97 : vector<1x128xf32> to vector<32x128xf32>
    %119 = arith.addf %117, %118 : vector<32x128xf32>
    %c1 = arith.constant 1 : index
    %c0_58 = arith.constant 0 : index
    %c0_59 = arith.constant 0 : index
    %120 = vector.load %arg2[%c1, %c0_58, %c0_59] : memref<4x128x384xbf16, #tpu.memory_space<vmem>>, vector<1x128x384xbf16>
    %121 = vector.shape_cast %120 : vector<1x128x384xbf16> to vector<128x384xbf16>
    %122 = arith.truncf %119 : vector<32x128xf32> to vector<32x128xbf16>
    %cst_60 = arith.constant dense<0.000000e+00> : vector<32x384xf32>
    %123 = tpu.matmul %122, %121, %cst_60 {dimension_numbers = #tpu.dot_dimension_numbers<[1], [0], [0], [1], [0, 0, 1, 1], [], []>} : vector<32x128xbf16>, vector<128x384xbf16>, vector<32x384xf32> -> vector<32x384xf32>
    %c1_61 = arith.constant 1 : index
    %c0_62 = arith.constant 0 : index
    %c0_63 = arith.constant 0 : index
    %124 = vector.load %arg3[%c1_61, %c0_62, %c0_63] : memref<4x1x384xf32, #tpu.memory_space<vmem>>, vector<1x1x384xf32>
    %125 = vector.shape_cast %124 : vector<1x1x384xf32> to vector<1x384xf32>
    %126 = vector.broadcast %125 : vector<1x384xf32> to vector<32x384xf32>
    %127 = arith.addf %123, %126 : vector<32x384xf32>
    %128 = vector.shape_cast %127 : vector<32x384xf32> to vector<2x16x384xf32>
    %129 = vector.extract_strided_slice %128 {offsets = [0, 0, 0], sizes = [2, 16, 128], strides = [1, 1, 1]} : vector<2x16x384xf32> to vector<2x16x128xf32>
    %130 = vector.extract_strided_slice %128 {offsets = [0, 0, 128], sizes = [2, 16, 128], strides = [1, 1, 1]} : vector<2x16x384xf32> to vector<2x16x128xf32>
    %131 = vector.extract_strided_slice %128 {offsets = [0, 0, 256], sizes = [2, 16, 128], strides = [1, 1, 1]} : vector<2x16x384xf32> to vector<2x16x128xf32>
    %132 = arith.truncf %129 : vector<2x16x128xf32> to vector<2x16x128xbf16>
    %133 = arith.truncf %130 : vector<2x16x128xf32> to vector<2x16x128xbf16>
    "tpu.trace_start"() <{level = 10 : i32, message = "bqd,bkd->bqk"}> : () -> ()
    %cst_64 = arith.constant dense<0.000000e+00> : vector<2x16x16xf32>
    %134 = tpu.matmul %132, %133, %cst_64 {dimension_numbers = #tpu.dot_dimension_numbers<[2], [2], [1], [1], [0, 0, 0, 1, 1, 1], [0], [0]>} : vector<2x16x128xbf16>, vector<2x16x128xbf16>, vector<2x16x16xf32> -> vector<2x16x16xf32>
    "tpu.trace_stop"() : () -> ()
    %135 = vector.shape_cast %7 : vector<16x16xf32> to vector<1x16x16xf32>
    %136 = vector.broadcast %135 : vector<1x16x16xf32> to vector<2x16x16xf32>
    %137 = arith.addf %134, %136 : vector<2x16x16xf32>
    %cst_65 = arith.constant dense<0xFF800000> : vector<2x16xf32>
    %138 = vector.multi_reduction <maximumf>, %137, %cst_65 [2] : vector<2x16x16xf32> to vector<2x16xf32>
    %139 = vector.shape_cast %138 : vector<2x16xf32> to vector<2x16x1xf32>
    %140 = vector.broadcast %139 : vector<2x16x1xf32> to vector<2x16x16xf32>
    %141 = arith.subf %137, %140 : vector<2x16x16xf32>
    %142 = math.exp %141 : vector<2x16x16xf32>
    %cst_66 = arith.constant dense<0.000000e+00> : vector<2x16xf32>
    %143 = vector.multi_reduction <add>, %142, %cst_66 [2] : vector<2x16x16xf32> to vector<2x16xf32>
    %144 = vector.shape_cast %143 : vector<2x16xf32> to vector<2x16x1xf32>
    %145 = tpu.reciprocal %144 {approx = true} : vector<2x16x1xf32> -> vector<2x16x1xf32>
    %146 = vector.broadcast %145 : vector<2x16x1xf32> to vector<2x16x16xf32>
    %147 = arith.mulf %142, %146 : vector<2x16x16xf32>
    %148 = arith.truncf %147 : vector<2x16x16xf32> to vector<2x16x16xbf16>
    %149 = arith.truncf %131 : vector<2x16x128xf32> to vector<2x16x128xbf16>
    "tpu.trace_start"() <{level = 10 : i32, message = "bqk,bkd->bqd"}> : () -> ()
    %cst_67 = arith.constant dense<0.000000e+00> : vector<2x16x128xf32>
    %150 = tpu.matmul %148, %149, %cst_67 {dimension_numbers = #tpu.dot_dimension_numbers<[2], [1], [1], [2], [0, 0, 0, 1, 1, 2], [0], [0]>} : vector<2x16x16xbf16>, vector<2x16x128xbf16>, vector<2x16x128xf32> -> vector<2x16x128xf32>
    "tpu.trace_stop"() : () -> ()
    %151 = vector.shape_cast %150 : vector<2x16x128xf32> to vector<32x128xf32>
    %c1_68 = arith.constant 1 : index
    %c0_69 = arith.constant 0 : index
    %c0_70 = arith.constant 0 : index
    %152 = vector.load %arg4[%c1_68, %c0_69, %c0_70] : memref<4x128x128xbf16, #tpu.memory_space<vmem>>, vector<1x128x128xbf16>
    %153 = vector.shape_cast %152 : vector<1x128x128xbf16> to vector<128x128xbf16>
    %154 = arith.truncf %151 : vector<32x128xf32> to vector<32x128xbf16>
    %cst_71 = arith.constant dense<0.000000e+00> : vector<32x128xf32>
    %155 = tpu.matmul %154, %153, %cst_71 {dimension_numbers = #tpu.dot_dimension_numbers<[1], [0], [0], [1], [0, 0, 1, 1], [], []>} : vector<32x128xbf16>, vector<128x128xbf16>, vector<32x128xf32> -> vector<32x128xf32>
    %c1_72 = arith.constant 1 : index
    %c0_73 = arith.constant 0 : index
    %c0_74 = arith.constant 0 : index
    %156 = vector.load %arg5[%c1_72, %c0_73, %c0_74] : memref<4x1x128xf32, #tpu.memory_space<vmem>>, vector<1x1x128xf32>
    %157 = vector.shape_cast %156 : vector<1x1x128xf32> to vector<1x128xf32>
    %158 = vector.broadcast %157 : vector<1x128xf32> to vector<32x128xf32>
    %159 = arith.addf %155, %158 : vector<32x128xf32>
    %160 = arith.addf %119, %159 : vector<32x128xf32>
    %c1_75 = arith.constant 1 : index
    %c0_76 = arith.constant 0 : index
    %c0_77 = arith.constant 0 : index
    %161 = vector.load %arg6[%c1_75, %c0_76, %c0_77] : memref<4x1x128xf32, #tpu.memory_space<vmem>>, vector<1x1x128xf32>
    %162 = vector.shape_cast %161 : vector<1x1x128xf32> to vector<1x128xf32>
    %c1_78 = arith.constant 1 : index
    %c0_79 = arith.constant 0 : index
    %c0_80 = arith.constant 0 : index
    %163 = vector.load %arg7[%c1_78, %c0_79, %c0_80] : memref<4x1x128xf32, #tpu.memory_space<vmem>>, vector<1x1x128xf32>
    %164 = vector.shape_cast %163 : vector<1x1x128xf32> to vector<1x128xf32>
    %cst_81 = arith.constant dense<0.000000e+00> : vector<32xf32>
    %165 = vector.multi_reduction <add>, %160, %cst_81 [1] : vector<32x128xf32> to vector<32xf32>
    %166 = vector.shape_cast %165 : vector<32xf32> to vector<32x1xf32>
    %cst_82 = arith.constant 1.280000e+02 : f32
    %167 = vector.broadcast %cst_82 : f32 to vector<32x1xf32>
    %168 = arith.divf %166, %167 : vector<32x1xf32>
    %169 = arith.mulf %160, %160 : vector<32x128xf32>
    %cst_83 = arith.constant dense<0.000000e+00> : vector<32xf32>
    %170 = vector.multi_reduction <add>, %169, %cst_83 [1] : vector<32x128xf32> to vector<32xf32>
    %171 = vector.shape_cast %170 : vector<32xf32> to vector<32x1xf32>
    %cst_84 = arith.constant 1.280000e+02 : f32
    %172 = vector.broadcast %cst_84 : f32 to vector<32x1xf32>
    %173 = arith.divf %171, %172 : vector<32x1xf32>
    %174 = arith.mulf %168, %168 : vector<32x1xf32>
    %175 = arith.subf %173, %174 : vector<32x1xf32>
    %176 = vector.broadcast %168 : vector<32x1xf32> to vector<32x128xf32>
    %177 = arith.subf %160, %176 : vector<32x128xf32>
    %cst_85 = arith.constant 9.99999974E-6 : f32
    %178 = vector.broadcast %cst_85 : f32 to vector<32x1xf32>
    %179 = arith.addf %175, %178 : vector<32x1xf32>
    %180 = math.rsqrt %179 : vector<32x1xf32>
    %181 = vector.broadcast %180 : vector<32x1xf32> to vector<32x128xf32>
    %182 = arith.mulf %177, %181 : vector<32x128xf32>
    %183 = vector.broadcast %162 : vector<1x128xf32> to vector<32x128xf32>
    %184 = arith.mulf %182, %183 : vector<32x128xf32>
    %185 = vector.broadcast %164 : vector<1x128xf32> to vector<32x128xf32>
    %186 = arith.addf %184, %185 : vector<32x128xf32>
    %c1_86 = arith.constant 1 : index
    %c0_87 = arith.constant 0 : index
    %c0_88 = arith.constant 0 : index
    %187 = vector.load %arg8[%c1_86, %c0_87, %c0_88] : memref<4x128x512xbf16, #tpu.memory_space<vmem>>, vector<1x128x512xbf16>
    %188 = vector.shape_cast %187 : vector<1x128x512xbf16> to vector<128x512xbf16>
    %189 = arith.truncf %186 : vector<32x128xf32> to vector<32x128xbf16>
    %cst_89 = arith.constant dense<0.000000e+00> : vector<32x512xf32>
    %190 = tpu.matmul %189, %188, %cst_89 {dimension_numbers = #tpu.dot_dimension_numbers<[1], [0], [0], [1], [0, 0, 1, 1], [], []>} : vector<32x128xbf16>, vector<128x512xbf16>, vector<32x512xf32> -> vector<32x512xf32>
    %c1_90 = arith.constant 1 : index
    %c0_91 = arith.constant 0 : index
    %c0_92 = arith.constant 0 : index
    %191 = vector.load %arg9[%c1_90, %c0_91, %c0_92] : memref<4x1x512xf32, #tpu.memory_space<vmem>>, vector<1x1x512xf32>
    %192 = vector.shape_cast %191 : vector<1x1x512xf32> to vector<1x512xf32>
    %193 = vector.broadcast %192 : vector<1x512xf32> to vector<32x512xf32>
    %194 = arith.addf %190, %193 : vector<32x512xf32>
    %cst_93 = arith.constant 0.000000e+00 : f32
    %195 = vector.broadcast %cst_93 : f32 to vector<32x512xf32>
    %196 = arith.maximumf %194, %195 : vector<32x512xf32>
    %c1_94 = arith.constant 1 : index
    %c0_95 = arith.constant 0 : index
    %c0_96 = arith.constant 0 : index
    %197 = vector.load %arg10[%c1_94, %c0_95, %c0_96] : memref<4x512x128xbf16, #tpu.memory_space<vmem>>, vector<1x512x128xbf16>
    %198 = vector.shape_cast %197 : vector<1x512x128xbf16> to vector<512x128xbf16>
    %199 = arith.truncf %196 : vector<32x512xf32> to vector<32x512xbf16>
    %cst_97 = arith.constant dense<0.000000e+00> : vector<32x128xf32>
    %200 = tpu.matmul %199, %198, %cst_97 {dimension_numbers = #tpu.dot_dimension_numbers<[1], [0], [0], [1], [0, 0, 1, 1], [], []>} : vector<32x512xbf16>, vector<512x128xbf16>, vector<32x128xf32> -> vector<32x128xf32>
    %c1_98 = arith.constant 1 : index
    %c0_99 = arith.constant 0 : index
    %c0_100 = arith.constant 0 : index
    %201 = vector.load %arg11[%c1_98, %c0_99, %c0_100] : memref<4x1x128xf32, #tpu.memory_space<vmem>>, vector<1x1x128xf32>
    %202 = vector.shape_cast %201 : vector<1x1x128xf32> to vector<1x128xf32>
    %203 = vector.broadcast %202 : vector<1x128xf32> to vector<32x128xf32>
    %204 = arith.addf %200, %203 : vector<32x128xf32>
    %205 = arith.addf %186, %204 : vector<32x128xf32>
    %c1_101 = arith.constant 1 : index
    %c0_102 = arith.constant 0 : index
    %c0_103 = arith.constant 0 : index
    %206 = vector.load %arg12[%c1_101, %c0_102, %c0_103] : memref<4x1x128xf32, #tpu.memory_space<vmem>>, vector<1x1x128xf32>
    %207 = vector.shape_cast %206 : vector<1x1x128xf32> to vector<1x128xf32>
    %c1_104 = arith.constant 1 : index
    %c0_105 = arith.constant 0 : index
    %c0_106 = arith.constant 0 : index
    %208 = vector.load %arg13[%c1_104, %c0_105, %c0_106] : memref<4x1x128xf32, #tpu.memory_space<vmem>>, vector<1x1x128xf32>
    %209 = vector.shape_cast %208 : vector<1x1x128xf32> to vector<1x128xf32>
    %cst_107 = arith.constant dense<0.000000e+00> : vector<32xf32>
    %210 = vector.multi_reduction <add>, %205, %cst_107 [1] : vector<32x128xf32> to vector<32xf32>
    %211 = vector.shape_cast %210 : vector<32xf32> to vector<32x1xf32>
    %cst_108 = arith.constant 1.280000e+02 : f32
    %212 = vector.broadcast %cst_108 : f32 to vector<32x1xf32>
    %213 = arith.divf %211, %212 : vector<32x1xf32>
    %214 = arith.mulf %205, %205 : vector<32x128xf32>
    %cst_109 = arith.constant dense<0.000000e+00> : vector<32xf32>
    %215 = vector.multi_reduction <add>, %214, %cst_109 [1] : vector<32x128xf32> to vector<32xf32>
    %216 = vector.shape_cast %215 : vector<32xf32> to vector<32x1xf32>
    %cst_110 = arith.constant 1.280000e+02 : f32
    %217 = vector.broadcast %cst_110 : f32 to vector<32x1xf32>
    %218 = arith.divf %216, %217 : vector<32x1xf32>
    %219 = arith.mulf %213, %213 : vector<32x1xf32>
    %220 = arith.subf %218, %219 : vector<32x1xf32>
    %221 = vector.broadcast %213 : vector<32x1xf32> to vector<32x128xf32>
    %222 = arith.subf %205, %221 : vector<32x128xf32>
    %cst_111 = arith.constant 9.99999974E-6 : f32
    %223 = vector.broadcast %cst_111 : f32 to vector<32x1xf32>
    %224 = arith.addf %220, %223 : vector<32x1xf32>
    %225 = math.rsqrt %224 : vector<32x1xf32>
    %226 = vector.broadcast %225 : vector<32x1xf32> to vector<32x128xf32>
    %227 = arith.mulf %222, %226 : vector<32x128xf32>
    %228 = vector.broadcast %207 : vector<1x128xf32> to vector<32x128xf32>
    %229 = arith.mulf %227, %228 : vector<32x128xf32>
    %230 = vector.broadcast %209 : vector<1x128xf32> to vector<32x128xf32>
    %231 = arith.addf %229, %230 : vector<32x128xf32>
    %c2 = arith.constant 2 : index
    %c0_112 = arith.constant 0 : index
    %c0_113 = arith.constant 0 : index
    %232 = vector.load %arg2[%c2, %c0_112, %c0_113] : memref<4x128x384xbf16, #tpu.memory_space<vmem>>, vector<1x128x384xbf16>
    %233 = vector.shape_cast %232 : vector<1x128x384xbf16> to vector<128x384xbf16>
    %234 = arith.truncf %231 : vector<32x128xf32> to vector<32x128xbf16>
    %cst_114 = arith.constant dense<0.000000e+00> : vector<32x384xf32>
    %235 = tpu.matmul %234, %233, %cst_114 {dimension_numbers = #tpu.dot_dimension_numbers<[1], [0], [0], [1], [0, 0, 1, 1], [], []>} : vector<32x128xbf16>, vector<128x384xbf16>, vector<32x384xf32> -> vector<32x384xf32>
    %c2_115 = arith.constant 2 : index
    %c0_116 = arith.constant 0 : index
    %c0_117 = arith.constant 0 : index
    %236 = vector.load %arg3[%c2_115, %c0_116, %c0_117] : memref<4x1x384xf32, #tpu.memory_space<vmem>>, vector<1x1x384xf32>
    %237 = vector.shape_cast %236 : vector<1x1x384xf32> to vector<1x384xf32>
    %238 = vector.broadcast %237 : vector<1x384xf32> to vector<32x384xf32>
    %239 = arith.addf %235, %238 : vector<32x384xf32>
    %240 = vector.shape_cast %239 : vector<32x384xf32> to vector<2x16x384xf32>
    %241 = vector.extract_strided_slice %240 {offsets = [0, 0, 0], sizes = [2, 16, 128], strides = [1, 1, 1]} : vector<2x16x384xf32> to vector<2x16x128xf32>
    %242 = vector.extract_strided_slice %240 {offsets = [0, 0, 128], sizes = [2, 16, 128], strides = [1, 1, 1]} : vector<2x16x384xf32> to vector<2x16x128xf32>
    %243 = vector.extract_strided_slice %240 {offsets = [0, 0, 256], sizes = [2, 16, 128], strides = [1, 1, 1]} : vector<2x16x384xf32> to vector<2x16x128xf32>
    %244 = arith.truncf %241 : vector<2x16x128xf32> to vector<2x16x128xbf16>
    %245 = arith.truncf %242 : vector<2x16x128xf32> to vector<2x16x128xbf16>
    "tpu.trace_start"() <{level = 10 : i32, message = "bqd,bkd->bqk"}> : () -> ()
    %cst_118 = arith.constant dense<0.000000e+00> : vector<2x16x16xf32>
    %246 = tpu.matmul %244, %245, %cst_118 {dimension_numbers = #tpu.dot_dimension_numbers<[2], [2], [1], [1], [0, 0, 0, 1, 1, 1], [0], [0]>} : vector<2x16x128xbf16>, vector<2x16x128xbf16>, vector<2x16x16xf32> -> vector<2x16x16xf32>
    "tpu.trace_stop"() : () -> ()
    %247 = vector.shape_cast %7 : vector<16x16xf32> to vector<1x16x16xf32>
    %248 = vector.broadcast %247 : vector<1x16x16xf32> to vector<2x16x16xf32>
    %249 = arith.addf %246, %248 : vector<2x16x16xf32>
    %cst_119 = arith.constant dense<0xFF800000> : vector<2x16xf32>
    %250 = vector.multi_reduction <maximumf>, %249, %cst_119 [2] : vector<2x16x16xf32> to vector<2x16xf32>
    %251 = vector.shape_cast %250 : vector<2x16xf32> to vector<2x16x1xf32>
    %252 = vector.broadcast %251 : vector<2x16x1xf32> to vector<2x16x16xf32>
    %253 = arith.subf %249, %252 : vector<2x16x16xf32>
    %254 = math.exp %253 : vector<2x16x16xf32>
    %cst_120 = arith.constant dense<0.000000e+00> : vector<2x16xf32>
    %255 = vector.multi_reduction <add>, %254, %cst_120 [2] : vector<2x16x16xf32> to vector<2x16xf32>
    %256 = vector.shape_cast %255 : vector<2x16xf32> to vector<2x16x1xf32>
    %257 = tpu.reciprocal %256 {approx = true} : vector<2x16x1xf32> -> vector<2x16x1xf32>
    %258 = vector.broadcast %257 : vector<2x16x1xf32> to vector<2x16x16xf32>
    %259 = arith.mulf %254, %258 : vector<2x16x16xf32>
    %260 = arith.truncf %259 : vector<2x16x16xf32> to vector<2x16x16xbf16>
    %261 = arith.truncf %243 : vector<2x16x128xf32> to vector<2x16x128xbf16>
    "tpu.trace_start"() <{level = 10 : i32, message = "bqk,bkd->bqd"}> : () -> ()
    %cst_121 = arith.constant dense<0.000000e+00> : vector<2x16x128xf32>
    %262 = tpu.matmul %260, %261, %cst_121 {dimension_numbers = #tpu.dot_dimension_numbers<[2], [1], [1], [2], [0, 0, 0, 1, 1, 2], [0], [0]>} : vector<2x16x16xbf16>, vector<2x16x128xbf16>, vector<2x16x128xf32> -> vector<2x16x128xf32>
    "tpu.trace_stop"() : () -> ()
    %263 = vector.shape_cast %262 : vector<2x16x128xf32> to vector<32x128xf32>
    %c2_122 = arith.constant 2 : index
    %c0_123 = arith.constant 0 : index
    %c0_124 = arith.constant 0 : index
    %264 = vector.load %arg4[%c2_122, %c0_123, %c0_124] : memref<4x128x128xbf16, #tpu.memory_space<vmem>>, vector<1x128x128xbf16>
    %265 = vector.shape_cast %264 : vector<1x128x128xbf16> to vector<128x128xbf16>
    %266 = arith.truncf %263 : vector<32x128xf32> to vector<32x128xbf16>
    %cst_125 = arith.constant dense<0.000000e+00> : vector<32x128xf32>
    %267 = tpu.matmul %266, %265, %cst_125 {dimension_numbers = #tpu.dot_dimension_numbers<[1], [0], [0], [1], [0, 0, 1, 1], [], []>} : vector<32x128xbf16>, vector<128x128xbf16>, vector<32x128xf32> -> vector<32x128xf32>
    %c2_126 = arith.constant 2 : index
    %c0_127 = arith.constant 0 : index
    %c0_128 = arith.constant 0 : index
    %268 = vector.load %arg5[%c2_126, %c0_127, %c0_128] : memref<4x1x128xf32, #tpu.memory_space<vmem>>, vector<1x1x128xf32>
    %269 = vector.shape_cast %268 : vector<1x1x128xf32> to vector<1x128xf32>
    %270 = vector.broadcast %269 : vector<1x128xf32> to vector<32x128xf32>
    %271 = arith.addf %267, %270 : vector<32x128xf32>
    %272 = arith.addf %231, %271 : vector<32x128xf32>
    %c2_129 = arith.constant 2 : index
    %c0_130 = arith.constant 0 : index
    %c0_131 = arith.constant 0 : index
    %273 = vector.load %arg6[%c2_129, %c0_130, %c0_131] : memref<4x1x128xf32, #tpu.memory_space<vmem>>, vector<1x1x128xf32>
    %274 = vector.shape_cast %273 : vector<1x1x128xf32> to vector<1x128xf32>
    %c2_132 = arith.constant 2 : index
    %c0_133 = arith.constant 0 : index
    %c0_134 = arith.constant 0 : index
    %275 = vector.load %arg7[%c2_132, %c0_133, %c0_134] : memref<4x1x128xf32, #tpu.memory_space<vmem>>, vector<1x1x128xf32>
    %276 = vector.shape_cast %275 : vector<1x1x128xf32> to vector<1x128xf32>
    %cst_135 = arith.constant dense<0.000000e+00> : vector<32xf32>
    %277 = vector.multi_reduction <add>, %272, %cst_135 [1] : vector<32x128xf32> to vector<32xf32>
    %278 = vector.shape_cast %277 : vector<32xf32> to vector<32x1xf32>
    %cst_136 = arith.constant 1.280000e+02 : f32
    %279 = vector.broadcast %cst_136 : f32 to vector<32x1xf32>
    %280 = arith.divf %278, %279 : vector<32x1xf32>
    %281 = arith.mulf %272, %272 : vector<32x128xf32>
    %cst_137 = arith.constant dense<0.000000e+00> : vector<32xf32>
    %282 = vector.multi_reduction <add>, %281, %cst_137 [1] : vector<32x128xf32> to vector<32xf32>
    %283 = vector.shape_cast %282 : vector<32xf32> to vector<32x1xf32>
    %cst_138 = arith.constant 1.280000e+02 : f32
    %284 = vector.broadcast %cst_138 : f32 to vector<32x1xf32>
    %285 = arith.divf %283, %284 : vector<32x1xf32>
    %286 = arith.mulf %280, %280 : vector<32x1xf32>
    %287 = arith.subf %285, %286 : vector<32x1xf32>
    %288 = vector.broadcast %280 : vector<32x1xf32> to vector<32x128xf32>
    %289 = arith.subf %272, %288 : vector<32x128xf32>
    %cst_139 = arith.constant 9.99999974E-6 : f32
    %290 = vector.broadcast %cst_139 : f32 to vector<32x1xf32>
    %291 = arith.addf %287, %290 : vector<32x1xf32>
    %292 = math.rsqrt %291 : vector<32x1xf32>
    %293 = vector.broadcast %292 : vector<32x1xf32> to vector<32x128xf32>
    %294 = arith.mulf %289, %293 : vector<32x128xf32>
    %295 = vector.broadcast %274 : vector<1x128xf32> to vector<32x128xf32>
    %296 = arith.mulf %294, %295 : vector<32x128xf32>
    %297 = vector.broadcast %276 : vector<1x128xf32> to vector<32x128xf32>
    %298 = arith.addf %296, %297 : vector<32x128xf32>
    %c2_140 = arith.constant 2 : index
    %c0_141 = arith.constant 0 : index
    %c0_142 = arith.constant 0 : index
    %299 = vector.load %arg8[%c2_140, %c0_141, %c0_142] : memref<4x128x512xbf16, #tpu.memory_space<vmem>>, vector<1x128x512xbf16>
    %300 = vector.shape_cast %299 : vector<1x128x512xbf16> to vector<128x512xbf16>
    %301 = arith.truncf %298 : vector<32x128xf32> to vector<32x128xbf16>
    %cst_143 = arith.constant dense<0.000000e+00> : vector<32x512xf32>
    %302 = tpu.matmul %301, %300, %cst_143 {dimension_numbers = #tpu.dot_dimension_numbers<[1], [0], [0], [1], [0, 0, 1, 1], [], []>} : vector<32x128xbf16>, vector<128x512xbf16>, vector<32x512xf32> -> vector<32x512xf32>
    %c2_144 = arith.constant 2 : index
    %c0_145 = arith.constant 0 : index
    %c0_146 = arith.constant 0 : index
    %303 = vector.load %arg9[%c2_144, %c0_145, %c0_146] : memref<4x1x512xf32, #tpu.memory_space<vmem>>, vector<1x1x512xf32>
    %304 = vector.shape_cast %303 : vector<1x1x512xf32> to vector<1x512xf32>
    %305 = vector.broadcast %304 : vector<1x512xf32> to vector<32x512xf32>
    %306 = arith.addf %302, %305 : vector<32x512xf32>
    %cst_147 = arith.constant 0.000000e+00 : f32
    %307 = vector.broadcast %cst_147 : f32 to vector<32x512xf32>
    %308 = arith.maximumf %306, %307 : vector<32x512xf32>
    %c2_148 = arith.constant 2 : index
    %c0_149 = arith.constant 0 : index
    %c0_150 = arith.constant 0 : index
    %309 = vector.load %arg10[%c2_148, %c0_149, %c0_150] : memref<4x512x128xbf16, #tpu.memory_space<vmem>>, vector<1x512x128xbf16>
    %310 = vector.shape_cast %309 : vector<1x512x128xbf16> to vector<512x128xbf16>
    %311 = arith.truncf %308 : vector<32x512xf32> to vector<32x512xbf16>
    %cst_151 = arith.constant dense<0.000000e+00> : vector<32x128xf32>
    %312 = tpu.matmul %311, %310, %cst_151 {dimension_numbers = #tpu.dot_dimension_numbers<[1], [0], [0], [1], [0, 0, 1, 1], [], []>} : vector<32x512xbf16>, vector<512x128xbf16>, vector<32x128xf32> -> vector<32x128xf32>
    %c2_152 = arith.constant 2 : index
    %c0_153 = arith.constant 0 : index
    %c0_154 = arith.constant 0 : index
    %313 = vector.load %arg11[%c2_152, %c0_153, %c0_154] : memref<4x1x128xf32, #tpu.memory_space<vmem>>, vector<1x1x128xf32>
    %314 = vector.shape_cast %313 : vector<1x1x128xf32> to vector<1x128xf32>
    %315 = vector.broadcast %314 : vector<1x128xf32> to vector<32x128xf32>
    %316 = arith.addf %312, %315 : vector<32x128xf32>
    %317 = arith.addf %298, %316 : vector<32x128xf32>
    %c2_155 = arith.constant 2 : index
    %c0_156 = arith.constant 0 : index
    %c0_157 = arith.constant 0 : index
    %318 = vector.load %arg12[%c2_155, %c0_156, %c0_157] : memref<4x1x128xf32, #tpu.memory_space<vmem>>, vector<1x1x128xf32>
    %319 = vector.shape_cast %318 : vector<1x1x128xf32> to vector<1x128xf32>
    %c2_158 = arith.constant 2 : index
    %c0_159 = arith.constant 0 : index
    %c0_160 = arith.constant 0 : index
    %320 = vector.load %arg13[%c2_158, %c0_159, %c0_160] : memref<4x1x128xf32, #tpu.memory_space<vmem>>, vector<1x1x128xf32>
    %321 = vector.shape_cast %320 : vector<1x1x128xf32> to vector<1x128xf32>
    %cst_161 = arith.constant dense<0.000000e+00> : vector<32xf32>
    %322 = vector.multi_reduction <add>, %317, %cst_161 [1] : vector<32x128xf32> to vector<32xf32>
    %323 = vector.shape_cast %322 : vector<32xf32> to vector<32x1xf32>
    %cst_162 = arith.constant 1.280000e+02 : f32
    %324 = vector.broadcast %cst_162 : f32 to vector<32x1xf32>
    %325 = arith.divf %323, %324 : vector<32x1xf32>
    %326 = arith.mulf %317, %317 : vector<32x128xf32>
    %cst_163 = arith.constant dense<0.000000e+00> : vector<32xf32>
    %327 = vector.multi_reduction <add>, %326, %cst_163 [1] : vector<32x128xf32> to vector<32xf32>
    %328 = vector.shape_cast %327 : vector<32xf32> to vector<32x1xf32>
    %cst_164 = arith.constant 1.280000e+02 : f32
    %329 = vector.broadcast %cst_164 : f32 to vector<32x1xf32>
    %330 = arith.divf %328, %329 : vector<32x1xf32>
    %331 = arith.mulf %325, %325 : vector<32x1xf32>
    %332 = arith.subf %330, %331 : vector<32x1xf32>
    %333 = vector.broadcast %325 : vector<32x1xf32> to vector<32x128xf32>
    %334 = arith.subf %317, %333 : vector<32x128xf32>
    %cst_165 = arith.constant 9.99999974E-6 : f32
    %335 = vector.broadcast %cst_165 : f32 to vector<32x1xf32>
    %336 = arith.addf %332, %335 : vector<32x1xf32>
    %337 = math.rsqrt %336 : vector<32x1xf32>
    %338 = vector.broadcast %337 : vector<32x1xf32> to vector<32x128xf32>
    %339 = arith.mulf %334, %338 : vector<32x128xf32>
    %340 = vector.broadcast %319 : vector<1x128xf32> to vector<32x128xf32>
    %341 = arith.mulf %339, %340 : vector<32x128xf32>
    %342 = vector.broadcast %321 : vector<1x128xf32> to vector<32x128xf32>
    %343 = arith.addf %341, %342 : vector<32x128xf32>
    %c3 = arith.constant 3 : index
    %c0_166 = arith.constant 0 : index
    %c0_167 = arith.constant 0 : index
    %344 = vector.load %arg2[%c3, %c0_166, %c0_167] : memref<4x128x384xbf16, #tpu.memory_space<vmem>>, vector<1x128x384xbf16>
    %345 = vector.shape_cast %344 : vector<1x128x384xbf16> to vector<128x384xbf16>
    %346 = arith.truncf %343 : vector<32x128xf32> to vector<32x128xbf16>
    %cst_168 = arith.constant dense<0.000000e+00> : vector<32x384xf32>
    %347 = tpu.matmul %346, %345, %cst_168 {dimension_numbers = #tpu.dot_dimension_numbers<[1], [0], [0], [1], [0, 0, 1, 1], [], []>} : vector<32x128xbf16>, vector<128x384xbf16>, vector<32x384xf32> -> vector<32x384xf32>
    %c3_169 = arith.constant 3 : index
    %c0_170 = arith.constant 0 : index
    %c0_171 = arith.constant 0 : index
    %348 = vector.load %arg3[%c3_169, %c0_170, %c0_171] : memref<4x1x384xf32, #tpu.memory_space<vmem>>, vector<1x1x384xf32>
    %349 = vector.shape_cast %348 : vector<1x1x384xf32> to vector<1x384xf32>
    %350 = vector.broadcast %349 : vector<1x384xf32> to vector<32x384xf32>
    %351 = arith.addf %347, %350 : vector<32x384xf32>
    %352 = vector.shape_cast %351 : vector<32x384xf32> to vector<2x16x384xf32>
    %353 = vector.extract_strided_slice %352 {offsets = [0, 0, 0], sizes = [2, 16, 128], strides = [1, 1, 1]} : vector<2x16x384xf32> to vector<2x16x128xf32>
    %354 = vector.extract_strided_slice %352 {offsets = [0, 0, 128], sizes = [2, 16, 128], strides = [1, 1, 1]} : vector<2x16x384xf32> to vector<2x16x128xf32>
    %355 = vector.extract_strided_slice %352 {offsets = [0, 0, 256], sizes = [2, 16, 128], strides = [1, 1, 1]} : vector<2x16x384xf32> to vector<2x16x128xf32>
    %356 = arith.truncf %353 : vector<2x16x128xf32> to vector<2x16x128xbf16>
    %357 = arith.truncf %354 : vector<2x16x128xf32> to vector<2x16x128xbf16>
    "tpu.trace_start"() <{level = 10 : i32, message = "bqd,bkd->bqk"}> : () -> ()
    %cst_172 = arith.constant dense<0.000000e+00> : vector<2x16x16xf32>
    %358 = tpu.matmul %356, %357, %cst_172 {dimension_numbers = #tpu.dot_dimension_numbers<[2], [2], [1], [1], [0, 0, 0, 1, 1, 1], [0], [0]>} : vector<2x16x128xbf16>, vector<2x16x128xbf16>, vector<2x16x16xf32> -> vector<2x16x16xf32>
    "tpu.trace_stop"() : () -> ()
    %359 = vector.shape_cast %7 : vector<16x16xf32> to vector<1x16x16xf32>
    %360 = vector.broadcast %359 : vector<1x16x16xf32> to vector<2x16x16xf32>
    %361 = arith.addf %358, %360 : vector<2x16x16xf32>
    %cst_173 = arith.constant dense<0xFF800000> : vector<2x16xf32>
    %362 = vector.multi_reduction <maximumf>, %361, %cst_173 [2] : vector<2x16x16xf32> to vector<2x16xf32>
    %363 = vector.shape_cast %362 : vector<2x16xf32> to vector<2x16x1xf32>
    %364 = vector.broadcast %363 : vector<2x16x1xf32> to vector<2x16x16xf32>
    %365 = arith.subf %361, %364 : vector<2x16x16xf32>
    %366 = math.exp %365 : vector<2x16x16xf32>
    %cst_174 = arith.constant dense<0.000000e+00> : vector<2x16xf32>
    %367 = vector.multi_reduction <add>, %366, %cst_174 [2] : vector<2x16x16xf32> to vector<2x16xf32>
    %368 = vector.shape_cast %367 : vector<2x16xf32> to vector<2x16x1xf32>
    %369 = tpu.reciprocal %368 {approx = true} : vector<2x16x1xf32> -> vector<2x16x1xf32>
    %370 = vector.broadcast %369 : vector<2x16x1xf32> to vector<2x16x16xf32>
    %371 = arith.mulf %366, %370 : vector<2x16x16xf32>
    %372 = arith.truncf %371 : vector<2x16x16xf32> to vector<2x16x16xbf16>
    %373 = arith.truncf %355 : vector<2x16x128xf32> to vector<2x16x128xbf16>
    "tpu.trace_start"() <{level = 10 : i32, message = "bqk,bkd->bqd"}> : () -> ()
    %cst_175 = arith.constant dense<0.000000e+00> : vector<2x16x128xf32>
    %374 = tpu.matmul %372, %373, %cst_175 {dimension_numbers = #tpu.dot_dimension_numbers<[2], [1], [1], [2], [0, 0, 0, 1, 1, 2], [0], [0]>} : vector<2x16x16xbf16>, vector<2x16x128xbf16>, vector<2x16x128xf32> -> vector<2x16x128xf32>
    "tpu.trace_stop"() : () -> ()
    %375 = vector.shape_cast %374 : vector<2x16x128xf32> to vector<32x128xf32>
    %c3_176 = arith.constant 3 : index
    %c0_177 = arith.constant 0 : index
    %c0_178 = arith.constant 0 : index
    %376 = vector.load %arg4[%c3_176, %c0_177, %c0_178] : memref<4x128x128xbf16, #tpu.memory_space<vmem>>, vector<1x128x128xbf16>
    %377 = vector.shape_cast %376 : vector<1x128x128xbf16> to vector<128x128xbf16>
    %378 = arith.truncf %375 : vector<32x128xf32> to vector<32x128xbf16>
    %cst_179 = arith.constant dense<0.000000e+00> : vector<32x128xf32>
    %379 = tpu.matmul %378, %377, %cst_179 {dimension_numbers = #tpu.dot_dimension_numbers<[1], [0], [0], [1], [0, 0, 1, 1], [], []>} : vector<32x128xbf16>, vector<128x128xbf16>, vector<32x128xf32> -> vector<32x128xf32>
    %c3_180 = arith.constant 3 : index
    %c0_181 = arith.constant 0 : index
    %c0_182 = arith.constant 0 : index
    %380 = vector.load %arg5[%c3_180, %c0_181, %c0_182] : memref<4x1x128xf32, #tpu.memory_space<vmem>>, vector<1x1x128xf32>
    %381 = vector.shape_cast %380 : vector<1x1x128xf32> to vector<1x128xf32>
    %382 = vector.broadcast %381 : vector<1x128xf32> to vector<32x128xf32>
    %383 = arith.addf %379, %382 : vector<32x128xf32>
    %384 = arith.addf %343, %383 : vector<32x128xf32>
    %c3_183 = arith.constant 3 : index
    %c0_184 = arith.constant 0 : index
    %c0_185 = arith.constant 0 : index
    %385 = vector.load %arg6[%c3_183, %c0_184, %c0_185] : memref<4x1x128xf32, #tpu.memory_space<vmem>>, vector<1x1x128xf32>
    %386 = vector.shape_cast %385 : vector<1x1x128xf32> to vector<1x128xf32>
    %c3_186 = arith.constant 3 : index
    %c0_187 = arith.constant 0 : index
    %c0_188 = arith.constant 0 : index
    %387 = vector.load %arg7[%c3_186, %c0_187, %c0_188] : memref<4x1x128xf32, #tpu.memory_space<vmem>>, vector<1x1x128xf32>
    %388 = vector.shape_cast %387 : vector<1x1x128xf32> to vector<1x128xf32>
    %cst_189 = arith.constant dense<0.000000e+00> : vector<32xf32>
    %389 = vector.multi_reduction <add>, %384, %cst_189 [1] : vector<32x128xf32> to vector<32xf32>
    %390 = vector.shape_cast %389 : vector<32xf32> to vector<32x1xf32>
    %cst_190 = arith.constant 1.280000e+02 : f32
    %391 = vector.broadcast %cst_190 : f32 to vector<32x1xf32>
    %392 = arith.divf %390, %391 : vector<32x1xf32>
    %393 = arith.mulf %384, %384 : vector<32x128xf32>
    %cst_191 = arith.constant dense<0.000000e+00> : vector<32xf32>
    %394 = vector.multi_reduction <add>, %393, %cst_191 [1] : vector<32x128xf32> to vector<32xf32>
    %395 = vector.shape_cast %394 : vector<32xf32> to vector<32x1xf32>
    %cst_192 = arith.constant 1.280000e+02 : f32
    %396 = vector.broadcast %cst_192 : f32 to vector<32x1xf32>
    %397 = arith.divf %395, %396 : vector<32x1xf32>
    %398 = arith.mulf %392, %392 : vector<32x1xf32>
    %399 = arith.subf %397, %398 : vector<32x1xf32>
    %400 = vector.broadcast %392 : vector<32x1xf32> to vector<32x128xf32>
    %401 = arith.subf %384, %400 : vector<32x128xf32>
    %cst_193 = arith.constant 9.99999974E-6 : f32
    %402 = vector.broadcast %cst_193 : f32 to vector<32x1xf32>
    %403 = arith.addf %399, %402 : vector<32x1xf32>
    %404 = math.rsqrt %403 : vector<32x1xf32>
    %405 = vector.broadcast %404 : vector<32x1xf32> to vector<32x128xf32>
    %406 = arith.mulf %401, %405 : vector<32x128xf32>
    %407 = vector.broadcast %386 : vector<1x128xf32> to vector<32x128xf32>
    %408 = arith.mulf %406, %407 : vector<32x128xf32>
    %409 = vector.broadcast %388 : vector<1x128xf32> to vector<32x128xf32>
    %410 = arith.addf %408, %409 : vector<32x128xf32>
    %c3_194 = arith.constant 3 : index
    %c0_195 = arith.constant 0 : index
    %c0_196 = arith.constant 0 : index
    %411 = vector.load %arg8[%c3_194, %c0_195, %c0_196] : memref<4x128x512xbf16, #tpu.memory_space<vmem>>, vector<1x128x512xbf16>
    %412 = vector.shape_cast %411 : vector<1x128x512xbf16> to vector<128x512xbf16>
    %413 = arith.truncf %410 : vector<32x128xf32> to vector<32x128xbf16>
    %cst_197 = arith.constant dense<0.000000e+00> : vector<32x512xf32>
    %414 = tpu.matmul %413, %412, %cst_197 {dimension_numbers = #tpu.dot_dimension_numbers<[1], [0], [0], [1], [0, 0, 1, 1], [], []>} : vector<32x128xbf16>, vector<128x512xbf16>, vector<32x512xf32> -> vector<32x512xf32>
    %c3_198 = arith.constant 3 : index
    %c0_199 = arith.constant 0 : index
    %c0_200 = arith.constant 0 : index
    %415 = vector.load %arg9[%c3_198, %c0_199, %c0_200] : memref<4x1x512xf32, #tpu.memory_space<vmem>>, vector<1x1x512xf32>
    %416 = vector.shape_cast %415 : vector<1x1x512xf32> to vector<1x512xf32>
    %417 = vector.broadcast %416 : vector<1x512xf32> to vector<32x512xf32>
    %418 = arith.addf %414, %417 : vector<32x512xf32>
    %cst_201 = arith.constant 0.000000e+00 : f32
    %419 = vector.broadcast %cst_201 : f32 to vector<32x512xf32>
    %420 = arith.maximumf %418, %419 : vector<32x512xf32>
    %c3_202 = arith.constant 3 : index
    %c0_203 = arith.constant 0 : index
    %c0_204 = arith.constant 0 : index
    %421 = vector.load %arg10[%c3_202, %c0_203, %c0_204] : memref<4x512x128xbf16, #tpu.memory_space<vmem>>, vector<1x512x128xbf16>
    %422 = vector.shape_cast %421 : vector<1x512x128xbf16> to vector<512x128xbf16>
    %423 = arith.truncf %420 : vector<32x512xf32> to vector<32x512xbf16>
    %cst_205 = arith.constant dense<0.000000e+00> : vector<32x128xf32>
    %424 = tpu.matmul %423, %422, %cst_205 {dimension_numbers = #tpu.dot_dimension_numbers<[1], [0], [0], [1], [0, 0, 1, 1], [], []>} : vector<32x512xbf16>, vector<512x128xbf16>, vector<32x128xf32> -> vector<32x128xf32>
    %c3_206 = arith.constant 3 : index
    %c0_207 = arith.constant 0 : index
    %c0_208 = arith.constant 0 : index
    %425 = vector.load %arg11[%c3_206, %c0_207, %c0_208] : memref<4x1x128xf32, #tpu.memory_space<vmem>>, vector<1x1x128xf32>
    %426 = vector.shape_cast %425 : vector<1x1x128xf32> to vector<1x128xf32>
    %427 = vector.broadcast %426 : vector<1x128xf32> to vector<32x128xf32>
    %428 = arith.addf %424, %427 : vector<32x128xf32>
    %429 = arith.addf %410, %428 : vector<32x128xf32>
    %c3_209 = arith.constant 3 : index
    %c0_210 = arith.constant 0 : index
    %c0_211 = arith.constant 0 : index
    %430 = vector.load %arg12[%c3_209, %c0_210, %c0_211] : memref<4x1x128xf32, #tpu.memory_space<vmem>>, vector<1x1x128xf32>
    %431 = vector.shape_cast %430 : vector<1x1x128xf32> to vector<1x128xf32>
    %c3_212 = arith.constant 3 : index
    %c0_213 = arith.constant 0 : index
    %c0_214 = arith.constant 0 : index
    %432 = vector.load %arg13[%c3_212, %c0_213, %c0_214] : memref<4x1x128xf32, #tpu.memory_space<vmem>>, vector<1x1x128xf32>
    %433 = vector.shape_cast %432 : vector<1x1x128xf32> to vector<1x128xf32>
    %cst_215 = arith.constant dense<0.000000e+00> : vector<32xf32>
    %434 = vector.multi_reduction <add>, %429, %cst_215 [1] : vector<32x128xf32> to vector<32xf32>
    %435 = vector.shape_cast %434 : vector<32xf32> to vector<32x1xf32>
    %cst_216 = arith.constant 1.280000e+02 : f32
    %436 = vector.broadcast %cst_216 : f32 to vector<32x1xf32>
    %437 = arith.divf %435, %436 : vector<32x1xf32>
    %438 = arith.mulf %429, %429 : vector<32x128xf32>
    %cst_217 = arith.constant dense<0.000000e+00> : vector<32xf32>
    %439 = vector.multi_reduction <add>, %438, %cst_217 [1] : vector<32x128xf32> to vector<32xf32>
    %440 = vector.shape_cast %439 : vector<32xf32> to vector<32x1xf32>
    %cst_218 = arith.constant 1.280000e+02 : f32
    %441 = vector.broadcast %cst_218 : f32 to vector<32x1xf32>
    %442 = arith.divf %440, %441 : vector<32x1xf32>
    %443 = arith.mulf %437, %437 : vector<32x1xf32>
    %444 = arith.subf %442, %443 : vector<32x1xf32>
    %445 = vector.broadcast %437 : vector<32x1xf32> to vector<32x128xf32>
    %446 = arith.subf %429, %445 : vector<32x128xf32>
    %cst_219 = arith.constant 9.99999974E-6 : f32
    %447 = vector.broadcast %cst_219 : f32 to vector<32x1xf32>
    %448 = arith.addf %444, %447 : vector<32x1xf32>
    %449 = math.rsqrt %448 : vector<32x1xf32>
    %450 = vector.broadcast %449 : vector<32x1xf32> to vector<32x128xf32>
    %451 = arith.mulf %446, %450 : vector<32x128xf32>
    %452 = vector.broadcast %431 : vector<1x128xf32> to vector<32x128xf32>
    %453 = arith.mulf %451, %452 : vector<32x128xf32>
    %454 = vector.broadcast %433 : vector<1x128xf32> to vector<32x128xf32>
    %455 = arith.addf %453, %454 : vector<32x128xf32>
    %c0_220 = arith.constant 0 : index
    %c0_221 = arith.constant 0 : index
    %456 = vector.load %arg14[%c0_220, %c0_221] : memref<128x384xbf16, #tpu.memory_space<vmem>>, vector<128x384xbf16>
    %457 = arith.truncf %455 : vector<32x128xf32> to vector<32x128xbf16>
    %cst_222 = arith.constant dense<0.000000e+00> : vector<32x384xf32>
    %458 = tpu.matmul %457, %456, %cst_222 {dimension_numbers = #tpu.dot_dimension_numbers<[1], [0], [0], [1], [0, 0, 1, 1], [], []>} : vector<32x128xbf16>, vector<128x384xbf16>, vector<32x384xf32> -> vector<32x384xf32>
    %c0_223 = arith.constant 0 : index
    %c0_224 = arith.constant 0 : index
    %459 = vector.load %arg15[%c0_223, %c0_224] : memref<1x384xf32, #tpu.memory_space<vmem>>, vector<1x384xf32>
    %460 = vector.broadcast %459 : vector<1x384xf32> to vector<32x384xf32>
    %461 = arith.addf %458, %460 : vector<32x384xf32>
    %462 = vector.shape_cast %461 : vector<32x384xf32> to vector<2x16x384xf32>
    %c0_225 = arith.constant 0 : index
    %c0_226 = arith.constant 0 : index
    %c0_227 = arith.constant 0 : index
    %463 = vector.load %arg16[%c0_225, %c0_226, %c0_227] : memref<2x16x384xf32, #tpu.memory_space<vmem>>, vector<2x16x384xf32>
    tpu.vector_store %arg16[%c0_225, %c0_226, %c0_227], %462 {strides = array<i32>} : memref<2x16x384xf32, #tpu.memory_space<vmem>>, vector<2x16x384xf32>,
    return
  }
  func.func @transform_0(%arg0: i32) -> (i32, i32, i32) {
    %c0_i32 = arith.constant 0 : i32
    %c0_i32_0 = arith.constant 0 : i32
    %c0_i32_1 = arith.constant 0 : i32
    return %arg0, %c0_i32, %c0_i32_0 : i32, i32, i32
  }
  func.func @transform_1(%arg0: i32) -> (i32, i32, i32) {
    %c0_i32 = arith.constant 0 : i32
    %c0_i32_0 = arith.constant 0 : i32
    %c0_i32_1 = arith.constant 0 : i32
    %c0_i32_2 = arith.constant 0 : i32
    return %c0_i32, %c0_i32_0, %c0_i32_1 : i32, i32, i32
  }
  func.func @transform_2(%arg0: i32) -> (i32, i32, i32) {
    %c0_i32 = arith.constant 0 : i32
    %c0_i32_0 = arith.constant 0 : i32
    %c0_i32_1 = arith.constant 0 : i32
    %c0_i32_2 = arith.constant 0 : i32
    return %c0_i32, %c0_i32_0, %c0_i32_1 : i32, i32, i32
  }
  func.func @transform_3(%arg0: i32) -> (i32, i32, i32) {
    %c0_i32 = arith.constant 0 : i32
    %c0_i32_0 = arith.constant 0 : i32
    %c0_i32_1 = arith.constant 0 : i32
    %c0_i32_2 = arith.constant 0 : i32
    return %c0_i32, %c0_i32_0, %c0_i32_1 : i32, i32, i32
  }
  func.func @transform_4(%arg0: i32) -> (i32, i32, i32) {
    %c0_i32 = arith.constant 0 : i32
    %c0_i32_0 = arith.constant 0 : i32
    %c0_i32_1 = arith.constant 0 : i32
    %c0_i32_2 = arith.constant 0 : i32
    return %c0_i32, %c0_i32_0, %c0_i32_1 : i32, i32, i32
  }
  func.func @transform_5(%arg0: i32) -> (i32, i32, i32) {
    %c0_i32 = arith.constant 0 : i32
    %c0_i32_0 = arith.constant 0 : i32
    %c0_i32_1 = arith.constant 0 : i32
    %c0_i32_2 = arith.constant 0 : i32
    return %c0_i32, %c0_i32_0, %c0_i32_1 : i32, i32, i32
  }
  func.func @transform_6(%arg0: i32) -> (i32, i32, i32) {
    %c0_i32 = arith.constant 0 : i32
    %c0_i32_0 = arith.constant 0 : i32
    %c0_i32_1 = arith.constant 0 : i32
    %c0_i32_2 = arith.constant 0 : i32
    return %c0_i32, %c0_i32_0, %c0_i32_1 : i32, i32, i32
  }
  func.func @transform_7(%arg0: i32) -> (i32, i32, i32) {
    %c0_i32 = arith.constant 0 : i32
    %c0_i32_0 = arith.constant 0 : i32
    %c0_i32_1 = arith.constant 0 : i32
    %c0_i32_2 = arith.constant 0 : i32
    return %c0_i32, %c0_i32_0, %c0_i32_1 : i32, i32, i32
  }
  func.func @transform_8(%arg0: i32) -> (i32, i32, i32) {
    %c0_i32 = arith.constant 0 : i32
    %c0_i32_0 = arith.constant 0 : i32
    %c0_i32_1 = arith.constant 0 : i32
    %c0_i32_2 = arith.constant 0 : i32
    return %c0_i32, %c0_i32_0, %c0_i32_1 : i32, i32, i32
  }
  func.func @transform_9(%arg0: i32) -> (i32, i32, i32) {
    %c0_i32 = arith.constant 0 : i32
    %c0_i32_0 = arith.constant 0 : i32
    %c0_i32_1 = arith.constant 0 : i32
    %c0_i32_2 = arith.constant 0 : i32
    return %c0_i32, %c0_i32_0, %c0_i32_1 : i32, i32, i32
  }
  func.func @transform_10(%arg0: i32) -> (i32, i32, i32) {
    %c0_i32 = arith.constant 0 : i32
    %c0_i32_0 = arith.constant 0 : i32
    %c0_i32_1 = arith.constant 0 : i32
    %c0_i32_2 = arith.constant 0 : i32
    return %c0_i32, %c0_i32_0, %c0_i32_1 : i32, i32, i32
  }
  func.func @transform_11(%arg0: i32) -> (i32, i32, i32) {
    %c0_i32 = arith.constant 0 : i32
    %c0_i32_0 = arith.constant 0 : i32
    %c0_i32_1 = arith.constant 0 : i32
    %c0_i32_2 = arith.constant 0 : i32
    return %c0_i32, %c0_i32_0, %c0_i32_1 : i32, i32, i32
  }
  func.func @transform_12(%arg0: i32) -> (i32, i32, i32) {
    %c0_i32 = arith.constant 0 : i32
    %c0_i32_0 = arith.constant 0 : i32
    %c0_i32_1 = arith.constant 0 : i32
    %c0_i32_2 = arith.constant 0 : i32
    return %c0_i32, %c0_i32_0, %c0_i32_1 : i32, i32, i32
  }
  func.func @transform_13(%arg0: i32) -> (i32, i32) {
    %c0_i32 = arith.constant 0 : i32
    %c0_i32_0 = arith.constant 0 : i32
    %c0_i32_1 = arith.constant 0 : i32
    return %c0_i32, %c0_i32_0 : i32, i32
  }
  func.func @transform_14(%arg0: i32) -> (i32, i32) {
    %c0_i32 = arith.constant 0 : i32
    %c0_i32_0 = arith.constant 0 : i32
    %c0_i32_1 = arith.constant 0 : i32
    return %c0_i32, %c0_i32_0 : i32, i32
  }
  func.func @transform_15(%arg0: i32) -> (i32, i32, i32) {
    %c0_i32 = arith.constant 0 : i32
    %c0_i32_0 = arith.constant 0 : i32
    %c0_i32_1 = arith.constant 0 : i32
    return %arg0, %c0_i32, %c0_i32_0 : i32, i32, i32
  }
}

</mosaic_0001>

<llo_original>
// kernel: simple_transformer_forward.1
$region0: #{simple_transformer_forward.1}
  #allocation0 [shape = 'u32[]', space=smem, size = 0x4, offset = 0x4, fixed_abs, tag = 'smem constant byte address 0x4 - core index']
  #allocation1 [shape = 'u32[144,128]{1,0:T(1,128)}', space=vmem, size = 0x12000, scoped, tag = 'internal scratch']
  %s0 = inlined_call_operand.vmem [shape: f32[2,16,128], index: 0, kind: input, shape index: {}]
  %s1 = inlined_call_operand.hbm [shape: bf16[4,128,384], index: 1, kind: input, shape index: {}]
  %s2 = inlined_call_operand.hbm [shape: f32[4,1,384], index: 2, kind: input, shape index: {}]
  %s3 = inlined_call_operand.hbm [shape: bf16[4,128,128], index: 3, kind: input, shape index: {}]
  %s4 = inlined_call_operand.hbm [shape: f32[4,1,128], index: 4, kind: input, shape index: {}]
  %s5 = inlined_call_operand.hbm [shape: f32[4,1,128], index: 5, kind: input, shape index: {}]
  %s6 = inlined_call_operand.hbm [shape: f32[4,1,128], index: 6, kind: input, shape index: {}]
  %s7 = inlined_call_operand.hbm [shape: bf16[4,128,512], index: 7, kind: input, shape index: {}]
  %s8 = inlined_call_operand.hbm [shape: f32[4,1,512], index: 8, kind: input, shape index: {}]
  %s9 = inlined_call_operand.hbm [shape: bf16[4,512,128], index: 9, kind: input, shape index: {}]
  %s10 = inlined_call_operand.hbm [shape: f32[4,1,128], index: 10, kind: input, shape index: {}]
  %s11 = inlined_call_operand.hbm [shape: f32[4,1,128], index: 11, kind: input, shape index: {}]
  %s12 = inlined_call_operand.hbm [shape: f32[4,1,128], index: 12, kind: input, shape index: {}]
  %s13 = inlined_call_operand.hbm [shape: bf16[128,384], index: 13, kind: input, shape index: {}]
  %s14 = inlined_call_operand.hbm [shape: f32[1,384], index: 14, kind: input, shape index: {}]
  %s15 = inlined_call_operand.hbm [shape: f32[2,16,384], index: 15, kind: output, shape index: {}]
  %s16 = sld [smem:[#allocation0]]
  $region126: #{simple_transformer_forward.1} parent=0
    _
  %s18 = ssub.s32 1, %s16
  %s19 = scalar_select 0, %s18, %s16
  $region1: #{simple_transformer_forward.1} parent=0
    #allocation2 [shape = 'u8[393216]{0}', space=vmem, size = 0x60000, scoped, tag = 'input window, operand 1, single buffered']
    #allocation3 [shape = 's32[1]{0}', space=sflag, size = 0x4, scoped, tag = 'scoped memory for simple_transformer_forward.1']
    #allocation4 [shape = 's32[1]{0}', space=sflag, size = 0x4, scoped, tag = 'scoped memory for simple_transformer_forward.1']
    #allocation5 [shape = 'u8[6144]{0}', space=vmem, size = 0x1800, scoped, tag = 'input window, operand 2, single buffered']
    #allocation6 [shape = 's32[1]{0}', space=sflag, size = 0x4, scoped, tag = 'scoped memory for simple_transformer_forward.1']
    #allocation7 [shape = 'u8[131072]{0}', space=vmem, size = 0x20000, scoped, tag = 'input window, operand 3, single buffered']
    #allocation8 [shape = 'u8[2048]{0}', space=vmem, size = 0x800, scoped, tag = 'input window, operand 4, single buffered']
    #allocation9 [shape = 's32[1]{0}', space=sflag, size = 0x4, scoped, tag = 'scoped memory for simple_transformer_forward.1']
    #allocation10 [shape = 'u8[2048]{0}', space=vmem, size = 0x800, scoped, tag = 'input window, operand 5, single buffered']
    #allocation11 [shape = 'u8[2048]{0}', space=vmem, size = 0x800, scoped, tag = 'input window, operand 6, single buffered']
    #allocation12 [shape = 's32[1]{0}', space=sflag, size = 0x4, scoped, tag = 'scoped memory for simple_transformer_forward.1']
    #allocation13 [shape = 'u8[524288]{0}', space=vmem, size = 0x80000, scoped, tag = 'input window, operand 7, single buffered']
    #allocation14 [shape = 'u8[8192]{0}', space=vmem, size = 0x2000, scoped, tag = 'input window, operand 8, single buffered']
    #allocation15 [shape = 's32[1]{0}', space=sflag, size = 0x4, scoped, tag = 'scoped memory for simple_transformer_forward.1']
    #allocation16 [shape = 'u8[524288]{0}', space=vmem, size = 0x80000, scoped, tag = 'input window, operand 9, single buffered']
    #allocation17 [shape = 'u8[2048]{0}', space=vmem, size = 0x800, scoped, tag = 'input window, operand 10, single buffered']
    #allocation18 [shape = 's32[1]{0}', space=sflag, size = 0x4, scoped, tag = 'scoped memory for simple_transformer_forward.1']
    #allocation19 [shape = 'u8[2048]{0}', space=vmem, size = 0x800, scoped, tag = 'input window, operand 11, single buffered']
    #allocation20 [shape = 'u8[2048]{0}', space=vmem, size = 0x800, scoped, tag = 'input window, operand 12, single buffered']
    #allocation21 [shape = 's32[1]{0}', space=sflag, size = 0x4, scoped, tag = 'scoped memory for simple_transformer_forward.1']
    #allocation22 [shape = 'u8[98304]{0}', space=vmem, size = 0x18000, scoped, tag = 'input window, operand 13, single buffered']
    #allocation23 [shape = 'u8[1536]{0}', space=vmem, size = 0x800, scoped, tag = 'input window, operand 14, single buffered']
    #allocation24 [shape = 's32[1]{0}', space=sflag, size = 0x4, scoped, tag = 'scoped memory for simple_transformer_forward.1']
    #allocation25 [shape = 'u8[49152]{0}', space=vmem, size = 0xc000, scoped, tag = 'output window, operand 0, single buffered']
    %20 = vsyncpa [#allocation3], 0
    %21 = vsyncpa [#allocation6], 0
    %22 = vsyncpa [#allocation9], 0
    %23 = vsyncpa [#allocation12], 0
    %24 = vsyncpa [#allocation15], 0
    %25 = vsyncpa [#allocation18], 0
    %26 = vsyncpa [#allocation21], 0
    %27 = vsyncpa [#allocation24], 0
    %28 = vsyncpa [#allocation4], 0
    // Predicated region
    $region2: #{simple_transformer_forward.1} parent=1 // pred_check
      _
    $region3: #{simple_transformer_forward.1} parent=1 // pred_check_branch
      %30 = sbr.rel (0) target = $region5
    $region4: #{simple_transformer_forward.1} parent=1 // pred_region
      _
    $region5: #{simple_transformer_forward.1} parent=1 // pred_fallthru
      _
    // Predicated region
    $region6: #{simple_transformer_forward.1} parent=1 // pred_check
      _
    $region7: #{simple_transformer_forward.1} parent=1 // pred_check_branch
      %32 = sbr.rel (0) target = $region9
    $region8: #{simple_transformer_forward.1} parent=1 // pred_region
      %s34 = ssub.s32 12288, 12288
      %35 = vsyncadd [#allocation3], %s34
      %s36 = sshll.u32 [#allocation2], 4
      %s37 = int_to_ptr.vmem [resolvable:$true] %s36
      %42 = dma.hbm_to_vmem [thread:$0]  %s1, 12288, %s37, [#allocation3], 192, 192, 12
    $region9: #{simple_transformer_forward.1} parent=1 // pred_fallthru
      _
    // Predicated region
    $region10: #{simple_transformer_forward.1} parent=1 // pred_check
      _
    $region11: #{simple_transformer_forward.1} parent=1 // pred_check_branch
      %44 = sbr.rel (0) target = $region13
    $region12: #{simple_transformer_forward.1} parent=1 // pred_region
      %s46 = ssub.s32 192, 192
      %47 = vsyncadd [#allocation6], %s46
      %s48 = sshll.u32 [#allocation5], 4
      %s49 = int_to_ptr.vmem [resolvable:$true] %s48
      %54 = dma.hbm_to_vmem [thread:$0]  %s2, 192, %s49, [#allocation6], 48, 48, 3
    $region13: #{simple_transformer_forward.1} parent=1 // pred_fallthru
      _
    // Predicated region
    $region14: #{simple_transformer_forward.1} parent=1 // pred_check
      _
    $region15: #{simple_transformer_forward.1} parent=1 // pred_check_branch
      %56 = sbr.rel (0) target = $region17
    $region16: #{simple_transformer_forward.1} parent=1 // pred_region
      %s58 = ssub.s32 4096, 4096
      %59 = vsyncadd [#allocation6], %s58
      %s60 = sshll.u32 [#allocation7], 4
      %s61 = int_to_ptr.vmem [resolvable:$true] %s60
      %66 = dma.hbm_to_vmem [thread:$0]  %s3, 4096, %s61, [#allocation6], 64, 64, 4
    $region17: #{simple_transformer_forward.1} parent=1 // pred_fallthru
      _
    // Predicated region
    $region18: #{simple_transformer_forward.1} parent=1 // pred_check
      _
    $region19: #{simple_transformer_forward.1} parent=1 // pred_check_branch
      %68 = sbr.rel (0) target = $region21
    $region20: #{simple_transformer_forward.1} parent=1 // pred_region
      %s70 = ssub.s32 64, 64
      %71 = vsyncadd [#allocation9], %s70
      %s72 = sshll.u32 [#allocation8], 4
      %s73 = int_to_ptr.vmem [resolvable:$true] %s72
      %78 = dma.hbm_to_vmem [thread:$0]  %s4, 64, %s73, [#allocation9], 16, 16, 1
    $region21: #{simple_transformer_forward.1} parent=1 // pred_fallthru
      _
    // Predicated region
    $region22: #{simple_transformer_forward.1} parent=1 // pred_check
      _
    $region23: #{simple_transformer_forward.1} parent=1 // pred_check_branch
      %80 = sbr.rel (0) target = $region25
    $region24: #{simple_transformer_forward.1} parent=1 // pred_region
      %s82 = ssub.s32 64, 64
      %83 = vsyncadd [#allocation9], %s82
      %s84 = sshll.u32 [#allocation10], 4
      %s85 = int_to_ptr.vmem [resolvable:$true] %s84
      %90 = dma.hbm_to_vmem [thread:$0]  %s5, 64, %s85, [#allocation9], 16, 16, 1
    $region25: #{simple_transformer_forward.1} parent=1 // pred_fallthru
      _
    // Predicated region
    $region26: #{simple_transformer_forward.1} parent=1 // pred_check
      _
    $region27: #{simple_transformer_forward.1} parent=1 // pred_check_branch
      %92 = sbr.rel (0) target = $region29
    $region28: #{simple_transformer_forward.1} parent=1 // pred_region
      %s94 = ssub.s32 64, 64
      %95 = vsyncadd [#allocation12], %s94
      %s96 = sshll.u32 [#allocation11], 4
      %s97 = int_to_ptr.vmem [resolvable:$true] %s96
      %102 = dma.hbm_to_vmem [thread:$0]  %s6, 64, %s97, [#allocation12], 16, 16, 1
    $region29: #{simple_transformer_forward.1} parent=1 // pred_fallthru
      _
    // Predicated region
    $region30: #{simple_transformer_forward.1} parent=1 // pred_check
      _
    $region31: #{simple_transformer_forward.1} parent=1 // pred_check_branch
      %104 = sbr.rel (0) target = $region33
    $region32: #{simple_transformer_forward.1} parent=1 // pred_region
      %s106 = ssub.s32 16384, 16384
      %107 = vsyncadd [#allocation12], %s106
      %s108 = sshll.u32 [#allocation13], 4
      %s109 = int_to_ptr.vmem [resolvable:$true] %s108
      %114 = dma.hbm_to_vmem [thread:$0]  %s7, 16384, %s109, [#allocation12], 256, 256, 16
    $region33: #{simple_transformer_forward.1} parent=1 // pred_fallthru
      _
    // Predicated region
    $region34: #{simple_transformer_forward.1} parent=1 // pred_check
      _
    $region35: #{simple_transformer_forward.1} parent=1 // pred_check_branch
      %116 = sbr.rel (0) target = $region37
    $region36: #{simple_transformer_forward.1} parent=1 // pred_region
      %s118 = ssub.s32 256, 256
      %119 = vsyncadd [#allocation15], %s118
      %s120 = sshll.u32 [#allocation14], 4
      %s121 = int_to_ptr.vmem [resolvable:$true] %s120
      %126 = dma.hbm_to_vmem [thread:$0]  %s8, 256, %s121, [#allocation15], 64, 64, 4
    $region37: #{simple_transformer_forward.1} parent=1 // pred_fallthru
      _
    // Predicated region
    $region38: #{simple_transformer_forward.1} parent=1 // pred_check
      _
    $region39: #{simple_transformer_forward.1} parent=1 // pred_check_branch
      %128 = sbr.rel (0) target = $region41
    $region40: #{simple_transformer_forward.1} parent=1 // pred_region
      %s130 = ssub.s32 16384, 16384
      %131 = vsyncadd [#allocation15], %s130
      %s132 = sshll.u32 [#allocation16], 4
      %s133 = int_to_ptr.vmem [resolvable:$true] %s132
      %138 = dma.hbm_to_vmem [thread:$0]  %s9, 16384, %s133, [#allocation15], 64, 64, 4
    $region41: #{simple_transformer_forward.1} parent=1 // pred_fallthru
      _
    // Predicated region
    $region42: #{simple_transformer_forward.1} parent=1 // pred_check
      _
    $region43: #{simple_transformer_forward.1} parent=1 // pred_check_branch
      %140 = sbr.rel (0) target = $region45
    $region44: #{simple_transformer_forward.1} parent=1 // pred_region
      %s142 = ssub.s32 64, 64
      %143 = vsyncadd [#allocation18], %s142
      %s144 = sshll.u32 [#allocation17], 4
      %s145 = int_to_ptr.vmem [resolvable:$true] %s144
      %150 = dma.hbm_to_vmem [thread:$0]  %s10, 64, %s145, [#allocation18], 16, 16, 1
    $region45: #{simple_transformer_forward.1} parent=1 // pred_fallthru
      _
    // Predicated region
    $region46: #{simple_transformer_forward.1} parent=1 // pred_check
      _
    $region47: #{simple_transformer_forward.1} parent=1 // pred_check_branch
      %152 = sbr.rel (0) target = $region49
    $region48: #{simple_transformer_forward.1} parent=1 // pred_region
      %s154 = ssub.s32 64, 64
      %155 = vsyncadd [#allocation18], %s154
      %s156 = sshll.u32 [#allocation19], 4
      %s157 = int_to_ptr.vmem [resolvable:$true] %s156
      %162 = dma.hbm_to_vmem [thread:$0]  %s11, 64, %s157, [#allocation18], 16, 16, 1
    $region49: #{simple_transformer_forward.1} parent=1 // pred_fallthru
      _
    // Predicated region
    $region50: #{simple_transformer_forward.1} parent=1 // pred_check
      _
    $region51: #{simple_transformer_forward.1} parent=1 // pred_check_branch
      %164 = sbr.rel (0) target = $region53
    $region52: #{simple_transformer_forward.1} parent=1 // pred_region
      %s166 = ssub.s32 64, 64
      %167 = vsyncadd [#allocation21], %s166
      %s168 = sshll.u32 [#allocation20], 4
      %s169 = int_to_ptr.vmem [resolvable:$true] %s168
      %174 = dma.hbm_to_vmem [thread:$0]  %s12, 64, %s169, [#allocation21], 16, 16, 1
    $region53: #{simple_transformer_forward.1} parent=1 // pred_fallthru
      _
    // Predicated region
    $region54: #{simple_transformer_forward.1} parent=1 // pred_check
      _
    $region55: #{simple_transformer_forward.1} parent=1 // pred_check_branch
      %176 = sbr.rel (0) target = $region57
    $region56: #{simple_transformer_forward.1} parent=1 // pred_region
      %s178 = ssub.s32 3072, 3072
      %179 = vsyncadd [#allocation21], %s178
      %s180 = sshll.u32 [#allocation22], 4
      %s181 = int_to_ptr.vmem [resolvable:$true] %s180
      %186 = dma.hbm_to_vmem [thread:$0]  %s13, 3072, %s181, [#allocation21], 192, 192, 12
    $region57: #{simple_transformer_forward.1} parent=1 // pred_fallthru
      _
    // Predicated region
    $region58: #{simple_transformer_forward.1} parent=1 // pred_check
      _
    $region59: #{simple_transformer_forward.1} parent=1 // pred_check_branch
      %188 = sbr.rel (0) target = $region61
    $region60: #{simple_transformer_forward.1} parent=1 // pred_region
      %s190 = ssub.s32 48, 48
      %191 = vsyncadd [#allocation24], %s190
      %s193 = sshll.u32 [#allocation23], 4
      %s194 = int_to_ptr.vmem [resolvable:$true] %s193
      %196 = dma.hbm_to_vmem [thread:$0]  %s14, 48, %s194, [#allocation24]
    $region61: #{simple_transformer_forward.1} parent=1 // pred_fallthru
      _
    // Predicated region
    $region62: #{simple_transformer_forward.1} parent=1 // pred_check
      _
    $region63: #{simple_transformer_forward.1} parent=1 // pred_check_branch
      %198 = sbr.rel (0) target = $region65
    $region64: #{simple_transformer_forward.1} parent=1 // pred_region
      %199 = dma.done [#allocation3], 12288
    $region65: #{simple_transformer_forward.1} parent=1 // pred_fallthru
      _
    // Predicated region
    $region66: #{simple_transformer_forward.1} parent=1 // pred_check
      _
    $region67: #{simple_transformer_forward.1} parent=1 // pred_check_branch
      %201 = sbr.rel (0) target = $region69
    $region68: #{simple_transformer_forward.1} parent=1 // pred_region
      %202 = dma.done [#allocation6], 192
    $region69: #{simple_transformer_forward.1} parent=1 // pred_fallthru
      _
    // Predicated region
    $region70: #{simple_transformer_forward.1} parent=1 // pred_check
      _
    $region71: #{simple_transformer_forward.1} parent=1 // pred_check_branch
      %204 = sbr.rel (0) target = $region73
    $region72: #{simple_transformer_forward.1} parent=1 // pred_region
      %205 = dma.done [#allocation6], 4096
    $region73: #{simple_transformer_forward.1} parent=1 // pred_fallthru
      _
    // Predicated region
    $region74: #{simple_transformer_forward.1} parent=1 // pred_check
      _
    $region75: #{simple_transformer_forward.1} parent=1 // pred_check_branch
      %207 = sbr.rel (0) target = $region77
    $region76: #{simple_transformer_forward.1} parent=1 // pred_region
      %208 = dma.done [#allocation9], 64
    $region77: #{simple_transformer_forward.1} parent=1 // pred_fallthru
      _
    // Predicated region
    $region78: #{simple_transformer_forward.1} parent=1 // pred_check
      _
    $region79: #{simple_transformer_forward.1} parent=1 // pred_check_branch
      %210 = sbr.rel (0) target = $region81
    $region80: #{simple_transformer_forward.1} parent=1 // pred_region
      %211 = dma.done [#allocation9], 64
    $region81: #{simple_transformer_forward.1} parent=1 // pred_fallthru
      _
    // Predicated region
    $region82: #{simple_transformer_forward.1} parent=1 // pred_check
      _
    $region83: #{simple_transformer_forward.1} parent=1 // pred_check_branch
      %213 = sbr.rel (0) target = $region85
    $region84: #{simple_transformer_forward.1} parent=1 // pred_region
      %214 = dma.done [#allocation12], 64
    $region85: #{simple_transformer_forward.1} parent=1 // pred_fallthru
      _
    // Predicated region
    $region86: #{simple_transformer_forward.1} parent=1 // pred_check
      _
    $region87: #{simple_transformer_forward.1} parent=1 // pred_check_branch
      %216 = sbr.rel (0) target = $region89
    $region88: #{simple_transformer_forward.1} parent=1 // pred_region
      %217 = dma.done [#allocation12], 16384
    $region89: #{simple_transformer_forward.1} parent=1 // pred_fallthru
      _
    // Predicated region
    $region90: #{simple_transformer_forward.1} parent=1 // pred_check
      _
    $region91: #{simple_transformer_forward.1} parent=1 // pred_check_branch
      %219 = sbr.rel (0) target = $region93
    $region92: #{simple_transformer_forward.1} parent=1 // pred_region
      %220 = dma.done [#allocation15], 256
    $region93: #{simple_transformer_forward.1} parent=1 // pred_fallthru
      _
    // Predicated region
    $region94: #{simple_transformer_forward.1} parent=1 // pred_check
      _
    $region95: #{simple_transformer_forward.1} parent=1 // pred_check_branch
      %222 = sbr.rel (0) target = $region97
    $region96: #{simple_transformer_forward.1} parent=1 // pred_region
      %223 = dma.done [#allocation15], 16384
    $region97: #{simple_transformer_forward.1} parent=1 // pred_fallthru
      _
    // Predicated region
    $region98: #{simple_transformer_forward.1} parent=1 // pred_check
      _
    $region99: #{simple_transformer_forward.1} parent=1 // pred_check_branch
      %225 = sbr.rel (0) target = $region101
    $region100: #{simple_transformer_forward.1} parent=1 // pred_region
      %226 = dma.done [#allocation18], 64
    $region101: #{simple_transformer_forward.1} parent=1 // pred_fallthru
      _
    // Predicated region
    $region102: #{simple_transformer_forward.1} parent=1 // pred_check
      _
    $region103: #{simple_transformer_forward.1} parent=1 // pred_check_branch
      %228 = sbr.rel (0) target = $region105
    $region104: #{simple_transformer_forward.1} parent=1 // pred_region
      %229 = dma.done [#allocation18], 64
    $region105: #{simple_transformer_forward.1} parent=1 // pred_fallthru
      _
    // Predicated region
    $region106: #{simple_transformer_forward.1} parent=1 // pred_check
      _
    $region107: #{simple_transformer_forward.1} parent=1 // pred_check_branch
      %231 = sbr.rel (0) target = $region109
    $region108: #{simple_transformer_forward.1} parent=1 // pred_region
      %232 = dma.done [#allocation21], 64
    $region109: #{simple_transformer_forward.1} parent=1 // pred_fallthru
      _
    // Predicated region
    $region110: #{simple_transformer_forward.1} parent=1 // pred_check
      _
    $region111: #{simple_transformer_forward.1} parent=1 // pred_check_branch
      %234 = sbr.rel (0) target = $region113
    $region112: #{simple_transformer_forward.1} parent=1 // pred_region
      %235 = dma.done [#allocation21], 3072
    $region113: #{simple_transformer_forward.1} parent=1 // pred_fallthru
      _
    // Predicated region
    $region114: #{simple_transformer_forward.1} parent=1 // pred_check
      _
    $region115: #{simple_transformer_forward.1} parent=1 // pred_check_branch
      %237 = sbr.rel (0) target = $region117
    $region116: #{simple_transformer_forward.1} parent=1 // pred_region
      %238 = dma.done [#allocation24], 48
    $region117: #{simple_transformer_forward.1} parent=1 // pred_fallthru
      _
    %v240 = vld [vmem:[%s0] sm:$0xff]
    %v241 = vld [vmem:[%s0 + $0x8] sm:$0xff]
    %v242 = vld [vmem:[%s0 + $0x10] sm:$0xff]
    %v243 = vld [vmem:[%s0 + $0x18] sm:$0xff]
    %v244 = vlaneseq
    %v245 = vshrl.u32 %v244, 7
    %v246 = vadd.s32 %v245, 8
    %v247 = vlaneseq
    %v248 = vand.u32 %v247, 127
    %vm249 = vcmp.le.s32.totalorder %v248, %v245
    %vm250 = vcmp.le.s32.totalorder %v248, %v246
    %v251 = vsel %vm249, 0.0, -1e+30
    %v252 = vsel %vm250, 0.0, -1e+30
    %v253 = vld [vmem:[#allocation2] sm:$0xff]
    %v254 = vld [vmem:[#allocation2 + $0x8] sm:$0xf]
    %v255 = vld [vmem:[#allocation2 + $0xc] sm:$0xff]
    %v256 = vld [vmem:[#allocation2 + $0x14] sm:$0xf]
    %v257 = vld [vmem:[#allocation2 + $0x18] sm:$0xff]
    %v258 = vld [vmem:[#allocation2 + $0x20] sm:$0xf]
    %v259 = vld [vmem:[#allocation2 + $0x24] sm:$0xff]
    %v260 = vld [vmem:[#allocation2 + $0x2c] sm:$0xf]
    %v261 = vld [vmem:[#allocation2 + $0x30] sm:$0xff]
    %v262 = vld [vmem:[#allocation2 + $0x38] sm:$0xf]
    %v263 = vld [vmem:[#allocation2 + $0x3c] sm:$0xff]
    %v264 = vld [vmem:[#allocation2 + $0x44] sm:$0xf]
    %v265 = vld [vmem:[#allocation2 + $0x48] sm:$0xff]
    %v266 = vld [vmem:[#allocation2 + $0x50] sm:$0xf]
    %v267 = vld [vmem:[#allocation2 + $0x54] sm:$0xff]
    %v268 = vld [vmem:[#allocation2 + $0x5c] sm:$0xf]
    %v269 = vld [vmem:[#allocation2 + $0x60] sm:$0xff]
    %v270 = vld [vmem:[#allocation2 + $0x68] sm:$0xf]
    %v271 = vld [vmem:[#allocation2 + $0x6c] sm:$0xff]
    %v272 = vld [vmem:[#allocation2 + $0x74] sm:$0xf]
    %v273 = vld [vmem:[#allocation2 + $0x78] sm:$0xff]
    %v274 = vld [vmem:[#allocation2 + $0x80] sm:$0xf]
    %v275 = vld [vmem:[#allocation2 + $0x84] sm:$0xff]
    %v276 = vld [vmem:[#allocation2 + $0x8c] sm:$0xf]
    %v277 = vld [vmem:[#allocation2 + $0x90] sm:$0xff]
    %v278 = vld [vmem:[#allocation2 + $0x98] sm:$0xf]
    %v279 = vld [vmem:[#allocation2 + $0x9c] sm:$0xff]
    %v280 = vld [vmem:[#allocation2 + $0xa4] sm:$0xf]
    %v281 = vld [vmem:[#allocation2 + $0xa8] sm:$0xff]
    %v282 = vld [vmem:[#allocation2 + $0xb0] sm:$0xf]
    %v283 = vld [vmem:[#allocation2 + $0xb4] sm:$0xff]
    %v284 = vld [vmem:[#allocation2 + $0xbc] sm:$0xf]
    %v285 = vpack.c.bf16 %v241, %v240
    %v286 = vpack.c.bf16 %v243, %v242
    %v287 = vld [vmem:[#allocation5] sm:$0x7]
    %v289 = vlaneseq
    %v290 = vshrl.u32 %v289, 7
    %v291 = vsub.s32 0, %v290
    %v292 = vrot.slane %v287, %v291
    %v293 = vlaneseq
    %v294 = vshrl.u32 %v293, 7
    %v295 = vsub.s32 1, %v294
    %v296 = vrot.slane %v287, %v295
    %v297 = vlaneseq
    %v298 = vshrl.u32 %v297, 7
    %v299 = vsub.s32 2, %v298
    %v300 = vrot.slane %v287, %v299
    %v336 = vunpack.c.l.b16 %v253
    %v337 = vunpack.c.h.b16 %v253
    %v338 = vunpack.c.l.b16 %v254
    %v339 = vunpack.c.l.b16 %v255
    %v340 = vunpack.c.h.b16 %v255
    %v341 = vunpack.c.l.b16 %v256
    %v342 = vunpack.c.l.b16 %v257
    %v343 = vunpack.c.h.b16 %v257
    %v344 = vunpack.c.l.b16 %v258
    %v345 = vunpack.c.l.b16 %v259
    %v346 = vunpack.c.h.b16 %v259
    %v347 = vunpack.c.l.b16 %v260
    %v348 = vunpack.c.l.b16 %v261
    %v349 = vunpack.c.h.b16 %v261
    %v350 = vunpack.c.l.b16 %v262
    %v351 = vunpack.c.l.b16 %v263
    %v352 = vunpack.c.h.b16 %v263
    %v353 = vunpack.c.l.b16 %v264
    %v354 = vunpack.c.l.b16 %v265
    %v355 = vunpack.c.h.b16 %v265
    %v356 = vunpack.c.l.b16 %v266
    %v357 = vunpack.c.l.b16 %v267
    %v358 = vunpack.c.h.b16 %v267
    %v359 = vunpack.c.l.b16 %v268
    %v360 = vunpack.c.l.b16 %v269
    %v361 = vunpack.c.h.b16 %v269
    %v362 = vunpack.c.l.b16 %v270
    %v363 = vunpack.c.l.b16 %v271
    %v364 = vunpack.c.h.b16 %v271
    %v365 = vunpack.c.l.b16 %v272
    %v366 = vunpack.c.l.b16 %v273
    %v367 = vunpack.c.h.b16 %v273
    %v368 = vunpack.c.l.b16 %v274
    %v369 = vunpack.c.l.b16 %v275
    %v370 = vunpack.c.h.b16 %v275
    %v371 = vunpack.c.l.b16 %v276
    %v372 = vunpack.c.l.b16 %v277
    %v373 = vunpack.c.h.b16 %v277
    %v374 = vunpack.c.l.b16 %v278
    %v375 = vunpack.c.l.b16 %v279
    %v376 = vunpack.c.h.b16 %v279
    %v377 = vunpack.c.l.b16 %v280
    %v378 = vunpack.c.l.b16 %v281
    %v379 = vunpack.c.h.b16 %v281
    %v380 = vunpack.c.l.b16 %v282
    %v381 = vunpack.c.l.b16 %v283
    %v382 = vunpack.c.h.b16 %v283
    %v383 = vunpack.c.l.b16 %v284
    %v384 = vpack.c.b16 %v339, %v336
    %v385 = vpack.c.b16 %v340, %v337
    %v386 = vpack.c.b16 %v341, %v338
    %v387 = vpack.c.b16 %v345, %v342
    %v388 = vpack.c.b16 %v346, %v343
    %v389 = vpack.c.b16 %v347, %v344
    %v390 = vpack.c.b16 %v351, %v348
    %v391 = vpack.c.b16 %v352, %v349
    %v392 = vpack.c.b16 %v353, %v350
    %v393 = vpack.c.b16 %v357, %v354
    %v394 = vpack.c.b16 %v358, %v355
    %v395 = vpack.c.b16 %v359, %v356
    %v396 = vpack.c.b16 %v363, %v360
    %v397 = vpack.c.b16 %v364, %v361
    %v398 = vpack.c.b16 %v365, %v362
    %v399 = vpack.c.b16 %v369, %v366
    %v400 = vpack.c.b16 %v370, %v367
    %v401 = vpack.c.b16 %v371, %v368
    %v402 = vpack.c.b16 %v375, %v372
    %v403 = vpack.c.b16 %v376, %v373
    %v404 = vpack.c.b16 %v377, %v374
    %v405 = vpack.c.b16 %v381, %v378
    %v406 = vpack.c.b16 %v382, %v379
    %v407 = vpack.c.b16 %v383, %v380
    %432 = vmatprep.subr.bf16.mxu0 %v385
    %433 = vmatpush1.bf16.msra.mxu0 %v384
    %434 = vmatprep.subr.bf16.mxu0 %v388
    %435 = vmatpush1.bf16.msra.mxu0 %v387
    %436 = vmatprep.subr.bf16.mxu0 %v391
    %437 = vmatpush1.bf16.msra.mxu0 %v390
    %438 = vmatprep.subr.bf16.mxu0 %v394
    %439 = vmatpush1.bf16.msra.mxu0 %v393
    %440 = vmatprep.subr.bf16.mxu0 %v397
    %441 = vmatpush1.bf16.msra.mxu0 %v396
    %442 = vmatprep.subr.bf16.mxu0 %v400
    %443 = vmatpush1.bf16.msra.mxu0 %v399
    %444 = vmatprep.subr.bf16.mxu0 %v403
    %445 = vmatpush1.bf16.msra.mxu0 %v402
    %446 = vmatprep.subr.bf16.mxu0 %v406
    %447 = vmatpush1.bf16.msra.mxu0 %v405
    %448 = vmatprep.subr.bf16.mxu0 0
    %449 = vmatpush1.bf16.msra.mxu0 0
    %450 = vmatprep.subr.bf16.mxu0 0
    %451 = vmatpush1.bf16.msra.mxu0 0
    %452 = vmatprep.subr.bf16.mxu0 0
    %453 = vmatpush1.bf16.msra.mxu0 0
    %454 = vmatprep.subr.bf16.mxu0 0
    %455 = vmatpush1.bf16.msra.mxu0 0
    %456 = vmatprep.subr.bf16.mxu0 0
    %457 = vmatpush1.bf16.msra.mxu0 0
    %458 = vmatprep.subr.bf16.mxu0 0
    %459 = vmatpush1.bf16.msra.mxu0 0
    %460 = vmatprep.subr.bf16.mxu0 0
    %461 = vmatpush1.bf16.msra.mxu0 0
    %462 = vmatprep.subr.bf16.mxu0 0
    %463 = vmatpush1.bf16.msra.mxu0 0
    %464 = vmatprep.mubr.bf16.mxu0 0
    %465 = vmatmul.mubr.bf16.gmra.mrb[0].mxu0 %v285
    %v466 = vpop.f32.mrb[0].mxu0
    %v467 = vadd.f32 %v292, %v466
    %v468 = vpop.f32.mrb[0].mxu0
    %v469 = vadd.f32 %v296, %v468
    %v470 = vpop.f32.mrb[0].mxu0
    %v471 = vadd.f32 %v292, %v470
    %v472 = vpop.f32.mrb[0].mxu0
    %v473 = vadd.f32 %v296, %v472
    %474 = vmatprep.mubr.bf16.mxu0 0
    %475 = vmatmul.mubr.bf16.gmra.mrb[0].mxu0 %v286
    %v476 = vpop.f32.mrb[0].mxu0
    %v477 = vadd.f32 %v292, %v476
    %v478 = vpop.f32.mrb[0].mxu0
    %v479 = vadd.f32 %v296, %v478
    %v480 = vpop.f32.mrb[0].mxu0
    %v481 = vadd.f32 %v292, %v480
    %v482 = vpop.f32.mrb[0].mxu0
    %v483 = vadd.f32 %v296, %v482
    %484 = vdwg.mxu0
    %485 = vmatprep.subr.bf16.mxu0 0
    %486 = vmatpush1.bf16.msra.mxu0 %v386
    %487 = vmatprep.subr.bf16.mxu0 0
    %488 = vmatpush1.bf16.msra.mxu0 %v389
    %489 = vmatprep.subr.bf16.mxu0 0
    %490 = vmatpush1.bf16.msra.mxu0 %v392
    %491 = vmatprep.subr.bf16.mxu0 0
    %492 = vmatpush1.bf16.msra.mxu0 %v395
    %493 = vmatprep.subr.bf16.mxu0 0
    %494 = vmatpush1.bf16.msra.mxu0 %v398
    %495 = vmatprep.subr.bf16.mxu0 0
    %496 = vmatpush1.bf16.msra.mxu0 %v401
    %497 = vmatprep.subr.bf16.mxu0 0
    %498 = vmatpush1.bf16.msra.mxu0 %v404
    %499 = vmatprep.subr.bf16.mxu0 0
    %500 = vmatpush1.bf16.msra.mxu0 %v407
    %501 = vmatprep.subr.bf16.mxu0 0
    %502 = vmatpush1.bf16.msra.mxu0 0
    %503 = vmatprep.subr.bf16.mxu0 0
    %504 = vmatpush1.bf16.msra.mxu0 0
    %505 = vmatprep.subr.bf16.mxu0 0
    %506 = vmatpush1.bf16.msra.mxu0 0
    %507 = vmatprep.subr.bf16.mxu0 0
    %508 = vmatpush1.bf16.msra.mxu0 0
    %509 = vmatprep.subr.bf16.mxu0 0
    %510 = vmatpush1.bf16.msra.mxu0 0
    %511 = vmatprep.subr.bf16.mxu0 0
    %512 = vmatpush1.bf16.msra.mxu0 0
    %513 = vmatprep.subr.bf16.mxu0 0
    %514 = vmatpush1.bf16.msra.mxu0 0
    %515 = vmatprep.subr.bf16.mxu0 0
    %516 = vmatpush1.bf16.msra.mxu0 0
    %517 = vmatprep.mubr.bf16.mxu0 0
    %518 = vmatmul.mubr.bf16.gmra.mrb[0].mxu0 %v285
    %v519 = vpop.f32.mrb[0].mxu0
    %v520 = vadd.f32 %v300, %v519
    %v521 = vpop.f32.mrb[0].mxu0
    %v522 = vpop.f32.mrb[0].mxu0
    %v523 = vadd.f32 %v300, %v522
    %v524 = vpop.f32.mrb[0].mxu0
    %525 = vmatprep.mubr.bf16.mxu0 0
    %526 = vmatmul.mubr.bf16.gmra.mrb[0].mxu0 %v286
    %v527 = vpop.f32.mrb[0].mxu0
    %v528 = vadd.f32 %v300, %v527
    %v529 = vpop.f32.mrb[0].mxu0
    %v530 = vpop.f32.mrb[0].mxu0
    %v531 = vadd.f32 %v300, %v530
    %v532 = vpop.f32.mrb[0].mxu0
    %533 = vdwg.mxu0
    %v534 = vpack.c.bf16 %v471, %v467
    %v535 = vpack.c.bf16 %v481, %v477
    %v536 = vpack.c.bf16 %v473, %v469
    %v537 = vpack.c.bf16 %v483, %v479
    %538 = vmatprep.subr.bf16.mxu0 0
    %539 = vmatpush1.bf16.xpose.msra.mxu0 %v536
    %540 = vmatprep.subr.bf16.mxu0 0
    %541 = vmatpush1.bf16.xpose.msra.mxu0 0
    %542 = vmatprep.subr.bf16.mxu0 0
    %543 = vmatpush1.bf16.xpose.msra.mxu0 0
    %544 = vmatprep.subr.bf16.mxu0 0
    %545 = vmatpush1.bf16.xpose.msra.mxu0 0
    %546 = vmatprep.subr.bf16.mxu0 0
    %547 = vmatpush1.bf16.xpose.msra.mxu0 0
    %548 = vmatprep.subr.bf16.mxu0 0
    %549 = vmatpush1.bf16.xpose.msra.mxu0 0
    %550 = vmatprep.subr.bf16.mxu0 0
    %551 = vmatpush1.bf16.xpose.msra.mxu0 0
    %552 = vmatprep.subr.bf16.mxu0 0
    %553 = vmatpush1.bf16.xpose.msra.mxu0 0
    %554 = vmatprep.subr.bf16.mxu0 0
    %555 = vmatpush1.bf16.xpose.msra.mxu0 0
    %556 = vmatprep.subr.bf16.mxu0 0
    %557 = vmatpush1.bf16.xpose.msra.mxu0 0
    %558 = vmatprep.subr.bf16.mxu0 0
    %559 = vmatpush1.bf16.xpose.msra.mxu0 0
    %560 = vmatprep.subr.bf16.mxu0 0
    %561 = vmatpush1.bf16.xpose.msra.mxu0 0
    %562 = vmatprep.subr.bf16.mxu0 0
    %563 = vmatpush1.bf16.xpose.msra.mxu0 0
    %564 = vmatprep.subr.bf16.mxu0 0
    %565 = vmatpush1.bf16.xpose.msra.mxu0 0
    %566 = vmatprep.subr.bf16.mxu0 0
    %567 = vmatpush1.bf16.xpose.msra.mxu0 0
    %568 = vmatprep.subr.bf16.mxu0 0
    %569 = vmatpush1.bf16.xpose.msra.mxu0 0
    %570 = vmatprep.mubr.bf16.mxu0 0
    %571 = vmatmul.mubr.bf16.gmra.mrb[0].mxu0 %v534
    %v572 = vpop.f32.mrb[0].mxu0
    %v573 = vadd.f32 %v251, %v572
    %v574 = vpop.f32.mrb[0].mxu0
    %v575 = vpop.f32.mrb[0].mxu0
    %v576 = vadd.f32 %v252, %v575
    %v577 = vpop.f32.mrb[0].mxu0
    %578 = vdwg.mxu0
    %579 = vmatprep.subr.bf16.mxu0 0
    %580 = vmatpush1.bf16.xpose.msra.mxu0 %v537
    %581 = vmatprep.subr.bf16.mxu0 0
    %582 = vmatpush1.bf16.xpose.msra.mxu0 0
    %583 = vmatprep.subr.bf16.mxu0 0
    %584 = vmatpush1.bf16.xpose.msra.mxu0 0
    %585 = vmatprep.subr.bf16.mxu0 0
    %586 = vmatpush1.bf16.xpose.msra.mxu0 0
    %587 = vmatprep.subr.bf16.mxu0 0
    %588 = vmatpush1.bf16.xpose.msra.mxu0 0
    %589 = vmatprep.subr.bf16.mxu0 0
    %590 = vmatpush1.bf16.xpose.msra.mxu0 0
    %591 = vmatprep.subr.bf16.mxu0 0
    %592 = vmatpush1.bf16.xpose.msra.mxu0 0
    %593 = vmatprep.subr.bf16.mxu0 0
    %594 = vmatpush1.bf16.xpose.msra.mxu0 0
    %595 = vmatprep.subr.bf16.mxu0 0
    %596 = vmatpush1.bf16.xpose.msra.mxu0 0
    %597 = vmatprep.subr.bf16.mxu0 0
    %598 = vmatpush1.bf16.xpose.msra.mxu0 0
    %599 = vmatprep.subr.bf16.mxu0 0
    %600 = vmatpush1.bf16.xpose.msra.mxu0 0
    %601 = vmatprep.subr.bf16.mxu0 0
    %602 = vmatpush1.bf16.xpose.msra.mxu0 0
    %603 = vmatprep.subr.bf16.mxu0 0
    %604 = vmatpush1.bf16.xpose.msra.mxu0 0
    %605 = vmatprep.subr.bf16.mxu0 0
    %606 = vmatpush1.bf16.xpose.msra.mxu0 0
    %607 = vmatprep.subr.bf16.mxu0 0
    %608 = vmatpush1.bf16.xpose.msra.mxu0 0
    %609 = vmatprep.subr.bf16.mxu0 0
    %610 = vmatpush1.bf16.xpose.msra.mxu0 0
    %611 = vmatprep.mubr.bf16.mxu0 0
    %612 = vmatmul.mubr.bf16.gmra.mrb[0].mxu0 %v535
    %v613 = vpop.f32.mrb[0].mxu0
    %v614 = vadd.f32 %v251, %v613
    %v615 = vpop.f32.mrb[0].mxu0
    %v616 = vpop.f32.mrb[0].mxu0
    %v617 = vadd.f32 %v252, %v616
    %v618 = vpop.f32.mrb[0].mxu0
    %619 = vdwg.mxu0
    %vm620 = vcmask 130048
    %v621 = vsel %vm620, %v573, -inf
    %622 = vmax.xlane.f32.xlu0 %v621
    %v623 = vpop.xlane.xlu0 %622
    %v624 = vsel %vm620, %v576, -inf
    %625 = vmax.xlane.f32.xlu0 %v624
    %v626 = vpop.xlane.xlu0 %625
    %v627 = vsel %vm620, %v614, -inf
    %628 = vmax.xlane.f32.xlu0 %v627
    %v629 = vpop.xlane.xlu0 %628
    %v630 = vsel %vm620, %v617, -inf
    %631 = vmax.xlane.f32.xlu0 %v630
    %v632 = vpop.xlane.xlu0 %631
    %v633 = vsub.f32 %v573, %v623
    %v634 = vsub.f32 %v576, %v626
    %v635 = vsub.f32 %v614, %v629
    %v636 = vsub.f32 %v617, %v632
    %v637 = vmul.f32 %v633, 1.442695
    %v638 = vpow.pop %v637
    %v639 = vmul.f32 %v634, 1.442695
    %v640 = vpow.pop %v639
    %v641 = vmul.f32 %v635, 1.442695
    %v642 = vpow.pop %v641
    %v643 = vmul.f32 %v636, 1.442695
    %v644 = vpow.pop %v643
    %v645 = vsel %vm620, %v638, 0.0
    %646 = vadd.xlane.f32.xlu0 %v645
    %v647 = vpop.xlane.xlu0 %646
    %v648 = vsel %vm620, %v640, 0.0
    %649 = vadd.xlane.f32.xlu0 %v648
    %v650 = vpop.xlane.xlu0 %649
    %v651 = vsel %vm620, %v642, 0.0
    %652 = vadd.xlane.f32.xlu0 %v651
    %v653 = vpop.xlane.xlu0 %652
    %v654 = vsel %vm620, %v644, 0.0
    %655 = vadd.xlane.f32.xlu0 %v654
    %v656 = vpop.xlane.xlu0 %655
    %v657 = vrcp.pop %v647
    %v658 = vrcp.pop %v650
    %v659 = vrcp.pop %v653
    %v660 = vrcp.pop %v656
    %v661 = vmul.f32 %v638, %v657
    %v662 = vmul.f32 %v640, %v658
    %v663 = vmul.f32 %v642, %v659
    %v664 = vmul.f32 %v644, %v660
    %v665 = vpack.c.bf16 %v662, %v661
    %v666 = vpack.c.bf16 %v664, %v663
    %v667 = vpack.c.bf16 %v523, %v520
    %v668 = vpack.c.bf16 %v531, %v528
    %v670 = vsel %vm620, %v665, 0
    %672 = vmatprep.subr.bf16.mxu0 0
    %673 = vmatpush1.bf16.msra.mxu0 %v667
    %674 = vmatprep.subr.bf16.mxu0 0
    %675 = vmatpush1.bf16.msra.mxu0 0
    %676 = vmatprep.subr.bf16.mxu0 0
    %677 = vmatpush1.bf16.msra.mxu0 0
    %678 = vmatprep.subr.bf16.mxu0 0
    %679 = vmatpush1.bf16.msra.mxu0 0
    %680 = vmatprep.subr.bf16.mxu0 0
    %681 = vmatpush1.bf16.msra.mxu0 0
    %682 = vmatprep.subr.bf16.mxu0 0
    %683 = vmatpush1.bf16.msra.mxu0 0
    %684 = vmatprep.subr.bf16.mxu0 0
    %685 = vmatpush1.bf16.msra.mxu0 0
    %686 = vmatprep.subr.bf16.mxu0 0
    %687 = vmatpush1.bf16.msra.mxu0 0
    %688 = vmatprep.subr.bf16.mxu0 0
    %689 = vmatpush1.bf16.msra.mxu0 0
    %690 = vmatprep.subr.bf16.mxu0 0
    %691 = vmatpush1.bf16.msra.mxu0 0
    %692 = vmatprep.subr.bf16.mxu0 0
    %693 = vmatpush1.bf16.msra.mxu0 0
    %694 = vmatprep.subr.bf16.mxu0 0
    %695 = vmatpush1.bf16.msra.mxu0 0
    %696 = vmatprep.subr.bf16.mxu0 0
    %697 = vmatpush1.bf16.msra.mxu0 0
    %698 = vmatprep.subr.bf16.mxu0 0
    %699 = vmatpush1.bf16.msra.mxu0 0
    %700 = vmatprep.subr.bf16.mxu0 0
    %701 = vmatpush1.bf16.msra.mxu0 0
    %702 = vmatprep.subr.bf16.mxu0 0
    %703 = vmatpush1.bf16.msra.mxu0 0
    %704 = vmatprep.mubr.bf16.mxu0 0
    %705 = vmatmul.mubr.bf16.gmra.mrb[0].mxu0 %v670
    %v706 = vpop.f32.mrb[0].mxu0
    %v707 = vadd.f32 0.0, %v706
    %v708 = vpop.f32.mrb[0].mxu0
    %v709 = vpop.f32.mrb[0].mxu0
    %v710 = vadd.f32 0.0, %v709
    %v711 = vpop.f32.mrb[0].mxu0
    %712 = vdwg.mxu0
    %v714 = vsel %vm620, %v666, 0
    %716 = vmatprep.subr.bf16.mxu0 0
    %717 = vmatpush1.bf16.msra.mxu0 %v668
    %718 = vmatprep.subr.bf16.mxu0 0
    %719 = vmatpush1.bf16.msra.mxu0 0
    %720 = vmatprep.subr.bf16.mxu0 0
    %721 = vmatpush1.bf16.msra.mxu0 0
    %722 = vmatprep.subr.bf16.mxu0 0
    %723 = vmatpush1.bf16.msra.mxu0 0
    %724 = vmatprep.subr.bf16.mxu0 0
    %725 = vmatpush1.bf16.msra.mxu0 0
    %726 = vmatprep.subr.bf16.mxu0 0
    %727 = vmatpush1.bf16.msra.mxu0 0
    %728 = vmatprep.subr.bf16.mxu0 0
    %729 = vmatpush1.bf16.msra.mxu0 0
    %730 = vmatprep.subr.bf16.mxu0 0
    %731 = vmatpush1.bf16.msra.mxu0 0
    %732 = vmatprep.subr.bf16.mxu0 0
    %733 = vmatpush1.bf16.msra.mxu0 0
    %734 = vmatprep.subr.bf16.mxu0 0
    %735 = vmatpush1.bf16.msra.mxu0 0
    %736 = vmatprep.subr.bf16.mxu0 0
    %737 = vmatpush1.bf16.msra.mxu0 0
    %738 = vmatprep.subr.bf16.mxu0 0
    %739 = vmatpush1.bf16.msra.mxu0 0
    %740 = vmatprep.subr.bf16.mxu0 0
    %741 = vmatpush1.bf16.msra.mxu0 0
    %742 = vmatprep.subr.bf16.mxu0 0
    %743 = vmatpush1.bf16.msra.mxu0 0
    %744 = vmatprep.subr.bf16.mxu0 0
    %745 = vmatpush1.bf16.msra.mxu0 0
    %746 = vmatprep.subr.bf16.mxu0 0
    %747 = vmatpush1.bf16.msra.mxu0 0
    %748 = vmatprep.mubr.bf16.mxu0 0
    %749 = vmatmul.mubr.bf16.gmra.mrb[0].mxu0 %v714
    %v750 = vpop.f32.mrb[0].mxu0
    %v751 = vadd.f32 0.0, %v750
    %v752 = vpop.f32.mrb[0].mxu0
    %v753 = vpop.f32.mrb[0].mxu0
    %v754 = vadd.f32 0.0, %v753
    %v755 = vpop.f32.mrb[0].mxu0
    %756 = vdwg.mxu0
    %v757 = vld [vmem:[#allocation7] sm:$0xf]
    %v758 = vld [vmem:[#allocation7 + $0x4] sm:$0xf]
    %v759 = vld [vmem:[#allocation7 + $0x8] sm:$0xf]
    %v760 = vld [vmem:[#allocation7 + $0xc] sm:$0xf]
    %v761 = vld [vmem:[#allocation7 + $0x10] sm:$0xf]
    %v762 = vld [vmem:[#allocation7 + $0x14] sm:$0xf]
    %v763 = vld [vmem:[#allocation7 + $0x18] sm:$0xf]
    %v764 = vld [vmem:[#allocation7 + $0x1c] sm:$0xf]
    %v765 = vld [vmem:[#allocation7 + $0x20] sm:$0xf]
    %v766 = vld [vmem:[#allocation7 + $0x24] sm:$0xf]
    %v767 = vld [vmem:[#allocation7 + $0x28] sm:$0xf]
    %v768 = vld [vmem:[#allocation7 + $0x2c] sm:$0xf]
    %v769 = vld [vmem:[#allocation7 + $0x30] sm:$0xf]
    %v770 = vld [vmem:[#allocation7 + $0x34] sm:$0xf]
    %v771 = vld [vmem:[#allocation7 + $0x38] sm:$0xf]
    %v772 = vld [vmem:[#allocation7 + $0x3c] sm:$0xf]
    %v773 = vpack.c.bf16 %v710, %v707
    %v774 = vpack.c.bf16 %v754, %v751
    %v775 = vld [vmem:[#allocation8] sm:$0x1]
    %v777 = vlaneseq
    %v778 = vshrl.u32 %v777, 7
    %v779 = vsub.s32 0, %v778
    %v780 = vrot.slane %v775, %v779
    %v798 = vunpack.c.l.b16 %v757
    %v799 = vunpack.c.l.b16 %v758
    %v800 = vunpack.c.l.b16 %v759
    %v801 = vunpack.c.l.b16 %v760
    %v802 = vunpack.c.l.b16 %v761
    %v803 = vunpack.c.l.b16 %v762
    %v804 = vunpack.c.l.b16 %v763
    %v805 = vunpack.c.l.b16 %v764
    %v806 = vunpack.c.l.b16 %v765
    %v807 = vunpack.c.l.b16 %v766
    %v808 = vunpack.c.l.b16 %v767
    %v809 = vunpack.c.l.b16 %v768
    %v810 = vunpack.c.l.b16 %v769
    %v811 = vunpack.c.l.b16 %v770
    %v812 = vunpack.c.l.b16 %v771
    %v813 = vunpack.c.l.b16 %v772
    %v814 = vpack.c.b16 %v799, %v798
    %v815 = vpack.c.b16 %v801, %v800
    %v816 = vpack.c.b16 %v803, %v802
    %v817 = vpack.c.b16 %v805, %v804
    %v818 = vpack.c.b16 %v807, %v806
    %v819 = vpack.c.b16 %v809, %v808
    %v820 = vpack.c.b16 %v811, %v810
    %v821 = vpack.c.b16 %v813, %v812
    %830 = vmatprep.subr.bf16.mxu0 0
    %831 = vmatpush1.bf16.msra.mxu0 %v814
    %832 = vmatprep.subr.bf16.mxu0 0
    %833 = vmatpush1.bf16.msra.mxu0 %v815
    %834 = vmatprep.subr.bf16.mxu0 0
    %835 = vmatpush1.bf16.msra.mxu0 %v816
    %836 = vmatprep.subr.bf16.mxu0 0
    %837 = vmatpush1.bf16.msra.mxu0 %v817
    %838 = vmatprep.subr.bf16.mxu0 0
    %839 = vmatpush1.bf16.msra.mxu0 %v818
    %840 = vmatprep.subr.bf16.mxu0 0
    %841 = vmatpush1.bf16.msra.mxu0 %v819
    %842 = vmatprep.subr.bf16.mxu0 0
    %843 = vmatpush1.bf16.msra.mxu0 %v820
    %844 = vmatprep.subr.bf16.mxu0 0
    %845 = vmatpush1.bf16.msra.mxu0 %v821
    %846 = vmatprep.subr.bf16.mxu0 0
    %847 = vmatpush1.bf16.msra.mxu0 0
    %848 = vmatprep.subr.bf16.mxu0 0
    %849 = vmatpush1.bf16.msra.mxu0 0
    %850 = vmatprep.subr.bf16.mxu0 0
    %851 = vmatpush1.bf16.msra.mxu0 0
    %852 = vmatprep.subr.bf16.mxu0 0
    %853 = vmatpush1.bf16.msra.mxu0 0
    %854 = vmatprep.subr.bf16.mxu0 0
    %855 = vmatpush1.bf16.msra.mxu0 0
    %856 = vmatprep.subr.bf16.mxu0 0
    %857 = vmatpush1.bf16.msra.mxu0 0
    %858 = vmatprep.subr.bf16.mxu0 0
    %859 = vmatpush1.bf16.msra.mxu0 0
    %860 = vmatprep.subr.bf16.mxu0 0
    %861 = vmatpush1.bf16.msra.mxu0 0
    %862 = vmatprep.mubr.bf16.mxu0 0
    %863 = vmatmul.mubr.bf16.gmra.mrb[0].mxu0 %v773
    %v864 = vpop.f32.mrb[0].mxu0
    %v865 = vadd.f32 %v780, %v864
    %v866 = vpop.f32.mrb[0].mxu0
    %v867 = vpop.f32.mrb[0].mxu0
    %v868 = vadd.f32 %v780, %v867
    %v869 = vpop.f32.mrb[0].mxu0
    %870 = vmatprep.mubr.bf16.mxu0 0
    %871 = vmatmul.mubr.bf16.gmra.mrb[0].mxu0 %v774
    %v872 = vpop.f32.mrb[0].mxu0
    %v873 = vadd.f32 %v780, %v872
    %v874 = vpop.f32.mrb[0].mxu0
    %v875 = vpop.f32.mrb[0].mxu0
    %v876 = vadd.f32 %v780, %v875
    %v877 = vpop.f32.mrb[0].mxu0
    %878 = vdwg.mxu0
    %v879 = vadd.f32 %v240, %v865
    %v880 = vadd.f32 %v241, %v868
    %v881 = vadd.f32 %v242, %v873
    %v882 = vadd.f32 %v243, %v876
    %v883 = vld [vmem:[#allocation10] sm:$0x1]
    %v884 = vld [vmem:[#allocation11] sm:$0x1]
    %885 = vadd.xlane.f32.xlu0 %v879
    %v886 = vpop.xlane.xlu0 %885
    %887 = vadd.xlane.f32.xlu0 %v880
    %v888 = vpop.xlane.xlu0 %887
    %889 = vadd.xlane.f32.xlu0 %v881
    %v890 = vpop.xlane.xlu0 %889
    %891 = vadd.xlane.f32.xlu0 %v882
    %v892 = vpop.xlane.xlu0 %891
    %v893 = vrcp.pop 128.0
    %v894 = vmul.f32 %v886, %v893
    %v895 = vmul.f32 %v888, %v893
    %v896 = vmul.f32 %v890, %v893
    %v897 = vmul.f32 %v892, %v893
    %v898 = vmul.f32 %v879, %v879
    %v899 = vmul.f32 %v880, %v880
    %v900 = vmul.f32 %v881, %v881
    %v901 = vmul.f32 %v882, %v882
    %902 = vadd.xlane.f32.xlu0 %v898
    %v903 = vpop.xlane.xlu0 %902
    %904 = vadd.xlane.f32.xlu0 %v899
    %v905 = vpop.xlane.xlu0 %904
    %906 = vadd.xlane.f32.xlu0 %v900
    %v907 = vpop.xlane.xlu0 %906
    %908 = vadd.xlane.f32.xlu0 %v901
    %v909 = vpop.xlane.xlu0 %908
    %v910 = vmul.f32 %v903, %v893
    %v911 = vmul.f32 %v905, %v893
    %v912 = vmul.f32 %v907, %v893
    %v913 = vmul.f32 %v909, %v893
    %v914 = vmul.f32 %v894, %v894
    %v915 = vmul.f32 %v895, %v895
    %v916 = vmul.f32 %v896, %v896
    %v917 = vmul.f32 %v897, %v897
    %v918 = vsub.f32 %v910, %v914
    %v919 = vsub.f32 %v911, %v915
    %v920 = vsub.f32 %v912, %v916
    %v921 = vsub.f32 %v913, %v917
    %v922 = vsub.f32 %v879, %v894
    %v923 = vsub.f32 %v880, %v895
    %v924 = vsub.f32 %v881, %v896
    %v925 = vsub.f32 %v882, %v897
    %v926 = vadd.f32 %v918, 1e-05
    %v927 = vadd.f32 %v919, 1e-05
    %v928 = vadd.f32 %v920, 1e-05
    %v929 = vadd.f32 %v921, 1e-05
    %v930 = vrsqrt.pop %v926
    %v931 = vrsqrt.pop %v927
    %v932 = vrsqrt.pop %v928
    %v933 = vrsqrt.pop %v929
    %v934 = vmul.f32 %v922, %v930
    %v935 = vmul.f32 %v923, %v931
    %v936 = vmul.f32 %v924, %v932
    %v937 = vmul.f32 %v925, %v933
    %v939 = vlaneseq
    %v940 = vshrl.u32 %v939, 7
    %v941 = vsub.s32 0, %v940
    %v942 = vrot.slane %v883, %v941
    %v944 = vmul.f32 %v934, %v942
    %v945 = vmul.f32 %v935, %v942
    %v946 = vmul.f32 %v936, %v942
    %v947 = vmul.f32 %v937, %v942
    %v949 = vlaneseq
    %v950 = vshrl.u32 %v949, 7
    %v951 = vsub.s32 0, %v950
    %v952 = vrot.slane %v884, %v951
    %v954 = vadd.f32 %v944, %v952
    %v955 = vadd.f32 %v945, %v952
    %v956 = vadd.f32 %v946, %v952
    %v957 = vadd.f32 %v947, %v952
    %v958 = vld [vmem:[#allocation13] sm:$0xff]
    %v959 = vld [vmem:[#allocation13 + $0x8] sm:$0xff]
    %v960 = vld [vmem:[#allocation13 + $0x10] sm:$0xff]
    %v961 = vld [vmem:[#allocation13 + $0x18] sm:$0xff]
    %v962 = vld [vmem:[#allocation13 + $0x20] sm:$0xff]
    %v963 = vld [vmem:[#allocation13 + $0x28] sm:$0xff]
    %v964 = vld [vmem:[#allocation13 + $0x30] sm:$0xff]
    %v965 = vld [vmem:[#allocation13 + $0x38] sm:$0xff]
    %v966 = vld [vmem:[#allocation13 + $0x40] sm:$0xff]
    %v967 = vld [vmem:[#allocation13 + $0x48] sm:$0xff]
    %v968 = vld [vmem:[#allocation13 + $0x50] sm:$0xff]
    %v969 = vld [vmem:[#allocation13 + $0x58] sm:$0xff]
    %v970 = vld [vmem:[#allocation13 + $0x60] sm:$0xff]
    %v971 = vld [vmem:[#allocation13 + $0x68] sm:$0xff]
    %v972 = vld [vmem:[#allocation13 + $0x70] sm:$0xff]
    %v973 = vld [vmem:[#allocation13 + $0x78] sm:$0xff]
    %v974 = vld [vmem:[#allocation13 + $0x80] sm:$0xff]
    %v975 = vld [vmem:[#allocation13 + $0x88] sm:$0xff]
    %v976 = vld [vmem:[#allocation13 + $0x90] sm:$0xff]
    %v977 = vld [vmem:[#allocation13 + $0x98] sm:$0xff]
    %v978 = vld [vmem:[#allocation13 + $0xa0] sm:$0xff]
    %v979 = vld [vmem:[#allocation13 + $0xa8] sm:$0xff]
    %v980 = vld [vmem:[#allocation13 + $0xb0] sm:$0xff]
    %v981 = vld [vmem:[#allocation13 + $0xb8] sm:$0xff]
    %v982 = vld [vmem:[#allocation13 + $0xc0] sm:$0xff]
    %v983 = vld [vmem:[#allocation13 + $0xc8] sm:$0xff]
    %v984 = vld [vmem:[#allocation13 + $0xd0] sm:$0xff]
    %v985 = vld [vmem:[#allocation13 + $0xd8] sm:$0xff]
    %v986 = vld [vmem:[#allocation13 + $0xe0] sm:$0xff]
    %v987 = vld [vmem:[#allocation13 + $0xe8] sm:$0xff]
    %v988 = vld [vmem:[#allocation13 + $0xf0] sm:$0xff]
    %v989 = vld [vmem:[#allocation13 + $0xf8] sm:$0xff]
    %v990 = vpack.c.bf16 %v955, %v954
    %v991 = vpack.c.bf16 %v957, %v956
    %v992 = vld [vmem:[#allocation14] sm:$0xf]
    %v994 = vlaneseq
    %v995 = vshrl.u32 %v994, 7
    %v996 = vsub.s32 0, %v995
    %v997 = vrot.slane %v992, %v996
    %v998 = vlaneseq
    %v999 = vshrl.u32 %v998, 7
    %v1000 = vsub.s32 1, %v999
    %v1001 = vrot.slane %v992, %v1000
    %v1002 = vlaneseq
    %v1003 = vshrl.u32 %v1002, 7
    %v1004 = vsub.s32 2, %v1003
    %v1005 = vrot.slane %v992, %v1004
    %v1006 = vlaneseq
    %v1007 = vshrl.u32 %v1006, 7
    %v1008 = vsub.s32 3, %v1007
    %v1009 = vrot.slane %v992, %v1008
    %v1046 = vunpack.c.l.b16 %v958
    %v1047 = vunpack.c.h.b16 %v958
    %v1048 = vunpack.c.l.b16 %v959
    %v1049 = vunpack.c.h.b16 %v959
    %v1050 = vunpack.c.l.b16 %v960
    %v1051 = vunpack.c.h.b16 %v960
    %v1052 = vunpack.c.l.b16 %v961
    %v1053 = vunpack.c.h.b16 %v961
    %v1054 = vunpack.c.l.b16 %v962
    %v1055 = vunpack.c.h.b16 %v962
    %v1056 = vunpack.c.l.b16 %v963
    %v1057 = vunpack.c.h.b16 %v963
    %v1058 = vunpack.c.l.b16 %v964
    %v1059 = vunpack.c.h.b16 %v964
    %v1060 = vunpack.c.l.b16 %v965
    %v1061 = vunpack.c.h.b16 %v965
    %v1062 = vunpack.c.l.b16 %v966
    %v1063 = vunpack.c.h.b16 %v966
    %v1064 = vunpack.c.l.b16 %v967
    %v1065 = vunpack.c.h.b16 %v967
    %v1066 = vunpack.c.l.b16 %v968
    %v1067 = vunpack.c.h.b16 %v968
    %v1068 = vunpack.c.l.b16 %v969
    %v1069 = vunpack.c.h.b16 %v969
    %v1070 = vunpack.c.l.b16 %v970
    %v1071 = vunpack.c.h.b16 %v970
    %v1072 = vunpack.c.l.b16 %v971
    %v1073 = vunpack.c.h.b16 %v971
    %v1074 = vunpack.c.l.b16 %v972
    %v1075 = vunpack.c.h.b16 %v972
    %v1076 = vunpack.c.l.b16 %v973
    %v1077 = vunpack.c.h.b16 %v973
    %v1078 = vunpack.c.l.b16 %v974
    %v1079 = vunpack.c.h.b16 %v974
    %v1080 = vunpack.c.l.b16 %v975
    %v1081 = vunpack.c.h.b16 %v975
    %v1082 = vunpack.c.l.b16 %v976
    %v1083 = vunpack.c.h.b16 %v976
    %v1084 = vunpack.c.l.b16 %v977
    %v1085 = vunpack.c.h.b16 %v977
    %v1086 = vunpack.c.l.b16 %v978
    %v1087 = vunpack.c.h.b16 %v978
    %v1088 = vunpack.c.l.b16 %v979
    %v1089 = vunpack.c.h.b16 %v979
    %v1090 = vunpack.c.l.b16 %v980
    %v1091 = vunpack.c.h.b16 %v980
    %v1092 = vunpack.c.l.b16 %v981
    %v1093 = vunpack.c.h.b16 %v981
    %v1094 = vunpack.c.l.b16 %v982
    %v1095 = vunpack.c.h.b16 %v982
    %v1096 = vunpack.c.l.b16 %v983
    %v1097 = vunpack.c.h.b16 %v983
    %v1098 = vunpack.c.l.b16 %v984
    %v1099 = vunpack.c.h.b16 %v984
    %v1100 = vunpack.c.l.b16 %v985
    %v1101 = vunpack.c.h.b16 %v985
    %v1102 = vunpack.c.l.b16 %v986
    %v1103 = vunpack.c.h.b16 %v986
    %v1104 = vunpack.c.l.b16 %v987
    %v1105 = vunpack.c.h.b16 %v987
    %v1106 = vunpack.c.l.b16 %v988
    %v1107 = vunpack.c.h.b16 %v988
    %v1108 = vunpack.c.l.b16 %v989
    %v1109 = vunpack.c.h.b16 %v989
    %v1110 = vpack.c.b16 %v1050, %v1046
    %v1111 = vpack.c.b16 %v1051, %v1047
    %v1112 = vpack.c.b16 %v1052, %v1048
    %v1113 = vpack.c.b16 %v1053, %v1049
    %v1114 = vpack.c.b16 %v1058, %v1054
    %v1115 = vpack.c.b16 %v1059, %v1055
    %v1116 = vpack.c.b16 %v1060, %v1056
    %v1117 = vpack.c.b16 %v1061, %v1057
    %v1118 = vpack.c.b16 %v1066, %v1062
    %v1119 = vpack.c.b16 %v1067, %v1063
    %v1120 = vpack.c.b16 %v1068, %v1064
    %v1121 = vpack.c.b16 %v1069, %v1065
    %v1122 = vpack.c.b16 %v1074, %v1070
    %v1123 = vpack.c.b16 %v1075, %v1071
    %v1124 = vpack.c.b16 %v1076, %v1072
    %v1125 = vpack.c.b16 %v1077, %v1073
    %v1126 = vpack.c.b16 %v1082, %v1078
    %v1127 = vpack.c.b16 %v1083, %v1079
    %v1128 = vpack.c.b16 %v1084, %v1080
    %v1129 = vpack.c.b16 %v1085, %v1081
    %v1130 = vpack.c.b16 %v1090, %v1086
    %v1131 = vpack.c.b16 %v1091, %v1087
    %v1132 = vpack.c.b16 %v1092, %v1088
    %v1133 = vpack.c.b16 %v1093, %v1089
    %v1134 = vpack.c.b16 %v1098, %v1094
    %v1135 = vpack.c.b16 %v1099, %v1095
    %v1136 = vpack.c.b16 %v1100, %v1096
    %v1137 = vpack.c.b16 %v1101, %v1097
    %v1138 = vpack.c.b16 %v1106, %v1102
    %v1139 = vpack.c.b16 %v1107, %v1103
    %v1140 = vpack.c.b16 %v1108, %v1104
    %v1141 = vpack.c.b16 %v1109, %v1105
    %1174 = vmatprep.subr.bf16.mxu0 %v1111
    %1175 = vmatpush1.bf16.msra.mxu0 %v1110
    %1176 = vmatprep.subr.bf16.mxu0 %v1115
    %1177 = vmatpush1.bf16.msra.mxu0 %v1114
    %1178 = vmatprep.subr.bf16.mxu0 %v1119
    %1179 = vmatpush1.bf16.msra.mxu0 %v1118
    %1180 = vmatprep.subr.bf16.mxu0 %v1123
    %1181 = vmatpush1.bf16.msra.mxu0 %v1122
    %1182 = vmatprep.subr.bf16.mxu0 %v1127
    %1183 = vmatpush1.bf16.msra.mxu0 %v1126
    %1184 = vmatprep.subr.bf16.mxu0 %v1131
    %1185 = vmatpush1.bf16.msra.mxu0 %v1130
    %1186 = vmatprep.subr.bf16.mxu0 %v1135
    %1187 = vmatpush1.bf16.msra.mxu0 %v1134
    %1188 = vmatprep.subr.bf16.mxu0 %v1139
    %1189 = vmatpush1.bf16.msra.mxu0 %v1138
    %1190 = vmatprep.subr.bf16.mxu0 0
    %1191 = vmatpush1.bf16.msra.mxu0 0
    %1192 = vmatprep.subr.bf16.mxu0 0
    %1193 = vmatpush1.bf16.msra.mxu0 0
    %1194 = vmatprep.subr.bf16.mxu0 0
    %1195 = vmatpush1.bf16.msra.mxu0 0
    %1196 = vmatprep.subr.bf16.mxu0 0
    %1197 = vmatpush1.bf16.msra.mxu0 0
    %1198 = vmatprep.subr.bf16.mxu0 0
    %1199 = vmatpush1.bf16.msra.mxu0 0
    %1200 = vmatprep.subr.bf16.mxu0 0
    %1201 = vmatpush1.bf16.msra.mxu0 0
    %1202 = vmatprep.subr.bf16.mxu0 0
    %1203 = vmatpush1.bf16.msra.mxu0 0
    %1204 = vmatprep.subr.bf16.mxu0 0
    %1205 = vmatpush1.bf16.msra.mxu0 0
    %1206 = vmatprep.mubr.bf16.mxu0 0
    %1207 = vmatmul.mubr.bf16.gmra.mrb[0].mxu0 %v990
    %v1208 = vpop.f32.mrb[0].mxu0
    %v1209 = vadd.f32 %v997, %v1208
    %v1210 = vpop.f32.mrb[0].mxu0
    %v1211 = vadd.f32 %v1001, %v1210
    %v1212 = vpop.f32.mrb[0].mxu0
    %v1213 = vadd.f32 %v997, %v1212
    %v1214 = vpop.f32.mrb[0].mxu0
    %v1215 = vadd.f32 %v1001, %v1214
    %1216 = vmatprep.mubr.bf16.mxu0 0
    %1217 = vmatmul.mubr.bf16.gmra.mrb[0].mxu0 %v991
    %v1218 = vpop.f32.mrb[0].mxu0
    %v1219 = vadd.f32 %v997, %v1218
    %v1220 = vpop.f32.mrb[0].mxu0
    %v1221 = vadd.f32 %v1001, %v1220
    %v1222 = vpop.f32.mrb[0].mxu0
    %v1223 = vadd.f32 %v997, %v1222
    %v1224 = vpop.f32.mrb[0].mxu0
    %v1225 = vadd.f32 %v1001, %v1224
    %1226 = vdwg.mxu0
    %1227 = vmatprep.subr.bf16.mxu0 %v1113
    %1228 = vmatpush1.bf16.msra.mxu0 %v1112
    %1229 = vmatprep.subr.bf16.mxu0 %v1117
    %1230 = vmatpush1.bf16.msra.mxu0 %v1116
    %1231 = vmatprep.subr.bf16.mxu0 %v1121
    %1232 = vmatpush1.bf16.msra.mxu0 %v1120
    %1233 = vmatprep.subr.bf16.mxu0 %v1125
    %1234 = vmatpush1.bf16.msra.mxu0 %v1124
    %1235 = vmatprep.subr.bf16.mxu0 %v1129
    %1236 = vmatpush1.bf16.msra.mxu0 %v1128
    %1237 = vmatprep.subr.bf16.mxu0 %v1133
    %1238 = vmatpush1.bf16.msra.mxu0 %v1132
    %1239 = vmatprep.subr.bf16.mxu0 %v1137
    %1240 = vmatpush1.bf16.msra.mxu0 %v1136
    %1241 = vmatprep.subr.bf16.mxu0 %v1141
    %1242 = vmatpush1.bf16.msra.mxu0 %v1140
    %1243 = vmatprep.subr.bf16.mxu0 0
    %1244 = vmatpush1.bf16.msra.mxu0 0
    %1245 = vmatprep.subr.bf16.mxu0 0
    %1246 = vmatpush1.bf16.msra.mxu0 0
    %1247 = vmatprep.subr.bf16.mxu0 0
    %1248 = vmatpush1.bf16.msra.mxu0 0
    %1249 = vmatprep.subr.bf16.mxu0 0
    %1250 = vmatpush1.bf16.msra.mxu0 0
    %1251 = vmatprep.subr.bf16.mxu0 0
    %1252 = vmatpush1.bf16.msra.mxu0 0
    %1253 = vmatprep.subr.bf16.mxu0 0
    %1254 = vmatpush1.bf16.msra.mxu0 0
    %1255 = vmatprep.subr.bf16.mxu0 0
    %1256 = vmatpush1.bf16.msra.mxu0 0
    %1257 = vmatprep.subr.bf16.mxu0 0
    %1258 = vmatpush1.bf16.msra.mxu0 0
    %1259 = vmatprep.mubr.bf16.mxu0 0
    %1260 = vmatmul.mubr.bf16.gmra.mrb[0].mxu0 %v990
    %v1261 = vpop.f32.mrb[0].mxu0
    %v1262 = vadd.f32 %v1005, %v1261
    %v1263 = vpop.f32.mrb[0].mxu0
    %v1264 = vadd.f32 %v1009, %v1263
    %v1265 = vpop.f32.mrb[0].mxu0
    %v1266 = vadd.f32 %v1005, %v1265
    %v1267 = vpop.f32.mrb[0].mxu0
    %v1268 = vadd.f32 %v1009, %v1267
    %1269 = vmatprep.mubr.bf16.mxu0 0
    %1270 = vmatmul.mubr.bf16.gmra.mrb[0].mxu0 %v991
    %v1271 = vpop.f32.mrb[0].mxu0
    %v1272 = vadd.f32 %v1005, %v1271
    %v1273 = vpop.f32.mrb[0].mxu0
    %v1274 = vadd.f32 %v1009, %v1273
    %v1275 = vpop.f32.mrb[0].mxu0
    %v1276 = vadd.f32 %v1005, %v1275
    %v1277 = vpop.f32.mrb[0].mxu0
    %v1278 = vadd.f32 %v1009, %v1277
    %1279 = vdwg.mxu0
    %v1280 = vmax.f32 %v1209, 0.0
    %v1281 = vmax.f32 %v1211, 0.0
    %v1282 = vmax.f32 %v1262, 0.0
    %v1283 = vmax.f32 %v1264, 0.0
    %v1284 = vmax.f32 %v1213, 0.0
    %v1285 = vmax.f32 %v1215, 0.0
    %v1286 = vmax.f32 %v1266, 0.0
    %v1287 = vmax.f32 %v1268, 0.0
    %v1288 = vmax.f32 %v1219, 0.0
    %v1289 = vmax.f32 %v1221, 0.0
    %v1290 = vmax.f32 %v1272, 0.0
    %v1291 = vmax.f32 %v1274, 0.0
    %v1292 = vmax.f32 %v1223, 0.0
    %v1293 = vmax.f32 %v1225, 0.0
    %v1294 = vmax.f32 %v1276, 0.0
    %v1295 = vmax.f32 %v1278, 0.0
    %v1296 = vld [vmem:[#allocation16] sm:$0xf]
    %v1297 = vld [vmem:[#allocation16 + $0x4] sm:$0xf]
    %v1298 = vld [vmem:[#allocation16 + $0x8] sm:$0xf]
    %v1299 = vld [vmem:[#allocation16 + $0xc] sm:$0xf]
    %v1300 = vld [vmem:[#allocation16 + $0x10] sm:$0xf]
    %v1301 = vld [vmem:[#allocation16 + $0x14] sm:$0xf]
    %v1302 = vld [vmem:[#allocation16 + $0x18] sm:$0xf]
    %v1303 = vld [vmem:[#allocation16 + $0x1c] sm:$0xf]
    %v1304 = vld [vmem:[#allocation16 + $0x20] sm:$0xf]
    %v1305 = vld [vmem:[#allocation16 + $0x24] sm:$0xf]
    %v1306 = vld [vmem:[#allocation16 + $0x28] sm:$0xf]
    %v1307 = vld [vmem:[#allocation16 + $0x2c] sm:$0xf]
    %v1308 = vld [vmem:[#allocation16 + $0x30] sm:$0xf]
    %v1309 = vld [vmem:[#allocation16 + $0x34] sm:$0xf]
    %v1310 = vld [vmem:[#allocation16 + $0x38] sm:$0xf]
    %v1311 = vld [vmem:[#allocation16 + $0x3c] sm:$0xf]
    %v1312 = vld [vmem:[#allocation16 + $0x40] sm:$0xf]
    %v1313 = vld [vmem:[#allocation16 + $0x44] sm:$0xf]
    %v1314 = vld [vmem:[#allocation16 + $0x48] sm:$0xf]
    %v1315 = vld [vmem:[#allocation16 + $0x4c] sm:$0xf]
    %v1316 = vld [vmem:[#allocation16 + $0x50] sm:$0xf]
    %v1317 = vld [vmem:[#allocation16 + $0x54] sm:$0xf]
    %v1318 = vld [vmem:[#allocation16 + $0x58] sm:$0xf]
    %v1319 = vld [vmem:[#allocation16 + $0x5c] sm:$0xf]
    %v1320 = vld [vmem:[#allocation16 + $0x60] sm:$0xf]
    %v1321 = vld [vmem:[#allocation16 + $0x64] sm:$0xf]
    %v1322 = vld [vmem:[#allocation16 + $0x68] sm:$0xf]
    %v1323 = vld [vmem:[#allocation16 + $0x6c] sm:$0xf]
    %v1324 = vld [vmem:[#allocation16 + $0x70] sm:$0xf]
    %v1325 = vld [vmem:[#allocation16 + $0x74] sm:$0xf]
    %v1326 = vld [vmem:[#allocation16 + $0x78] sm:$0xf]
    %v1327 = vld [vmem:[#allocation16 + $0x7c] sm:$0xf]
    %v1328 = vld [vmem:[#allocation16 + $0x80] sm:$0xf]
    %v1329 = vld [vmem:[#allocation16 + $0x84] sm:$0xf]
    %v1330 = vld [vmem:[#allocation16 + $0x88] sm:$0xf]
    %v1331 = vld [vmem:[#allocation16 + $0x8c] sm:$0xf]
    %v1332 = vld [vmem:[#allocation16 + $0x90] sm:$0xf]
    %v1333 = vld [vmem:[#allocation16 + $0x94] sm:$0xf]
    %v1334 = vld [vmem:[#allocation16 + $0x98] sm:$0xf]
    %v1335 = vld [vmem:[#allocation16 + $0x9c] sm:$0xf]
    %v1336 = vld [vmem:[#allocation16 + $0xa0] sm:$0xf]
    %v1337 = vld [vmem:[#allocation16 + $0xa4] sm:$0xf]
    %v1338 = vld [vmem:[#allocation16 + $0xa8] sm:$0xf]
    %v1339 = vld [vmem:[#allocation16 + $0xac] sm:$0xf]
    %v1340 = vld [vmem:[#allocation16 + $0xb0] sm:$0xf]
    %v1341 = vld [vmem:[#allocation16 + $0xb4] sm:$0xf]
    %v1342 = vld [vmem:[#allocation16 + $0xb8] sm:$0xf]
    %v1343 = vld [vmem:[#allocation16 + $0xbc] sm:$0xf]
    %v1344 = vld [vmem:[#allocation16 + $0xc0] sm:$0xf]
    %v1345 = vld [vmem:[#allocation16 + $0xc4] sm:$0xf]
    %v1346 = vld [vmem:[#allocation16 + $0xc8] sm:$0xf]
    %v1347 = vld [vmem:[#allocation16 + $0xcc] sm:$0xf]
    %v1348 = vld [vmem:[#allocation16 + $0xd0] sm:$0xf]
    %v1349 = vld [vmem:[#allocation16 + $0xd4] sm:$0xf]
    %v1350 = vld [vmem:[#allocation16 + $0xd8] sm:$0xf]
    %v1351 = vld [vmem:[#allocation16 + $0xdc] sm:$0xf]
    %v1352 = vld [vmem:[#allocation16 + $0xe0] sm:$0xf]
    %v1353 = vld [vmem:[#allocation16 + $0xe4] sm:$0xf]
    %v1354 = vld [vmem:[#allocation16 + $0xe8] sm:$0xf]
    %v1355 = vld [vmem:[#allocation16 + $0xec] sm:$0xf]
    %v1356 = vld [vmem:[#allocation16 + $0xf0] sm:$0xf]
    %v1357 = vld [vmem:[#allocation16 + $0xf4] sm:$0xf]
    %v1358 = vld [vmem:[#allocation16 + $0xf8] sm:$0xf]
    %v1359 = vld [vmem:[#allocation16 + $0xfc] sm:$0xf]
    %v1360 = vpack.c.bf16 %v1284, %v1280
    %v1361 = vpack.c.bf16 %v1285, %v1281
    %v1362 = vpack.c.bf16 %v1286, %v1282
    %v1363 = vpack.c.bf16 %v1287, %v1283
    %v1364 = vpack.c.bf16 %v1292, %v1288
    %v1365 = vpack.c.bf16 %v1293, %v1289
    %v1366 = vpack.c.bf16 %v1294, %v1290
    %v1367 = vpack.c.bf16 %v1295, %v1291
    %v1368 = vld [vmem:[#allocation17] sm:$0x1]
    %v1370 = vlaneseq
    %v1371 = vshrl.u32 %v1370, 7
    %v1372 = vsub.s32 0, %v1371
    %v1373 = vrot.slane %v1368, %v1372
    %v1439 = vunpack.c.l.b16 %v1296
    %v1440 = vunpack.c.l.b16 %v1297
    %v1441 = vunpack.c.l.b16 %v1298
    %v1442 = vunpack.c.l.b16 %v1299
    %v1443 = vunpack.c.l.b16 %v1300
    %v1444 = vunpack.c.l.b16 %v1301
    %v1445 = vunpack.c.l.b16 %v1302
    %v1446 = vunpack.c.l.b16 %v1303
    %v1447 = vunpack.c.l.b16 %v1304
    %v1448 = vunpack.c.l.b16 %v1305
    %v1449 = vunpack.c.l.b16 %v1306
    %v1450 = vunpack.c.l.b16 %v1307
    %v1451 = vunpack.c.l.b16 %v1308
    %v1452 = vunpack.c.l.b16 %v1309
    %v1453 = vunpack.c.l.b16 %v1310
    %v1454 = vunpack.c.l.b16 %v1311
    %v1455 = vunpack.c.l.b16 %v1312
    %v1456 = vunpack.c.l.b16 %v1313
    %v1457 = vunpack.c.l.b16 %v1314
    %v1458 = vunpack.c.l.b16 %v1315
    %v1459 = vunpack.c.l.b16 %v1316
    %v1460 = vunpack.c.l.b16 %v1317
    %v1461 = vunpack.c.l.b16 %v1318
    %v1462 = vunpack.c.l.b16 %v1319
    %v1463 = vunpack.c.l.b16 %v1320
    %v1464 = vunpack.c.l.b16 %v1321
    %v1465 = vunpack.c.l.b16 %v1322
    %v1466 = vunpack.c.l.b16 %v1323
    %v1467 = vunpack.c.l.b16 %v1324
    %v1468 = vunpack.c.l.b16 %v1325
    %v1469 = vunpack.c.l.b16 %v1326
    %v1470 = vunpack.c.l.b16 %v1327
    %v1471 = vunpack.c.l.b16 %v1328
    %v1472 = vunpack.c.l.b16 %v1329
    %v1473 = vunpack.c.l.b16 %v1330
    %v1474 = vunpack.c.l.b16 %v1331
    %v1475 = vunpack.c.l.b16 %v1332
    %v1476 = vunpack.c.l.b16 %v1333
    %v1477 = vunpack.c.l.b16 %v1334
    %v1478 = vunpack.c.l.b16 %v1335
    %v1479 = vunpack.c.l.b16 %v1336
    %v1480 = vunpack.c.l.b16 %v1337
    %v1481 = vunpack.c.l.b16 %v1338
    %v1482 = vunpack.c.l.b16 %v1339
    %v1483 = vunpack.c.l.b16 %v1340
    %v1484 = vunpack.c.l.b16 %v1341
    %v1485 = vunpack.c.l.b16 %v1342
    %v1486 = vunpack.c.l.b16 %v1343
    %v1487 = vunpack.c.l.b16 %v1344
    %v1488 = vunpack.c.l.b16 %v1345
    %v1489 = vunpack.c.l.b16 %v1346
    %v1490 = vunpack.c.l.b16 %v1347
    %v1491 = vunpack.c.l.b16 %v1348
    %v1492 = vunpack.c.l.b16 %v1349
    %v1493 = vunpack.c.l.b16 %v1350
    %v1494 = vunpack.c.l.b16 %v1351
    %v1495 = vunpack.c.l.b16 %v1352
    %v1496 = vunpack.c.l.b16 %v1353
    %v1497 = vunpack.c.l.b16 %v1354
    %v1498 = vunpack.c.l.b16 %v1355
    %v1499 = vunpack.c.l.b16 %v1356
    %v1500 = vunpack.c.l.b16 %v1357
    %v1501 = vunpack.c.l.b16 %v1358
    %v1502 = vunpack.c.l.b16 %v1359
    %v1503 = vpack.c.b16 %v1440, %v1439
    %v1504 = vpack.c.b16 %v1442, %v1441
    %v1505 = vpack.c.b16 %v1444, %v1443
    %v1506 = vpack.c.b16 %v1446, %v1445
    %v1507 = vpack.c.b16 %v1448, %v1447
    %v1508 = vpack.c.b16 %v1450, %v1449
    %v1509 = vpack.c.b16 %v1452, %v1451
    %v1510 = vpack.c.b16 %v1454, %v1453
    %v1511 = vpack.c.b16 %v1456, %v1455
    %v1512 = vpack.c.b16 %v1458, %v1457
    %v1513 = vpack.c.b16 %v1460, %v1459
    %v1514 = vpack.c.b16 %v1462, %v1461
    %v1515 = vpack.c.b16 %v1464, %v1463
    %v1516 = vpack.c.b16 %v1466, %v1465
    %v1517 = vpack.c.b16 %v1468, %v1467
    %v1518 = vpack.c.b16 %v1470, %v1469
    %v1519 = vpack.c.b16 %v1472, %v1471
    %v1520 = vpack.c.b16 %v1474, %v1473
    %v1521 = vpack.c.b16 %v1476, %v1475
    %v1522 = vpack.c.b16 %v1478, %v1477
    %v1523 = vpack.c.b16 %v1480, %v1479
    %v1524 = vpack.c.b16 %v1482, %v1481
    %v1525 = vpack.c.b16 %v1484, %v1483
    %v1526 = vpack.c.b16 %v1486, %v1485
    %v1527 = vpack.c.b16 %v1488, %v1487
    %v1528 = vpack.c.b16 %v1490, %v1489
    %v1529 = vpack.c.b16 %v1492, %v1491
    %v1530 = vpack.c.b16 %v1494, %v1493
    %v1531 = vpack.c.b16 %v1496, %v1495
    %v1532 = vpack.c.b16 %v1498, %v1497
    %v1533 = vpack.c.b16 %v1500, %v1499
    %v1534 = vpack.c.b16 %v1502, %v1501
    %1567 = vmatprep.subr.bf16.mxu0 0
    %1568 = vmatpush1.bf16.msra.mxu0 %v1503
    %1569 = vmatprep.subr.bf16.mxu0 0
    %1570 = vmatpush1.bf16.msra.mxu0 %v1504
    %1571 = vmatprep.subr.bf16.mxu0 0
    %1572 = vmatpush1.bf16.msra.mxu0 %v1505
    %1573 = vmatprep.subr.bf16.mxu0 0
    %1574 = vmatpush1.bf16.msra.mxu0 %v1506
    %1575 = vmatprep.subr.bf16.mxu0 0
    %1576 = vmatpush1.bf16.msra.mxu0 %v1507
    %1577 = vmatprep.subr.bf16.mxu0 0
    %1578 = vmatpush1.bf16.msra.mxu0 %v1508
    %1579 = vmatprep.subr.bf16.mxu0 0
    %1580 = vmatpush1.bf16.msra.mxu0 %v1509
    %1581 = vmatprep.subr.bf16.mxu0 0
    %1582 = vmatpush1.bf16.msra.mxu0 %v1510
    %1583 = vmatprep.subr.bf16.mxu0 0
    %1584 = vmatpush1.bf16.msra.mxu0 %v1511
    %1585 = vmatprep.subr.bf16.mxu0 0
    %1586 = vmatpush1.bf16.msra.mxu0 %v1512
    %1587 = vmatprep.subr.bf16.mxu0 0
    %1588 = vmatpush1.bf16.msra.mxu0 %v1513
    %1589 = vmatprep.subr.bf16.mxu0 0
    %1590 = vmatpush1.bf16.msra.mxu0 %v1514
    %1591 = vmatprep.subr.bf16.mxu0 0
    %1592 = vmatpush1.bf16.msra.mxu0 %v1515
    %1593 = vmatprep.subr.bf16.mxu0 0
    %1594 = vmatpush1.bf16.msra.mxu0 %v1516
    %1595 = vmatprep.subr.bf16.mxu0 0
    %1596 = vmatpush1.bf16.msra.mxu0 %v1517
    %1597 = vmatprep.subr.bf16.mxu0 0
    %1598 = vmatpush1.bf16.msra.mxu0 %v1518
    %1599 = vmatprep.mubr.bf16.mxu0 %v1361
    %1600 = vmatmul.mubr.bf16.gmra.mrb[0].mxu0 %v1360
    %v1601 = vpop.f32.mrb[0].mxu0
    %v1602 = vadd.f32 %v1373, %v1601
    %v1603 = vpop.f32.mrb[0].mxu0
    %v1604 = vpop.f32.mrb[0].mxu0
    %v1605 = vadd.f32 %v1373, %v1604
    %v1606 = vpop.f32.mrb[0].mxu0
    %1607 = vmatprep.mubr.bf16.mxu0 %v1365
    %1608 = vmatmul.mubr.bf16.gmra.mrb[0].mxu0 %v1364
    %v1609 = vpop.f32.mrb[0].mxu0
    %v1610 = vadd.f32 %v1373, %v1609
    %v1611 = vpop.f32.mrb[0].mxu0
    %v1612 = vpop.f32.mrb[0].mxu0
    %v1613 = vadd.f32 %v1373, %v1612
    %v1614 = vpop.f32.mrb[0].mxu0
    %1615 = vdwg.mxu0
    %1616 = vmatprep.subr.bf16.mxu0 0
    %1617 = vmatpush1.bf16.msra.mxu0 %v1519
    %1618 = vmatprep.subr.bf16.mxu0 0
    %1619 = vmatpush1.bf16.msra.mxu0 %v1520
    %1620 = vmatprep.subr.bf16.mxu0 0
    %1621 = vmatpush1.bf16.msra.mxu0 %v1521
    %1622 = vmatprep.subr.bf16.mxu0 0
    %1623 = vmatpush1.bf16.msra.mxu0 %v1522
    %1624 = vmatprep.subr.bf16.mxu0 0
    %1625 = vmatpush1.bf16.msra.mxu0 %v1523
    %1626 = vmatprep.subr.bf16.mxu0 0
    %1627 = vmatpush1.bf16.msra.mxu0 %v1524
    %1628 = vmatprep.subr.bf16.mxu0 0
    %1629 = vmatpush1.bf16.msra.mxu0 %v1525
    %1630 = vmatprep.subr.bf16.mxu0 0
    %1631 = vmatpush1.bf16.msra.mxu0 %v1526
    %1632 = vmatprep.subr.bf16.mxu0 0
    %1633 = vmatpush1.bf16.msra.mxu0 %v1527
    %1634 = vmatprep.subr.bf16.mxu0 0
    %1635 = vmatpush1.bf16.msra.mxu0 %v1528
    %1636 = vmatprep.subr.bf16.mxu0 0
    %1637 = vmatpush1.bf16.msra.mxu0 %v1529
    %1638 = vmatprep.subr.bf16.mxu0 0
    %1639 = vmatpush1.bf16.msra.mxu0 %v1530
    %1640 = vmatprep.subr.bf16.mxu0 0
    %1641 = vmatpush1.bf16.msra.mxu0 %v1531
    %1642 = vmatprep.subr.bf16.mxu0 0
    %1643 = vmatpush1.bf16.msra.mxu0 %v1532
    %1644 = vmatprep.subr.bf16.mxu0 0
    %1645 = vmatpush1.bf16.msra.mxu0 %v1533
    %1646 = vmatprep.subr.bf16.mxu0 0
    %1647 = vmatpush1.bf16.msra.mxu0 %v1534
    %1648 = vmatprep.mubr.bf16.mxu0 %v1363
    %1649 = vmatmul.mubr.bf16.gmra.mrb[0].mxu0 %v1362
    %v1650 = vpop.f32.mrb[0].mxu0
    %v1651 = vadd.f32 %v1602, %v1650
    %v1652 = vpop.f32.mrb[0].mxu0
    %v1653 = vpop.f32.mrb[0].mxu0
    %v1654 = vadd.f32 %v1605, %v1653
    %v1655 = vpop.f32.mrb[0].mxu0
    %1656 = vmatprep.mubr.bf16.mxu0 %v1367
    %1657 = vmatmul.mubr.bf16.gmra.mrb[0].mxu0 %v1366
    %v1658 = vpop.f32.mrb[0].mxu0
    %v1659 = vadd.f32 %v1610, %v1658
    %v1660 = vpop.f32.mrb[0].mxu0
    %v1661 = vpop.f32.mrb[0].mxu0
    %v1662 = vadd.f32 %v1613, %v1661
    %v1663 = vpop.f32.mrb[0].mxu0
    %1664 = vdwg.mxu0
    %v1665 = vadd.f32 %v954, %v1651
    %v1666 = vadd.f32 %v955, %v1654
    %v1667 = vadd.f32 %v956, %v1659
    %v1668 = vadd.f32 %v957, %v1662
    %v1669 = vld [vmem:[#allocation19] sm:$0x1]
    %v1670 = vld [vmem:[#allocation20] sm:$0x1]
    %1671 = vadd.xlane.f32.xlu0 %v1665
    %v1672 = vpop.xlane.xlu0 %1671
    %1673 = vadd.xlane.f32.xlu0 %v1666
    %v1674 = vpop.xlane.xlu0 %1673
    %1675 = vadd.xlane.f32.xlu0 %v1667
    %v1676 = vpop.xlane.xlu0 %1675
    %1677 = vadd.xlane.f32.xlu0 %v1668
    %v1678 = vpop.xlane.xlu0 %1677
    %v1679 = vmul.f32 %v1672, %v893
    %v1680 = vmul.f32 %v1674, %v893
    %v1681 = vmul.f32 %v1676, %v893
    %v1682 = vmul.f32 %v1678, %v893
    %v1683 = vmul.f32 %v1665, %v1665
    %v1684 = vmul.f32 %v1666, %v1666
    %v1685 = vmul.f32 %v1667, %v1667
    %v1686 = vmul.f32 %v1668, %v1668
    %1687 = vadd.xlane.f32.xlu0 %v1683
    %v1688 = vpop.xlane.xlu0 %1687
    %1689 = vadd.xlane.f32.xlu0 %v1684
    %v1690 = vpop.xlane.xlu0 %1689
    %1691 = vadd.xlane.f32.xlu0 %v1685
    %v1692 = vpop.xlane.xlu0 %1691
    %1693 = vadd.xlane.f32.xlu0 %v1686
    %v1694 = vpop.xlane.xlu0 %1693
    %v1695 = vmul.f32 %v1688, %v893
    %v1696 = vmul.f32 %v1690, %v893
    %v1697 = vmul.f32 %v1692, %v893
    %v1698 = vmul.f32 %v1694, %v893
    %v1699 = vmul.f32 %v1679, %v1679
    %v1700 = vmul.f32 %v1680, %v1680
    %v1701 = vmul.f32 %v1681, %v1681
    %v1702 = vmul.f32 %v1682, %v1682
    %v1703 = vsub.f32 %v1695, %v1699
    %v1704 = vsub.f32 %v1696, %v1700
    %v1705 = vsub.f32 %v1697, %v1701
    %v1706 = vsub.f32 %v1698, %v1702
    %v1707 = vsub.f32 %v1665, %v1679
    %v1708 = vsub.f32 %v1666, %v1680
    %v1709 = vsub.f32 %v1667, %v1681
    %v1710 = vsub.f32 %v1668, %v1682
    %v1711 = vadd.f32 %v1703, 1e-05
    %v1712 = vadd.f32 %v1704, 1e-05
    %v1713 = vadd.f32 %v1705, 1e-05
    %v1714 = vadd.f32 %v1706, 1e-05
    %v1715 = vrsqrt.pop %v1711
    %v1716 = vrsqrt.pop %v1712
    %v1717 = vrsqrt.pop %v1713
    %v1718 = vrsqrt.pop %v1714
    %v1719 = vmul.f32 %v1707, %v1715
    %v1720 = vmul.f32 %v1708, %v1716
    %v1721 = vmul.f32 %v1709, %v1717
    %v1722 = vmul.f32 %v1710, %v1718
    %v1724 = vlaneseq
    %v1725 = vshrl.u32 %v1724, 7
    %v1726 = vsub.s32 0, %v1725
    %v1727 = vrot.slane %v1669, %v1726
    %v1729 = vmul.f32 %v1719, %v1727
    %v1730 = vmul.f32 %v1720, %v1727
    %v1731 = vmul.f32 %v1721, %v1727
    %v1732 = vmul.f32 %v1722, %v1727
    %v1734 = vlaneseq
    %v1735 = vshrl.u32 %v1734, 7
    %v1736 = vsub.s32 0, %v1735
    %v1737 = vrot.slane %v1670, %v1736
    %v1739 = vadd.f32 %v1729, %v1737
    %v1740 = vadd.f32 %v1730, %v1737
    %v1741 = vadd.f32 %v1731, %v1737
    %v1742 = vadd.f32 %v1732, %v1737
    %s1743 = scalar_lea.vmem [#allocation2], 192
    %v1744 = vld [vmem:[%s1743] sm:$0xff]
    %v1745 = vld [vmem:[%s1743 + $0x8] sm:$0xf]
    %v1746 = vld [vmem:[%s1743 + $0xc] sm:$0xff]
    %v1747 = vld [vmem:[%s1743 + $0x14] sm:$0xf]
    %v1748 = vld [vmem:[%s1743 + $0x18] sm:$0xff]
    %v1749 = vld [vmem:[%s1743 + $0x20] sm:$0xf]
    %v1750 = vld [vmem:[%s1743 + $0x24] sm:$0xff]
    %v1751 = vld [vmem:[%s1743 + $0x2c] sm:$0xf]
    %v1752 = vld [vmem:[%s1743 + $0x30] sm:$0xff]
    %v1753 = vld [vmem:[%s1743 + $0x38] sm:$0xf]
    %v1754 = vld [vmem:[%s1743 + $0x3c] sm:$0xff]
    %v1755 = vld [vmem:[%s1743 + $0x44] sm:$0xf]
    %v1756 = vld [vmem:[%s1743 + $0x48] sm:$0xff]
    %v1757 = vld [vmem:[%s1743 + $0x50] sm:$0xf]
    %v1758 = vld [vmem:[%s1743 + $0x54] sm:$0xff]
    %v1759 = vld [vmem:[%s1743 + $0x5c] sm:$0xf]
    %v1760 = vld [vmem:[%s1743 + $0x60] sm:$0xff]
    %v1761 = vld [vmem:[%s1743 + $0x68] sm:$0xf]
    %v1762 = vld [vmem:[%s1743 + $0x6c] sm:$0xff]
    %v1763 = vld [vmem:[%s1743 + $0x74] sm:$0xf]
    %v1764 = vld [vmem:[%s1743 + $0x78] sm:$0xff]
    %v1765 = vld [vmem:[%s1743 + $0x80] sm:$0xf]
    %v1766 = vld [vmem:[%s1743 + $0x84] sm:$0xff]
    %v1767 = vld [vmem:[%s1743 + $0x8c] sm:$0xf]
    %v1768 = vld [vmem:[%s1743 + $0x90] sm:$0xff]
    %v1769 = vld [vmem:[%s1743 + $0x98] sm:$0xf]
    %v1770 = vld [vmem:[%s1743 + $0x9c] sm:$0xff]
    %v1771 = vld [vmem:[%s1743 + $0xa4] sm:$0xf]
    %v1772 = vld [vmem:[%s1743 + $0xa8] sm:$0xff]
    %v1773 = vld [vmem:[%s1743 + $0xb0] sm:$0xf]
    %v1774 = vld [vmem:[%s1743 + $0xb4] sm:$0xff]
    %v1775 = vld [vmem:[%s1743 + $0xbc] sm:$0xf]
    %v1776 = vpack.c.bf16 %v1740, %v1739
    %v1777 = vpack.c.bf16 %v1742, %v1741
    %s1778 = scalar_lea.vmem [#allocation5], 3
    %v1779 = vld [vmem:[%s1778] sm:$0x7]
    %v1781 = vlaneseq
    %v1782 = vshrl.u32 %v1781, 7
    %v1783 = vsub.s32 0, %v1782
    %v1784 = vrot.slane %v1779, %v1783
    %v1785 = vlaneseq
    %v1786 = vshrl.u32 %v1785, 7
    %v1787 = vsub.s32 1, %v1786
    %v1788 = vrot.slane %v1779, %v1787
    %v1789 = vlaneseq
    %v1790 = vshrl.u32 %v1789, 7
    %v1791 = vsub.s32 2, %v1790
    %v1792 = vrot.slane %v1779, %v1791
    %v1828 = vunpack.c.l.b16 %v1744
    %v1829 = vunpack.c.h.b16 %v1744
    %v1830 = vunpack.c.l.b16 %v1745
    %v1831 = vunpack.c.l.b16 %v1746
    %v1832 = vunpack.c.h.b16 %v1746
    %v1833 = vunpack.c.l.b16 %v1747
    %v1834 = vunpack.c.l.b16 %v1748
    %v1835 = vunpack.c.h.b16 %v1748
    %v1836 = vunpack.c.l.b16 %v1749
    %v1837 = vunpack.c.l.b16 %v1750
    %v1838 = vunpack.c.h.b16 %v1750
    %v1839 = vunpack.c.l.b16 %v1751
    %v1840 = vunpack.c.l.b16 %v1752
    %v1841 = vunpack.c.h.b16 %v1752
    %v1842 = vunpack.c.l.b16 %v1753
    %v1843 = vunpack.c.l.b16 %v1754
    %v1844 = vunpack.c.h.b16 %v1754
    %v1845 = vunpack.c.l.b16 %v1755
    %v1846 = vunpack.c.l.b16 %v1756
    %v1847 = vunpack.c.h.b16 %v1756
    %v1848 = vunpack.c.l.b16 %v1757
    %v1849 = vunpack.c.l.b16 %v1758
    %v1850 = vunpack.c.h.b16 %v1758
    %v1851 = vunpack.c.l.b16 %v1759
    %v1852 = vunpack.c.l.b16 %v1760
    %v1853 = vunpack.c.h.b16 %v1760
    %v1854 = vunpack.c.l.b16 %v1761
    %v1855 = vunpack.c.l.b16 %v1762
    %v1856 = vunpack.c.h.b16 %v1762
    %v1857 = vunpack.c.l.b16 %v1763
    %v1858 = vunpack.c.l.b16 %v1764
    %v1859 = vunpack.c.h.b16 %v1764
    %v1860 = vunpack.c.l.b16 %v1765
    %v1861 = vunpack.c.l.b16 %v1766
    %v1862 = vunpack.c.h.b16 %v1766
    %v1863 = vunpack.c.l.b16 %v1767
    %v1864 = vunpack.c.l.b16 %v1768
    %v1865 = vunpack.c.h.b16 %v1768
    %v1866 = vunpack.c.l.b16 %v1769
    %v1867 = vunpack.c.l.b16 %v1770
    %v1868 = vunpack.c.h.b16 %v1770
    %v1869 = vunpack.c.l.b16 %v1771
    %v1870 = vunpack.c.l.b16 %v1772
    %v1871 = vunpack.c.h.b16 %v1772
    %v1872 = vunpack.c.l.b16 %v1773
    %v1873 = vunpack.c.l.b16 %v1774
    %v1874 = vunpack.c.h.b16 %v1774
    %v1875 = vunpack.c.l.b16 %v1775
    %v1876 = vpack.c.b16 %v1831, %v1828
    %v1877 = vpack.c.b16 %v1832, %v1829
    %v1878 = vpack.c.b16 %v1833, %v1830
    %v1879 = vpack.c.b16 %v1837, %v1834
    %v1880 = vpack.c.b16 %v1838, %v1835
    %v1881 = vpack.c.b16 %v1839, %v1836
    %v1882 = vpack.c.b16 %v1843, %v1840
    %v1883 = vpack.c.b16 %v1844, %v1841
    %v1884 = vpack.c.b16 %v1845, %v1842
    %v1885 = vpack.c.b16 %v1849, %v1846
    %v1886 = vpack.c.b16 %v1850, %v1847
    %v1887 = vpack.c.b16 %v1851, %v1848
    %v1888 = vpack.c.b16 %v1855, %v1852
    %v1889 = vpack.c.b16 %v1856, %v1853
    %v1890 = vpack.c.b16 %v1857, %v1854
    %v1891 = vpack.c.b16 %v1861, %v1858
    %v1892 = vpack.c.b16 %v1862, %v1859
    %v1893 = vpack.c.b16 %v1863, %v1860
    %v1894 = vpack.c.b16 %v1867, %v1864
    %v1895 = vpack.c.b16 %v1868, %v1865
    %v1896 = vpack.c.b16 %v1869, %v1866
    %v1897 = vpack.c.b16 %v1873, %v1870
    %v1898 = vpack.c.b16 %v1874, %v1871
    %v1899 = vpack.c.b16 %v1875, %v1872
    %1924 = vmatprep.subr.bf16.mxu0 %v1877
    %1925 = vmatpush1.bf16.msra.mxu0 %v1876
    %1926 = vmatprep.subr.bf16.mxu0 %v1880
    %1927 = vmatpush1.bf16.msra.mxu0 %v1879
    %1928 = vmatprep.subr.bf16.mxu0 %v1883
    %1929 = vmatpush1.bf16.msra.mxu0 %v1882
    %1930 = vmatprep.subr.bf16.mxu0 %v1886
    %1931 = vmatpush1.bf16.msra.mxu0 %v1885
    %1932 = vmatprep.subr.bf16.mxu0 %v1889
    %1933 = vmatpush1.bf16.msra.mxu0 %v1888
    %1934 = vmatprep.subr.bf16.mxu0 %v1892
    %1935 = vmatpush1.bf16.msra.mxu0 %v1891
    %1936 = vmatprep.subr.bf16.mxu0 %v1895
    %1937 = vmatpush1.bf16.msra.mxu0 %v1894
    %1938 = vmatprep.subr.bf16.mxu0 %v1898
    %1939 = vmatpush1.bf16.msra.mxu0 %v1897
    %1940 = vmatprep.subr.bf16.mxu0 0
    %1941 = vmatpush1.bf16.msra.mxu0 0
    %1942 = vmatprep.subr.bf16.mxu0 0
    %1943 = vmatpush1.bf16.msra.mxu0 0
    %1944 = vmatprep.subr.bf16.mxu0 0
    %1945 = vmatpush1.bf16.msra.mxu0 0
    %1946 = vmatprep.subr.bf16.mxu0 0
    %1947 = vmatpush1.bf16.msra.mxu0 0
    %1948 = vmatprep.subr.bf16.mxu0 0
    %1949 = vmatpush1.bf16.msra.mxu0 0
    %1950 = vmatprep.subr.bf16.mxu0 0
    %1951 = vmatpush1.bf16.msra.mxu0 0
    %1952 = vmatprep.subr.bf16.mxu0 0
    %1953 = vmatpush1.bf16.msra.mxu0 0
    %1954 = vmatprep.subr.bf16.mxu0 0
    %1955 = vmatpush1.bf16.msra.mxu0 0
    %1956 = vmatprep.mubr.bf16.mxu0 0
    %1957 = vmatmul.mubr.bf16.gmra.mrb[0].mxu0 %v1776
    %v1958 = vpop.f32.mrb[0].mxu0
    %v1959 = vadd.f32 %v1784, %v1958
    %v1960 = vpop.f32.mrb[0].mxu0
    %v1961 = vadd.f32 %v1788, %v1960
    %v1962 = vpop.f32.mrb[0].mxu0
    %v1963 = vadd.f32 %v1784, %v1962
    %v1964 = vpop.f32.mrb[0].mxu0
    %v1965 = vadd.f32 %v1788, %v1964
    %1966 = vmatprep.mubr.bf16.mxu0 0
    %1967 = vmatmul.mubr.bf16.gmra.mrb[0].mxu0 %v1777
    %v1968 = vpop.f32.mrb[0].mxu0
    %v1969 = vadd.f32 %v1784, %v1968
    %v1970 = vpop.f32.mrb[0].mxu0
    %v1971 = vadd.f32 %v1788, %v1970
    %v1972 = vpop.f32.mrb[0].mxu0
    %v1973 = vadd.f32 %v1784, %v1972
    %v1974 = vpop.f32.mrb[0].mxu0
    %v1975 = vadd.f32 %v1788, %v1974
    %1976 = vdwg.mxu0
    %1977 = vmatprep.subr.bf16.mxu0 0
    %1978 = vmatpush1.bf16.msra.mxu0 %v1878
    %1979 = vmatprep.subr.bf16.mxu0 0
    %1980 = vmatpush1.bf16.msra.mxu0 %v1881
    %1981 = vmatprep.subr.bf16.mxu0 0
    %1982 = vmatpush1.bf16.msra.mxu0 %v1884
    %1983 = vmatprep.subr.bf16.mxu0 0
    %1984 = vmatpush1.bf16.msra.mxu0 %v1887
    %1985 = vmatprep.subr.bf16.mxu0 0
    %1986 = vmatpush1.bf16.msra.mxu0 %v1890
    %1987 = vmatprep.subr.bf16.mxu0 0
    %1988 = vmatpush1.bf16.msra.mxu0 %v1893
    %1989 = vmatprep.subr.bf16.mxu0 0
    %1990 = vmatpush1.bf16.msra.mxu0 %v1896
    %1991 = vmatprep.subr.bf16.mxu0 0
    %1992 = vmatpush1.bf16.msra.mxu0 %v1899
    %1993 = vmatprep.subr.bf16.mxu0 0
    %1994 = vmatpush1.bf16.msra.mxu0 0
    %1995 = vmatprep.subr.bf16.mxu0 0
    %1996 = vmatpush1.bf16.msra.mxu0 0
    %1997 = vmatprep.subr.bf16.mxu0 0
    %1998 = vmatpush1.bf16.msra.mxu0 0
    %1999 = vmatprep.subr.bf16.mxu0 0
    %2000 = vmatpush1.bf16.msra.mxu0 0
    %2001 = vmatprep.subr.bf16.mxu0 0
    %2002 = vmatpush1.bf16.msra.mxu0 0
    %2003 = vmatprep.subr.bf16.mxu0 0
    %2004 = vmatpush1.bf16.msra.mxu0 0
    %2005 = vmatprep.subr.bf16.mxu0 0
    %2006 = vmatpush1.bf16.msra.mxu0 0
    %2007 = vmatprep.subr.bf16.mxu0 0
    %2008 = vmatpush1.bf16.msra.mxu0 0
    %2009 = vmatprep.mubr.bf16.mxu0 0
    %2010 = vmatmul.mubr.bf16.gmra.mrb[0].mxu0 %v1776
    %v2011 = vpop.f32.mrb[0].mxu0
    %v2012 = vadd.f32 %v1792, %v2011
    %v2013 = vpop.f32.mrb[0].mxu0
    %v2014 = vpop.f32.mrb[0].mxu0
    %v2015 = vadd.f32 %v1792, %v2014
    %v2016 = vpop.f32.mrb[0].mxu0
    %2017 = vmatprep.mubr.bf16.mxu0 0
    %2018 = vmatmul.mubr.bf16.gmra.mrb[0].mxu0 %v1777
    %v2019 = vpop.f32.mrb[0].mxu0
    %v2020 = vadd.f32 %v1792, %v2019
    %v2021 = vpop.f32.mrb[0].mxu0
    %v2022 = vpop.f32.mrb[0].mxu0
    %v2023 = vadd.f32 %v1792, %v2022
    %v2024 = vpop.f32.mrb[0].mxu0
    %2025 = vdwg.mxu0
    %v2026 = vpack.c.bf16 %v1963, %v1959
    %v2027 = vpack.c.bf16 %v1973, %v1969
    %v2028 = vpack.c.bf16 %v1965, %v1961
    %v2029 = vpack.c.bf16 %v1975, %v1971
    %2030 = vmatprep.subr.bf16.mxu0 0
    %2031 = vmatpush1.bf16.xpose.msra.mxu0 %v2028
    %2032 = vmatprep.subr.bf16.mxu0 0
    %2033 = vmatpush1.bf16.xpose.msra.mxu0 0
    %2034 = vmatprep.subr.bf16.mxu0 0
    %2035 = vmatpush1.bf16.xpose.msra.mxu0 0
    %2036 = vmatprep.subr.bf16.mxu0 0
    %2037 = vmatpush1.bf16.xpose.msra.mxu0 0
    %2038 = vmatprep.subr.bf16.mxu0 0
    %2039 = vmatpush1.bf16.xpose.msra.mxu0 0
    %2040 = vmatprep.subr.bf16.mxu0 0
    %2041 = vmatpush1.bf16.xpose.msra.mxu0 0
    %2042 = vmatprep.subr.bf16.mxu0 0
    %2043 = vmatpush1.bf16.xpose.msra.mxu0 0
    %2044 = vmatprep.subr.bf16.mxu0 0
    %2045 = vmatpush1.bf16.xpose.msra.mxu0 0
    %2046 = vmatprep.subr.bf16.mxu0 0
    %2047 = vmatpush1.bf16.xpose.msra.mxu0 0
    %2048 = vmatprep.subr.bf16.mxu0 0
    %2049 = vmatpush1.bf16.xpose.msra.mxu0 0
    %2050 = vmatprep.subr.bf16.mxu0 0
    %2051 = vmatpush1.bf16.xpose.msra.mxu0 0
    %2052 = vmatprep.subr.bf16.mxu0 0
    %2053 = vmatpush1.bf16.xpose.msra.mxu0 0
    %2054 = vmatprep.subr.bf16.mxu0 0
    %2055 = vmatpush1.bf16.xpose.msra.mxu0 0
    %2056 = vmatprep.subr.bf16.mxu0 0
    %2057 = vmatpush1.bf16.xpose.msra.mxu0 0
    %2058 = vmatprep.subr.bf16.mxu0 0
    %2059 = vmatpush1.bf16.xpose.msra.mxu0 0
    %2060 = vmatprep.subr.bf16.mxu0 0
    %2061 = vmatpush1.bf16.xpose.msra.mxu0 0
    %2062 = vmatprep.mubr.bf16.mxu0 0
    %2063 = vmatmul.mubr.bf16.gmra.mrb[0].mxu0 %v2026
    %v2064 = vpop.f32.mrb[0].mxu0
    %v2065 = vadd.f32 %v251, %v2064
    %v2066 = vpop.f32.mrb[0].mxu0
    %v2067 = vpop.f32.mrb[0].mxu0
    %v2068 = vadd.f32 %v252, %v2067
    %v2069 = vpop.f32.mrb[0].mxu0
    %2070 = vdwg.mxu0
    %2071 = vmatprep.subr.bf16.mxu0 0
    %2072 = vmatpush1.bf16.xpose.msra.mxu0 %v2029
    %2073 = vmatprep.subr.bf16.mxu0 0
    %2074 = vmatpush1.bf16.xpose.msra.mxu0 0
    %2075 = vmatprep.subr.bf16.mxu0 0
    %2076 = vmatpush1.bf16.xpose.msra.mxu0 0
    %2077 = vmatprep.subr.bf16.mxu0 0
    %2078 = vmatpush1.bf16.xpose.msra.mxu0 0
    %2079 = vmatprep.subr.bf16.mxu0 0
    %2080 = vmatpush1.bf16.xpose.msra.mxu0 0
    %2081 = vmatprep.subr.bf16.mxu0 0
    %2082 = vmatpush1.bf16.xpose.msra.mxu0 0
    %2083 = vmatprep.subr.bf16.mxu0 0
    %2084 = vmatpush1.bf16.xpose.msra.mxu0 0
    %2085 = vmatprep.subr.bf16.mxu0 0
    %2086 = vmatpush1.bf16.xpose.msra.mxu0 0
    %2087 = vmatprep.subr.bf16.mxu0 0
    %2088 = vmatpush1.bf16.xpose.msra.mxu0 0
    %2089 = vmatprep.subr.bf16.mxu0 0
    %2090 = vmatpush1.bf16.xpose.msra.mxu0 0
    %2091 = vmatprep.subr.bf16.mxu0 0
    %2092 = vmatpush1.bf16.xpose.msra.mxu0 0
    %2093 = vmatprep.subr.bf16.mxu0 0
    %2094 = vmatpush1.bf16.xpose.msra.mxu0 0
    %2095 = vmatprep.subr.bf16.mxu0 0
    %2096 = vmatpush1.bf16.xpose.msra.mxu0 0
    %2097 = vmatprep.subr.bf16.mxu0 0
    %2098 = vmatpush1.bf16.xpose.msra.mxu0 0
    %2099 = vmatprep.subr.bf16.mxu0 0
    %2100 = vmatpush1.bf16.xpose.msra.mxu0 0
    %2101 = vmatprep.subr.bf16.mxu0 0
    %2102 = vmatpush1.bf16.xpose.msra.mxu0 0
    %2103 = vmatprep.mubr.bf16.mxu0 0
    %2104 = vmatmul.mubr.bf16.gmra.mrb[0].mxu0 %v2027
    %v2105 = vpop.f32.mrb[0].mxu0
    %v2106 = vadd.f32 %v251, %v2105
    %v2107 = vpop.f32.mrb[0].mxu0
    %v2108 = vpop.f32.mrb[0].mxu0
    %v2109 = vadd.f32 %v252, %v2108
    %v2110 = vpop.f32.mrb[0].mxu0
    %2111 = vdwg.mxu0
    %v2112 = vsel %vm620, %v2065, -inf
    %2113 = vmax.xlane.f32.xlu0 %v2112
    %v2114 = vpop.xlane.xlu0 %2113
    %v2115 = vsel %vm620, %v2068, -inf
    %2116 = vmax.xlane.f32.xlu0 %v2115
    %v2117 = vpop.xlane.xlu0 %2116
    %v2118 = vsel %vm620, %v2106, -inf
    %2119 = vmax.xlane.f32.xlu0 %v2118
    %v2120 = vpop.xlane.xlu0 %2119
    %v2121 = vsel %vm620, %v2109, -inf
    %2122 = vmax.xlane.f32.xlu0 %v2121
    %v2123 = vpop.xlane.xlu0 %2122
    %v2124 = vsub.f32 %v2065, %v2114
    %v2125 = vsub.f32 %v2068, %v2117
    %v2126 = vsub.f32 %v2106, %v2120
    %v2127 = vsub.f32 %v2109, %v2123
    %v2128 = vmul.f32 %v2124, 1.442695
    %v2129 = vpow.pop %v2128
    %v2130 = vmul.f32 %v2125, 1.442695
    %v2131 = vpow.pop %v2130
    %v2132 = vmul.f32 %v2126, 1.442695
    %v2133 = vpow.pop %v2132
    %v2134 = vmul.f32 %v2127, 1.442695
    %v2135 = vpow.pop %v2134
    %v2136 = vsel %vm620, %v2129, 0.0
    %2137 = vadd.xlane.f32.xlu0 %v2136
    %v2138 = vpop.xlane.xlu0 %2137
    %v2139 = vsel %vm620, %v2131, 0.0
    %2140 = vadd.xlane.f32.xlu0 %v2139
    %v2141 = vpop.xlane.xlu0 %2140
    %v2142 = vsel %vm620, %v2133, 0.0
    %2143 = vadd.xlane.f32.xlu0 %v2142
    %v2144 = vpop.xlane.xlu0 %2143
    %v2145 = vsel %vm620, %v2135, 0.0
    %2146 = vadd.xlane.f32.xlu0 %v2145
    %v2147 = vpop.xlane.xlu0 %2146
    %v2148 = vrcp.pop %v2138
    %v2149 = vrcp.pop %v2141
    %v2150 = vrcp.pop %v2144
    %v2151 = vrcp.pop %v2147
    %v2152 = vmul.f32 %v2129, %v2148
    %v2153 = vmul.f32 %v2131, %v2149
    %v2154 = vmul.f32 %v2133, %v2150
    %v2155 = vmul.f32 %v2135, %v2151
    %v2156 = vpack.c.bf16 %v2153, %v2152
    %v2157 = vpack.c.bf16 %v2155, %v2154
    %v2158 = vpack.c.bf16 %v2015, %v2012
    %v2159 = vpack.c.bf16 %v2023, %v2020
    %v2161 = vsel %vm620, %v2156, 0
    %2163 = vmatprep.subr.bf16.mxu0 0
    %2164 = vmatpush1.bf16.msra.mxu0 %v2158
    %2165 = vmatprep.subr.bf16.mxu0 0
    %2166 = vmatpush1.bf16.msra.mxu0 0
    %2167 = vmatprep.subr.bf16.mxu0 0
    %2168 = vmatpush1.bf16.msra.mxu0 0
    %2169 = vmatprep.subr.bf16.mxu0 0
    %2170 = vmatpush1.bf16.msra.mxu0 0
    %2171 = vmatprep.subr.bf16.mxu0 0
    %2172 = vmatpush1.bf16.msra.mxu0 0
    %2173 = vmatprep.subr.bf16.mxu0 0
    %2174 = vmatpush1.bf16.msra.mxu0 0
    %2175 = vmatprep.subr.bf16.mxu0 0
    %2176 = vmatpush1.bf16.msra.mxu0 0
    %2177 = vmatprep.subr.bf16.mxu0 0
    %2178 = vmatpush1.bf16.msra.mxu0 0
    %2179 = vmatprep.subr.bf16.mxu0 0
    %2180 = vmatpush1.bf16.msra.mxu0 0
    %2181 = vmatprep.subr.bf16.mxu0 0
    %2182 = vmatpush1.bf16.msra.mxu0 0
    %2183 = vmatprep.subr.bf16.mxu0 0
    %2184 = vmatpush1.bf16.msra.mxu0 0
    %2185 = vmatprep.subr.bf16.mxu0 0
    %2186 = vmatpush1.bf16.msra.mxu0 0
    %2187 = vmatprep.subr.bf16.mxu0 0
    %2188 = vmatpush1.bf16.msra.mxu0 0
    %2189 = vmatprep.subr.bf16.mxu0 0
    %2190 = vmatpush1.bf16.msra.mxu0 0
    %2191 = vmatprep.subr.bf16.mxu0 0
    %2192 = vmatpush1.bf16.msra.mxu0 0
    %2193 = vmatprep.subr.bf16.mxu0 0
    %2194 = vmatpush1.bf16.msra.mxu0 0
    %2195 = vmatprep.mubr.bf16.mxu0 0
    %2196 = vmatmul.mubr.bf16.gmra.mrb[0].mxu0 %v2161
    %v2197 = vpop.f32.mrb[0].mxu0
    %v2198 = vadd.f32 0.0, %v2197
    %v2199 = vpop.f32.mrb[0].mxu0
    %v2200 = vpop.f32.mrb[0].mxu0
    %v2201 = vadd.f32 0.0, %v2200
    %v2202 = vpop.f32.mrb[0].mxu0
    %2203 = vdwg.mxu0
    %v2205 = vsel %vm620, %v2157, 0
    %2207 = vmatprep.subr.bf16.mxu0 0
    %2208 = vmatpush1.bf16.msra.mxu0 %v2159
    %2209 = vmatprep.subr.bf16.mxu0 0
    %2210 = vmatpush1.bf16.msra.mxu0 0
    %2211 = vmatprep.subr.bf16.mxu0 0
    %2212 = vmatpush1.bf16.msra.mxu0 0
    %2213 = vmatprep.subr.bf16.mxu0 0
    %2214 = vmatpush1.bf16.msra.mxu0 0
    %2215 = vmatprep.subr.bf16.mxu0 0
    %2216 = vmatpush1.bf16.msra.mxu0 0
    %2217 = vmatprep.subr.bf16.mxu0 0
    %2218 = vmatpush1.bf16.msra.mxu0 0
    %2219 = vmatprep.subr.bf16.mxu0 0
    %2220 = vmatpush1.bf16.msra.mxu0 0
    %2221 = vmatprep.subr.bf16.mxu0 0
    %2222 = vmatpush1.bf16.msra.mxu0 0
    %2223 = vmatprep.subr.bf16.mxu0 0
    %2224 = vmatpush1.bf16.msra.mxu0 0
    %2225 = vmatprep.subr.bf16.mxu0 0
    %2226 = vmatpush1.bf16.msra.mxu0 0
    %2227 = vmatprep.subr.bf16.mxu0 0
    %2228 = vmatpush1.bf16.msra.mxu0 0
    %2229 = vmatprep.subr.bf16.mxu0 0
    %2230 = vmatpush1.bf16.msra.mxu0 0
    %2231 = vmatprep.subr.bf16.mxu0 0
    %2232 = vmatpush1.bf16.msra.mxu0 0
    %2233 = vmatprep.subr.bf16.mxu0 0
    %2234 = vmatpush1.bf16.msra.mxu0 0
    %2235 = vmatprep.subr.bf16.mxu0 0
    %2236 = vmatpush1.bf16.msra.mxu0 0
    %2237 = vmatprep.subr.bf16.mxu0 0
    %2238 = vmatpush1.bf16.msra.mxu0 0
    %2239 = vmatprep.mubr.bf16.mxu0 0
    %2240 = vmatmul.mubr.bf16.gmra.mrb[0].mxu0 %v2205
    %v2241 = vpop.f32.mrb[0].mxu0
    %v2242 = vadd.f32 0.0, %v2241
    %v2243 = vpop.f32.mrb[0].mxu0
    %v2244 = vpop.f32.mrb[0].mxu0
    %v2245 = vadd.f32 0.0, %v2244
    %v2246 = vpop.f32.mrb[0].mxu0
    %2247 = vdwg.mxu0
    %s2248 = scalar_lea.vmem [#allocation7], 64
    %v2249 = vld [vmem:[%s2248] sm:$0xf]
    %v2250 = vld [vmem:[%s2248 + $0x4] sm:$0xf]
    %v2251 = vld [vmem:[%s2248 + $0x8] sm:$0xf]
    %v2252 = vld [vmem:[%s2248 + $0xc] sm:$0xf]
    %v2253 = vld [vmem:[%s2248 + $0x10] sm:$0xf]
    %v2254 = vld [vmem:[%s2248 + $0x14] sm:$0xf]
    %v2255 = vld [vmem:[%s2248 + $0x18] sm:$0xf]
    %v2256 = vld [vmem:[%s2248 + $0x1c] sm:$0xf]
    %v2257 = vld [vmem:[%s2248 + $0x20] sm:$0xf]
    %v2258 = vld [vmem:[%s2248 + $0x24] sm:$0xf]
    %v2259 = vld [vmem:[%s2248 + $0x28] sm:$0xf]
    %v2260 = vld [vmem:[%s2248 + $0x2c] sm:$0xf]
    %v2261 = vld [vmem:[%s2248 + $0x30] sm:$0xf]
    %v2262 = vld [vmem:[%s2248 + $0x34] sm:$0xf]
    %v2263 = vld [vmem:[%s2248 + $0x38] sm:$0xf]
    %v2264 = vld [vmem:[%s2248 + $0x3c] sm:$0xf]
    %v2265 = vpack.c.bf16 %v2201, %v2198
    %v2266 = vpack.c.bf16 %v2245, %v2242
    %s2267 = scalar_lea.vmem [#allocation8], 1
    %v2268 = vld [vmem:[%s2267] sm:$0x1]
    %v2270 = vlaneseq
    %v2271 = vshrl.u32 %v2270, 7
    %v2272 = vsub.s32 0, %v2271
    %v2273 = vrot.slane %v2268, %v2272
    %v2291 = vunpack.c.l.b16 %v2249
    %v2292 = vunpack.c.l.b16 %v2250
    %v2293 = vunpack.c.l.b16 %v2251
    %v2294 = vunpack.c.l.b16 %v2252
    %v2295 = vunpack.c.l.b16 %v2253
    %v2296 = vunpack.c.l.b16 %v2254
    %v2297 = vunpack.c.l.b16 %v2255
    %v2298 = vunpack.c.l.b16 %v2256
    %v2299 = vunpack.c.l.b16 %v2257
    %v2300 = vunpack.c.l.b16 %v2258
    %v2301 = vunpack.c.l.b16 %v2259
    %v2302 = vunpack.c.l.b16 %v2260
    %v2303 = vunpack.c.l.b16 %v2261
    %v2304 = vunpack.c.l.b16 %v2262
    %v2305 = vunpack.c.l.b16 %v2263
    %v2306 = vunpack.c.l.b16 %v2264
    %v2307 = vpack.c.b16 %v2292, %v2291
    %v2308 = vpack.c.b16 %v2294, %v2293
    %v2309 = vpack.c.b16 %v2296, %v2295
    %v2310 = vpack.c.b16 %v2298, %v2297
    %v2311 = vpack.c.b16 %v2300, %v2299
    %v2312 = vpack.c.b16 %v2302, %v2301
    %v2313 = vpack.c.b16 %v2304, %v2303
    %v2314 = vpack.c.b16 %v2306, %v2305
    %2323 = vmatprep.subr.bf16.mxu0 0
    %2324 = vmatpush1.bf16.msra.mxu0 %v2307
    %2325 = vmatprep.subr.bf16.mxu0 0
    %2326 = vmatpush1.bf16.msra.mxu0 %v2308
    %2327 = vmatprep.subr.bf16.mxu0 0
    %2328 = vmatpush1.bf16.msra.mxu0 %v2309
    %2329 = vmatprep.subr.bf16.mxu0 0
    %2330 = vmatpush1.bf16.msra.mxu0 %v2310
    %2331 = vmatprep.subr.bf16.mxu0 0
    %2332 = vmatpush1.bf16.msra.mxu0 %v2311
    %2333 = vmatprep.subr.bf16.mxu0 0
    %2334 = vmatpush1.bf16.msra.mxu0 %v2312
    %2335 = vmatprep.subr.bf16.mxu0 0
    %2336 = vmatpush1.bf16.msra.mxu0 %v2313
    %2337 = vmatprep.subr.bf16.mxu0 0
    %2338 = vmatpush1.bf16.msra.mxu0 %v2314
    %2339 = vmatprep.subr.bf16.mxu0 0
    %2340 = vmatpush1.bf16.msra.mxu0 0
    %2341 = vmatprep.subr.bf16.mxu0 0
    %2342 = vmatpush1.bf16.msra.mxu0 0
    %2343 = vmatprep.subr.bf16.mxu0 0
    %2344 = vmatpush1.bf16.msra.mxu0 0
    %2345 = vmatprep.subr.bf16.mxu0 0
    %2346 = vmatpush1.bf16.msra.mxu0 0
    %2347 = vmatprep.subr.bf16.mxu0 0
    %2348 = vmatpush1.bf16.msra.mxu0 0
    %2349 = vmatprep.subr.bf16.mxu0 0
    %2350 = vmatpush1.bf16.msra.mxu0 0
    %2351 = vmatprep.subr.bf16.mxu0 0
    %2352 = vmatpush1.bf16.msra.mxu0 0
    %2353 = vmatprep.subr.bf16.mxu0 0
    %2354 = vmatpush1.bf16.msra.mxu0 0
    %2355 = vmatprep.mubr.bf16.mxu0 0
    %2356 = vmatmul.mubr.bf16.gmra.mrb[0].mxu0 %v2265
    %v2357 = vpop.f32.mrb[0].mxu0
    %v2358 = vadd.f32 %v2273, %v2357
    %v2359 = vpop.f32.mrb[0].mxu0
    %v2360 = vpop.f32.mrb[0].mxu0
    %v2361 = vadd.f32 %v2273, %v2360
    %v2362 = vpop.f32.mrb[0].mxu0
    %2363 = vmatprep.mubr.bf16.mxu0 0
    %2364 = vmatmul.mubr.bf16.gmra.mrb[0].mxu0 %v2266
    %v2365 = vpop.f32.mrb[0].mxu0
    %v2366 = vadd.f32 %v2273, %v2365
    %v2367 = vpop.f32.mrb[0].mxu0
    %v2368 = vpop.f32.mrb[0].mxu0
    %v2369 = vadd.f32 %v2273, %v2368
    %v2370 = vpop.f32.mrb[0].mxu0
    %2371 = vdwg.mxu0
    %v2372 = vadd.f32 %v1739, %v2358
    %v2373 = vadd.f32 %v1740, %v2361
    %v2374 = vadd.f32 %v1741, %v2366
    %v2375 = vadd.f32 %v1742, %v2369
    %s2376 = scalar_lea.vmem [#allocation10], 1
    %v2377 = vld [vmem:[%s2376] sm:$0x1]
    %s2378 = scalar_lea.vmem [#allocation11], 1
    %v2379 = vld [vmem:[%s2378] sm:$0x1]
    %2380 = vadd.xlane.f32.xlu0 %v2372
    %v2381 = vpop.xlane.xlu0 %2380
    %2382 = vadd.xlane.f32.xlu0 %v2373
    %v2383 = vpop.xlane.xlu0 %2382
    %2384 = vadd.xlane.f32.xlu0 %v2374
    %v2385 = vpop.xlane.xlu0 %2384
    %2386 = vadd.xlane.f32.xlu0 %v2375
    %v2387 = vpop.xlane.xlu0 %2386
    %v2388 = vmul.f32 %v2381, %v893
    %v2389 = vmul.f32 %v2383, %v893
    %v2390 = vmul.f32 %v2385, %v893
    %v2391 = vmul.f32 %v2387, %v893
    %v2392 = vmul.f32 %v2372, %v2372
    %v2393 = vmul.f32 %v2373, %v2373
    %v2394 = vmul.f32 %v2374, %v2374
    %v2395 = vmul.f32 %v2375, %v2375
    %2396 = vadd.xlane.f32.xlu0 %v2392
    %v2397 = vpop.xlane.xlu0 %2396
    %2398 = vadd.xlane.f32.xlu0 %v2393
    %v2399 = vpop.xlane.xlu0 %2398
    %2400 = vadd.xlane.f32.xlu0 %v2394
    %v2401 = vpop.xlane.xlu0 %2400
    %2402 = vadd.xlane.f32.xlu0 %v2395
    %v2403 = vpop.xlane.xlu0 %2402
    %v2404 = vmul.f32 %v2397, %v893
    %v2405 = vmul.f32 %v2399, %v893
    %v2406 = vmul.f32 %v2401, %v893
    %v2407 = vmul.f32 %v2403, %v893
    %v2408 = vmul.f32 %v2388, %v2388
    %v2409 = vmul.f32 %v2389, %v2389
    %v2410 = vmul.f32 %v2390, %v2390
    %v2411 = vmul.f32 %v2391, %v2391
    %v2412 = vsub.f32 %v2404, %v2408
    %v2413 = vsub.f32 %v2405, %v2409
    %v2414 = vsub.f32 %v2406, %v2410
    %v2415 = vsub.f32 %v2407, %v2411
    %v2416 = vsub.f32 %v2372, %v2388
    %v2417 = vsub.f32 %v2373, %v2389
    %v2418 = vsub.f32 %v2374, %v2390
    %v2419 = vsub.f32 %v2375, %v2391
    %v2420 = vadd.f32 %v2412, 1e-05
    %v2421 = vadd.f32 %v2413, 1e-05
    %v2422 = vadd.f32 %v2414, 1e-05
    %v2423 = vadd.f32 %v2415, 1e-05
    %v2424 = vrsqrt.pop %v2420
    %v2425 = vrsqrt.pop %v2421
    %v2426 = vrsqrt.pop %v2422
    %v2427 = vrsqrt.pop %v2423
    %v2428 = vmul.f32 %v2416, %v2424
    %v2429 = vmul.f32 %v2417, %v2425
    %v2430 = vmul.f32 %v2418, %v2426
    %v2431 = vmul.f32 %v2419, %v2427
    %v2433 = vlaneseq
    %v2434 = vshrl.u32 %v2433, 7
    %v2435 = vsub.s32 0, %v2434
    %v2436 = vrot.slane %v2377, %v2435
    %v2438 = vmul.f32 %v2428, %v2436
    %v2439 = vmul.f32 %v2429, %v2436
    %v2440 = vmul.f32 %v2430, %v2436
    %v2441 = vmul.f32 %v2431, %v2436
    %v2443 = vlaneseq
    %v2444 = vshrl.u32 %v2443, 7
    %v2445 = vsub.s32 0, %v2444
    %v2446 = vrot.slane %v2379, %v2445
    %v2448 = vadd.f32 %v2438, %v2446
    %v2449 = vadd.f32 %v2439, %v2446
    %v2450 = vadd.f32 %v2440, %v2446
    %v2451 = vadd.f32 %v2441, %v2446
    %s2452 = scalar_lea.vmem [#allocation13], 256
    %v2453 = vld [vmem:[%s2452] sm:$0xff]
    %v2454 = vld [vmem:[%s2452 + $0x8] sm:$0xff]
    %v2455 = vld [vmem:[%s2452 + $0x10] sm:$0xff]
    %v2456 = vld [vmem:[%s2452 + $0x18] sm:$0xff]
    %v2457 = vld [vmem:[%s2452 + $0x20] sm:$0xff]
    %v2458 = vld [vmem:[%s2452 + $0x28] sm:$0xff]
    %v2459 = vld [vmem:[%s2452 + $0x30] sm:$0xff]
    %v2460 = vld [vmem:[%s2452 + $0x38] sm:$0xff]
    %v2461 = vld [vmem:[%s2452 + $0x40] sm:$0xff]
    %v2462 = vld [vmem:[%s2452 + $0x48] sm:$0xff]
    %v2463 = vld [vmem:[%s2452 + $0x50] sm:$0xff]
    %v2464 = vld [vmem:[%s2452 + $0x58] sm:$0xff]
    %v2465 = vld [vmem:[%s2452 + $0x60] sm:$0xff]
    %v2466 = vld [vmem:[%s2452 + $0x68] sm:$0xff]
    %v2467 = vld [vmem:[%s2452 + $0x70] sm:$0xff]
    %v2468 = vld [vmem:[%s2452 + $0x78] sm:$0xff]
    %v2469 = vld [vmem:[%s2452 + $0x80] sm:$0xff]
    %v2470 = vld [vmem:[%s2452 + $0x88] sm:$0xff]
    %v2471 = vld [vmem:[%s2452 + $0x90] sm:$0xff]
    %v2472 = vld [vmem:[%s2452 + $0x98] sm:$0xff]
    %v2473 = vld [vmem:[%s2452 + $0xa0] sm:$0xff]
    %v2474 = vld [vmem:[%s2452 + $0xa8] sm:$0xff]
    %v2475 = vld [vmem:[%s2452 + $0xb0] sm:$0xff]
    %v2476 = vld [vmem:[%s2452 + $0xb8] sm:$0xff]
    %v2477 = vld [vmem:[%s2452 + $0xc0] sm:$0xff]
    %v2478 = vld [vmem:[%s2452 + $0xc8] sm:$0xff]
    %v2479 = vld [vmem:[%s2452 + $0xd0] sm:$0xff]
    %v2480 = vld [vmem:[%s2452 + $0xd8] sm:$0xff]
    %v2481 = vld [vmem:[%s2452 + $0xe0] sm:$0xff]
    %v2482 = vld [vmem:[%s2452 + $0xe8] sm:$0xff]
    %v2483 = vld [vmem:[%s2452 + $0xf0] sm:$0xff]
    %v2484 = vld [vmem:[%s2452 + $0xf8] sm:$0xff]
    %v2485 = vpack.c.bf16 %v2449, %v2448
    %v2486 = vpack.c.bf16 %v2451, %v2450
    %s2487 = scalar_lea.vmem [#allocation14], 4
    %v2488 = vld [vmem:[%s2487] sm:$0xf]
    %v2490 = vlaneseq
    %v2491 = vshrl.u32 %v2490, 7
    %v2492 = vsub.s32 0, %v2491
    %v2493 = vrot.slane %v2488, %v2492
    %v2494 = vlaneseq
    %v2495 = vshrl.u32 %v2494, 7
    %v2496 = vsub.s32 1, %v2495
    %v2497 = vrot.slane %v2488, %v2496
    %v2498 = vlaneseq
    %v2499 = vshrl.u32 %v2498, 7
    %v2500 = vsub.s32 2, %v2499
    %v2501 = vrot.slane %v2488, %v2500
    %v2502 = vlaneseq
    %v2503 = vshrl.u32 %v2502, 7
    %v2504 = vsub.s32 3, %v2503
    %v2505 = vrot.slane %v2488, %v2504
    %v2542 = vunpack.c.l.b16 %v2453
    %v2543 = vunpack.c.h.b16 %v2453
    %v2544 = vunpack.c.l.b16 %v2454
    %v2545 = vunpack.c.h.b16 %v2454
    %v2546 = vunpack.c.l.b16 %v2455
    %v2547 = vunpack.c.h.b16 %v2455
    %v2548 = vunpack.c.l.b16 %v2456
    %v2549 = vunpack.c.h.b16 %v2456
    %v2550 = vunpack.c.l.b16 %v2457
    %v2551 = vunpack.c.h.b16 %v2457
    %v2552 = vunpack.c.l.b16 %v2458
    %v2553 = vunpack.c.h.b16 %v2458
    %v2554 = vunpack.c.l.b16 %v2459
    %v2555 = vunpack.c.h.b16 %v2459
    %v2556 = vunpack.c.l.b16 %v2460
    %v2557 = vunpack.c.h.b16 %v2460
    %v2558 = vunpack.c.l.b16 %v2461
    %v2559 = vunpack.c.h.b16 %v2461
    %v2560 = vunpack.c.l.b16 %v2462
    %v2561 = vunpack.c.h.b16 %v2462
    %v2562 = vunpack.c.l.b16 %v2463
    %v2563 = vunpack.c.h.b16 %v2463
    %v2564 = vunpack.c.l.b16 %v2464
    %v2565 = vunpack.c.h.b16 %v2464
    %v2566 = vunpack.c.l.b16 %v2465
    %v2567 = vunpack.c.h.b16 %v2465
    %v2568 = vunpack.c.l.b16 %v2466
    %v2569 = vunpack.c.h.b16 %v2466
    %v2570 = vunpack.c.l.b16 %v2467
    %v2571 = vunpack.c.h.b16 %v2467
    %v2572 = vunpack.c.l.b16 %v2468
    %v2573 = vunpack.c.h.b16 %v2468
    %v2574 = vunpack.c.l.b16 %v2469
    %v2575 = vunpack.c.h.b16 %v2469
    %v2576 = vunpack.c.l.b16 %v2470
    %v2577 = vunpack.c.h.b16 %v2470
    %v2578 = vunpack.c.l.b16 %v2471
    %v2579 = vunpack.c.h.b16 %v2471
    %v2580 = vunpack.c.l.b16 %v2472
    %v2581 = vunpack.c.h.b16 %v2472
    %v2582 = vunpack.c.l.b16 %v2473
    %v2583 = vunpack.c.h.b16 %v2473
    %v2584 = vunpack.c.l.b16 %v2474
    %v2585 = vunpack.c.h.b16 %v2474
    %v2586 = vunpack.c.l.b16 %v2475
    %v2587 = vunpack.c.h.b16 %v2475
    %v2588 = vunpack.c.l.b16 %v2476
    %v2589 = vunpack.c.h.b16 %v2476
    %v2590 = vunpack.c.l.b16 %v2477
    %v2591 = vunpack.c.h.b16 %v2477
    %v2592 = vunpack.c.l.b16 %v2478
    %v2593 = vunpack.c.h.b16 %v2478
    %v2594 = vunpack.c.l.b16 %v2479
    %v2595 = vunpack.c.h.b16 %v2479
    %v2596 = vunpack.c.l.b16 %v2480
    %v2597 = vunpack.c.h.b16 %v2480
    %v2598 = vunpack.c.l.b16 %v2481
    %v2599 = vunpack.c.h.b16 %v2481
    %v2600 = vunpack.c.l.b16 %v2482
    %v2601 = vunpack.c.h.b16 %v2482
    %v2602 = vunpack.c.l.b16 %v2483
    %v2603 = vunpack.c.h.b16 %v2483
    %v2604 = vunpack.c.l.b16 %v2484
    %v2605 = vunpack.c.h.b16 %v2484
    %v2606 = vpack.c.b16 %v2546, %v2542
    %v2607 = vpack.c.b16 %v2547, %v2543
    %v2608 = vpack.c.b16 %v2548, %v2544
    %v2609 = vpack.c.b16 %v2549, %v2545
    %v2610 = vpack.c.b16 %v2554, %v2550
    %v2611 = vpack.c.b16 %v2555, %v2551
    %v2612 = vpack.c.b16 %v2556, %v2552
    %v2613 = vpack.c.b16 %v2557, %v2553
    %v2614 = vpack.c.b16 %v2562, %v2558
    %v2615 = vpack.c.b16 %v2563, %v2559
    %v2616 = vpack.c.b16 %v2564, %v2560
    %v2617 = vpack.c.b16 %v2565, %v2561
    %v2618 = vpack.c.b16 %v2570, %v2566
    %v2619 = vpack.c.b16 %v2571, %v2567
    %v2620 = vpack.c.b16 %v2572, %v2568
    %v2621 = vpack.c.b16 %v2573, %v2569
    %v2622 = vpack.c.b16 %v2578, %v2574
    %v2623 = vpack.c.b16 %v2579, %v2575
    %v2624 = vpack.c.b16 %v2580, %v2576
    %v2625 = vpack.c.b16 %v2581, %v2577
    %v2626 = vpack.c.b16 %v2586, %v2582
    %v2627 = vpack.c.b16 %v2587, %v2583
    %v2628 = vpack.c.b16 %v2588, %v2584
    %v2629 = vpack.c.b16 %v2589, %v2585
    %v2630 = vpack.c.b16 %v2594, %v2590
    %v2631 = vpack.c.b16 %v2595, %v2591
    %v2632 = vpack.c.b16 %v2596, %v2592
    %v2633 = vpack.c.b16 %v2597, %v2593
    %v2634 = vpack.c.b16 %v2602, %v2598
    %v2635 = vpack.c.b16 %v2603, %v2599
    %v2636 = vpack.c.b16 %v2604, %v2600
    %v2637 = vpack.c.b16 %v2605, %v2601
    %2670 = vmatprep.subr.bf16.mxu0 %v2607
    %2671 = vmatpush1.bf16.msra.mxu0 %v2606
    %2672 = vmatprep.subr.bf16.mxu0 %v2611
    %2673 = vmatpush1.bf16.msra.mxu0 %v2610
    %2674 = vmatprep.subr.bf16.mxu0 %v2615
    %2675 = vmatpush1.bf16.msra.mxu0 %v2614
    %2676 = vmatprep.subr.bf16.mxu0 %v2619
    %2677 = vmatpush1.bf16.msra.mxu0 %v2618
    %2678 = vmatprep.subr.bf16.mxu0 %v2623
    %2679 = vmatpush1.bf16.msra.mxu0 %v2622
    %2680 = vmatprep.subr.bf16.mxu0 %v2627
    %2681 = vmatpush1.bf16.msra.mxu0 %v2626
    %2682 = vmatprep.subr.bf16.mxu0 %v2631
    %2683 = vmatpush1.bf16.msra.mxu0 %v2630
    %2684 = vmatprep.subr.bf16.mxu0 %v2635
    %2685 = vmatpush1.bf16.msra.mxu0 %v2634
    %2686 = vmatprep.subr.bf16.mxu0 0
    %2687 = vmatpush1.bf16.msra.mxu0 0
    %2688 = vmatprep.subr.bf16.mxu0 0
    %2689 = vmatpush1.bf16.msra.mxu0 0
    %2690 = vmatprep.subr.bf16.mxu0 0
    %2691 = vmatpush1.bf16.msra.mxu0 0
    %2692 = vmatprep.subr.bf16.mxu0 0
    %2693 = vmatpush1.bf16.msra.mxu0 0
    %2694 = vmatprep.subr.bf16.mxu0 0
    %2695 = vmatpush1.bf16.msra.mxu0 0
    %2696 = vmatprep.subr.bf16.mxu0 0
    %2697 = vmatpush1.bf16.msra.mxu0 0
    %2698 = vmatprep.subr.bf16.mxu0 0
    %2699 = vmatpush1.bf16.msra.mxu0 0
    %2700 = vmatprep.subr.bf16.mxu0 0
    %2701 = vmatpush1.bf16.msra.mxu0 0
    %2702 = vmatprep.mubr.bf16.mxu0 0
    %2703 = vmatmul.mubr.bf16.gmra.mrb[0].mxu0 %v2485
    %v2704 = vpop.f32.mrb[0].mxu0
    %v2705 = vadd.f32 %v2493, %v2704
    %v2706 = vpop.f32.mrb[0].mxu0
    %v2707 = vadd.f32 %v2497, %v2706
    %v2708 = vpop.f32.mrb[0].mxu0
    %v2709 = vadd.f32 %v2493, %v2708
    %v2710 = vpop.f32.mrb[0].mxu0
    %v2711 = vadd.f32 %v2497, %v2710
    %2712 = vmatprep.mubr.bf16.mxu0 0
    %2713 = vmatmul.mubr.bf16.gmra.mrb[0].mxu0 %v2486
    %v2714 = vpop.f32.mrb[0].mxu0
    %v2715 = vadd.f32 %v2493, %v2714
    %v2716 = vpop.f32.mrb[0].mxu0
    %v2717 = vadd.f32 %v2497, %v2716
    %v2718 = vpop.f32.mrb[0].mxu0
    %v2719 = vadd.f32 %v2493, %v2718
    %v2720 = vpop.f32.mrb[0].mxu0
    %v2721 = vadd.f32 %v2497, %v2720
    %2722 = vdwg.mxu0
    %2723 = vmatprep.subr.bf16.mxu0 %v2609
    %2724 = vmatpush1.bf16.msra.mxu0 %v2608
    %2725 = vmatprep.subr.bf16.mxu0 %v2613
    %2726 = vmatpush1.bf16.msra.mxu0 %v2612
    %2727 = vmatprep.subr.bf16.mxu0 %v2617
    %2728 = vmatpush1.bf16.msra.mxu0 %v2616
    %2729 = vmatprep.subr.bf16.mxu0 %v2621
    %2730 = vmatpush1.bf16.msra.mxu0 %v2620
    %2731 = vmatprep.subr.bf16.mxu0 %v2625
    %2732 = vmatpush1.bf16.msra.mxu0 %v2624
    %2733 = vmatprep.subr.bf16.mxu0 %v2629
    %2734 = vmatpush1.bf16.msra.mxu0 %v2628
    %2735 = vmatprep.subr.bf16.mxu0 %v2633
    %2736 = vmatpush1.bf16.msra.mxu0 %v2632
    %2737 = vmatprep.subr.bf16.mxu0 %v2637
    %2738 = vmatpush1.bf16.msra.mxu0 %v2636
    %2739 = vmatprep.subr.bf16.mxu0 0
    %2740 = vmatpush1.bf16.msra.mxu0 0
    %2741 = vmatprep.subr.bf16.mxu0 0
    %2742 = vmatpush1.bf16.msra.mxu0 0
    %2743 = vmatprep.subr.bf16.mxu0 0
    %2744 = vmatpush1.bf16.msra.mxu0 0
    %2745 = vmatprep.subr.bf16.mxu0 0
    %2746 = vmatpush1.bf16.msra.mxu0 0
    %2747 = vmatprep.subr.bf16.mxu0 0
    %2748 = vmatpush1.bf16.msra.mxu0 0
    %2749 = vmatprep.subr.bf16.mxu0 0
    %2750 = vmatpush1.bf16.msra.mxu0 0
    %2751 = vmatprep.subr.bf16.mxu0 0
    %2752 = vmatpush1.bf16.msra.mxu0 0
    %2753 = vmatprep.subr.bf16.mxu0 0
    %2754 = vmatpush1.bf16.msra.mxu0 0
    %2755 = vmatprep.mubr.bf16.mxu0 0
    %2756 = vmatmul.mubr.bf16.gmra.mrb[0].mxu0 %v2485
    %v2757 = vpop.f32.mrb[0].mxu0
    %v2758 = vadd.f32 %v2501, %v2757
    %v2759 = vpop.f32.mrb[0].mxu0
    %v2760 = vadd.f32 %v2505, %v2759
    %v2761 = vpop.f32.mrb[0].mxu0
    %v2762 = vadd.f32 %v2501, %v2761
    %v2763 = vpop.f32.mrb[0].mxu0
    %v2764 = vadd.f32 %v2505, %v2763
    %2765 = vmatprep.mubr.bf16.mxu0 0
    %2766 = vmatmul.mubr.bf16.gmra.mrb[0].mxu0 %v2486
    %v2767 = vpop.f32.mrb[0].mxu0
    %v2768 = vadd.f32 %v2501, %v2767
    %v2769 = vpop.f32.mrb[0].mxu0
    %v2770 = vadd.f32 %v2505, %v2769
    %v2771 = vpop.f32.mrb[0].mxu0
    %v2772 = vadd.f32 %v2501, %v2771
    %v2773 = vpop.f32.mrb[0].mxu0
    %v2774 = vadd.f32 %v2505, %v2773
    %2775 = vdwg.mxu0
    %v2776 = vmax.f32 %v2705, 0.0
    %v2777 = vmax.f32 %v2707, 0.0
    %v2778 = vmax.f32 %v2758, 0.0
    %v2779 = vmax.f32 %v2760, 0.0
    %v2780 = vmax.f32 %v2709, 0.0
    %v2781 = vmax.f32 %v2711, 0.0
    %v2782 = vmax.f32 %v2762, 0.0
    %v2783 = vmax.f32 %v2764, 0.0
    %v2784 = vmax.f32 %v2715, 0.0
    %v2785 = vmax.f32 %v2717, 0.0
    %v2786 = vmax.f32 %v2768, 0.0
    %v2787 = vmax.f32 %v2770, 0.0
    %v2788 = vmax.f32 %v2719, 0.0
    %v2789 = vmax.f32 %v2721, 0.0
    %v2790 = vmax.f32 %v2772, 0.0
    %v2791 = vmax.f32 %v2774, 0.0
    %s2792 = scalar_lea.vmem [#allocation16], 256
    %v2793 = vld [vmem:[%s2792] sm:$0xf]
    %v2794 = vld [vmem:[%s2792 + $0x4] sm:$0xf]
    %v2795 = vld [vmem:[%s2792 + $0x8] sm:$0xf]
    %v2796 = vld [vmem:[%s2792 + $0xc] sm:$0xf]
    %v2797 = vld [vmem:[%s2792 + $0x10] sm:$0xf]
    %v2798 = vld [vmem:[%s2792 + $0x14] sm:$0xf]
    %v2799 = vld [vmem:[%s2792 + $0x18] sm:$0xf]
    %v2800 = vld [vmem:[%s2792 + $0x1c] sm:$0xf]
    %v2801 = vld [vmem:[%s2792 + $0x20] sm:$0xf]
    %v2802 = vld [vmem:[%s2792 + $0x24] sm:$0xf]
    %v2803 = vld [vmem:[%s2792 + $0x28] sm:$0xf]
    %v2804 = vld [vmem:[%s2792 + $0x2c] sm:$0xf]
    %v2805 = vld [vmem:[%s2792 + $0x30] sm:$0xf]
    %v2806 = vld [vmem:[%s2792 + $0x34] sm:$0xf]
    %v2807 = vld [vmem:[%s2792 + $0x38] sm:$0xf]
    %v2808 = vld [vmem:[%s2792 + $0x3c] sm:$0xf]
    %v2809 = vld [vmem:[%s2792 + $0x40] sm:$0xf]
    %v2810 = vld [vmem:[%s2792 + $0x44] sm:$0xf]
    %v2811 = vld [vmem:[%s2792 + $0x48] sm:$0xf]
    %v2812 = vld [vmem:[%s2792 + $0x4c] sm:$0xf]
    %v2813 = vld [vmem:[%s2792 + $0x50] sm:$0xf]
    %v2814 = vld [vmem:[%s2792 + $0x54] sm:$0xf]
    %v2815 = vld [vmem:[%s2792 + $0x58] sm:$0xf]
    %v2816 = vld [vmem:[%s2792 + $0x5c] sm:$0xf]
    %v2817 = vld [vmem:[%s2792 + $0x60] sm:$0xf]
    %v2818 = vld [vmem:[%s2792 + $0x64] sm:$0xf]
    %v2819 = vld [vmem:[%s2792 + $0x68] sm:$0xf]
    %v2820 = vld [vmem:[%s2792 + $0x6c] sm:$0xf]
    %v2821 = vld [vmem:[%s2792 + $0x70] sm:$0xf]
    %v2822 = vld [vmem:[%s2792 + $0x74] sm:$0xf]
    %v2823 = vld [vmem:[%s2792 + $0x78] sm:$0xf]
    %v2824 = vld [vmem:[%s2792 + $0x7c] sm:$0xf]
    %v2825 = vld [vmem:[%s2792 + $0x80] sm:$0xf]
    %v2826 = vld [vmem:[%s2792 + $0x84] sm:$0xf]
    %v2827 = vld [vmem:[%s2792 + $0x88] sm:$0xf]
    %v2828 = vld [vmem:[%s2792 + $0x8c] sm:$0xf]
    %v2829 = vld [vmem:[%s2792 + $0x90] sm:$0xf]
    %v2830 = vld [vmem:[%s2792 + $0x94] sm:$0xf]
    %v2831 = vld [vmem:[%s2792 + $0x98] sm:$0xf]
    %v2832 = vld [vmem:[%s2792 + $0x9c] sm:$0xf]
    %v2833 = vld [vmem:[%s2792 + $0xa0] sm:$0xf]
    %v2834 = vld [vmem:[%s2792 + $0xa4] sm:$0xf]
    %v2835 = vld [vmem:[%s2792 + $0xa8] sm:$0xf]
    %v2836 = vld [vmem:[%s2792 + $0xac] sm:$0xf]
    %v2837 = vld [vmem:[%s2792 + $0xb0] sm:$0xf]
    %v2838 = vld [vmem:[%s2792 + $0xb4] sm:$0xf]
    %v2839 = vld [vmem:[%s2792 + $0xb8] sm:$0xf]
    %v2840 = vld [vmem:[%s2792 + $0xbc] sm:$0xf]
    %v2841 = vld [vmem:[%s2792 + $0xc0] sm:$0xf]
    %v2842 = vld [vmem:[%s2792 + $0xc4] sm:$0xf]
    %v2843 = vld [vmem:[%s2792 + $0xc8] sm:$0xf]
    %v2844 = vld [vmem:[%s2792 + $0xcc] sm:$0xf]
    %v2845 = vld [vmem:[%s2792 + $0xd0] sm:$0xf]
    %v2846 = vld [vmem:[%s2792 + $0xd4] sm:$0xf]
    %v2847 = vld [vmem:[%s2792 + $0xd8] sm:$0xf]
    %v2848 = vld [vmem:[%s2792 + $0xdc] sm:$0xf]
    %v2849 = vld [vmem:[%s2792 + $0xe0] sm:$0xf]
    %v2850 = vld [vmem:[%s2792 + $0xe4] sm:$0xf]
    %v2851 = vld [vmem:[%s2792 + $0xe8] sm:$0xf]
    %v2852 = vld [vmem:[%s2792 + $0xec] sm:$0xf]
    %v2853 = vld [vmem:[%s2792 + $0xf0] sm:$0xf]
    %v2854 = vld [vmem:[%s2792 + $0xf4] sm:$0xf]
    %v2855 = vld [vmem:[%s2792 + $0xf8] sm:$0xf]
    %v2856 = vld [vmem:[%s2792 + $0xfc] sm:$0xf]
    %v2857 = vpack.c.bf16 %v2780, %v2776
    %v2858 = vpack.c.bf16 %v2781, %v2777
    %v2859 = vpack.c.bf16 %v2782, %v2778
    %v2860 = vpack.c.bf16 %v2783, %v2779
    %v2861 = vpack.c.bf16 %v2788, %v2784
    %v2862 = vpack.c.bf16 %v2789, %v2785
    %v2863 = vpack.c.bf16 %v2790, %v2786
    %v2864 = vpack.c.bf16 %v2791, %v2787
    %s2865 = scalar_lea.vmem [#allocation17], 1
    %v2866 = vld [vmem:[%s2865] sm:$0x1]
    %v2868 = vlaneseq
    %v2869 = vshrl.u32 %v2868, 7
    %v2870 = vsub.s32 0, %v2869
    %v2871 = vrot.slane %v2866, %v2870
    %v2937 = vunpack.c.l.b16 %v2793
    %v2938 = vunpack.c.l.b16 %v2794
    %v2939 = vunpack.c.l.b16 %v2795
    %v2940 = vunpack.c.l.b16 %v2796
    %v2941 = vunpack.c.l.b16 %v2797
    %v2942 = vunpack.c.l.b16 %v2798
    %v2943 = vunpack.c.l.b16 %v2799
    %v2944 = vunpack.c.l.b16 %v2800
    %v2945 = vunpack.c.l.b16 %v2801
    %v2946 = vunpack.c.l.b16 %v2802
    %v2947 = vunpack.c.l.b16 %v2803
    %v2948 = vunpack.c.l.b16 %v2804
    %v2949 = vunpack.c.l.b16 %v2805
    %v2950 = vunpack.c.l.b16 %v2806
    %v2951 = vunpack.c.l.b16 %v2807
    %v2952 = vunpack.c.l.b16 %v2808
    %v2953 = vunpack.c.l.b16 %v2809
    %v2954 = vunpack.c.l.b16 %v2810
    %v2955 = vunpack.c.l.b16 %v2811
    %v2956 = vunpack.c.l.b16 %v2812
    %v2957 = vunpack.c.l.b16 %v2813
    %v2958 = vunpack.c.l.b16 %v2814
    %v2959 = vunpack.c.l.b16 %v2815
    %v2960 = vunpack.c.l.b16 %v2816
    %v2961 = vunpack.c.l.b16 %v2817
    %v2962 = vunpack.c.l.b16 %v2818
    %v2963 = vunpack.c.l.b16 %v2819
    %v2964 = vunpack.c.l.b16 %v2820
    %v2965 = vunpack.c.l.b16 %v2821
    %v2966 = vunpack.c.l.b16 %v2822
    %v2967 = vunpack.c.l.b16 %v2823
    %v2968 = vunpack.c.l.b16 %v2824
    %v2969 = vunpack.c.l.b16 %v2825
    %v2970 = vunpack.c.l.b16 %v2826
    %v2971 = vunpack.c.l.b16 %v2827
    %v2972 = vunpack.c.l.b16 %v2828
    %v2973 = vunpack.c.l.b16 %v2829
    %v2974 = vunpack.c.l.b16 %v2830
    %v2975 = vunpack.c.l.b16 %v2831
    %v2976 = vunpack.c.l.b16 %v2832
    %v2977 = vunpack.c.l.b16 %v2833
    %v2978 = vunpack.c.l.b16 %v2834
    %v2979 = vunpack.c.l.b16 %v2835
    %v2980 = vunpack.c.l.b16 %v2836
    %v2981 = vunpack.c.l.b16 %v2837
    %v2982 = vunpack.c.l.b16 %v2838
    %v2983 = vunpack.c.l.b16 %v2839
    %v2984 = vunpack.c.l.b16 %v2840
    %v2985 = vunpack.c.l.b16 %v2841
    %v2986 = vunpack.c.l.b16 %v2842
    %v2987 = vunpack.c.l.b16 %v2843
    %v2988 = vunpack.c.l.b16 %v2844
    %v2989 = vunpack.c.l.b16 %v2845
    %v2990 = vunpack.c.l.b16 %v2846
    %v2991 = vunpack.c.l.b16 %v2847
    %v2992 = vunpack.c.l.b16 %v2848
    %v2993 = vunpack.c.l.b16 %v2849
    %v2994 = vunpack.c.l.b16 %v2850
    %v2995 = vunpack.c.l.b16 %v2851
    %v2996 = vunpack.c.l.b16 %v2852
    %v2997 = vunpack.c.l.b16 %v2853
    %v2998 = vunpack.c.l.b16 %v2854
    %v2999 = vunpack.c.l.b16 %v2855
    %v3000 = vunpack.c.l.b16 %v2856
    %v3001 = vpack.c.b16 %v2938, %v2937
    %v3002 = vpack.c.b16 %v2940, %v2939
    %v3003 = vpack.c.b16 %v2942, %v2941
    %v3004 = vpack.c.b16 %v2944, %v2943
    %v3005 = vpack.c.b16 %v2946, %v2945
    %v3006 = vpack.c.b16 %v2948, %v2947
    %v3007 = vpack.c.b16 %v2950, %v2949
    %v3008 = vpack.c.b16 %v2952, %v2951
    %v3009 = vpack.c.b16 %v2954, %v2953
    %v3010 = vpack.c.b16 %v2956, %v2955
    %v3011 = vpack.c.b16 %v2958, %v2957
    %v3012 = vpack.c.b16 %v2960, %v2959
    %v3013 = vpack.c.b16 %v2962, %v2961
    %v3014 = vpack.c.b16 %v2964, %v2963
    %v3015 = vpack.c.b16 %v2966, %v2965
    %v3016 = vpack.c.b16 %v2968, %v2967
    %v3017 = vpack.c.b16 %v2970, %v2969
    %v3018 = vpack.c.b16 %v2972, %v2971
    %v3019 = vpack.c.b16 %v2974, %v2973
    %v3020 = vpack.c.b16 %v2976, %v2975
    %v3021 = vpack.c.b16 %v2978, %v2977
    %v3022 = vpack.c.b16 %v2980, %v2979
    %v3023 = vpack.c.b16 %v2982, %v2981
    %v3024 = vpack.c.b16 %v2984, %v2983
    %v3025 = vpack.c.b16 %v2986, %v2985
    %v3026 = vpack.c.b16 %v2988, %v2987
    %v3027 = vpack.c.b16 %v2990, %v2989
    %v3028 = vpack.c.b16 %v2992, %v2991
    %v3029 = vpack.c.b16 %v2994, %v2993
    %v3030 = vpack.c.b16 %v2996, %v2995
    %v3031 = vpack.c.b16 %v2998, %v2997
    %v3032 = vpack.c.b16 %v3000, %v2999
    %3065 = vmatprep.subr.bf16.mxu0 0
    %3066 = vmatpush1.bf16.msra.mxu0 %v3001
    %3067 = vmatprep.subr.bf16.mxu0 0
    %3068 = vmatpush1.bf16.msra.mxu0 %v3002
    %3069 = vmatprep.subr.bf16.mxu0 0
    %3070 = vmatpush1.bf16.msra.mxu0 %v3003
    %3071 = vmatprep.subr.bf16.mxu0 0
    %3072 = vmatpush1.bf16.msra.mxu0 %v3004
    %3073 = vmatprep.subr.bf16.mxu0 0
    %3074 = vmatpush1.bf16.msra.mxu0 %v3005
    %3075 = vmatprep.subr.bf16.mxu0 0
    %3076 = vmatpush1.bf16.msra.mxu0 %v3006
    %3077 = vmatprep.subr.bf16.mxu0 0
    %3078 = vmatpush1.bf16.msra.mxu0 %v3007
    %3079 = vmatprep.subr.bf16.mxu0 0
    %3080 = vmatpush1.bf16.msra.mxu0 %v3008
    %3081 = vmatprep.subr.bf16.mxu0 0
    %3082 = vmatpush1.bf16.msra.mxu0 %v3009
    %3083 = vmatprep.subr.bf16.mxu0 0
    %3084 = vmatpush1.bf16.msra.mxu0 %v3010
    %3085 = vmatprep.subr.bf16.mxu0 0
    %3086 = vmatpush1.bf16.msra.mxu0 %v3011
    %3087 = vmatprep.subr.bf16.mxu0 0
    %3088 = vmatpush1.bf16.msra.mxu0 %v3012
    %3089 = vmatprep.subr.bf16.mxu0 0
    %3090 = vmatpush1.bf16.msra.mxu0 %v3013
    %3091 = vmatprep.subr.bf16.mxu0 0
    %3092 = vmatpush1.bf16.msra.mxu0 %v3014
    %3093 = vmatprep.subr.bf16.mxu0 0
    %3094 = vmatpush1.bf16.msra.mxu0 %v3015
    %3095 = vmatprep.subr.bf16.mxu0 0
    %3096 = vmatpush1.bf16.msra.mxu0 %v3016
    %3097 = vmatprep.mubr.bf16.mxu0 %v2858
    %3098 = vmatmul.mubr.bf16.gmra.mrb[0].mxu0 %v2857
    %v3099 = vpop.f32.mrb[0].mxu0
    %v3100 = vadd.f32 %v2871, %v3099
    %v3101 = vpop.f32.mrb[0].mxu0
    %v3102 = vpop.f32.mrb[0].mxu0
    %v3103 = vadd.f32 %v2871, %v3102
    %v3104 = vpop.f32.mrb[0].mxu0
    %3105 = vmatprep.mubr.bf16.mxu0 %v2862
    %3106 = vmatmul.mubr.bf16.gmra.mrb[0].mxu0 %v2861
    %v3107 = vpop.f32.mrb[0].mxu0
    %v3108 = vadd.f32 %v2871, %v3107
    %v3109 = vpop.f32.mrb[0].mxu0
    %v3110 = vpop.f32.mrb[0].mxu0
    %v3111 = vadd.f32 %v2871, %v3110
    %v3112 = vpop.f32.mrb[0].mxu0
    %3113 = vdwg.mxu0
    %3114 = vmatprep.subr.bf16.mxu0 0
    %3115 = vmatpush1.bf16.msra.mxu0 %v3017
    %3116 = vmatprep.subr.bf16.mxu0 0
    %3117 = vmatpush1.bf16.msra.mxu0 %v3018
    %3118 = vmatprep.subr.bf16.mxu0 0
    %3119 = vmatpush1.bf16.msra.mxu0 %v3019
    %3120 = vmatprep.subr.bf16.mxu0 0
    %3121 = vmatpush1.bf16.msra.mxu0 %v3020
    %3122 = vmatprep.subr.bf16.mxu0 0
    %3123 = vmatpush1.bf16.msra.mxu0 %v3021
    %3124 = vmatprep.subr.bf16.mxu0 0
    %3125 = vmatpush1.bf16.msra.mxu0 %v3022
    %3126 = vmatprep.subr.bf16.mxu0 0
    %3127 = vmatpush1.bf16.msra.mxu0 %v3023
    %3128 = vmatprep.subr.bf16.mxu0 0
    %3129 = vmatpush1.bf16.msra.mxu0 %v3024
    %3130 = vmatprep.subr.bf16.mxu0 0
    %3131 = vmatpush1.bf16.msra.mxu0 %v3025
    %3132 = vmatprep.subr.bf16.mxu0 0
    %3133 = vmatpush1.bf16.msra.mxu0 %v3026
    %3134 = vmatprep.subr.bf16.mxu0 0
    %3135 = vmatpush1.bf16.msra.mxu0 %v3027
    %3136 = vmatprep.subr.bf16.mxu0 0
    %3137 = vmatpush1.bf16.msra.mxu0 %v3028
    %3138 = vmatprep.subr.bf16.mxu0 0
    %3139 = vmatpush1.bf16.msra.mxu0 %v3029
    %3140 = vmatprep.subr.bf16.mxu0 0
    %3141 = vmatpush1.bf16.msra.mxu0 %v3030
    %3142 = vmatprep.subr.bf16.mxu0 0
    %3143 = vmatpush1.bf16.msra.mxu0 %v3031
    %3144 = vmatprep.subr.bf16.mxu0 0
    %3145 = vmatpush1.bf16.msra.mxu0 %v3032
    %3146 = vmatprep.mubr.bf16.mxu0 %v2860
    %3147 = vmatmul.mubr.bf16.gmra.mrb[0].mxu0 %v2859
    %v3148 = vpop.f32.mrb[0].mxu0
    %v3149 = vadd.f32 %v3100, %v3148
    %v3150 = vpop.f32.mrb[0].mxu0
    %v3151 = vpop.f32.mrb[0].mxu0
    %v3152 = vadd.f32 %v3103, %v3151
    %v3153 = vpop.f32.mrb[0].mxu0
    %3154 = vmatprep.mubr.bf16.mxu0 %v2864
    %3155 = vmatmul.mubr.bf16.gmra.mrb[0].mxu0 %v2863
    %v3156 = vpop.f32.mrb[0].mxu0
    %v3157 = vadd.f32 %v3108, %v3156
    %v3158 = vpop.f32.mrb[0].mxu0
    %v3159 = vpop.f32.mrb[0].mxu0
    %v3160 = vadd.f32 %v3111, %v3159
    %v3161 = vpop.f32.mrb[0].mxu0
    %3162 = vdwg.mxu0
    %v3163 = vadd.f32 %v2448, %v3149
    %v3164 = vadd.f32 %v2449, %v3152
    %v3165 = vadd.f32 %v2450, %v3157
    %v3166 = vadd.f32 %v2451, %v3160
    %s3167 = scalar_lea.vmem [#allocation19], 1
    %v3168 = vld [vmem:[%s3167] sm:$0x1]
    %s3169 = scalar_lea.vmem [#allocation20], 1
    %v3170 = vld [vmem:[%s3169] sm:$0x1]
    %3171 = vadd.xlane.f32.xlu0 %v3163
    %v3172 = vpop.xlane.xlu0 %3171
    %3173 = vadd.xlane.f32.xlu0 %v3164
    %v3174 = vpop.xlane.xlu0 %3173
    %3175 = vadd.xlane.f32.xlu0 %v3165
    %v3176 = vpop.xlane.xlu0 %3175
    %3177 = vadd.xlane.f32.xlu0 %v3166
    %v3178 = vpop.xlane.xlu0 %3177
    %v3179 = vmul.f32 %v3172, %v893
    %v3180 = vmul.f32 %v3174, %v893
    %v3181 = vmul.f32 %v3176, %v893
    %v3182 = vmul.f32 %v3178, %v893
    %v3183 = vmul.f32 %v3163, %v3163
    %v3184 = vmul.f32 %v3164, %v3164
    %v3185 = vmul.f32 %v3165, %v3165
    %v3186 = vmul.f32 %v3166, %v3166
    %3187 = vadd.xlane.f32.xlu0 %v3183
    %v3188 = vpop.xlane.xlu0 %3187
    %3189 = vadd.xlane.f32.xlu0 %v3184
    %v3190 = vpop.xlane.xlu0 %3189
    %3191 = vadd.xlane.f32.xlu0 %v3185
    %v3192 = vpop.xlane.xlu0 %3191
    %3193 = vadd.xlane.f32.xlu0 %v3186
    %v3194 = vpop.xlane.xlu0 %3193
    %v3195 = vmul.f32 %v3188, %v893
    %v3196 = vmul.f32 %v3190, %v893
    %v3197 = vmul.f32 %v3192, %v893
    %v3198 = vmul.f32 %v3194, %v893
    %v3199 = vmul.f32 %v3179, %v3179
    %v3200 = vmul.f32 %v3180, %v3180
    %v3201 = vmul.f32 %v3181, %v3181
    %v3202 = vmul.f32 %v3182, %v3182
    %v3203 = vsub.f32 %v3195, %v3199
    %v3204 = vsub.f32 %v3196, %v3200
    %v3205 = vsub.f32 %v3197, %v3201
    %v3206 = vsub.f32 %v3198, %v3202
    %v3207 = vsub.f32 %v3163, %v3179
    %v3208 = vsub.f32 %v3164, %v3180
    %v3209 = vsub.f32 %v3165, %v3181
    %v3210 = vsub.f32 %v3166, %v3182
    %v3211 = vadd.f32 %v3203, 1e-05
    %v3212 = vadd.f32 %v3204, 1e-05
    %v3213 = vadd.f32 %v3205, 1e-05
    %v3214 = vadd.f32 %v3206, 1e-05
    %v3215 = vrsqrt.pop %v3211
    %v3216 = vrsqrt.pop %v3212
    %v3217 = vrsqrt.pop %v3213
    %v3218 = vrsqrt.pop %v3214
    %v3219 = vmul.f32 %v3207, %v3215
    %v3220 = vmul.f32 %v3208, %v3216
    %v3221 = vmul.f32 %v3209, %v3217
    %v3222 = vmul.f32 %v3210, %v3218
    %v3224 = vlaneseq
    %v3225 = vshrl.u32 %v3224, 7
    %v3226 = vsub.s32 0, %v3225
    %v3227 = vrot.slane %v3168, %v3226
    %v3229 = vmul.f32 %v3219, %v3227
    %v3230 = vmul.f32 %v3220, %v3227
    %v3231 = vmul.f32 %v3221, %v3227
    %v3232 = vmul.f32 %v3222, %v3227
    %v3234 = vlaneseq
    %v3235 = vshrl.u32 %v3234, 7
    %v3236 = vsub.s32 0, %v3235
    %v3237 = vrot.slane %v3170, %v3236
    %v3239 = vadd.f32 %v3229, %v3237
    %v3240 = vadd.f32 %v3230, %v3237
    %v3241 = vadd.f32 %v3231, %v3237
    %v3242 = vadd.f32 %v3232, %v3237
    %s3243 = scalar_lea.vmem [#allocation2], 384
    %v3244 = vld [vmem:[%s3243] sm:$0xff]
    %v3245 = vld [vmem:[%s3243 + $0x8] sm:$0xf]
    %v3246 = vld [vmem:[%s3243 + $0xc] sm:$0xff]
    %v3247 = vld [vmem:[%s3243 + $0x14] sm:$0xf]
    %v3248 = vld [vmem:[%s3243 + $0x18] sm:$0xff]
    %v3249 = vld [vmem:[%s3243 + $0x20] sm:$0xf]
    %v3250 = vld [vmem:[%s3243 + $0x24] sm:$0xff]
    %v3251 = vld [vmem:[%s3243 + $0x2c] sm:$0xf]
    %v3252 = vld [vmem:[%s3243 + $0x30] sm:$0xff]
    %v3253 = vld [vmem:[%s3243 + $0x38] sm:$0xf]
    %v3254 = vld [vmem:[%s3243 + $0x3c] sm:$0xff]
    %v3255 = vld [vmem:[%s3243 + $0x44] sm:$0xf]
    %v3256 = vld [vmem:[%s3243 + $0x48] sm:$0xff]
    %v3257 = vld [vmem:[%s3243 + $0x50] sm:$0xf]
    %v3258 = vld [vmem:[%s3243 + $0x54] sm:$0xff]
    %v3259 = vld [vmem:[%s3243 + $0x5c] sm:$0xf]
    %v3260 = vld [vmem:[%s3243 + $0x60] sm:$0xff]
    %v3261 = vld [vmem:[%s3243 + $0x68] sm:$0xf]
    %v3262 = vld [vmem:[%s3243 + $0x6c] sm:$0xff]
    %v3263 = vld [vmem:[%s3243 + $0x74] sm:$0xf]
    %v3264 = vld [vmem:[%s3243 + $0x78] sm:$0xff]
    %v3265 = vld [vmem:[%s3243 + $0x80] sm:$0xf]
    %v3266 = vld [vmem:[%s3243 + $0x84] sm:$0xff]
    %v3267 = vld [vmem:[%s3243 + $0x8c] sm:$0xf]
    %v3268 = vld [vmem:[%s3243 + $0x90] sm:$0xff]
    %v3269 = vld [vmem:[%s3243 + $0x98] sm:$0xf]
    %v3270 = vld [vmem:[%s3243 + $0x9c] sm:$0xff]
    %v3271 = vld [vmem:[%s3243 + $0xa4] sm:$0xf]
    %v3272 = vld [vmem:[%s3243 + $0xa8] sm:$0xff]
    %v3273 = vld [vmem:[%s3243 + $0xb0] sm:$0xf]
    %v3274 = vld [vmem:[%s3243 + $0xb4] sm:$0xff]
    %v3275 = vld [vmem:[%s3243 + $0xbc] sm:$0xf]
    %v3276 = vpack.c.bf16 %v3240, %v3239
    %v3277 = vpack.c.bf16 %v3242, %v3241
    %s3278 = scalar_lea.vmem [#allocation5], 6
    %v3279 = vld [vmem:[%s3278] sm:$0x7]
    %v3281 = vlaneseq
    %v3282 = vshrl.u32 %v3281, 7
    %v3283 = vsub.s32 0, %v3282
    %v3284 = vrot.slane %v3279, %v3283
    %v3285 = vlaneseq
    %v3286 = vshrl.u32 %v3285, 7
    %v3287 = vsub.s32 1, %v3286
    %v3288 = vrot.slane %v3279, %v3287
    %v3289 = vlaneseq
    %v3290 = vshrl.u32 %v3289, 7
    %v3291 = vsub.s32 2, %v3290
    %v3292 = vrot.slane %v3279, %v3291
    %v3328 = vunpack.c.l.b16 %v3244
    %v3329 = vunpack.c.h.b16 %v3244
    %v3330 = vunpack.c.l.b16 %v3245
    %v3331 = vunpack.c.l.b16 %v3246
    %v3332 = vunpack.c.h.b16 %v3246
    %v3333 = vunpack.c.l.b16 %v3247
    %v3334 = vunpack.c.l.b16 %v3248
    %v3335 = vunpack.c.h.b16 %v3248
    %v3336 = vunpack.c.l.b16 %v3249
    %v3337 = vunpack.c.l.b16 %v3250
    %v3338 = vunpack.c.h.b16 %v3250
    %v3339 = vunpack.c.l.b16 %v3251
    %v3340 = vunpack.c.l.b16 %v3252
    %v3341 = vunpack.c.h.b16 %v3252
    %v3342 = vunpack.c.l.b16 %v3253
    %v3343 = vunpack.c.l.b16 %v3254
    %v3344 = vunpack.c.h.b16 %v3254
    %v3345 = vunpack.c.l.b16 %v3255
    %v3346 = vunpack.c.l.b16 %v3256
    %v3347 = vunpack.c.h.b16 %v3256
    %v3348 = vunpack.c.l.b16 %v3257
    %v3349 = vunpack.c.l.b16 %v3258
    %v3350 = vunpack.c.h.b16 %v3258
    %v3351 = vunpack.c.l.b16 %v3259
    %v3352 = vunpack.c.l.b16 %v3260
    %v3353 = vunpack.c.h.b16 %v3260
    %v3354 = vunpack.c.l.b16 %v3261
    %v3355 = vunpack.c.l.b16 %v3262
    %v3356 = vunpack.c.h.b16 %v3262
    %v3357 = vunpack.c.l.b16 %v3263
    %v3358 = vunpack.c.l.b16 %v3264
    %v3359 = vunpack.c.h.b16 %v3264
    %v3360 = vunpack.c.l.b16 %v3265
    %v3361 = vunpack.c.l.b16 %v3266
    %v3362 = vunpack.c.h.b16 %v3266
    %v3363 = vunpack.c.l.b16 %v3267
    %v3364 = vunpack.c.l.b16 %v3268
    %v3365 = vunpack.c.h.b16 %v3268
    %v3366 = vunpack.c.l.b16 %v3269
    %v3367 = vunpack.c.l.b16 %v3270
    %v3368 = vunpack.c.h.b16 %v3270
    %v3369 = vunpack.c.l.b16 %v3271
    %v3370 = vunpack.c.l.b16 %v3272
    %v3371 = vunpack.c.h.b16 %v3272
    %v3372 = vunpack.c.l.b16 %v3273
    %v3373 = vunpack.c.l.b16 %v3274
    %v3374 = vunpack.c.h.b16 %v3274
    %v3375 = vunpack.c.l.b16 %v3275
    %v3376 = vpack.c.b16 %v3331, %v3328
    %v3377 = vpack.c.b16 %v3332, %v3329
    %v3378 = vpack.c.b16 %v3333, %v3330
    %v3379 = vpack.c.b16 %v3337, %v3334
    %v3380 = vpack.c.b16 %v3338, %v3335
    %v3381 = vpack.c.b16 %v3339, %v3336
    %v3382 = vpack.c.b16 %v3343, %v3340
    %v3383 = vpack.c.b16 %v3344, %v3341
    %v3384 = vpack.c.b16 %v3345, %v3342
    %v3385 = vpack.c.b16 %v3349, %v3346
    %v3386 = vpack.c.b16 %v3350, %v3347
    %v3387 = vpack.c.b16 %v3351, %v3348
    %v3388 = vpack.c.b16 %v3355, %v3352
    %v3389 = vpack.c.b16 %v3356, %v3353
    %v3390 = vpack.c.b16 %v3357, %v3354
    %v3391 = vpack.c.b16 %v3361, %v3358
    %v3392 = vpack.c.b16 %v3362, %v3359
    %v3393 = vpack.c.b16 %v3363, %v3360
    %v3394 = vpack.c.b16 %v3367, %v3364
    %v3395 = vpack.c.b16 %v3368, %v3365
    %v3396 = vpack.c.b16 %v3369, %v3366
    %v3397 = vpack.c.b16 %v3373, %v3370
    %v3398 = vpack.c.b16 %v3374, %v3371
    %v3399 = vpack.c.b16 %v3375, %v3372
    %3424 = vmatprep.subr.bf16.mxu0 %v3377
    %3425 = vmatpush1.bf16.msra.mxu0 %v3376
    %3426 = vmatprep.subr.bf16.mxu0 %v3380
    %3427 = vmatpush1.bf16.msra.mxu0 %v3379
    %3428 = vmatprep.subr.bf16.mxu0 %v3383
    %3429 = vmatpush1.bf16.msra.mxu0 %v3382
    %3430 = vmatprep.subr.bf16.mxu0 %v3386
    %3431 = vmatpush1.bf16.msra.mxu0 %v3385
    %3432 = vmatprep.subr.bf16.mxu0 %v3389
    %3433 = vmatpush1.bf16.msra.mxu0 %v3388
    %3434 = vmatprep.subr.bf16.mxu0 %v3392
    %3435 = vmatpush1.bf16.msra.mxu0 %v3391
    %3436 = vmatprep.subr.bf16.mxu0 %v3395
    %3437 = vmatpush1.bf16.msra.mxu0 %v3394
    %3438 = vmatprep.subr.bf16.mxu0 %v3398
    %3439 = vmatpush1.bf16.msra.mxu0 %v3397
    %3440 = vmatprep.subr.bf16.mxu0 0
    %3441 = vmatpush1.bf16.msra.mxu0 0
    %3442 = vmatprep.subr.bf16.mxu0 0
    %3443 = vmatpush1.bf16.msra.mxu0 0
    %3444 = vmatprep.subr.bf16.mxu0 0
    %3445 = vmatpush1.bf16.msra.mxu0 0
    %3446 = vmatprep.subr.bf16.mxu0 0
    %3447 = vmatpush1.bf16.msra.mxu0 0
    %3448 = vmatprep.subr.bf16.mxu0 0
    %3449 = vmatpush1.bf16.msra.mxu0 0
    %3450 = vmatprep.subr.bf16.mxu0 0
    %3451 = vmatpush1.bf16.msra.mxu0 0
    %3452 = vmatprep.subr.bf16.mxu0 0
    %3453 = vmatpush1.bf16.msra.mxu0 0
    %3454 = vmatprep.subr.bf16.mxu0 0
    %3455 = vmatpush1.bf16.msra.mxu0 0
    %3456 = vmatprep.mubr.bf16.mxu0 0
    %3457 = vmatmul.mubr.bf16.gmra.mrb[0].mxu0 %v3276
    %v3458 = vpop.f32.mrb[0].mxu0
    %v3459 = vadd.f32 %v3284, %v3458
    %v3460 = vpop.f32.mrb[0].mxu0
    %v3461 = vadd.f32 %v3288, %v3460
    %v3462 = vpop.f32.mrb[0].mxu0
    %v3463 = vadd.f32 %v3284, %v3462
    %v3464 = vpop.f32.mrb[0].mxu0
    %v3465 = vadd.f32 %v3288, %v3464
    %3466 = vmatprep.mubr.bf16.mxu0 0
    %3467 = vmatmul.mubr.bf16.gmra.mrb[0].mxu0 %v3277
    %v3468 = vpop.f32.mrb[0].mxu0
    %v3469 = vadd.f32 %v3284, %v3468
    %v3470 = vpop.f32.mrb[0].mxu0
    %v3471 = vadd.f32 %v3288, %v3470
    %v3472 = vpop.f32.mrb[0].mxu0
    %v3473 = vadd.f32 %v3284, %v3472
    %v3474 = vpop.f32.mrb[0].mxu0
    %v3475 = vadd.f32 %v3288, %v3474
    %3476 = vdwg.mxu0
    %3477 = vmatprep.subr.bf16.mxu0 0
    %3478 = vmatpush1.bf16.msra.mxu0 %v3378
    %3479 = vmatprep.subr.bf16.mxu0 0
    %3480 = vmatpush1.bf16.msra.mxu0 %v3381
    %3481 = vmatprep.subr.bf16.mxu0 0
    %3482 = vmatpush1.bf16.msra.mxu0 %v3384
    %3483 = vmatprep.subr.bf16.mxu0 0
    %3484 = vmatpush1.bf16.msra.mxu0 %v3387
    %3485 = vmatprep.subr.bf16.mxu0 0
    %3486 = vmatpush1.bf16.msra.mxu0 %v3390
    %3487 = vmatprep.subr.bf16.mxu0 0
    %3488 = vmatpush1.bf16.msra.mxu0 %v3393
    %3489 = vmatprep.subr.bf16.mxu0 0
    %3490 = vmatpush1.bf16.msra.mxu0 %v3396
    %3491 = vmatprep.subr.bf16.mxu0 0
    %3492 = vmatpush1.bf16.msra.mxu0 %v3399
    %3493 = vmatprep.subr.bf16.mxu0 0
    %3494 = vmatpush1.bf16.msra.mxu0 0
    %3495 = vmatprep.subr.bf16.mxu0 0
    %3496 = vmatpush1.bf16.msra.mxu0 0
    %3497 = vmatprep.subr.bf16.mxu0 0
    %3498 = vmatpush1.bf16.msra.mxu0 0
    %3499 = vmatprep.subr.bf16.mxu0 0
    %3500 = vmatpush1.bf16.msra.mxu0 0
    %3501 = vmatprep.subr.bf16.mxu0 0
    %3502 = vmatpush1.bf16.msra.mxu0 0
    %3503 = vmatprep.subr.bf16.mxu0 0
    %3504 = vmatpush1.bf16.msra.mxu0 0
    %3505 = vmatprep.subr.bf16.mxu0 0
    %3506 = vmatpush1.bf16.msra.mxu0 0
    %3507 = vmatprep.subr.bf16.mxu0 0
    %3508 = vmatpush1.bf16.msra.mxu0 0
    %3509 = vmatprep.mubr.bf16.mxu0 0
    %3510 = vmatmul.mubr.bf16.gmra.mrb[0].mxu0 %v3276
    %v3511 = vpop.f32.mrb[0].mxu0
    %v3512 = vadd.f32 %v3292, %v3511
    %v3513 = vpop.f32.mrb[0].mxu0
    %v3514 = vpop.f32.mrb[0].mxu0
    %v3515 = vadd.f32 %v3292, %v3514
    %v3516 = vpop.f32.mrb[0].mxu0
    %3517 = vmatprep.mubr.bf16.mxu0 0
    %3518 = vmatmul.mubr.bf16.gmra.mrb[0].mxu0 %v3277
    %v3519 = vpop.f32.mrb[0].mxu0
    %v3520 = vadd.f32 %v3292, %v3519
    %v3521 = vpop.f32.mrb[0].mxu0
    %v3522 = vpop.f32.mrb[0].mxu0
    %v3523 = vadd.f32 %v3292, %v3522
    %v3524 = vpop.f32.mrb[0].mxu0
    %3525 = vdwg.mxu0
    %v3526 = vpack.c.bf16 %v3463, %v3459
    %v3527 = vpack.c.bf16 %v3473, %v3469
    %v3528 = vpack.c.bf16 %v3465, %v3461
    %v3529 = vpack.c.bf16 %v3475, %v3471
    %3530 = vmatprep.subr.bf16.mxu0 0
    %3531 = vmatpush1.bf16.xpose.msra.mxu0 %v3528
    %3532 = vmatprep.subr.bf16.mxu0 0
    %3533 = vmatpush1.bf16.xpose.msra.mxu0 0
    %3534 = vmatprep.subr.bf16.mxu0 0
    %3535 = vmatpush1.bf16.xpose.msra.mxu0 0
    %3536 = vmatprep.subr.bf16.mxu0 0
    %3537 = vmatpush1.bf16.xpose.msra.mxu0 0
    %3538 = vmatprep.subr.bf16.mxu0 0
    %3539 = vmatpush1.bf16.xpose.msra.mxu0 0
    %3540 = vmatprep.subr.bf16.mxu0 0
    %3541 = vmatpush1.bf16.xpose.msra.mxu0 0
    %3542 = vmatprep.subr.bf16.mxu0 0
    %3543 = vmatpush1.bf16.xpose.msra.mxu0 0
    %3544 = vmatprep.subr.bf16.mxu0 0
    %3545 = vmatpush1.bf16.xpose.msra.mxu0 0
    %3546 = vmatprep.subr.bf16.mxu0 0
    %3547 = vmatpush1.bf16.xpose.msra.mxu0 0
    %3548 = vmatprep.subr.bf16.mxu0 0
    %3549 = vmatpush1.bf16.xpose.msra.mxu0 0
    %3550 = vmatprep.subr.bf16.mxu0 0
    %3551 = vmatpush1.bf16.xpose.msra.mxu0 0
    %3552 = vmatprep.subr.bf16.mxu0 0
    %3553 = vmatpush1.bf16.xpose.msra.mxu0 0
    %3554 = vmatprep.subr.bf16.mxu0 0
    %3555 = vmatpush1.bf16.xpose.msra.mxu0 0
    %3556 = vmatprep.subr.bf16.mxu0 0
    %3557 = vmatpush1.bf16.xpose.msra.mxu0 0
    %3558 = vmatprep.subr.bf16.mxu0 0
    %3559 = vmatpush1.bf16.xpose.msra.mxu0 0
    %3560 = vmatprep.subr.bf16.mxu0 0
    %3561 = vmatpush1.bf16.xpose.msra.mxu0 0
    %3562 = vmatprep.mubr.bf16.mxu0 0
    %3563 = vmatmul.mubr.bf16.gmra.mrb[0].mxu0 %v3526
    %v3564 = vpop.f32.mrb[0].mxu0
    %v3565 = vadd.f32 %v251, %v3564
    %v3566 = vpop.f32.mrb[0].mxu0
    %v3567 = vpop.f32.mrb[0].mxu0
    %v3568 = vadd.f32 %v252, %v3567
    %v3569 = vpop.f32.mrb[0].mxu0
    %3570 = vdwg.mxu0
    %3571 = vmatprep.subr.bf16.mxu0 0
    %3572 = vmatpush1.bf16.xpose.msra.mxu0 %v3529
    %3573 = vmatprep.subr.bf16.mxu0 0
    %3574 = vmatpush1.bf16.xpose.msra.mxu0 0
    %3575 = vmatprep.subr.bf16.mxu0 0
    %3576 = vmatpush1.bf16.xpose.msra.mxu0 0
    %3577 = vmatprep.subr.bf16.mxu0 0
    %3578 = vmatpush1.bf16.xpose.msra.mxu0 0
    %3579 = vmatprep.subr.bf16.mxu0 0
    %3580 = vmatpush1.bf16.xpose.msra.mxu0 0
    %3581 = vmatprep.subr.bf16.mxu0 0
    %3582 = vmatpush1.bf16.xpose.msra.mxu0 0
    %3583 = vmatprep.subr.bf16.mxu0 0
    %3584 = vmatpush1.bf16.xpose.msra.mxu0 0
    %3585 = vmatprep.subr.bf16.mxu0 0
    %3586 = vmatpush1.bf16.xpose.msra.mxu0 0
    %3587 = vmatprep.subr.bf16.mxu0 0
    %3588 = vmatpush1.bf16.xpose.msra.mxu0 0
    %3589 = vmatprep.subr.bf16.mxu0 0
    %3590 = vmatpush1.bf16.xpose.msra.mxu0 0
    %3591 = vmatprep.subr.bf16.mxu0 0
    %3592 = vmatpush1.bf16.xpose.msra.mxu0 0
    %3593 = vmatprep.subr.bf16.mxu0 0
    %3594 = vmatpush1.bf16.xpose.msra.mxu0 0
    %3595 = vmatprep.subr.bf16.mxu0 0
    %3596 = vmatpush1.bf16.xpose.msra.mxu0 0
    %3597 = vmatprep.subr.bf16.mxu0 0
    %3598 = vmatpush1.bf16.xpose.msra.mxu0 0
    %3599 = vmatprep.subr.bf16.mxu0 0
    %3600 = vmatpush1.bf16.xpose.msra.mxu0 0
    %3601 = vmatprep.subr.bf16.mxu0 0
    %3602 = vmatpush1.bf16.xpose.msra.mxu0 0
    %3603 = vmatprep.mubr.bf16.mxu0 0
    %3604 = vmatmul.mubr.bf16.gmra.mrb[0].mxu0 %v3527
    %v3605 = vpop.f32.mrb[0].mxu0
    %v3606 = vadd.f32 %v251, %v3605
    %v3607 = vpop.f32.mrb[0].mxu0
    %v3608 = vpop.f32.mrb[0].mxu0
    %v3609 = vadd.f32 %v252, %v3608
    %v3610 = vpop.f32.mrb[0].mxu0
    %3611 = vdwg.mxu0
    %v3612 = vsel %vm620, %v3565, -inf
    %3613 = vmax.xlane.f32.xlu0 %v3612
    %v3614 = vpop.xlane.xlu0 %3613
    %v3615 = vsel %vm620, %v3568, -inf
    %3616 = vmax.xlane.f32.xlu0 %v3615
    %v3617 = vpop.xlane.xlu0 %3616
    %v3618 = vsel %vm620, %v3606, -inf
    %3619 = vmax.xlane.f32.xlu0 %v3618
    %v3620 = vpop.xlane.xlu0 %3619
    %v3621 = vsel %vm620, %v3609, -inf
    %3622 = vmax.xlane.f32.xlu0 %v3621
    %v3623 = vpop.xlane.xlu0 %3622
    %v3624 = vsub.f32 %v3565, %v3614
    %v3625 = vsub.f32 %v3568, %v3617
    %v3626 = vsub.f32 %v3606, %v3620
    %v3627 = vsub.f32 %v3609, %v3623
    %v3628 = vmul.f32 %v3624, 1.442695
    %v3629 = vpow.pop %v3628
    %v3630 = vmul.f32 %v3625, 1.442695
    %v3631 = vpow.pop %v3630
    %v3632 = vmul.f32 %v3626, 1.442695
    %v3633 = vpow.pop %v3632
    %v3634 = vmul.f32 %v3627, 1.442695
    %v3635 = vpow.pop %v3634
    %v3636 = vsel %vm620, %v3629, 0.0
    %3637 = vadd.xlane.f32.xlu0 %v3636
    %v3638 = vpop.xlane.xlu0 %3637
    %v3639 = vsel %vm620, %v3631, 0.0
    %3640 = vadd.xlane.f32.xlu0 %v3639
    %v3641 = vpop.xlane.xlu0 %3640
    %v3642 = vsel %vm620, %v3633, 0.0
    %3643 = vadd.xlane.f32.xlu0 %v3642
    %v3644 = vpop.xlane.xlu0 %3643
    %v3645 = vsel %vm620, %v3635, 0.0
    %3646 = vadd.xlane.f32.xlu0 %v3645
    %v3647 = vpop.xlane.xlu0 %3646
    %v3648 = vrcp.pop %v3638
    %v3649 = vrcp.pop %v3641
    %v3650 = vrcp.pop %v3644
    %v3651 = vrcp.pop %v3647
    %v3652 = vmul.f32 %v3629, %v3648
    %v3653 = vmul.f32 %v3631, %v3649
    %v3654 = vmul.f32 %v3633, %v3650
    %v3655 = vmul.f32 %v3635, %v3651
    %v3656 = vpack.c.bf16 %v3653, %v3652
    %v3657 = vpack.c.bf16 %v3655, %v3654
    %v3658 = vpack.c.bf16 %v3515, %v3512
    %v3659 = vpack.c.bf16 %v3523, %v3520
    %v3661 = vsel %vm620, %v3656, 0
    %3663 = vmatprep.subr.bf16.mxu0 0
    %3664 = vmatpush1.bf16.msra.mxu0 %v3658
    %3665 = vmatprep.subr.bf16.mxu0 0
    %3666 = vmatpush1.bf16.msra.mxu0 0
    %3667 = vmatprep.subr.bf16.mxu0 0
    %3668 = vmatpush1.bf16.msra.mxu0 0
    %3669 = vmatprep.subr.bf16.mxu0 0
    %3670 = vmatpush1.bf16.msra.mxu0 0
    %3671 = vmatprep.subr.bf16.mxu0 0
    %3672 = vmatpush1.bf16.msra.mxu0 0
    %3673 = vmatprep.subr.bf16.mxu0 0
    %3674 = vmatpush1.bf16.msra.mxu0 0
    %3675 = vmatprep.subr.bf16.mxu0 0
    %3676 = vmatpush1.bf16.msra.mxu0 0
    %3677 = vmatprep.subr.bf16.mxu0 0
    %3678 = vmatpush1.bf16.msra.mxu0 0
    %3679 = vmatprep.subr.bf16.mxu0 0
    %3680 = vmatpush1.bf16.msra.mxu0 0
    %3681 = vmatprep.subr.bf16.mxu0 0
    %3682 = vmatpush1.bf16.msra.mxu0 0
    %3683 = vmatprep.subr.bf16.mxu0 0
    %3684 = vmatpush1.bf16.msra.mxu0 0
    %3685 = vmatprep.subr.bf16.mxu0 0
    %3686 = vmatpush1.bf16.msra.mxu0 0
    %3687 = vmatprep.subr.bf16.mxu0 0
    %3688 = vmatpush1.bf16.msra.mxu0 0
    %3689 = vmatprep.subr.bf16.mxu0 0
    %3690 = vmatpush1.bf16.msra.mxu0 0
    %3691 = vmatprep.subr.bf16.mxu0 0
    %3692 = vmatpush1.bf16.msra.mxu0 0
    %3693 = vmatprep.subr.bf16.mxu0 0
    %3694 = vmatpush1.bf16.msra.mxu0 0
    %3695 = vmatprep.mubr.bf16.mxu0 0
    %3696 = vmatmul.mubr.bf16.gmra.mrb[0].mxu0 %v3661
    %v3697 = vpop.f32.mrb[0].mxu0
    %v3698 = vadd.f32 0.0, %v3697
    %v3699 = vpop.f32.mrb[0].mxu0
    %v3700 = vpop.f32.mrb[0].mxu0
    %v3701 = vadd.f32 0.0, %v3700
    %v3702 = vpop.f32.mrb[0].mxu0
    %3703 = vdwg.mxu0
    %v3705 = vsel %vm620, %v3657, 0
    %3707 = vmatprep.subr.bf16.mxu0 0
    %3708 = vmatpush1.bf16.msra.mxu0 %v3659
    %3709 = vmatprep.subr.bf16.mxu0 0
    %3710 = vmatpush1.bf16.msra.mxu0 0
    %3711 = vmatprep.subr.bf16.mxu0 0
    %3712 = vmatpush1.bf16.msra.mxu0 0
    %3713 = vmatprep.subr.bf16.mxu0 0
    %3714 = vmatpush1.bf16.msra.mxu0 0
    %3715 = vmatprep.subr.bf16.mxu0 0
    %3716 = vmatpush1.bf16.msra.mxu0 0
    %3717 = vmatprep.subr.bf16.mxu0 0
    %3718 = vmatpush1.bf16.msra.mxu0 0
    %3719 = vmatprep.subr.bf16.mxu0 0
    %3720 = vmatpush1.bf16.msra.mxu0 0
    %3721 = vmatprep.subr.bf16.mxu0 0
    %3722 = vmatpush1.bf16.msra.mxu0 0
    %3723 = vmatprep.subr.bf16.mxu0 0
    %3724 = vmatpush1.bf16.msra.mxu0 0
    %3725 = vmatprep.subr.bf16.mxu0 0
    %3726 = vmatpush1.bf16.msra.mxu0 0
    %3727 = vmatprep.subr.bf16.mxu0 0
    %3728 = vmatpush1.bf16.msra.mxu0 0
    %3729 = vmatprep.subr.bf16.mxu0 0
    %3730 = vmatpush1.bf16.msra.mxu0 0
    %3731 = vmatprep.subr.bf16.mxu0 0
    %3732 = vmatpush1.bf16.msra.mxu0 0
    %3733 = vmatprep.subr.bf16.mxu0 0
    %3734 = vmatpush1.bf16.msra.mxu0 0
    %3735 = vmatprep.subr.bf16.mxu0 0
    %3736 = vmatpush1.bf16.msra.mxu0 0
    %3737 = vmatprep.subr.bf16.mxu0 0
    %3738 = vmatpush1.bf16.msra.mxu0 0
    %3739 = vmatprep.mubr.bf16.mxu0 0
    %3740 = vmatmul.mubr.bf16.gmra.mrb[0].mxu0 %v3705
    %v3741 = vpop.f32.mrb[0].mxu0
    %v3742 = vadd.f32 0.0, %v3741
    %v3743 = vpop.f32.mrb[0].mxu0
    %v3744 = vpop.f32.mrb[0].mxu0
    %v3745 = vadd.f32 0.0, %v3744
    %v3746 = vpop.f32.mrb[0].mxu0
    %3747 = vdwg.mxu0
    %s3748 = scalar_lea.vmem [#allocation7], 128
    %v3749 = vld [vmem:[%s3748] sm:$0xf]
    %v3750 = vld [vmem:[%s3748 + $0x4] sm:$0xf]
    %v3751 = vld [vmem:[%s3748 + $0x8] sm:$0xf]
    %v3752 = vld [vmem:[%s3748 + $0xc] sm:$0xf]
    %v3753 = vld [vmem:[%s3748 + $0x10] sm:$0xf]
    %v3754 = vld [vmem:[%s3748 + $0x14] sm:$0xf]
    %v3755 = vld [vmem:[%s3748 + $0x18] sm:$0xf]
    %v3756 = vld [vmem:[%s3748 + $0x1c] sm:$0xf]
    %v3757 = vld [vmem:[%s3748 + $0x20] sm:$0xf]
    %v3758 = vld [vmem:[%s3748 + $0x24] sm:$0xf]
    %v3759 = vld [vmem:[%s3748 + $0x28] sm:$0xf]
    %v3760 = vld [vmem:[%s3748 + $0x2c] sm:$0xf]
    %v3761 = vld [vmem:[%s3748 + $0x30] sm:$0xf]
    %v3762 = vld [vmem:[%s3748 + $0x34] sm:$0xf]
    %v3763 = vld [vmem:[%s3748 + $0x38] sm:$0xf]
    %v3764 = vld [vmem:[%s3748 + $0x3c] sm:$0xf]
    %v3765 = vpack.c.bf16 %v3701, %v3698
    %v3766 = vpack.c.bf16 %v3745, %v3742
    %s3767 = scalar_lea.vmem [#allocation8], 2
    %v3768 = vld [vmem:[%s3767] sm:$0x1]
    %v3770 = vlaneseq
    %v3771 = vshrl.u32 %v3770, 7
    %v3772 = vsub.s32 0, %v3771
    %v3773 = vrot.slane %v3768, %v3772
    %v3791 = vunpack.c.l.b16 %v3749
    %v3792 = vunpack.c.l.b16 %v3750
    %v3793 = vunpack.c.l.b16 %v3751
    %v3794 = vunpack.c.l.b16 %v3752
    %v3795 = vunpack.c.l.b16 %v3753
    %v3796 = vunpack.c.l.b16 %v3754
    %v3797 = vunpack.c.l.b16 %v3755
    %v3798 = vunpack.c.l.b16 %v3756
    %v3799 = vunpack.c.l.b16 %v3757
    %v3800 = vunpack.c.l.b16 %v3758
    %v3801 = vunpack.c.l.b16 %v3759
    %v3802 = vunpack.c.l.b16 %v3760
    %v3803 = vunpack.c.l.b16 %v3761
    %v3804 = vunpack.c.l.b16 %v3762
    %v3805 = vunpack.c.l.b16 %v3763
    %v3806 = vunpack.c.l.b16 %v3764
    %v3807 = vpack.c.b16 %v3792, %v3791
    %v3808 = vpack.c.b16 %v3794, %v3793
    %v3809 = vpack.c.b16 %v3796, %v3795
    %v3810 = vpack.c.b16 %v3798, %v3797
    %v3811 = vpack.c.b16 %v3800, %v3799
    %v3812 = vpack.c.b16 %v3802, %v3801
    %v3813 = vpack.c.b16 %v3804, %v3803
    %v3814 = vpack.c.b16 %v3806, %v3805
    %3823 = vmatprep.subr.bf16.mxu0 0
    %3824 = vmatpush1.bf16.msra.mxu0 %v3807
    %3825 = vmatprep.subr.bf16.mxu0 0
    %3826 = vmatpush1.bf16.msra.mxu0 %v3808
    %3827 = vmatprep.subr.bf16.mxu0 0
    %3828 = vmatpush1.bf16.msra.mxu0 %v3809
    %3829 = vmatprep.subr.bf16.mxu0 0
    %3830 = vmatpush1.bf16.msra.mxu0 %v3810
    %3831 = vmatprep.subr.bf16.mxu0 0
    %3832 = vmatpush1.bf16.msra.mxu0 %v3811
    %3833 = vmatprep.subr.bf16.mxu0 0
    %3834 = vmatpush1.bf16.msra.mxu0 %v3812
    %3835 = vmatprep.subr.bf16.mxu0 0
    %3836 = vmatpush1.bf16.msra.mxu0 %v3813
    %3837 = vmatprep.subr.bf16.mxu0 0
    %3838 = vmatpush1.bf16.msra.mxu0 %v3814
    %3839 = vmatprep.subr.bf16.mxu0 0
    %3840 = vmatpush1.bf16.msra.mxu0 0
    %3841 = vmatprep.subr.bf16.mxu0 0
    %3842 = vmatpush1.bf16.msra.mxu0 0
    %3843 = vmatprep.subr.bf16.mxu0 0
    %3844 = vmatpush1.bf16.msra.mxu0 0
    %3845 = vmatprep.subr.bf16.mxu0 0
    %3846 = vmatpush1.bf16.msra.mxu0 0
    %3847 = vmatprep.subr.bf16.mxu0 0
    %3848 = vmatpush1.bf16.msra.mxu0 0
    %3849 = vmatprep.subr.bf16.mxu0 0
    %3850 = vmatpush1.bf16.msra.mxu0 0
    %3851 = vmatprep.subr.bf16.mxu0 0
    %3852 = vmatpush1.bf16.msra.mxu0 0
    %3853 = vmatprep.subr.bf16.mxu0 0
    %3854 = vmatpush1.bf16.msra.mxu0 0
    %3855 = vmatprep.mubr.bf16.mxu0 0
    %3856 = vmatmul.mubr.bf16.gmra.mrb[0].mxu0 %v3765
    %v3857 = vpop.f32.mrb[0].mxu0
    %v3858 = vadd.f32 %v3773, %v3857
    %v3859 = vpop.f32.mrb[0].mxu0
    %v3860 = vpop.f32.mrb[0].mxu0
    %v3861 = vadd.f32 %v3773, %v3860
    %v3862 = vpop.f32.mrb[0].mxu0
    %3863 = vmatprep.mubr.bf16.mxu0 0
    %3864 = vmatmul.mubr.bf16.gmra.mrb[0].mxu0 %v3766
    %v3865 = vpop.f32.mrb[0].mxu0
    %v3866 = vadd.f32 %v3773, %v3865
    %v3867 = vpop.f32.mrb[0].mxu0
    %v3868 = vpop.f32.mrb[0].mxu0
    %v3869 = vadd.f32 %v3773, %v3868
    %v3870 = vpop.f32.mrb[0].mxu0
    %3871 = vdwg.mxu0
    %v3872 = vadd.f32 %v3239, %v3858
    %v3873 = vadd.f32 %v3240, %v3861
    %v3874 = vadd.f32 %v3241, %v3866
    %v3875 = vadd.f32 %v3242, %v3869
    %s3876 = scalar_lea.vmem [#allocation10], 2
    %v3877 = vld [vmem:[%s3876] sm:$0x1]
    %s3878 = scalar_lea.vmem [#allocation11], 2
    %v3879 = vld [vmem:[%s3878] sm:$0x1]
    %3880 = vadd.xlane.f32.xlu0 %v3872
    %v3881 = vpop.xlane.xlu0 %3880
    %3882 = vadd.xlane.f32.xlu0 %v3873
    %v3883 = vpop.xlane.xlu0 %3882
    %3884 = vadd.xlane.f32.xlu0 %v3874
    %v3885 = vpop.xlane.xlu0 %3884
    %3886 = vadd.xlane.f32.xlu0 %v3875
    %v3887 = vpop.xlane.xlu0 %3886
    %v3888 = vmul.f32 %v3881, %v893
    %v3889 = vmul.f32 %v3883, %v893
    %v3890 = vmul.f32 %v3885, %v893
    %v3891 = vmul.f32 %v3887, %v893
    %v3892 = vmul.f32 %v3872, %v3872
    %v3893 = vmul.f32 %v3873, %v3873
    %v3894 = vmul.f32 %v3874, %v3874
    %v3895 = vmul.f32 %v3875, %v3875
    %3896 = vadd.xlane.f32.xlu0 %v3892
    %v3897 = vpop.xlane.xlu0 %3896
    %3898 = vadd.xlane.f32.xlu0 %v3893
    %v3899 = vpop.xlane.xlu0 %3898
    %3900 = vadd.xlane.f32.xlu0 %v3894
    %v3901 = vpop.xlane.xlu0 %3900
    %3902 = vadd.xlane.f32.xlu0 %v3895
    %v3903 = vpop.xlane.xlu0 %3902
    %v3904 = vmul.f32 %v3897, %v893
    %v3905 = vmul.f32 %v3899, %v893
    %v3906 = vmul.f32 %v3901, %v893
    %v3907 = vmul.f32 %v3903, %v893
    %v3908 = vmul.f32 %v3888, %v3888
    %v3909 = vmul.f32 %v3889, %v3889
    %v3910 = vmul.f32 %v3890, %v3890
    %v3911 = vmul.f32 %v3891, %v3891
    %v3912 = vsub.f32 %v3904, %v3908
    %v3913 = vsub.f32 %v3905, %v3909
    %v3914 = vsub.f32 %v3906, %v3910
    %v3915 = vsub.f32 %v3907, %v3911
    %v3916 = vsub.f32 %v3872, %v3888
    %v3917 = vsub.f32 %v3873, %v3889
    %v3918 = vsub.f32 %v3874, %v3890
    %v3919 = vsub.f32 %v3875, %v3891
    %v3920 = vadd.f32 %v3912, 1e-05
    %v3921 = vadd.f32 %v3913, 1e-05
    %v3922 = vadd.f32 %v3914, 1e-05
    %v3923 = vadd.f32 %v3915, 1e-05
    %v3924 = vrsqrt.pop %v3920
    %v3925 = vrsqrt.pop %v3921
    %v3926 = vrsqrt.pop %v3922
    %v3927 = vrsqrt.pop %v3923
    %v3928 = vmul.f32 %v3916, %v3924
    %v3929 = vmul.f32 %v3917, %v3925
    %v3930 = vmul.f32 %v3918, %v3926
    %v3931 = vmul.f32 %v3919, %v3927
    %v3933 = vlaneseq
    %v3934 = vshrl.u32 %v3933, 7
    %v3935 = vsub.s32 0, %v3934
    %v3936 = vrot.slane %v3877, %v3935
    %v3938 = vmul.f32 %v3928, %v3936
    %v3939 = vmul.f32 %v3929, %v3936
    %v3940 = vmul.f32 %v3930, %v3936
    %v3941 = vmul.f32 %v3931, %v3936
    %v3943 = vlaneseq
    %v3944 = vshrl.u32 %v3943, 7
    %v3945 = vsub.s32 0, %v3944
    %v3946 = vrot.slane %v3879, %v3945
    %v3948 = vadd.f32 %v3938, %v3946
    %v3949 = vadd.f32 %v3939, %v3946
    %v3950 = vadd.f32 %v3940, %v3946
    %v3951 = vadd.f32 %v3941, %v3946
    %s3952 = scalar_lea.vmem [#allocation13], 512
    %v3953 = vld [vmem:[%s3952] sm:$0xff]
    %v3954 = vld [vmem:[%s3952 + $0x8] sm:$0xff]
    %v3955 = vld [vmem:[%s3952 + $0x10] sm:$0xff]
    %v3956 = vld [vmem:[%s3952 + $0x18] sm:$0xff]
    %v3957 = vld [vmem:[%s3952 + $0x20] sm:$0xff]
    %v3958 = vld [vmem:[%s3952 + $0x28] sm:$0xff]
    %v3959 = vld [vmem:[%s3952 + $0x30] sm:$0xff]
    %v3960 = vld [vmem:[%s3952 + $0x38] sm:$0xff]
    %v3961 = vld [vmem:[%s3952 + $0x40] sm:$0xff]
    %v3962 = vld [vmem:[%s3952 + $0x48] sm:$0xff]
    %v3963 = vld [vmem:[%s3952 + $0x50] sm:$0xff]
    %v3964 = vld [vmem:[%s3952 + $0x58] sm:$0xff]
    %v3965 = vld [vmem:[%s3952 + $0x60] sm:$0xff]
    %v3966 = vld [vmem:[%s3952 + $0x68] sm:$0xff]
    %v3967 = vld [vmem:[%s3952 + $0x70] sm:$0xff]
    %v3968 = vld [vmem:[%s3952 + $0x78] sm:$0xff]
    %v3969 = vld [vmem:[%s3952 + $0x80] sm:$0xff]
    %v3970 = vld [vmem:[%s3952 + $0x88] sm:$0xff]
    %v3971 = vld [vmem:[%s3952 + $0x90] sm:$0xff]
    %v3972 = vld [vmem:[%s3952 + $0x98] sm:$0xff]
    %v3973 = vld [vmem:[%s3952 + $0xa0] sm:$0xff]
    %v3974 = vld [vmem:[%s3952 + $0xa8] sm:$0xff]
    %v3975 = vld [vmem:[%s3952 + $0xb0] sm:$0xff]
    %v3976 = vld [vmem:[%s3952 + $0xb8] sm:$0xff]
    %v3977 = vld [vmem:[%s3952 + $0xc0] sm:$0xff]
    %v3978 = vld [vmem:[%s3952 + $0xc8] sm:$0xff]
    %v3979 = vld [vmem:[%s3952 + $0xd0] sm:$0xff]
    %v3980 = vld [vmem:[%s3952 + $0xd8] sm:$0xff]
    %v3981 = vld [vmem:[%s3952 + $0xe0] sm:$0xff]
    %v3982 = vld [vmem:[%s3952 + $0xe8] sm:$0xff]
    %v3983 = vld [vmem:[%s3952 + $0xf0] sm:$0xff]
    %v3984 = vld [vmem:[%s3952 + $0xf8] sm:$0xff]
    %v3985 = vpack.c.bf16 %v3949, %v3948
    %v3986 = vpack.c.bf16 %v3951, %v3950
    %s3987 = scalar_lea.vmem [#allocation14], 8
    %v3988 = vld [vmem:[%s3987] sm:$0xf]
    %v3990 = vlaneseq
    %v3991 = vshrl.u32 %v3990, 7
    %v3992 = vsub.s32 0, %v3991
    %v3993 = vrot.slane %v3988, %v3992
    %v3994 = vlaneseq
    %v3995 = vshrl.u32 %v3994, 7
    %v3996 = vsub.s32 1, %v3995
    %v3997 = vrot.slane %v3988, %v3996
    %v3998 = vlaneseq
    %v3999 = vshrl.u32 %v3998, 7
    %v4000 = vsub.s32 2, %v3999
    %v4001 = vrot.slane %v3988, %v4000
    %v4002 = vlaneseq
    %v4003 = vshrl.u32 %v4002, 7
    %v4004 = vsub.s32 3, %v4003
    %v4005 = vrot.slane %v3988, %v4004
    %v4042 = vunpack.c.l.b16 %v3953
    %v4043 = vunpack.c.h.b16 %v3953
    %v4044 = vunpack.c.l.b16 %v3954
    %v4045 = vunpack.c.h.b16 %v3954
    %v4046 = vunpack.c.l.b16 %v3955
    %v4047 = vunpack.c.h.b16 %v3955
    %v4048 = vunpack.c.l.b16 %v3956
    %v4049 = vunpack.c.h.b16 %v3956
    %v4050 = vunpack.c.l.b16 %v3957
    %v4051 = vunpack.c.h.b16 %v3957
    %v4052 = vunpack.c.l.b16 %v3958
    %v4053 = vunpack.c.h.b16 %v3958
    %v4054 = vunpack.c.l.b16 %v3959
    %v4055 = vunpack.c.h.b16 %v3959
    %v4056 = vunpack.c.l.b16 %v3960
    %v4057 = vunpack.c.h.b16 %v3960
    %v4058 = vunpack.c.l.b16 %v3961
    %v4059 = vunpack.c.h.b16 %v3961
    %v4060 = vunpack.c.l.b16 %v3962
    %v4061 = vunpack.c.h.b16 %v3962
    %v4062 = vunpack.c.l.b16 %v3963
    %v4063 = vunpack.c.h.b16 %v3963
    %v4064 = vunpack.c.l.b16 %v3964
    %v4065 = vunpack.c.h.b16 %v3964
    %v4066 = vunpack.c.l.b16 %v3965
    %v4067 = vunpack.c.h.b16 %v3965
    %v4068 = vunpack.c.l.b16 %v3966
    %v4069 = vunpack.c.h.b16 %v3966
    %v4070 = vunpack.c.l.b16 %v3967
    %v4071 = vunpack.c.h.b16 %v3967
    %v4072 = vunpack.c.l.b16 %v3968
    %v4073 = vunpack.c.h.b16 %v3968
    %v4074 = vunpack.c.l.b16 %v3969
    %v4075 = vunpack.c.h.b16 %v3969
    %v4076 = vunpack.c.l.b16 %v3970
    %v4077 = vunpack.c.h.b16 %v3970
    %v4078 = vunpack.c.l.b16 %v3971
    %v4079 = vunpack.c.h.b16 %v3971
    %v4080 = vunpack.c.l.b16 %v3972
    %v4081 = vunpack.c.h.b16 %v3972
    %v4082 = vunpack.c.l.b16 %v3973
    %v4083 = vunpack.c.h.b16 %v3973
    %v4084 = vunpack.c.l.b16 %v3974
    %v4085 = vunpack.c.h.b16 %v3974
    %v4086 = vunpack.c.l.b16 %v3975
    %v4087 = vunpack.c.h.b16 %v3975
    %v4088 = vunpack.c.l.b16 %v3976
    %v4089 = vunpack.c.h.b16 %v3976
    %v4090 = vunpack.c.l.b16 %v3977
    %v4091 = vunpack.c.h.b16 %v3977
    %v4092 = vunpack.c.l.b16 %v3978
    %v4093 = vunpack.c.h.b16 %v3978
    %v4094 = vunpack.c.l.b16 %v3979
    %v4095 = vunpack.c.h.b16 %v3979
    %v4096 = vunpack.c.l.b16 %v3980
    %v4097 = vunpack.c.h.b16 %v3980
    %v4098 = vunpack.c.l.b16 %v3981
    %v4099 = vunpack.c.h.b16 %v3981
    %v4100 = vunpack.c.l.b16 %v3982
    %v4101 = vunpack.c.h.b16 %v3982
    %v4102 = vunpack.c.l.b16 %v3983
    %v4103 = vunpack.c.h.b16 %v3983
    %v4104 = vunpack.c.l.b16 %v3984
    %v4105 = vunpack.c.h.b16 %v3984
    %v4106 = vpack.c.b16 %v4046, %v4042
    %v4107 = vpack.c.b16 %v4047, %v4043
    %v4108 = vpack.c.b16 %v4048, %v4044
    %v4109 = vpack.c.b16 %v4049, %v4045
    %v4110 = vpack.c.b16 %v4054, %v4050
    %v4111 = vpack.c.b16 %v4055, %v4051
    %v4112 = vpack.c.b16 %v4056, %v4052
    %v4113 = vpack.c.b16 %v4057, %v4053
    %v4114 = vpack.c.b16 %v4062, %v4058
    %v4115 = vpack.c.b16 %v4063, %v4059
    %v4116 = vpack.c.b16 %v4064, %v4060
    %v4117 = vpack.c.b16 %v4065, %v4061
    %v4118 = vpack.c.b16 %v4070, %v4066
    %v4119 = vpack.c.b16 %v4071, %v4067
    %v4120 = vpack.c.b16 %v4072, %v4068
    %v4121 = vpack.c.b16 %v4073, %v4069
    %v4122 = vpack.c.b16 %v4078, %v4074
    %v4123 = vpack.c.b16 %v4079, %v4075
    %v4124 = vpack.c.b16 %v4080, %v4076
    %v4125 = vpack.c.b16 %v4081, %v4077
    %v4126 = vpack.c.b16 %v4086, %v4082
    %v4127 = vpack.c.b16 %v4087, %v4083
    %v4128 = vpack.c.b16 %v4088, %v4084
    %v4129 = vpack.c.b16 %v4089, %v4085
    %v4130 = vpack.c.b16 %v4094, %v4090
    %v4131 = vpack.c.b16 %v4095, %v4091
    %v4132 = vpack.c.b16 %v4096, %v4092
    %v4133 = vpack.c.b16 %v4097, %v4093
    %v4134 = vpack.c.b16 %v4102, %v4098
    %v4135 = vpack.c.b16 %v4103, %v4099
    %v4136 = vpack.c.b16 %v4104, %v4100
    %v4137 = vpack.c.b16 %v4105, %v4101
    %4170 = vmatprep.subr.bf16.mxu0 %v4107
    %4171 = vmatpush1.bf16.msra.mxu0 %v4106
    %4172 = vmatprep.subr.bf16.mxu0 %v4111
    %4173 = vmatpush1.bf16.msra.mxu0 %v4110
    %4174 = vmatprep.subr.bf16.mxu0 %v4115
    %4175 = vmatpush1.bf16.msra.mxu0 %v4114
    %4176 = vmatprep.subr.bf16.mxu0 %v4119
    %4177 = vmatpush1.bf16.msra.mxu0 %v4118
    %4178 = vmatprep.subr.bf16.mxu0 %v4123
    %4179 = vmatpush1.bf16.msra.mxu0 %v4122
    %4180 = vmatprep.subr.bf16.mxu0 %v4127
    %4181 = vmatpush1.bf16.msra.mxu0 %v4126
    %4182 = vmatprep.subr.bf16.mxu0 %v4131
    %4183 = vmatpush1.bf16.msra.mxu0 %v4130
    %4184 = vmatprep.subr.bf16.mxu0 %v4135
    %4185 = vmatpush1.bf16.msra.mxu0 %v4134
    %4186 = vmatprep.subr.bf16.mxu0 0
    %4187 = vmatpush1.bf16.msra.mxu0 0
    %4188 = vmatprep.subr.bf16.mxu0 0
    %4189 = vmatpush1.bf16.msra.mxu0 0
    %4190 = vmatprep.subr.bf16.mxu0 0
    %4191 = vmatpush1.bf16.msra.mxu0 0
    %4192 = vmatprep.subr.bf16.mxu0 0
    %4193 = vmatpush1.bf16.msra.mxu0 0
    %4194 = vmatprep.subr.bf16.mxu0 0
    %4195 = vmatpush1.bf16.msra.mxu0 0
    %4196 = vmatprep.subr.bf16.mxu0 0
    %4197 = vmatpush1.bf16.msra.mxu0 0
    %4198 = vmatprep.subr.bf16.mxu0 0
    %4199 = vmatpush1.bf16.msra.mxu0 0
    %4200 = vmatprep.subr.bf16.mxu0 0
    %4201 = vmatpush1.bf16.msra.mxu0 0
    %4202 = vmatprep.mubr.bf16.mxu0 0
    %4203 = vmatmul.mubr.bf16.gmra.mrb[0].mxu0 %v3985
    %v4204 = vpop.f32.mrb[0].mxu0
    %v4205 = vadd.f32 %v3993, %v4204
    %v4206 = vpop.f32.mrb[0].mxu0
    %v4207 = vadd.f32 %v3997, %v4206
    %v4208 = vpop.f32.mrb[0].mxu0
    %v4209 = vadd.f32 %v3993, %v4208
    %v4210 = vpop.f32.mrb[0].mxu0
    %v4211 = vadd.f32 %v3997, %v4210
    %4212 = vmatprep.mubr.bf16.mxu0 0
    %4213 = vmatmul.mubr.bf16.gmra.mrb[0].mxu0 %v3986
    %v4214 = vpop.f32.mrb[0].mxu0
    %v4215 = vadd.f32 %v3993, %v4214
    %v4216 = vpop.f32.mrb[0].mxu0
    %v4217 = vadd.f32 %v3997, %v4216
    %v4218 = vpop.f32.mrb[0].mxu0
    %v4219 = vadd.f32 %v3993, %v4218
    %v4220 = vpop.f32.mrb[0].mxu0
    %v4221 = vadd.f32 %v3997, %v4220
    %4222 = vdwg.mxu0
    %4223 = vmatprep.subr.bf16.mxu0 %v4109
    %4224 = vmatpush1.bf16.msra.mxu0 %v4108
    %4225 = vmatprep.subr.bf16.mxu0 %v4113
    %4226 = vmatpush1.bf16.msra.mxu0 %v4112
    %4227 = vmatprep.subr.bf16.mxu0 %v4117
    %4228 = vmatpush1.bf16.msra.mxu0 %v4116
    %4229 = vmatprep.subr.bf16.mxu0 %v4121
    %4230 = vmatpush1.bf16.msra.mxu0 %v4120
    %4231 = vmatprep.subr.bf16.mxu0 %v4125
    %4232 = vmatpush1.bf16.msra.mxu0 %v4124
    %4233 = vmatprep.subr.bf16.mxu0 %v4129
    %4234 = vmatpush1.bf16.msra.mxu0 %v4128
    %4235 = vmatprep.subr.bf16.mxu0 %v4133
    %4236 = vmatpush1.bf16.msra.mxu0 %v4132
    %4237 = vmatprep.subr.bf16.mxu0 %v4137
    %4238 = vmatpush1.bf16.msra.mxu0 %v4136
    %4239 = vmatprep.subr.bf16.mxu0 0
    %4240 = vmatpush1.bf16.msra.mxu0 0
    %4241 = vmatprep.subr.bf16.mxu0 0
    %4242 = vmatpush1.bf16.msra.mxu0 0
    %4243 = vmatprep.subr.bf16.mxu0 0
    %4244 = vmatpush1.bf16.msra.mxu0 0
    %4245 = vmatprep.subr.bf16.mxu0 0
    %4246 = vmatpush1.bf16.msra.mxu0 0
    %4247 = vmatprep.subr.bf16.mxu0 0
    %4248 = vmatpush1.bf16.msra.mxu0 0
    %4249 = vmatprep.subr.bf16.mxu0 0
    %4250 = vmatpush1.bf16.msra.mxu0 0
    %4251 = vmatprep.subr.bf16.mxu0 0
    %4252 = vmatpush1.bf16.msra.mxu0 0
    %4253 = vmatprep.subr.bf16.mxu0 0
    %4254 = vmatpush1.bf16.msra.mxu0 0
    %4255 = vmatprep.mubr.bf16.mxu0 0
    %4256 = vmatmul.mubr.bf16.gmra.mrb[0].mxu0 %v3985
    %v4257 = vpop.f32.mrb[0].mxu0
    %v4258 = vadd.f32 %v4001, %v4257
    %v4259 = vpop.f32.mrb[0].mxu0
    %v4260 = vadd.f32 %v4005, %v4259
    %v4261 = vpop.f32.mrb[0].mxu0
    %v4262 = vadd.f32 %v4001, %v4261
    %v4263 = vpop.f32.mrb[0].mxu0
    %v4264 = vadd.f32 %v4005, %v4263
    %4265 = vmatprep.mubr.bf16.mxu0 0
    %4266 = vmatmul.mubr.bf16.gmra.mrb[0].mxu0 %v3986
    %v4267 = vpop.f32.mrb[0].mxu0
    %v4268 = vadd.f32 %v4001, %v4267
    %v4269 = vpop.f32.mrb[0].mxu0
    %v4270 = vadd.f32 %v4005, %v4269
    %v4271 = vpop.f32.mrb[0].mxu0
    %v4272 = vadd.f32 %v4001, %v4271
    %v4273 = vpop.f32.mrb[0].mxu0
    %v4274 = vadd.f32 %v4005, %v4273
    %4275 = vdwg.mxu0
    %v4276 = vmax.f32 %v4205, 0.0
    %v4277 = vmax.f32 %v4207, 0.0
    %v4278 = vmax.f32 %v4258, 0.0
    %v4279 = vmax.f32 %v4260, 0.0
    %v4280 = vmax.f32 %v4209, 0.0
    %v4281 = vmax.f32 %v4211, 0.0
    %v4282 = vmax.f32 %v4262, 0.0
    %v4283 = vmax.f32 %v4264, 0.0
    %v4284 = vmax.f32 %v4215, 0.0
    %v4285 = vmax.f32 %v4217, 0.0
    %v4286 = vmax.f32 %v4268, 0.0
    %v4287 = vmax.f32 %v4270, 0.0
    %v4288 = vmax.f32 %v4219, 0.0
    %v4289 = vmax.f32 %v4221, 0.0
    %v4290 = vmax.f32 %v4272, 0.0
    %v4291 = vmax.f32 %v4274, 0.0
    %s4292 = scalar_lea.vmem [#allocation16], 512
    %v4293 = vld [vmem:[%s4292] sm:$0xf]
    %v4294 = vld [vmem:[%s4292 + $0x4] sm:$0xf]
    %v4295 = vld [vmem:[%s4292 + $0x8] sm:$0xf]
    %v4296 = vld [vmem:[%s4292 + $0xc] sm:$0xf]
    %v4297 = vld [vmem:[%s4292 + $0x10] sm:$0xf]
    %v4298 = vld [vmem:[%s4292 + $0x14] sm:$0xf]
    %v4299 = vld [vmem:[%s4292 + $0x18] sm:$0xf]
    %v4300 = vld [vmem:[%s4292 + $0x1c] sm:$0xf]
    %v4301 = vld [vmem:[%s4292 + $0x20] sm:$0xf]
    %v4302 = vld [vmem:[%s4292 + $0x24] sm:$0xf]
    %v4303 = vld [vmem:[%s4292 + $0x28] sm:$0xf]
    %v4304 = vld [vmem:[%s4292 + $0x2c] sm:$0xf]
    %v4305 = vld [vmem:[%s4292 + $0x30] sm:$0xf]
    %v4306 = vld [vmem:[%s4292 + $0x34] sm:$0xf]
    %v4307 = vld [vmem:[%s4292 + $0x38] sm:$0xf]
    %v4308 = vld [vmem:[%s4292 + $0x3c] sm:$0xf]
    %v4309 = vld [vmem:[%s4292 + $0x40] sm:$0xf]
    %v4310 = vld [vmem:[%s4292 + $0x44] sm:$0xf]
    %v4311 = vld [vmem:[%s4292 + $0x48] sm:$0xf]
    %v4312 = vld [vmem:[%s4292 + $0x4c] sm:$0xf]
    %v4313 = vld [vmem:[%s4292 + $0x50] sm:$0xf]
    %v4314 = vld [vmem:[%s4292 + $0x54] sm:$0xf]
    %v4315 = vld [vmem:[%s4292 + $0x58] sm:$0xf]
    %v4316 = vld [vmem:[%s4292 + $0x5c] sm:$0xf]
    %v4317 = vld [vmem:[%s4292 + $0x60] sm:$0xf]
    %v4318 = vld [vmem:[%s4292 + $0x64] sm:$0xf]
    %v4319 = vld [vmem:[%s4292 + $0x68] sm:$0xf]
    %v4320 = vld [vmem:[%s4292 + $0x6c] sm:$0xf]
    %v4321 = vld [vmem:[%s4292 + $0x70] sm:$0xf]
    %v4322 = vld [vmem:[%s4292 + $0x74] sm:$0xf]
    %v4323 = vld [vmem:[%s4292 + $0x78] sm:$0xf]
    %v4324 = vld [vmem:[%s4292 + $0x7c] sm:$0xf]
    %v4325 = vld [vmem:[%s4292 + $0x80] sm:$0xf]
    %v4326 = vld [vmem:[%s4292 + $0x84] sm:$0xf]
    %v4327 = vld [vmem:[%s4292 + $0x88] sm:$0xf]
    %v4328 = vld [vmem:[%s4292 + $0x8c] sm:$0xf]
    %v4329 = vld [vmem:[%s4292 + $0x90] sm:$0xf]
    %v4330 = vld [vmem:[%s4292 + $0x94] sm:$0xf]
    %v4331 = vld [vmem:[%s4292 + $0x98] sm:$0xf]
    %v4332 = vld [vmem:[%s4292 + $0x9c] sm:$0xf]
    %v4333 = vld [vmem:[%s4292 + $0xa0] sm:$0xf]
    %v4334 = vld [vmem:[%s4292 + $0xa4] sm:$0xf]
    %v4335 = vld [vmem:[%s4292 + $0xa8] sm:$0xf]
    %v4336 = vld [vmem:[%s4292 + $0xac] sm:$0xf]
    %v4337 = vld [vmem:[%s4292 + $0xb0] sm:$0xf]
    %v4338 = vld [vmem:[%s4292 + $0xb4] sm:$0xf]
    %v4339 = vld [vmem:[%s4292 + $0xb8] sm:$0xf]
    %v4340 = vld [vmem:[%s4292 + $0xbc] sm:$0xf]
    %v4341 = vld [vmem:[%s4292 + $0xc0] sm:$0xf]
    %v4342 = vld [vmem:[%s4292 + $0xc4] sm:$0xf]
    %v4343 = vld [vmem:[%s4292 + $0xc8] sm:$0xf]
    %v4344 = vld [vmem:[%s4292 + $0xcc] sm:$0xf]
    %v4345 = vld [vmem:[%s4292 + $0xd0] sm:$0xf]
    %v4346 = vld [vmem:[%s4292 + $0xd4] sm:$0xf]
    %v4347 = vld [vmem:[%s4292 + $0xd8] sm:$0xf]
    %v4348 = vld [vmem:[%s4292 + $0xdc] sm:$0xf]
    %v4349 = vld [vmem:[%s4292 + $0xe0] sm:$0xf]
    %v4350 = vld [vmem:[%s4292 + $0xe4] sm:$0xf]
    %v4351 = vld [vmem:[%s4292 + $0xe8] sm:$0xf]
    %v4352 = vld [vmem:[%s4292 + $0xec] sm:$0xf]
    %v4353 = vld [vmem:[%s4292 + $0xf0] sm:$0xf]
    %v4354 = vld [vmem:[%s4292 + $0xf4] sm:$0xf]
    %v4355 = vld [vmem:[%s4292 + $0xf8] sm:$0xf]
    %v4356 = vld [vmem:[%s4292 + $0xfc] sm:$0xf]
    %v4357 = vpack.c.bf16 %v4280, %v4276
    %v4358 = vpack.c.bf16 %v4281, %v4277
    %v4359 = vpack.c.bf16 %v4282, %v4278
    %v4360 = vpack.c.bf16 %v4283, %v4279
    %v4361 = vpack.c.bf16 %v4288, %v4284
    %v4362 = vpack.c.bf16 %v4289, %v4285
    %v4363 = vpack.c.bf16 %v4290, %v4286
    %v4364 = vpack.c.bf16 %v4291, %v4287
    %s4365 = scalar_lea.vmem [#allocation17], 2
    %v4366 = vld [vmem:[%s4365] sm:$0x1]
    %v4368 = vlaneseq
    %v4369 = vshrl.u32 %v4368, 7
    %v4370 = vsub.s32 0, %v4369
    %v4371 = vrot.slane %v4366, %v4370
    %v4437 = vunpack.c.l.b16 %v4293
    %v4438 = vunpack.c.l.b16 %v4294
    %v4439 = vunpack.c.l.b16 %v4295
    %v4440 = vunpack.c.l.b16 %v4296
    %v4441 = vunpack.c.l.b16 %v4297
    %v4442 = vunpack.c.l.b16 %v4298
    %v4443 = vunpack.c.l.b16 %v4299
    %v4444 = vunpack.c.l.b16 %v4300
    %v4445 = vunpack.c.l.b16 %v4301
    %v4446 = vunpack.c.l.b16 %v4302
    %v4447 = vunpack.c.l.b16 %v4303
    %v4448 = vunpack.c.l.b16 %v4304
    %v4449 = vunpack.c.l.b16 %v4305
    %v4450 = vunpack.c.l.b16 %v4306
    %v4451 = vunpack.c.l.b16 %v4307
    %v4452 = vunpack.c.l.b16 %v4308
    %v4453 = vunpack.c.l.b16 %v4309
    %v4454 = vunpack.c.l.b16 %v4310
    %v4455 = vunpack.c.l.b16 %v4311
    %v4456 = vunpack.c.l.b16 %v4312
    %v4457 = vunpack.c.l.b16 %v4313
    %v4458 = vunpack.c.l.b16 %v4314
    %v4459 = vunpack.c.l.b16 %v4315
    %v4460 = vunpack.c.l.b16 %v4316
    %v4461 = vunpack.c.l.b16 %v4317
    %v4462 = vunpack.c.l.b16 %v4318
    %v4463 = vunpack.c.l.b16 %v4319
    %v4464 = vunpack.c.l.b16 %v4320
    %v4465 = vunpack.c.l.b16 %v4321
    %v4466 = vunpack.c.l.b16 %v4322
    %v4467 = vunpack.c.l.b16 %v4323
    %v4468 = vunpack.c.l.b16 %v4324
    %v4469 = vunpack.c.l.b16 %v4325
    %v4470 = vunpack.c.l.b16 %v4326
    %v4471 = vunpack.c.l.b16 %v4327
    %v4472 = vunpack.c.l.b16 %v4328
    %v4473 = vunpack.c.l.b16 %v4329
    %v4474 = vunpack.c.l.b16 %v4330
    %v4475 = vunpack.c.l.b16 %v4331
    %v4476 = vunpack.c.l.b16 %v4332
    %v4477 = vunpack.c.l.b16 %v4333
    %v4478 = vunpack.c.l.b16 %v4334
    %v4479 = vunpack.c.l.b16 %v4335
    %v4480 = vunpack.c.l.b16 %v4336
    %v4481 = vunpack.c.l.b16 %v4337
    %v4482 = vunpack.c.l.b16 %v4338
    %v4483 = vunpack.c.l.b16 %v4339
    %v4484 = vunpack.c.l.b16 %v4340
    %v4485 = vunpack.c.l.b16 %v4341
    %v4486 = vunpack.c.l.b16 %v4342
    %v4487 = vunpack.c.l.b16 %v4343
    %v4488 = vunpack.c.l.b16 %v4344
    %v4489 = vunpack.c.l.b16 %v4345
    %v4490 = vunpack.c.l.b16 %v4346
    %v4491 = vunpack.c.l.b16 %v4347
    %v4492 = vunpack.c.l.b16 %v4348
    %v4493 = vunpack.c.l.b16 %v4349
    %v4494 = vunpack.c.l.b16 %v4350
    %v4495 = vunpack.c.l.b16 %v4351
    %v4496 = vunpack.c.l.b16 %v4352
    %v4497 = vunpack.c.l.b16 %v4353
    %v4498 = vunpack.c.l.b16 %v4354
    %v4499 = vunpack.c.l.b16 %v4355
    %v4500 = vunpack.c.l.b16 %v4356
    %v4501 = vpack.c.b16 %v4438, %v4437
    %v4502 = vpack.c.b16 %v4440, %v4439
    %v4503 = vpack.c.b16 %v4442, %v4441
    %v4504 = vpack.c.b16 %v4444, %v4443
    %v4505 = vpack.c.b16 %v4446, %v4445
    %v4506 = vpack.c.b16 %v4448, %v4447
    %v4507 = vpack.c.b16 %v4450, %v4449
    %v4508 = vpack.c.b16 %v4452, %v4451
    %v4509 = vpack.c.b16 %v4454, %v4453
    %v4510 = vpack.c.b16 %v4456, %v4455
    %v4511 = vpack.c.b16 %v4458, %v4457
    %v4512 = vpack.c.b16 %v4460, %v4459
    %v4513 = vpack.c.b16 %v4462, %v4461
    %v4514 = vpack.c.b16 %v4464, %v4463
    %v4515 = vpack.c.b16 %v4466, %v4465
    %v4516 = vpack.c.b16 %v4468, %v4467
    %v4517 = vpack.c.b16 %v4470, %v4469
    %v4518 = vpack.c.b16 %v4472, %v4471
    %v4519 = vpack.c.b16 %v4474, %v4473
    %v4520 = vpack.c.b16 %v4476, %v4475
    %v4521 = vpack.c.b16 %v4478, %v4477
    %v4522 = vpack.c.b16 %v4480, %v4479
    %v4523 = vpack.c.b16 %v4482, %v4481
    %v4524 = vpack.c.b16 %v4484, %v4483
    %v4525 = vpack.c.b16 %v4486, %v4485
    %v4526 = vpack.c.b16 %v4488, %v4487
    %v4527 = vpack.c.b16 %v4490, %v4489
    %v4528 = vpack.c.b16 %v4492, %v4491
    %v4529 = vpack.c.b16 %v4494, %v4493
    %v4530 = vpack.c.b16 %v4496, %v4495
    %v4531 = vpack.c.b16 %v4498, %v4497
    %v4532 = vpack.c.b16 %v4500, %v4499
    %4565 = vmatprep.subr.bf16.mxu0 0
    %4566 = vmatpush1.bf16.msra.mxu0 %v4501
    %4567 = vmatprep.subr.bf16.mxu0 0
    %4568 = vmatpush1.bf16.msra.mxu0 %v4502
    %4569 = vmatprep.subr.bf16.mxu0 0
    %4570 = vmatpush1.bf16.msra.mxu0 %v4503
    %4571 = vmatprep.subr.bf16.mxu0 0
    %4572 = vmatpush1.bf16.msra.mxu0 %v4504
    %4573 = vmatprep.subr.bf16.mxu0 0
    %4574 = vmatpush1.bf16.msra.mxu0 %v4505
    %4575 = vmatprep.subr.bf16.mxu0 0
    %4576 = vmatpush1.bf16.msra.mxu0 %v4506
    %4577 = vmatprep.subr.bf16.mxu0 0
    %4578 = vmatpush1.bf16.msra.mxu0 %v4507
    %4579 = vmatprep.subr.bf16.mxu0 0
    %4580 = vmatpush1.bf16.msra.mxu0 %v4508
    %4581 = vmatprep.subr.bf16.mxu0 0
    %4582 = vmatpush1.bf16.msra.mxu0 %v4509
    %4583 = vmatprep.subr.bf16.mxu0 0
    %4584 = vmatpush1.bf16.msra.mxu0 %v4510
    %4585 = vmatprep.subr.bf16.mxu0 0
    %4586 = vmatpush1.bf16.msra.mxu0 %v4511
    %4587 = vmatprep.subr.bf16.mxu0 0
    %4588 = vmatpush1.bf16.msra.mxu0 %v4512
    %4589 = vmatprep.subr.bf16.mxu0 0
    %4590 = vmatpush1.bf16.msra.mxu0 %v4513
    %4591 = vmatprep.subr.bf16.mxu0 0
    %4592 = vmatpush1.bf16.msra.mxu0 %v4514
    %4593 = vmatprep.subr.bf16.mxu0 0
    %4594 = vmatpush1.bf16.msra.mxu0 %v4515
    %4595 = vmatprep.subr.bf16.mxu0 0
    %4596 = vmatpush1.bf16.msra.mxu0 %v4516
    %4597 = vmatprep.mubr.bf16.mxu0 %v4358
    %4598 = vmatmul.mubr.bf16.gmra.mrb[0].mxu0 %v4357
    %v4599 = vpop.f32.mrb[0].mxu0
    %v4600 = vadd.f32 %v4371, %v4599
    %v4601 = vpop.f32.mrb[0].mxu0
    %v4602 = vpop.f32.mrb[0].mxu0
    %v4603 = vadd.f32 %v4371, %v4602
    %v4604 = vpop.f32.mrb[0].mxu0
    %4605 = vmatprep.mubr.bf16.mxu0 %v4362
    %4606 = vmatmul.mubr.bf16.gmra.mrb[0].mxu0 %v4361
    %v4607 = vpop.f32.mrb[0].mxu0
    %v4608 = vadd.f32 %v4371, %v4607
    %v4609 = vpop.f32.mrb[0].mxu0
    %v4610 = vpop.f32.mrb[0].mxu0
    %v4611 = vadd.f32 %v4371, %v4610
    %v4612 = vpop.f32.mrb[0].mxu0
    %4613 = vdwg.mxu0
    %4614 = vmatprep.subr.bf16.mxu0 0
    %4615 = vmatpush1.bf16.msra.mxu0 %v4517
    %4616 = vmatprep.subr.bf16.mxu0 0
    %4617 = vmatpush1.bf16.msra.mxu0 %v4518
    %4618 = vmatprep.subr.bf16.mxu0 0
    %4619 = vmatpush1.bf16.msra.mxu0 %v4519
    %4620 = vmatprep.subr.bf16.mxu0 0
    %4621 = vmatpush1.bf16.msra.mxu0 %v4520
    %4622 = vmatprep.subr.bf16.mxu0 0
    %4623 = vmatpush1.bf16.msra.mxu0 %v4521
    %4624 = vmatprep.subr.bf16.mxu0 0
    %4625 = vmatpush1.bf16.msra.mxu0 %v4522
    %4626 = vmatprep.subr.bf16.mxu0 0
    %4627 = vmatpush1.bf16.msra.mxu0 %v4523
    %4628 = vmatprep.subr.bf16.mxu0 0
    %4629 = vmatpush1.bf16.msra.mxu0 %v4524
    %4630 = vmatprep.subr.bf16.mxu0 0
    %4631 = vmatpush1.bf16.msra.mxu0 %v4525
    %4632 = vmatprep.subr.bf16.mxu0 0
    %4633 = vmatpush1.bf16.msra.mxu0 %v4526
    %4634 = vmatprep.subr.bf16.mxu0 0
    %4635 = vmatpush1.bf16.msra.mxu0 %v4527
    %4636 = vmatprep.subr.bf16.mxu0 0
    %4637 = vmatpush1.bf16.msra.mxu0 %v4528
    %4638 = vmatprep.subr.bf16.mxu0 0
    %4639 = vmatpush1.bf16.msra.mxu0 %v4529
    %4640 = vmatprep.subr.bf16.mxu0 0
    %4641 = vmatpush1.bf16.msra.mxu0 %v4530
    %4642 = vmatprep.subr.bf16.mxu0 0
    %4643 = vmatpush1.bf16.msra.mxu0 %v4531
    %4644 = vmatprep.subr.bf16.mxu0 0
    %4645 = vmatpush1.bf16.msra.mxu0 %v4532
    %4646 = vmatprep.mubr.bf16.mxu0 %v4360
    %4647 = vmatmul.mubr.bf16.gmra.mrb[0].mxu0 %v4359
    %v4648 = vpop.f32.mrb[0].mxu0
    %v4649 = vadd.f32 %v4600, %v4648
    %v4650 = vpop.f32.mrb[0].mxu0
    %v4651 = vpop.f32.mrb[0].mxu0
    %v4652 = vadd.f32 %v4603, %v4651
    %v4653 = vpop.f32.mrb[0].mxu0
    %4654 = vmatprep.mubr.bf16.mxu0 %v4364
    %4655 = vmatmul.mubr.bf16.gmra.mrb[0].mxu0 %v4363
    %v4656 = vpop.f32.mrb[0].mxu0
    %v4657 = vadd.f32 %v4608, %v4656
    %v4658 = vpop.f32.mrb[0].mxu0
    %v4659 = vpop.f32.mrb[0].mxu0
    %v4660 = vadd.f32 %v4611, %v4659
    %v4661 = vpop.f32.mrb[0].mxu0
    %4662 = vdwg.mxu0
    %v4663 = vadd.f32 %v3948, %v4649
    %v4664 = vadd.f32 %v3949, %v4652
    %v4665 = vadd.f32 %v3950, %v4657
    %v4666 = vadd.f32 %v3951, %v4660
    %s4667 = scalar_lea.vmem [#allocation19], 2
    %v4668 = vld [vmem:[%s4667] sm:$0x1]
    %s4669 = scalar_lea.vmem [#allocation20], 2
    %v4670 = vld [vmem:[%s4669] sm:$0x1]
    %4671 = vadd.xlane.f32.xlu0 %v4663
    %v4672 = vpop.xlane.xlu0 %4671
    %4673 = vadd.xlane.f32.xlu0 %v4664
    %v4674 = vpop.xlane.xlu0 %4673
    %4675 = vadd.xlane.f32.xlu0 %v4665
    %v4676 = vpop.xlane.xlu0 %4675
    %4677 = vadd.xlane.f32.xlu0 %v4666
    %v4678 = vpop.xlane.xlu0 %4677
    %v4679 = vmul.f32 %v4672, %v893
    %v4680 = vmul.f32 %v4674, %v893
    %v4681 = vmul.f32 %v4676, %v893
    %v4682 = vmul.f32 %v4678, %v893
    %v4683 = vmul.f32 %v4663, %v4663
    %v4684 = vmul.f32 %v4664, %v4664
    %v4685 = vmul.f32 %v4665, %v4665
    %v4686 = vmul.f32 %v4666, %v4666
    %4687 = vadd.xlane.f32.xlu0 %v4683
    %v4688 = vpop.xlane.xlu0 %4687
    %4689 = vadd.xlane.f32.xlu0 %v4684
    %v4690 = vpop.xlane.xlu0 %4689
    %4691 = vadd.xlane.f32.xlu0 %v4685
    %v4692 = vpop.xlane.xlu0 %4691
    %4693 = vadd.xlane.f32.xlu0 %v4686
    %v4694 = vpop.xlane.xlu0 %4693
    %v4695 = vmul.f32 %v4688, %v893
    %v4696 = vmul.f32 %v4690, %v893
    %v4697 = vmul.f32 %v4692, %v893
    %v4698 = vmul.f32 %v4694, %v893
    %v4699 = vmul.f32 %v4679, %v4679
    %v4700 = vmul.f32 %v4680, %v4680
    %v4701 = vmul.f32 %v4681, %v4681
    %v4702 = vmul.f32 %v4682, %v4682
    %v4703 = vsub.f32 %v4695, %v4699
    %v4704 = vsub.f32 %v4696, %v4700
    %v4705 = vsub.f32 %v4697, %v4701
    %v4706 = vsub.f32 %v4698, %v4702
    %v4707 = vsub.f32 %v4663, %v4679
    %v4708 = vsub.f32 %v4664, %v4680
    %v4709 = vsub.f32 %v4665, %v4681
    %v4710 = vsub.f32 %v4666, %v4682
    %v4711 = vadd.f32 %v4703, 1e-05
    %v4712 = vadd.f32 %v4704, 1e-05
    %v4713 = vadd.f32 %v4705, 1e-05
    %v4714 = vadd.f32 %v4706, 1e-05
    %v4715 = vrsqrt.pop %v4711
    %v4716 = vrsqrt.pop %v4712
    %v4717 = vrsqrt.pop %v4713
    %v4718 = vrsqrt.pop %v4714
    %v4719 = vmul.f32 %v4707, %v4715
    %v4720 = vmul.f32 %v4708, %v4716
    %v4721 = vmul.f32 %v4709, %v4717
    %v4722 = vmul.f32 %v4710, %v4718
    %v4724 = vlaneseq
    %v4725 = vshrl.u32 %v4724, 7
    %v4726 = vsub.s32 0, %v4725
    %v4727 = vrot.slane %v4668, %v4726
    %v4729 = vmul.f32 %v4719, %v4727
    %v4730 = vmul.f32 %v4720, %v4727
    %v4731 = vmul.f32 %v4721, %v4727
    %v4732 = vmul.f32 %v4722, %v4727
    %v4734 = vlaneseq
    %v4735 = vshrl.u32 %v4734, 7
    %v4736 = vsub.s32 0, %v4735
    %v4737 = vrot.slane %v4670, %v4736
    %v4739 = vadd.f32 %v4729, %v4737
    %v4740 = vadd.f32 %v4730, %v4737
    %v4741 = vadd.f32 %v4731, %v4737
    %v4742 = vadd.f32 %v4732, %v4737
    %s4743 = scalar_lea.vmem [#allocation2], 576
    %v4744 = vld [vmem:[%s4743] sm:$0xff]
    %v4745 = vld [vmem:[%s4743 + $0x8] sm:$0xf]
    %v4746 = vld [vmem:[%s4743 + $0xc] sm:$0xff]
    %v4747 = vld [vmem:[%s4743 + $0x14] sm:$0xf]
    %v4748 = vld [vmem:[%s4743 + $0x18] sm:$0xff]
    %v4749 = vld [vmem:[%s4743 + $0x20] sm:$0xf]
    %v4750 = vld [vmem:[%s4743 + $0x24] sm:$0xff]
    %v4751 = vld [vmem:[%s4743 + $0x2c] sm:$0xf]
    %v4752 = vld [vmem:[%s4743 + $0x30] sm:$0xff]
    %v4753 = vld [vmem:[%s4743 + $0x38] sm:$0xf]
    %v4754 = vld [vmem:[%s4743 + $0x3c] sm:$0xff]
    %v4755 = vld [vmem:[%s4743 + $0x44] sm:$0xf]
    %v4756 = vld [vmem:[%s4743 + $0x48] sm:$0xff]
    %v4757 = vld [vmem:[%s4743 + $0x50] sm:$0xf]
    %v4758 = vld [vmem:[%s4743 + $0x54] sm:$0xff]
    %v4759 = vld [vmem:[%s4743 + $0x5c] sm:$0xf]
    %v4760 = vld [vmem:[%s4743 + $0x60] sm:$0xff]
    %v4761 = vld [vmem:[%s4743 + $0x68] sm:$0xf]
    %v4762 = vld [vmem:[%s4743 + $0x6c] sm:$0xff]
    %v4763 = vld [vmem:[%s4743 + $0x74] sm:$0xf]
    %v4764 = vld [vmem:[%s4743 + $0x78] sm:$0xff]
    %v4765 = vld [vmem:[%s4743 + $0x80] sm:$0xf]
    %v4766 = vld [vmem:[%s4743 + $0x84] sm:$0xff]
    %v4767 = vld [vmem:[%s4743 + $0x8c] sm:$0xf]
    %v4768 = vld [vmem:[%s4743 + $0x90] sm:$0xff]
    %v4769 = vld [vmem:[%s4743 + $0x98] sm:$0xf]
    %v4770 = vld [vmem:[%s4743 + $0x9c] sm:$0xff]
    %v4771 = vld [vmem:[%s4743 + $0xa4] sm:$0xf]
    %v4772 = vld [vmem:[%s4743 + $0xa8] sm:$0xff]
    %v4773 = vld [vmem:[%s4743 + $0xb0] sm:$0xf]
    %v4774 = vld [vmem:[%s4743 + $0xb4] sm:$0xff]
    %v4775 = vld [vmem:[%s4743 + $0xbc] sm:$0xf]
    %v4776 = vpack.c.bf16 %v4740, %v4739
    %v4777 = vpack.c.bf16 %v4742, %v4741
    %s4778 = scalar_lea.vmem [#allocation5], 9
    %v4779 = vld [vmem:[%s4778] sm:$0x7]
    %v4781 = vlaneseq
    %v4782 = vshrl.u32 %v4781, 7
    %v4783 = vsub.s32 0, %v4782
    %v4784 = vrot.slane %v4779, %v4783
    %v4785 = vlaneseq
    %v4786 = vshrl.u32 %v4785, 7
    %v4787 = vsub.s32 1, %v4786
    %v4788 = vrot.slane %v4779, %v4787
    %v4789 = vlaneseq
    %v4790 = vshrl.u32 %v4789, 7
    %v4791 = vsub.s32 2, %v4790
    %v4792 = vrot.slane %v4779, %v4791
    %v4828 = vunpack.c.l.b16 %v4744
    %v4829 = vunpack.c.h.b16 %v4744
    %v4830 = vunpack.c.l.b16 %v4745
    %v4831 = vunpack.c.l.b16 %v4746
    %v4832 = vunpack.c.h.b16 %v4746
    %v4833 = vunpack.c.l.b16 %v4747
    %v4834 = vunpack.c.l.b16 %v4748
    %v4835 = vunpack.c.h.b16 %v4748
    %v4836 = vunpack.c.l.b16 %v4749
    %v4837 = vunpack.c.l.b16 %v4750
    %v4838 = vunpack.c.h.b16 %v4750
    %v4839 = vunpack.c.l.b16 %v4751
    %v4840 = vunpack.c.l.b16 %v4752
    %v4841 = vunpack.c.h.b16 %v4752
    %v4842 = vunpack.c.l.b16 %v4753
    %v4843 = vunpack.c.l.b16 %v4754
    %v4844 = vunpack.c.h.b16 %v4754
    %v4845 = vunpack.c.l.b16 %v4755
    %v4846 = vunpack.c.l.b16 %v4756
    %v4847 = vunpack.c.h.b16 %v4756
    %v4848 = vunpack.c.l.b16 %v4757
    %v4849 = vunpack.c.l.b16 %v4758
    %v4850 = vunpack.c.h.b16 %v4758
    %v4851 = vunpack.c.l.b16 %v4759
    %v4852 = vunpack.c.l.b16 %v4760
    %v4853 = vunpack.c.h.b16 %v4760
    %v4854 = vunpack.c.l.b16 %v4761
    %v4855 = vunpack.c.l.b16 %v4762
    %v4856 = vunpack.c.h.b16 %v4762
    %v4857 = vunpack.c.l.b16 %v4763
    %v4858 = vunpack.c.l.b16 %v4764
    %v4859 = vunpack.c.h.b16 %v4764
    %v4860 = vunpack.c.l.b16 %v4765
    %v4861 = vunpack.c.l.b16 %v4766
    %v4862 = vunpack.c.h.b16 %v4766
    %v4863 = vunpack.c.l.b16 %v4767
    %v4864 = vunpack.c.l.b16 %v4768
    %v4865 = vunpack.c.h.b16 %v4768
    %v4866 = vunpack.c.l.b16 %v4769
    %v4867 = vunpack.c.l.b16 %v4770
    %v4868 = vunpack.c.h.b16 %v4770
    %v4869 = vunpack.c.l.b16 %v4771
    %v4870 = vunpack.c.l.b16 %v4772
    %v4871 = vunpack.c.h.b16 %v4772
    %v4872 = vunpack.c.l.b16 %v4773
    %v4873 = vunpack.c.l.b16 %v4774
    %v4874 = vunpack.c.h.b16 %v4774
    %v4875 = vunpack.c.l.b16 %v4775
    %v4876 = vpack.c.b16 %v4831, %v4828
    %v4877 = vpack.c.b16 %v4832, %v4829
    %v4878 = vpack.c.b16 %v4833, %v4830
    %v4879 = vpack.c.b16 %v4837, %v4834
    %v4880 = vpack.c.b16 %v4838, %v4835
    %v4881 = vpack.c.b16 %v4839, %v4836
    %v4882 = vpack.c.b16 %v4843, %v4840
    %v4883 = vpack.c.b16 %v4844, %v4841
    %v4884 = vpack.c.b16 %v4845, %v4842
    %v4885 = vpack.c.b16 %v4849, %v4846
    %v4886 = vpack.c.b16 %v4850, %v4847
    %v4887 = vpack.c.b16 %v4851, %v4848
    %v4888 = vpack.c.b16 %v4855, %v4852
    %v4889 = vpack.c.b16 %v4856, %v4853
    %v4890 = vpack.c.b16 %v4857, %v4854
    %v4891 = vpack.c.b16 %v4861, %v4858
    %v4892 = vpack.c.b16 %v4862, %v4859
    %v4893 = vpack.c.b16 %v4863, %v4860
    %v4894 = vpack.c.b16 %v4867, %v4864
    %v4895 = vpack.c.b16 %v4868, %v4865
    %v4896 = vpack.c.b16 %v4869, %v4866
    %v4897 = vpack.c.b16 %v4873, %v4870
    %v4898 = vpack.c.b16 %v4874, %v4871
    %v4899 = vpack.c.b16 %v4875, %v4872
    %4924 = vmatprep.subr.bf16.mxu0 %v4877
    %4925 = vmatpush1.bf16.msra.mxu0 %v4876
    %4926 = vmatprep.subr.bf16.mxu0 %v4880
    %4927 = vmatpush1.bf16.msra.mxu0 %v4879
    %4928 = vmatprep.subr.bf16.mxu0 %v4883
    %4929 = vmatpush1.bf16.msra.mxu0 %v4882
    %4930 = vmatprep.subr.bf16.mxu0 %v4886
    %4931 = vmatpush1.bf16.msra.mxu0 %v4885
    %4932 = vmatprep.subr.bf16.mxu0 %v4889
    %4933 = vmatpush1.bf16.msra.mxu0 %v4888
    %4934 = vmatprep.subr.bf16.mxu0 %v4892
    %4935 = vmatpush1.bf16.msra.mxu0 %v4891
    %4936 = vmatprep.subr.bf16.mxu0 %v4895
    %4937 = vmatpush1.bf16.msra.mxu0 %v4894
    %4938 = vmatprep.subr.bf16.mxu0 %v4898
    %4939 = vmatpush1.bf16.msra.mxu0 %v4897
    %4940 = vmatprep.subr.bf16.mxu0 0
    %4941 = vmatpush1.bf16.msra.mxu0 0
    %4942 = vmatprep.subr.bf16.mxu0 0
    %4943 = vmatpush1.bf16.msra.mxu0 0
    %4944 = vmatprep.subr.bf16.mxu0 0
    %4945 = vmatpush1.bf16.msra.mxu0 0
    %4946 = vmatprep.subr.bf16.mxu0 0
    %4947 = vmatpush1.bf16.msra.mxu0 0
    %4948 = vmatprep.subr.bf16.mxu0 0
    %4949 = vmatpush1.bf16.msra.mxu0 0
    %4950 = vmatprep.subr.bf16.mxu0 0
    %4951 = vmatpush1.bf16.msra.mxu0 0
    %4952 = vmatprep.subr.bf16.mxu0 0
    %4953 = vmatpush1.bf16.msra.mxu0 0
    %4954 = vmatprep.subr.bf16.mxu0 0
    %4955 = vmatpush1.bf16.msra.mxu0 0
    %4956 = vmatprep.mubr.bf16.mxu0 0
    %4957 = vmatmul.mubr.bf16.gmra.mrb[0].mxu0 %v4776
    %v4958 = vpop.f32.mrb[0].mxu0
    %v4959 = vadd.f32 %v4784, %v4958
    %v4960 = vpop.f32.mrb[0].mxu0
    %v4961 = vadd.f32 %v4788, %v4960
    %v4962 = vpop.f32.mrb[0].mxu0
    %v4963 = vadd.f32 %v4784, %v4962
    %v4964 = vpop.f32.mrb[0].mxu0
    %v4965 = vadd.f32 %v4788, %v4964
    %4966 = vmatprep.mubr.bf16.mxu0 0
    %4967 = vmatmul.mubr.bf16.gmra.mrb[0].mxu0 %v4777
    %v4968 = vpop.f32.mrb[0].mxu0
    %v4969 = vadd.f32 %v4784, %v4968
    %v4970 = vpop.f32.mrb[0].mxu0
    %v4971 = vadd.f32 %v4788, %v4970
    %v4972 = vpop.f32.mrb[0].mxu0
    %v4973 = vadd.f32 %v4784, %v4972
    %v4974 = vpop.f32.mrb[0].mxu0
    %v4975 = vadd.f32 %v4788, %v4974
    %4976 = vdwg.mxu0
    %4977 = vmatprep.subr.bf16.mxu0 0
    %4978 = vmatpush1.bf16.msra.mxu0 %v4878
    %4979 = vmatprep.subr.bf16.mxu0 0
    %4980 = vmatpush1.bf16.msra.mxu0 %v4881
    %4981 = vmatprep.subr.bf16.mxu0 0
    %4982 = vmatpush1.bf16.msra.mxu0 %v4884
    %4983 = vmatprep.subr.bf16.mxu0 0
    %4984 = vmatpush1.bf16.msra.mxu0 %v4887
    %4985 = vmatprep.subr.bf16.mxu0 0
    %4986 = vmatpush1.bf16.msra.mxu0 %v4890
    %4987 = vmatprep.subr.bf16.mxu0 0
    %4988 = vmatpush1.bf16.msra.mxu0 %v4893
    %4989 = vmatprep.subr.bf16.mxu0 0
    %4990 = vmatpush1.bf16.msra.mxu0 %v4896
    %4991 = vmatprep.subr.bf16.mxu0 0
    %4992 = vmatpush1.bf16.msra.mxu0 %v4899
    %4993 = vmatprep.subr.bf16.mxu0 0
    %4994 = vmatpush1.bf16.msra.mxu0 0
    %4995 = vmatprep.subr.bf16.mxu0 0
    %4996 = vmatpush1.bf16.msra.mxu0 0
    %4997 = vmatprep.subr.bf16.mxu0 0
    %4998 = vmatpush1.bf16.msra.mxu0 0
    %4999 = vmatprep.subr.bf16.mxu0 0
    %5000 = vmatpush1.bf16.msra.mxu0 0
    %5001 = vmatprep.subr.bf16.mxu0 0
    %5002 = vmatpush1.bf16.msra.mxu0 0
    %5003 = vmatprep.subr.bf16.mxu0 0
    %5004 = vmatpush1.bf16.msra.mxu0 0
    %5005 = vmatprep.subr.bf16.mxu0 0
    %5006 = vmatpush1.bf16.msra.mxu0 0
    %5007 = vmatprep.subr.bf16.mxu0 0
    %5008 = vmatpush1.bf16.msra.mxu0 0
    %5009 = vmatprep.mubr.bf16.mxu0 0
    %5010 = vmatmul.mubr.bf16.gmra.mrb[0].mxu0 %v4776
    %v5011 = vpop.f32.mrb[0].mxu0
    %v5012 = vadd.f32 %v4792, %v5011
    %v5013 = vpop.f32.mrb[0].mxu0
    %v5014 = vpop.f32.mrb[0].mxu0
    %v5015 = vadd.f32 %v4792, %v5014
    %v5016 = vpop.f32.mrb[0].mxu0
    %5017 = vmatprep.mubr.bf16.mxu0 0
    %5018 = vmatmul.mubr.bf16.gmra.mrb[0].mxu0 %v4777
    %v5019 = vpop.f32.mrb[0].mxu0
    %v5020 = vadd.f32 %v4792, %v5019
    %v5021 = vpop.f32.mrb[0].mxu0
    %v5022 = vpop.f32.mrb[0].mxu0
    %v5023 = vadd.f32 %v4792, %v5022
    %v5024 = vpop.f32.mrb[0].mxu0
    %5025 = vdwg.mxu0
    %v5026 = vpack.c.bf16 %v4963, %v4959
    %v5027 = vpack.c.bf16 %v4973, %v4969
    %v5028 = vpack.c.bf16 %v4965, %v4961
    %v5029 = vpack.c.bf16 %v4975, %v4971
    %5030 = vmatprep.subr.bf16.mxu0 0
    %5031 = vmatpush1.bf16.xpose.msra.mxu0 %v5028
    %5032 = vmatprep.subr.bf16.mxu0 0
    %5033 = vmatpush1.bf16.xpose.msra.mxu0 0
    %5034 = vmatprep.subr.bf16.mxu0 0
    %5035 = vmatpush1.bf16.xpose.msra.mxu0 0
    %5036 = vmatprep.subr.bf16.mxu0 0
    %5037 = vmatpush1.bf16.xpose.msra.mxu0 0
    %5038 = vmatprep.subr.bf16.mxu0 0
    %5039 = vmatpush1.bf16.xpose.msra.mxu0 0
    %5040 = vmatprep.subr.bf16.mxu0 0
    %5041 = vmatpush1.bf16.xpose.msra.mxu0 0
    %5042 = vmatprep.subr.bf16.mxu0 0
    %5043 = vmatpush1.bf16.xpose.msra.mxu0 0
    %5044 = vmatprep.subr.bf16.mxu0 0
    %5045 = vmatpush1.bf16.xpose.msra.mxu0 0
    %5046 = vmatprep.subr.bf16.mxu0 0
    %5047 = vmatpush1.bf16.xpose.msra.mxu0 0
    %5048 = vmatprep.subr.bf16.mxu0 0
    %5049 = vmatpush1.bf16.xpose.msra.mxu0 0
    %5050 = vmatprep.subr.bf16.mxu0 0
    %5051 = vmatpush1.bf16.xpose.msra.mxu0 0
    %5052 = vmatprep.subr.bf16.mxu0 0
    %5053 = vmatpush1.bf16.xpose.msra.mxu0 0
    %5054 = vmatprep.subr.bf16.mxu0 0
    %5055 = vmatpush1.bf16.xpose.msra.mxu0 0
    %5056 = vmatprep.subr.bf16.mxu0 0
    %5057 = vmatpush1.bf16.xpose.msra.mxu0 0
    %5058 = vmatprep.subr.bf16.mxu0 0
    %5059 = vmatpush1.bf16.xpose.msra.mxu0 0
    %5060 = vmatprep.subr.bf16.mxu0 0
    %5061 = vmatpush1.bf16.xpose.msra.mxu0 0
    %5062 = vmatprep.mubr.bf16.mxu0 0
    %5063 = vmatmul.mubr.bf16.gmra.mrb[0].mxu0 %v5026
    %v5064 = vpop.f32.mrb[0].mxu0
    %v5065 = vadd.f32 %v251, %v5064
    %v5066 = vpop.f32.mrb[0].mxu0
    %v5067 = vpop.f32.mrb[0].mxu0
    %v5068 = vadd.f32 %v252, %v5067
    %v5069 = vpop.f32.mrb[0].mxu0
    %5070 = vdwg.mxu0
    %5071 = vmatprep.subr.bf16.mxu0 0
    %5072 = vmatpush1.bf16.xpose.msra.mxu0 %v5029
    %5073 = vmatprep.subr.bf16.mxu0 0
    %5074 = vmatpush1.bf16.xpose.msra.mxu0 0
    %5075 = vmatprep.subr.bf16.mxu0 0
    %5076 = vmatpush1.bf16.xpose.msra.mxu0 0
    %5077 = vmatprep.subr.bf16.mxu0 0
    %5078 = vmatpush1.bf16.xpose.msra.mxu0 0
    %5079 = vmatprep.subr.bf16.mxu0 0
    %5080 = vmatpush1.bf16.xpose.msra.mxu0 0
    %5081 = vmatprep.subr.bf16.mxu0 0
    %5082 = vmatpush1.bf16.xpose.msra.mxu0 0
    %5083 = vmatprep.subr.bf16.mxu0 0
    %5084 = vmatpush1.bf16.xpose.msra.mxu0 0
    %5085 = vmatprep.subr.bf16.mxu0 0
    %5086 = vmatpush1.bf16.xpose.msra.mxu0 0
    %5087 = vmatprep.subr.bf16.mxu0 0
    %5088 = vmatpush1.bf16.xpose.msra.mxu0 0
    %5089 = vmatprep.subr.bf16.mxu0 0
    %5090 = vmatpush1.bf16.xpose.msra.mxu0 0
    %5091 = vmatprep.subr.bf16.mxu0 0
    %5092 = vmatpush1.bf16.xpose.msra.mxu0 0
    %5093 = vmatprep.subr.bf16.mxu0 0
    %5094 = vmatpush1.bf16.xpose.msra.mxu0 0
    %5095 = vmatprep.subr.bf16.mxu0 0
    %5096 = vmatpush1.bf16.xpose.msra.mxu0 0
    %5097 = vmatprep.subr.bf16.mxu0 0
    %5098 = vmatpush1.bf16.xpose.msra.mxu0 0
    %5099 = vmatprep.subr.bf16.mxu0 0
    %5100 = vmatpush1.bf16.xpose.msra.mxu0 0
    %5101 = vmatprep.subr.bf16.mxu0 0
    %5102 = vmatpush1.bf16.xpose.msra.mxu0 0
    %5103 = vmatprep.mubr.bf16.mxu0 0
    %5104 = vmatmul.mubr.bf16.gmra.mrb[0].mxu0 %v5027
    %v5105 = vpop.f32.mrb[0].mxu0
    %v5106 = vadd.f32 %v251, %v5105
    %v5107 = vpop.f32.mrb[0].mxu0
    %v5108 = vpop.f32.mrb[0].mxu0
    %v5109 = vadd.f32 %v252, %v5108
    %v5110 = vpop.f32.mrb[0].mxu0
    %5111 = vdwg.mxu0
    %v5112 = vsel %vm620, %v5065, -inf
    %5113 = vmax.xlane.f32.xlu0 %v5112
    %v5114 = vpop.xlane.xlu0 %5113
    %v5115 = vsel %vm620, %v5068, -inf
    %5116 = vmax.xlane.f32.xlu0 %v5115
    %v5117 = vpop.xlane.xlu0 %5116
    %v5118 = vsel %vm620, %v5106, -inf
    %5119 = vmax.xlane.f32.xlu0 %v5118
    %v5120 = vpop.xlane.xlu0 %5119
    %v5121 = vsel %vm620, %v5109, -inf
    %5122 = vmax.xlane.f32.xlu0 %v5121
    %v5123 = vpop.xlane.xlu0 %5122
    %v5124 = vsub.f32 %v5065, %v5114
    %v5125 = vsub.f32 %v5068, %v5117
    %v5126 = vsub.f32 %v5106, %v5120
    %v5127 = vsub.f32 %v5109, %v5123
    %v5128 = vmul.f32 %v5124, 1.442695
    %v5129 = vpow.pop %v5128
    %v5130 = vmul.f32 %v5125, 1.442695
    %v5131 = vpow.pop %v5130
    %v5132 = vmul.f32 %v5126, 1.442695
    %v5133 = vpow.pop %v5132
    %v5134 = vmul.f32 %v5127, 1.442695
    %v5135 = vpow.pop %v5134
    %v5136 = vsel %vm620, %v5129, 0.0
    %5137 = vadd.xlane.f32.xlu0 %v5136
    %v5138 = vpop.xlane.xlu0 %5137
    %v5139 = vsel %vm620, %v5131, 0.0
    %5140 = vadd.xlane.f32.xlu0 %v5139
    %v5141 = vpop.xlane.xlu0 %5140
    %v5142 = vsel %vm620, %v5133, 0.0
    %5143 = vadd.xlane.f32.xlu0 %v5142
    %v5144 = vpop.xlane.xlu0 %5143
    %v5145 = vsel %vm620, %v5135, 0.0
    %5146 = vadd.xlane.f32.xlu0 %v5145
    %v5147 = vpop.xlane.xlu0 %5146
    %v5148 = vrcp.pop %v5138
    %v5149 = vrcp.pop %v5141
    %v5150 = vrcp.pop %v5144
    %v5151 = vrcp.pop %v5147
    %v5152 = vmul.f32 %v5129, %v5148
    %v5153 = vmul.f32 %v5131, %v5149
    %v5154 = vmul.f32 %v5133, %v5150
    %v5155 = vmul.f32 %v5135, %v5151
    %v5156 = vpack.c.bf16 %v5153, %v5152
    %v5157 = vpack.c.bf16 %v5155, %v5154
    %v5158 = vpack.c.bf16 %v5015, %v5012
    %v5159 = vpack.c.bf16 %v5023, %v5020
    %v5161 = vsel %vm620, %v5156, 0
    %5163 = vmatprep.subr.bf16.mxu0 0
    %5164 = vmatpush1.bf16.msra.mxu0 %v5158
    %5165 = vmatprep.subr.bf16.mxu0 0
    %5166 = vmatpush1.bf16.msra.mxu0 0
    %5167 = vmatprep.subr.bf16.mxu0 0
    %5168 = vmatpush1.bf16.msra.mxu0 0
    %5169 = vmatprep.subr.bf16.mxu0 0
    %5170 = vmatpush1.bf16.msra.mxu0 0
    %5171 = vmatprep.subr.bf16.mxu0 0
    %5172 = vmatpush1.bf16.msra.mxu0 0
    %5173 = vmatprep.subr.bf16.mxu0 0
    %5174 = vmatpush1.bf16.msra.mxu0 0
    %5175 = vmatprep.subr.bf16.mxu0 0
    %5176 = vmatpush1.bf16.msra.mxu0 0
    %5177 = vmatprep.subr.bf16.mxu0 0
    %5178 = vmatpush1.bf16.msra.mxu0 0
    %5179 = vmatprep.subr.bf16.mxu0 0
    %5180 = vmatpush1.bf16.msra.mxu0 0
    %5181 = vmatprep.subr.bf16.mxu0 0
    %5182 = vmatpush1.bf16.msra.mxu0 0
    %5183 = vmatprep.subr.bf16.mxu0 0
    %5184 = vmatpush1.bf16.msra.mxu0 0
    %5185 = vmatprep.subr.bf16.mxu0 0
    %5186 = vmatpush1.bf16.msra.mxu0 0
    %5187 = vmatprep.subr.bf16.mxu0 0
    %5188 = vmatpush1.bf16.msra.mxu0 0
    %5189 = vmatprep.subr.bf16.mxu0 0
    %5190 = vmatpush1.bf16.msra.mxu0 0
    %5191 = vmatprep.subr.bf16.mxu0 0
    %5192 = vmatpush1.bf16.msra.mxu0 0
    %5193 = vmatprep.subr.bf16.mxu0 0
    %5194 = vmatpush1.bf16.msra.mxu0 0
    %5195 = vmatprep.mubr.bf16.mxu0 0
    %5196 = vmatmul.mubr.bf16.gmra.mrb[0].mxu0 %v5161
    %v5197 = vpop.f32.mrb[0].mxu0
    %v5198 = vadd.f32 0.0, %v5197
    %v5199 = vpop.f32.mrb[0].mxu0
    %v5200 = vpop.f32.mrb[0].mxu0
    %v5201 = vadd.f32 0.0, %v5200
    %v5202 = vpop.f32.mrb[0].mxu0
    %5203 = vdwg.mxu0
    %v5205 = vsel %vm620, %v5157, 0
    %5207 = vmatprep.subr.bf16.mxu0 0
    %5208 = vmatpush1.bf16.msra.mxu0 %v5159
    %5209 = vmatprep.subr.bf16.mxu0 0
    %5210 = vmatpush1.bf16.msra.mxu0 0
    %5211 = vmatprep.subr.bf16.mxu0 0
    %5212 = vmatpush1.bf16.msra.mxu0 0
    %5213 = vmatprep.subr.bf16.mxu0 0
    %5214 = vmatpush1.bf16.msra.mxu0 0
    %5215 = vmatprep.subr.bf16.mxu0 0
    %5216 = vmatpush1.bf16.msra.mxu0 0
    %5217 = vmatprep.subr.bf16.mxu0 0
    %5218 = vmatpush1.bf16.msra.mxu0 0
    %5219 = vmatprep.subr.bf16.mxu0 0
    %5220 = vmatpush1.bf16.msra.mxu0 0
    %5221 = vmatprep.subr.bf16.mxu0 0
    %5222 = vmatpush1.bf16.msra.mxu0 0
    %5223 = vmatprep.subr.bf16.mxu0 0
    %5224 = vmatpush1.bf16.msra.mxu0 0
    %5225 = vmatprep.subr.bf16.mxu0 0
    %5226 = vmatpush1.bf16.msra.mxu0 0
    %5227 = vmatprep.subr.bf16.mxu0 0
    %5228 = vmatpush1.bf16.msra.mxu0 0
    %5229 = vmatprep.subr.bf16.mxu0 0
    %5230 = vmatpush1.bf16.msra.mxu0 0
    %5231 = vmatprep.subr.bf16.mxu0 0
    %5232 = vmatpush1.bf16.msra.mxu0 0
    %5233 = vmatprep.subr.bf16.mxu0 0
    %5234 = vmatpush1.bf16.msra.mxu0 0
    %5235 = vmatprep.subr.bf16.mxu0 0
    %5236 = vmatpush1.bf16.msra.mxu0 0
    %5237 = vmatprep.subr.bf16.mxu0 0
    %5238 = vmatpush1.bf16.msra.mxu0 0
    %5239 = vmatprep.mubr.bf16.mxu0 0
    %5240 = vmatmul.mubr.bf16.gmra.mrb[0].mxu0 %v5205
    %v5241 = vpop.f32.mrb[0].mxu0
    %v5242 = vadd.f32 0.0, %v5241
    %v5243 = vpop.f32.mrb[0].mxu0
    %v5244 = vpop.f32.mrb[0].mxu0
    %v5245 = vadd.f32 0.0, %v5244
    %v5246 = vpop.f32.mrb[0].mxu0
    %5247 = vdwg.mxu0
    %s5248 = scalar_lea.vmem [#allocation7], 192
    %v5249 = vld [vmem:[%s5248] sm:$0xf]
    %v5250 = vld [vmem:[%s5248 + $0x4] sm:$0xf]
    %v5251 = vld [vmem:[%s5248 + $0x8] sm:$0xf]
    %v5252 = vld [vmem:[%s5248 + $0xc] sm:$0xf]
    %v5253 = vld [vmem:[%s5248 + $0x10] sm:$0xf]
    %v5254 = vld [vmem:[%s5248 + $0x14] sm:$0xf]
    %v5255 = vld [vmem:[%s5248 + $0x18] sm:$0xf]
    %v5256 = vld [vmem:[%s5248 + $0x1c] sm:$0xf]
    %v5257 = vld [vmem:[%s5248 + $0x20] sm:$0xf]
    %v5258 = vld [vmem:[%s5248 + $0x24] sm:$0xf]
    %v5259 = vld [vmem:[%s5248 + $0x28] sm:$0xf]
    %v5260 = vld [vmem:[%s5248 + $0x2c] sm:$0xf]
    %v5261 = vld [vmem:[%s5248 + $0x30] sm:$0xf]
    %v5262 = vld [vmem:[%s5248 + $0x34] sm:$0xf]
    %v5263 = vld [vmem:[%s5248 + $0x38] sm:$0xf]
    %v5264 = vld [vmem:[%s5248 + $0x3c] sm:$0xf]
    %v5265 = vpack.c.bf16 %v5201, %v5198
    %v5266 = vpack.c.bf16 %v5245, %v5242
    %s5267 = scalar_lea.vmem [#allocation8], 3
    %v5268 = vld [vmem:[%s5267] sm:$0x1]
    %v5270 = vlaneseq
    %v5271 = vshrl.u32 %v5270, 7
    %v5272 = vsub.s32 0, %v5271
    %v5273 = vrot.slane %v5268, %v5272
    %v5291 = vunpack.c.l.b16 %v5249
    %v5292 = vunpack.c.l.b16 %v5250
    %v5293 = vunpack.c.l.b16 %v5251
    %v5294 = vunpack.c.l.b16 %v5252
    %v5295 = vunpack.c.l.b16 %v5253
    %v5296 = vunpack.c.l.b16 %v5254
    %v5297 = vunpack.c.l.b16 %v5255
    %v5298 = vunpack.c.l.b16 %v5256
    %v5299 = vunpack.c.l.b16 %v5257
    %v5300 = vunpack.c.l.b16 %v5258
    %v5301 = vunpack.c.l.b16 %v5259
    %v5302 = vunpack.c.l.b16 %v5260
    %v5303 = vunpack.c.l.b16 %v5261
    %v5304 = vunpack.c.l.b16 %v5262
    %v5305 = vunpack.c.l.b16 %v5263
    %v5306 = vunpack.c.l.b16 %v5264
    %v5307 = vpack.c.b16 %v5292, %v5291
    %v5308 = vpack.c.b16 %v5294, %v5293
    %v5309 = vpack.c.b16 %v5296, %v5295
    %v5310 = vpack.c.b16 %v5298, %v5297
    %v5311 = vpack.c.b16 %v5300, %v5299
    %v5312 = vpack.c.b16 %v5302, %v5301
    %v5313 = vpack.c.b16 %v5304, %v5303
    %v5314 = vpack.c.b16 %v5306, %v5305
    %5323 = vmatprep.subr.bf16.mxu0 0
    %5324 = vmatpush1.bf16.msra.mxu0 %v5307
    %5325 = vmatprep.subr.bf16.mxu0 0
    %5326 = vmatpush1.bf16.msra.mxu0 %v5308
    %5327 = vmatprep.subr.bf16.mxu0 0
    %5328 = vmatpush1.bf16.msra.mxu0 %v5309
    %5329 = vmatprep.subr.bf16.mxu0 0
    %5330 = vmatpush1.bf16.msra.mxu0 %v5310
    %5331 = vmatprep.subr.bf16.mxu0 0
    %5332 = vmatpush1.bf16.msra.mxu0 %v5311
    %5333 = vmatprep.subr.bf16.mxu0 0
    %5334 = vmatpush1.bf16.msra.mxu0 %v5312
    %5335 = vmatprep.subr.bf16.mxu0 0
    %5336 = vmatpush1.bf16.msra.mxu0 %v5313
    %5337 = vmatprep.subr.bf16.mxu0 0
    %5338 = vmatpush1.bf16.msra.mxu0 %v5314
    %5339 = vmatprep.subr.bf16.mxu0 0
    %5340 = vmatpush1.bf16.msra.mxu0 0
    %5341 = vmatprep.subr.bf16.mxu0 0
    %5342 = vmatpush1.bf16.msra.mxu0 0
    %5343 = vmatprep.subr.bf16.mxu0 0
    %5344 = vmatpush1.bf16.msra.mxu0 0
    %5345 = vmatprep.subr.bf16.mxu0 0
    %5346 = vmatpush1.bf16.msra.mxu0 0
    %5347 = vmatprep.subr.bf16.mxu0 0
    %5348 = vmatpush1.bf16.msra.mxu0 0
    %5349 = vmatprep.subr.bf16.mxu0 0
    %5350 = vmatpush1.bf16.msra.mxu0 0
    %5351 = vmatprep.subr.bf16.mxu0 0
    %5352 = vmatpush1.bf16.msra.mxu0 0
    %5353 = vmatprep.subr.bf16.mxu0 0
    %5354 = vmatpush1.bf16.msra.mxu0 0
    %5355 = vmatprep.mubr.bf16.mxu0 0
    %5356 = vmatmul.mubr.bf16.gmra.mrb[0].mxu0 %v5265
    %v5357 = vpop.f32.mrb[0].mxu0
    %v5358 = vadd.f32 %v5273, %v5357
    %v5359 = vpop.f32.mrb[0].mxu0
    %v5360 = vpop.f32.mrb[0].mxu0
    %v5361 = vadd.f32 %v5273, %v5360
    %v5362 = vpop.f32.mrb[0].mxu0
    %5363 = vmatprep.mubr.bf16.mxu0 0
    %5364 = vmatmul.mubr.bf16.gmra.mrb[0].mxu0 %v5266
    %v5365 = vpop.f32.mrb[0].mxu0
    %v5366 = vadd.f32 %v5273, %v5365
    %v5367 = vpop.f32.mrb[0].mxu0
    %v5368 = vpop.f32.mrb[0].mxu0
    %v5369 = vadd.f32 %v5273, %v5368
    %v5370 = vpop.f32.mrb[0].mxu0
    %5371 = vdwg.mxu0
    %v5372 = vadd.f32 %v4739, %v5358
    %v5373 = vadd.f32 %v4740, %v5361
    %v5374 = vadd.f32 %v4741, %v5366
    %v5375 = vadd.f32 %v4742, %v5369
    %s5376 = scalar_lea.vmem [#allocation10], 3
    %v5377 = vld [vmem:[%s5376] sm:$0x1]
    %s5378 = scalar_lea.vmem [#allocation11], 3
    %v5379 = vld [vmem:[%s5378] sm:$0x1]
    %5380 = vadd.xlane.f32.xlu0 %v5372
    %v5381 = vpop.xlane.xlu0 %5380
    %5382 = vadd.xlane.f32.xlu0 %v5373
    %v5383 = vpop.xlane.xlu0 %5382
    %5384 = vadd.xlane.f32.xlu0 %v5374
    %v5385 = vpop.xlane.xlu0 %5384
    %5386 = vadd.xlane.f32.xlu0 %v5375
    %v5387 = vpop.xlane.xlu0 %5386
    %v5388 = vmul.f32 %v5381, %v893
    %v5389 = vmul.f32 %v5383, %v893
    %v5390 = vmul.f32 %v5385, %v893
    %v5391 = vmul.f32 %v5387, %v893
    %v5392 = vmul.f32 %v5372, %v5372
    %v5393 = vmul.f32 %v5373, %v5373
    %v5394 = vmul.f32 %v5374, %v5374
    %v5395 = vmul.f32 %v5375, %v5375
    %5396 = vadd.xlane.f32.xlu0 %v5392
    %v5397 = vpop.xlane.xlu0 %5396
    %5398 = vadd.xlane.f32.xlu0 %v5393
    %v5399 = vpop.xlane.xlu0 %5398
    %5400 = vadd.xlane.f32.xlu0 %v5394
    %v5401 = vpop.xlane.xlu0 %5400
    %5402 = vadd.xlane.f32.xlu0 %v5395
    %v5403 = vpop.xlane.xlu0 %5402
    %v5404 = vmul.f32 %v5397, %v893
    %v5405 = vmul.f32 %v5399, %v893
    %v5406 = vmul.f32 %v5401, %v893
    %v5407 = vmul.f32 %v5403, %v893
    %v5408 = vmul.f32 %v5388, %v5388
    %v5409 = vmul.f32 %v5389, %v5389
    %v5410 = vmul.f32 %v5390, %v5390
    %v5411 = vmul.f32 %v5391, %v5391
    %v5412 = vsub.f32 %v5404, %v5408
    %v5413 = vsub.f32 %v5405, %v5409
    %v5414 = vsub.f32 %v5406, %v5410
    %v5415 = vsub.f32 %v5407, %v5411
    %v5416 = vsub.f32 %v5372, %v5388
    %v5417 = vsub.f32 %v5373, %v5389
    %v5418 = vsub.f32 %v5374, %v5390
    %v5419 = vsub.f32 %v5375, %v5391
    %v5420 = vadd.f32 %v5412, 1e-05
    %v5421 = vadd.f32 %v5413, 1e-05
    %v5422 = vadd.f32 %v5414, 1e-05
    %v5423 = vadd.f32 %v5415, 1e-05
    %v5424 = vrsqrt.pop %v5420
    %v5425 = vrsqrt.pop %v5421
    %v5426 = vrsqrt.pop %v5422
    %v5427 = vrsqrt.pop %v5423
    %v5428 = vmul.f32 %v5416, %v5424
    %v5429 = vmul.f32 %v5417, %v5425
    %v5430 = vmul.f32 %v5418, %v5426
    %v5431 = vmul.f32 %v5419, %v5427
    %v5433 = vlaneseq
    %v5434 = vshrl.u32 %v5433, 7
    %v5435 = vsub.s32 0, %v5434
    %v5436 = vrot.slane %v5377, %v5435
    %v5438 = vmul.f32 %v5428, %v5436
    %v5439 = vmul.f32 %v5429, %v5436
    %v5440 = vmul.f32 %v5430, %v5436
    %v5441 = vmul.f32 %v5431, %v5436
    %v5443 = vlaneseq
    %v5444 = vshrl.u32 %v5443, 7
    %v5445 = vsub.s32 0, %v5444
    %v5446 = vrot.slane %v5379, %v5445
    %v5448 = vadd.f32 %v5438, %v5446
    %v5449 = vadd.f32 %v5439, %v5446
    %v5450 = vadd.f32 %v5440, %v5446
    %v5451 = vadd.f32 %v5441, %v5446
    %s5452 = scalar_lea.vmem [#allocation13], 768
    %v5453 = vld [vmem:[%s5452] sm:$0xff]
    %v5454 = vld [vmem:[%s5452 + $0x8] sm:$0xff]
    %v5455 = vld [vmem:[%s5452 + $0x10] sm:$0xff]
    %v5456 = vld [vmem:[%s5452 + $0x18] sm:$0xff]
    %v5457 = vld [vmem:[%s5452 + $0x20] sm:$0xff]
    %v5458 = vld [vmem:[%s5452 + $0x28] sm:$0xff]
    %v5459 = vld [vmem:[%s5452 + $0x30] sm:$0xff]
    %v5460 = vld [vmem:[%s5452 + $0x38] sm:$0xff]
    %v5461 = vld [vmem:[%s5452 + $0x40] sm:$0xff]
    %v5462 = vld [vmem:[%s5452 + $0x48] sm:$0xff]
    %v5463 = vld [vmem:[%s5452 + $0x50] sm:$0xff]
    %v5464 = vld [vmem:[%s5452 + $0x58] sm:$0xff]
    %v5465 = vld [vmem:[%s5452 + $0x60] sm:$0xff]
    %v5466 = vld [vmem:[%s5452 + $0x68] sm:$0xff]
    %v5467 = vld [vmem:[%s5452 + $0x70] sm:$0xff]
    %v5468 = vld [vmem:[%s5452 + $0x78] sm:$0xff]
    %v5469 = vld [vmem:[%s5452 + $0x80] sm:$0xff]
    %v5470 = vld [vmem:[%s5452 + $0x88] sm:$0xff]
    %v5471 = vld [vmem:[%s5452 + $0x90] sm:$0xff]
    %v5472 = vld [vmem:[%s5452 + $0x98] sm:$0xff]
    %v5473 = vld [vmem:[%s5452 + $0xa0] sm:$0xff]
    %v5474 = vld [vmem:[%s5452 + $0xa8] sm:$0xff]
    %v5475 = vld [vmem:[%s5452 + $0xb0] sm:$0xff]
    %v5476 = vld [vmem:[%s5452 + $0xb8] sm:$0xff]
    %v5477 = vld [vmem:[%s5452 + $0xc0] sm:$0xff]
    %v5478 = vld [vmem:[%s5452 + $0xc8] sm:$0xff]
    %v5479 = vld [vmem:[%s5452 + $0xd0] sm:$0xff]
    %v5480 = vld [vmem:[%s5452 + $0xd8] sm:$0xff]
    %v5481 = vld [vmem:[%s5452 + $0xe0] sm:$0xff]
    %v5482 = vld [vmem:[%s5452 + $0xe8] sm:$0xff]
    %v5483 = vld [vmem:[%s5452 + $0xf0] sm:$0xff]
    %v5484 = vld [vmem:[%s5452 + $0xf8] sm:$0xff]
    %v5485 = vpack.c.bf16 %v5449, %v5448
    %v5486 = vpack.c.bf16 %v5451, %v5450
    %s5487 = scalar_lea.vmem [#allocation14], 12
    %v5488 = vld [vmem:[%s5487] sm:$0xf]
    %v5490 = vlaneseq
    %v5491 = vshrl.u32 %v5490, 7
    %v5492 = vsub.s32 0, %v5491
    %v5493 = vrot.slane %v5488, %v5492
    %v5494 = vlaneseq
    %v5495 = vshrl.u32 %v5494, 7
    %v5496 = vsub.s32 1, %v5495
    %v5497 = vrot.slane %v5488, %v5496
    %v5498 = vlaneseq
    %v5499 = vshrl.u32 %v5498, 7
    %v5500 = vsub.s32 2, %v5499
    %v5501 = vrot.slane %v5488, %v5500
    %v5502 = vlaneseq
    %v5503 = vshrl.u32 %v5502, 7
    %v5504 = vsub.s32 3, %v5503
    %v5505 = vrot.slane %v5488, %v5504
    %v5542 = vunpack.c.l.b16 %v5453
    %v5543 = vunpack.c.h.b16 %v5453
    %v5544 = vunpack.c.l.b16 %v5454
    %v5545 = vunpack.c.h.b16 %v5454
    %v5546 = vunpack.c.l.b16 %v5455
    %v5547 = vunpack.c.h.b16 %v5455
    %v5548 = vunpack.c.l.b16 %v5456
    %v5549 = vunpack.c.h.b16 %v5456
    %v5550 = vunpack.c.l.b16 %v5457
    %v5551 = vunpack.c.h.b16 %v5457
    %v5552 = vunpack.c.l.b16 %v5458
    %v5553 = vunpack.c.h.b16 %v5458
    %v5554 = vunpack.c.l.b16 %v5459
    %v5555 = vunpack.c.h.b16 %v5459
    %v5556 = vunpack.c.l.b16 %v5460
    %v5557 = vunpack.c.h.b16 %v5460
    %v5558 = vunpack.c.l.b16 %v5461
    %v5559 = vunpack.c.h.b16 %v5461
    %v5560 = vunpack.c.l.b16 %v5462
    %v5561 = vunpack.c.h.b16 %v5462
    %v5562 = vunpack.c.l.b16 %v5463
    %v5563 = vunpack.c.h.b16 %v5463
    %v5564 = vunpack.c.l.b16 %v5464
    %v5565 = vunpack.c.h.b16 %v5464
    %v5566 = vunpack.c.l.b16 %v5465
    %v5567 = vunpack.c.h.b16 %v5465
    %v5568 = vunpack.c.l.b16 %v5466
    %v5569 = vunpack.c.h.b16 %v5466
    %v5570 = vunpack.c.l.b16 %v5467
    %v5571 = vunpack.c.h.b16 %v5467
    %v5572 = vunpack.c.l.b16 %v5468
    %v5573 = vunpack.c.h.b16 %v5468
    %v5574 = vunpack.c.l.b16 %v5469
    %v5575 = vunpack.c.h.b16 %v5469
    %v5576 = vunpack.c.l.b16 %v5470
    %v5577 = vunpack.c.h.b16 %v5470
    %v5578 = vunpack.c.l.b16 %v5471
    %v5579 = vunpack.c.h.b16 %v5471
    %v5580 = vunpack.c.l.b16 %v5472
    %v5581 = vunpack.c.h.b16 %v5472
    %v5582 = vunpack.c.l.b16 %v5473
    %v5583 = vunpack.c.h.b16 %v5473
    %v5584 = vunpack.c.l.b16 %v5474
    %v5585 = vunpack.c.h.b16 %v5474
    %v5586 = vunpack.c.l.b16 %v5475
    %v5587 = vunpack.c.h.b16 %v5475
    %v5588 = vunpack.c.l.b16 %v5476
    %v5589 = vunpack.c.h.b16 %v5476
    %v5590 = vunpack.c.l.b16 %v5477
    %v5591 = vunpack.c.h.b16 %v5477
    %v5592 = vunpack.c.l.b16 %v5478
    %v5593 = vunpack.c.h.b16 %v5478
    %v5594 = vunpack.c.l.b16 %v5479
    %v5595 = vunpack.c.h.b16 %v5479
    %v5596 = vunpack.c.l.b16 %v5480
    %v5597 = vunpack.c.h.b16 %v5480
    %v5598 = vunpack.c.l.b16 %v5481
    %v5599 = vunpack.c.h.b16 %v5481
    %v5600 = vunpack.c.l.b16 %v5482
    %v5601 = vunpack.c.h.b16 %v5482
    %v5602 = vunpack.c.l.b16 %v5483
    %v5603 = vunpack.c.h.b16 %v5483
    %v5604 = vunpack.c.l.b16 %v5484
    %v5605 = vunpack.c.h.b16 %v5484
    %v5606 = vpack.c.b16 %v5546, %v5542
    %v5607 = vpack.c.b16 %v5547, %v5543
    %v5608 = vpack.c.b16 %v5548, %v5544
    %v5609 = vpack.c.b16 %v5549, %v5545
    %v5610 = vpack.c.b16 %v5554, %v5550
    %v5611 = vpack.c.b16 %v5555, %v5551
    %v5612 = vpack.c.b16 %v5556, %v5552
    %v5613 = vpack.c.b16 %v5557, %v5553
    %v5614 = vpack.c.b16 %v5562, %v5558
    %v5615 = vpack.c.b16 %v5563, %v5559
    %v5616 = vpack.c.b16 %v5564, %v5560
    %v5617 = vpack.c.b16 %v5565, %v5561
    %v5618 = vpack.c.b16 %v5570, %v5566
    %v5619 = vpack.c.b16 %v5571, %v5567
    %v5620 = vpack.c.b16 %v5572, %v5568
    %v5621 = vpack.c.b16 %v5573, %v5569
    %v5622 = vpack.c.b16 %v5578, %v5574
    %v5623 = vpack.c.b16 %v5579, %v5575
    %v5624 = vpack.c.b16 %v5580, %v5576
    %v5625 = vpack.c.b16 %v5581, %v5577
    %v5626 = vpack.c.b16 %v5586, %v5582
    %v5627 = vpack.c.b16 %v5587, %v5583
    %v5628 = vpack.c.b16 %v5588, %v5584
    %v5629 = vpack.c.b16 %v5589, %v5585
    %v5630 = vpack.c.b16 %v5594, %v5590
    %v5631 = vpack.c.b16 %v5595, %v5591
    %v5632 = vpack.c.b16 %v5596, %v5592
    %v5633 = vpack.c.b16 %v5597, %v5593
    %v5634 = vpack.c.b16 %v5602, %v5598
    %v5635 = vpack.c.b16 %v5603, %v5599
    %v5636 = vpack.c.b16 %v5604, %v5600
    %v5637 = vpack.c.b16 %v5605, %v5601
    %5670 = vmatprep.subr.bf16.mxu0 %v5607
    %5671 = vmatpush1.bf16.msra.mxu0 %v5606
    %5672 = vmatprep.subr.bf16.mxu0 %v5611
    %5673 = vmatpush1.bf16.msra.mxu0 %v5610
    %5674 = vmatprep.subr.bf16.mxu0 %v5615
    %5675 = vmatpush1.bf16.msra.mxu0 %v5614
    %5676 = vmatprep.subr.bf16.mxu0 %v5619
    %5677 = vmatpush1.bf16.msra.mxu0 %v5618
    %5678 = vmatprep.subr.bf16.mxu0 %v5623
    %5679 = vmatpush1.bf16.msra.mxu0 %v5622
    %5680 = vmatprep.subr.bf16.mxu0 %v5627
    %5681 = vmatpush1.bf16.msra.mxu0 %v5626
    %5682 = vmatprep.subr.bf16.mxu0 %v5631
    %5683 = vmatpush1.bf16.msra.mxu0 %v5630
    %5684 = vmatprep.subr.bf16.mxu0 %v5635
    %5685 = vmatpush1.bf16.msra.mxu0 %v5634
    %5686 = vmatprep.subr.bf16.mxu0 0
    %5687 = vmatpush1.bf16.msra.mxu0 0
    %5688 = vmatprep.subr.bf16.mxu0 0
    %5689 = vmatpush1.bf16.msra.mxu0 0
    %5690 = vmatprep.subr.bf16.mxu0 0
    %5691 = vmatpush1.bf16.msra.mxu0 0
    %5692 = vmatprep.subr.bf16.mxu0 0
    %5693 = vmatpush1.bf16.msra.mxu0 0
    %5694 = vmatprep.subr.bf16.mxu0 0
    %5695 = vmatpush1.bf16.msra.mxu0 0
    %5696 = vmatprep.subr.bf16.mxu0 0
    %5697 = vmatpush1.bf16.msra.mxu0 0
    %5698 = vmatprep.subr.bf16.mxu0 0
    %5699 = vmatpush1.bf16.msra.mxu0 0
    %5700 = vmatprep.subr.bf16.mxu0 0
    %5701 = vmatpush1.bf16.msra.mxu0 0
    %5702 = vmatprep.mubr.bf16.mxu0 0
    %5703 = vmatmul.mubr.bf16.gmra.mrb[0].mxu0 %v5485
    %v5704 = vpop.f32.mrb[0].mxu0
    %v5705 = vadd.f32 %v5493, %v5704
    %v5706 = vpop.f32.mrb[0].mxu0
    %v5707 = vadd.f32 %v5497, %v5706
    %v5708 = vpop.f32.mrb[0].mxu0
    %v5709 = vadd.f32 %v5493, %v5708
    %v5710 = vpop.f32.mrb[0].mxu0
    %v5711 = vadd.f32 %v5497, %v5710
    %5712 = vmatprep.mubr.bf16.mxu0 0
    %5713 = vmatmul.mubr.bf16.gmra.mrb[0].mxu0 %v5486
    %v5714 = vpop.f32.mrb[0].mxu0
    %v5715 = vadd.f32 %v5493, %v5714
    %v5716 = vpop.f32.mrb[0].mxu0
    %v5717 = vadd.f32 %v5497, %v5716
    %v5718 = vpop.f32.mrb[0].mxu0
    %v5719 = vadd.f32 %v5493, %v5718
    %v5720 = vpop.f32.mrb[0].mxu0
    %v5721 = vadd.f32 %v5497, %v5720
    %5722 = vdwg.mxu0
    %5723 = vmatprep.subr.bf16.mxu0 %v5609
    %5724 = vmatpush1.bf16.msra.mxu0 %v5608
    %5725 = vmatprep.subr.bf16.mxu0 %v5613
    %5726 = vmatpush1.bf16.msra.mxu0 %v5612
    %5727 = vmatprep.subr.bf16.mxu0 %v5617
    %5728 = vmatpush1.bf16.msra.mxu0 %v5616
    %5729 = vmatprep.subr.bf16.mxu0 %v5621
    %5730 = vmatpush1.bf16.msra.mxu0 %v5620
    %5731 = vmatprep.subr.bf16.mxu0 %v5625
    %5732 = vmatpush1.bf16.msra.mxu0 %v5624
    %5733 = vmatprep.subr.bf16.mxu0 %v5629
    %5734 = vmatpush1.bf16.msra.mxu0 %v5628
    %5735 = vmatprep.subr.bf16.mxu0 %v5633
    %5736 = vmatpush1.bf16.msra.mxu0 %v5632
    %5737 = vmatprep.subr.bf16.mxu0 %v5637
    %5738 = vmatpush1.bf16.msra.mxu0 %v5636
    %5739 = vmatprep.subr.bf16.mxu0 0
    %5740 = vmatpush1.bf16.msra.mxu0 0
    %5741 = vmatprep.subr.bf16.mxu0 0
    %5742 = vmatpush1.bf16.msra.mxu0 0
    %5743 = vmatprep.subr.bf16.mxu0 0
    %5744 = vmatpush1.bf16.msra.mxu0 0
    %5745 = vmatprep.subr.bf16.mxu0 0
    %5746 = vmatpush1.bf16.msra.mxu0 0
    %5747 = vmatprep.subr.bf16.mxu0 0
    %5748 = vmatpush1.bf16.msra.mxu0 0
    %5749 = vmatprep.subr.bf16.mxu0 0
    %5750 = vmatpush1.bf16.msra.mxu0 0
    %5751 = vmatprep.subr.bf16.mxu0 0
    %5752 = vmatpush1.bf16.msra.mxu0 0
    %5753 = vmatprep.subr.bf16.mxu0 0
    %5754 = vmatpush1.bf16.msra.mxu0 0
    %5755 = vmatprep.mubr.bf16.mxu0 0
    %5756 = vmatmul.mubr.bf16.gmra.mrb[0].mxu0 %v5485
    %v5757 = vpop.f32.mrb[0].mxu0
    %v5758 = vadd.f32 %v5501, %v5757
    %v5759 = vpop.f32.mrb[0].mxu0
    %v5760 = vadd.f32 %v5505, %v5759
    %v5761 = vpop.f32.mrb[0].mxu0
    %v5762 = vadd.f32 %v5501, %v5761
    %v5763 = vpop.f32.mrb[0].mxu0
    %v5764 = vadd.f32 %v5505, %v5763
    %5765 = vmatprep.mubr.bf16.mxu0 0
    %5766 = vmatmul.mubr.bf16.gmra.mrb[0].mxu0 %v5486
    %v5767 = vpop.f32.mrb[0].mxu0
    %v5768 = vadd.f32 %v5501, %v5767
    %v5769 = vpop.f32.mrb[0].mxu0
    %v5770 = vadd.f32 %v5505, %v5769
    %v5771 = vpop.f32.mrb[0].mxu0
    %v5772 = vadd.f32 %v5501, %v5771
    %v5773 = vpop.f32.mrb[0].mxu0
    %v5774 = vadd.f32 %v5505, %v5773
    %5775 = vdwg.mxu0
    %v5776 = vmax.f32 %v5705, 0.0
    %v5777 = vmax.f32 %v5707, 0.0
    %v5778 = vmax.f32 %v5758, 0.0
    %v5779 = vmax.f32 %v5760, 0.0
    %v5780 = vmax.f32 %v5709, 0.0
    %v5781 = vmax.f32 %v5711, 0.0
    %v5782 = vmax.f32 %v5762, 0.0
    %v5783 = vmax.f32 %v5764, 0.0
    %v5784 = vmax.f32 %v5715, 0.0
    %v5785 = vmax.f32 %v5717, 0.0
    %v5786 = vmax.f32 %v5768, 0.0
    %v5787 = vmax.f32 %v5770, 0.0
    %v5788 = vmax.f32 %v5719, 0.0
    %v5789 = vmax.f32 %v5721, 0.0
    %v5790 = vmax.f32 %v5772, 0.0
    %v5791 = vmax.f32 %v5774, 0.0
    %s5792 = scalar_lea.vmem [#allocation16], 768
    %v5793 = vld [vmem:[%s5792] sm:$0xf]
    %v5794 = vld [vmem:[%s5792 + $0x4] sm:$0xf]
    %v5795 = vld [vmem:[%s5792 + $0x8] sm:$0xf]
    %v5796 = vld [vmem:[%s5792 + $0xc] sm:$0xf]
    %v5797 = vld [vmem:[%s5792 + $0x10] sm:$0xf]
    %v5798 = vld [vmem:[%s5792 + $0x14] sm:$0xf]
    %v5799 = vld [vmem:[%s5792 + $0x18] sm:$0xf]
    %v5800 = vld [vmem:[%s5792 + $0x1c] sm:$0xf]
    %v5801 = vld [vmem:[%s5792 + $0x20] sm:$0xf]
    %v5802 = vld [vmem:[%s5792 + $0x24] sm:$0xf]
    %v5803 = vld [vmem:[%s5792 + $0x28] sm:$0xf]
    %v5804 = vld [vmem:[%s5792 + $0x2c] sm:$0xf]
    %v5805 = vld [vmem:[%s5792 + $0x30] sm:$0xf]
    %v5806 = vld [vmem:[%s5792 + $0x34] sm:$0xf]
    %v5807 = vld [vmem:[%s5792 + $0x38] sm:$0xf]
    %v5808 = vld [vmem:[%s5792 + $0x3c] sm:$0xf]
    %v5809 = vld [vmem:[%s5792 + $0x40] sm:$0xf]
    %v5810 = vld [vmem:[%s5792 + $0x44] sm:$0xf]
    %v5811 = vld [vmem:[%s5792 + $0x48] sm:$0xf]
    %v5812 = vld [vmem:[%s5792 + $0x4c] sm:$0xf]
    %v5813 = vld [vmem:[%s5792 + $0x50] sm:$0xf]
    %v5814 = vld [vmem:[%s5792 + $0x54] sm:$0xf]
    %v5815 = vld [vmem:[%s5792 + $0x58] sm:$0xf]
    %v5816 = vld [vmem:[%s5792 + $0x5c] sm:$0xf]
    %v5817 = vld [vmem:[%s5792 + $0x60] sm:$0xf]
    %v5818 = vld [vmem:[%s5792 + $0x64] sm:$0xf]
    %v5819 = vld [vmem:[%s5792 + $0x68] sm:$0xf]
    %v5820 = vld [vmem:[%s5792 + $0x6c] sm:$0xf]
    %v5821 = vld [vmem:[%s5792 + $0x70] sm:$0xf]
    %v5822 = vld [vmem:[%s5792 + $0x74] sm:$0xf]
    %v5823 = vld [vmem:[%s5792 + $0x78] sm:$0xf]
    %v5824 = vld [vmem:[%s5792 + $0x7c] sm:$0xf]
    %v5825 = vld [vmem:[%s5792 + $0x80] sm:$0xf]
    %v5826 = vld [vmem:[%s5792 + $0x84] sm:$0xf]
    %v5827 = vld [vmem:[%s5792 + $0x88] sm:$0xf]
    %v5828 = vld [vmem:[%s5792 + $0x8c] sm:$0xf]
    %v5829 = vld [vmem:[%s5792 + $0x90] sm:$0xf]
    %v5830 = vld [vmem:[%s5792 + $0x94] sm:$0xf]
    %v5831 = vld [vmem:[%s5792 + $0x98] sm:$0xf]
    %v5832 = vld [vmem:[%s5792 + $0x9c] sm:$0xf]
    %v5833 = vld [vmem:[%s5792 + $0xa0] sm:$0xf]
    %v5834 = vld [vmem:[%s5792 + $0xa4] sm:$0xf]
    %v5835 = vld [vmem:[%s5792 + $0xa8] sm:$0xf]
    %v5836 = vld [vmem:[%s5792 + $0xac] sm:$0xf]
    %v5837 = vld [vmem:[%s5792 + $0xb0] sm:$0xf]
    %v5838 = vld [vmem:[%s5792 + $0xb4] sm:$0xf]
    %v5839 = vld [vmem:[%s5792 + $0xb8] sm:$0xf]
    %v5840 = vld [vmem:[%s5792 + $0xbc] sm:$0xf]
    %v5841 = vld [vmem:[%s5792 + $0xc0] sm:$0xf]
    %v5842 = vld [vmem:[%s5792 + $0xc4] sm:$0xf]
    %v5843 = vld [vmem:[%s5792 + $0xc8] sm:$0xf]
    %v5844 = vld [vmem:[%s5792 + $0xcc] sm:$0xf]
    %v5845 = vld [vmem:[%s5792 + $0xd0] sm:$0xf]
    %v5846 = vld [vmem:[%s5792 + $0xd4] sm:$0xf]
    %v5847 = vld [vmem:[%s5792 + $0xd8] sm:$0xf]
    %v5848 = vld [vmem:[%s5792 + $0xdc] sm:$0xf]
    %v5849 = vld [vmem:[%s5792 + $0xe0] sm:$0xf]
    %v5850 = vld [vmem:[%s5792 + $0xe4] sm:$0xf]
    %v5851 = vld [vmem:[%s5792 + $0xe8] sm:$0xf]
    %v5852 = vld [vmem:[%s5792 + $0xec] sm:$0xf]
    %v5853 = vld [vmem:[%s5792 + $0xf0] sm:$0xf]
    %v5854 = vld [vmem:[%s5792 + $0xf4] sm:$0xf]
    %v5855 = vld [vmem:[%s5792 + $0xf8] sm:$0xf]
    %v5856 = vld [vmem:[%s5792 + $0xfc] sm:$0xf]
    %v5857 = vpack.c.bf16 %v5780, %v5776
    %v5858 = vpack.c.bf16 %v5781, %v5777
    %v5859 = vpack.c.bf16 %v5782, %v5778
    %v5860 = vpack.c.bf16 %v5783, %v5779
    %v5861 = vpack.c.bf16 %v5788, %v5784
    %v5862 = vpack.c.bf16 %v5789, %v5785
    %v5863 = vpack.c.bf16 %v5790, %v5786
    %v5864 = vpack.c.bf16 %v5791, %v5787
    %s5865 = scalar_lea.vmem [#allocation17], 3
    %v5866 = vld [vmem:[%s5865] sm:$0x1]
    %v5868 = vlaneseq
    %v5869 = vshrl.u32 %v5868, 7
    %v5870 = vsub.s32 0, %v5869
    %v5871 = vrot.slane %v5866, %v5870
    %v5937 = vunpack.c.l.b16 %v5793
    %v5938 = vunpack.c.l.b16 %v5794
    %v5939 = vunpack.c.l.b16 %v5795
    %v5940 = vunpack.c.l.b16 %v5796
    %v5941 = vunpack.c.l.b16 %v5797
    %v5942 = vunpack.c.l.b16 %v5798
    %v5943 = vunpack.c.l.b16 %v5799
    %v5944 = vunpack.c.l.b16 %v5800
    %v5945 = vunpack.c.l.b16 %v5801
    %v5946 = vunpack.c.l.b16 %v5802
    %v5947 = vunpack.c.l.b16 %v5803
    %v5948 = vunpack.c.l.b16 %v5804
    %v5949 = vunpack.c.l.b16 %v5805
    %v5950 = vunpack.c.l.b16 %v5806
    %v5951 = vunpack.c.l.b16 %v5807
    %v5952 = vunpack.c.l.b16 %v5808
    %v5953 = vunpack.c.l.b16 %v5809
    %v5954 = vunpack.c.l.b16 %v5810
    %v5955 = vunpack.c.l.b16 %v5811
    %v5956 = vunpack.c.l.b16 %v5812
    %v5957 = vunpack.c.l.b16 %v5813
    %v5958 = vunpack.c.l.b16 %v5814
    %v5959 = vunpack.c.l.b16 %v5815
    %v5960 = vunpack.c.l.b16 %v5816
    %v5961 = vunpack.c.l.b16 %v5817
    %v5962 = vunpack.c.l.b16 %v5818
    %v5963 = vunpack.c.l.b16 %v5819
    %v5964 = vunpack.c.l.b16 %v5820
    %v5965 = vunpack.c.l.b16 %v5821
    %v5966 = vunpack.c.l.b16 %v5822
    %v5967 = vunpack.c.l.b16 %v5823
    %v5968 = vunpack.c.l.b16 %v5824
    %v5969 = vunpack.c.l.b16 %v5825
    %v5970 = vunpack.c.l.b16 %v5826
    %v5971 = vunpack.c.l.b16 %v5827
    %v5972 = vunpack.c.l.b16 %v5828
    %v5973 = vunpack.c.l.b16 %v5829
    %v5974 = vunpack.c.l.b16 %v5830
    %v5975 = vunpack.c.l.b16 %v5831
    %v5976 = vunpack.c.l.b16 %v5832
    %v5977 = vunpack.c.l.b16 %v5833
    %v5978 = vunpack.c.l.b16 %v5834
    %v5979 = vunpack.c.l.b16 %v5835
    %v5980 = vunpack.c.l.b16 %v5836
    %v5981 = vunpack.c.l.b16 %v5837
    %v5982 = vunpack.c.l.b16 %v5838
    %v5983 = vunpack.c.l.b16 %v5839
    %v5984 = vunpack.c.l.b16 %v5840
    %v5985 = vunpack.c.l.b16 %v5841
    %v5986 = vunpack.c.l.b16 %v5842
    %v5987 = vunpack.c.l.b16 %v5843
    %v5988 = vunpack.c.l.b16 %v5844
    %v5989 = vunpack.c.l.b16 %v5845
    %v5990 = vunpack.c.l.b16 %v5846
    %v5991 = vunpack.c.l.b16 %v5847
    %v5992 = vunpack.c.l.b16 %v5848
    %v5993 = vunpack.c.l.b16 %v5849
    %v5994 = vunpack.c.l.b16 %v5850
    %v5995 = vunpack.c.l.b16 %v5851
    %v5996 = vunpack.c.l.b16 %v5852
    %v5997 = vunpack.c.l.b16 %v5853
    %v5998 = vunpack.c.l.b16 %v5854
    %v5999 = vunpack.c.l.b16 %v5855
    %v6000 = vunpack.c.l.b16 %v5856
    %v6001 = vpack.c.b16 %v5938, %v5937
    %v6002 = vpack.c.b16 %v5940, %v5939
    %v6003 = vpack.c.b16 %v5942, %v5941
    %v6004 = vpack.c.b16 %v5944, %v5943
    %v6005 = vpack.c.b16 %v5946, %v5945
    %v6006 = vpack.c.b16 %v5948, %v5947
    %v6007 = vpack.c.b16 %v5950, %v5949
    %v6008 = vpack.c.b16 %v5952, %v5951
    %v6009 = vpack.c.b16 %v5954, %v5953
    %v6010 = vpack.c.b16 %v5956, %v5955
    %v6011 = vpack.c.b16 %v5958, %v5957
    %v6012 = vpack.c.b16 %v5960, %v5959
    %v6013 = vpack.c.b16 %v5962, %v5961
    %v6014 = vpack.c.b16 %v5964, %v5963
    %v6015 = vpack.c.b16 %v5966, %v5965
    %v6016 = vpack.c.b16 %v5968, %v5967
    %v6017 = vpack.c.b16 %v5970, %v5969
    %v6018 = vpack.c.b16 %v5972, %v5971
    %v6019 = vpack.c.b16 %v5974, %v5973
    %v6020 = vpack.c.b16 %v5976, %v5975
    %v6021 = vpack.c.b16 %v5978, %v5977
    %v6022 = vpack.c.b16 %v5980, %v5979
    %v6023 = vpack.c.b16 %v5982, %v5981
    %v6024 = vpack.c.b16 %v5984, %v5983
    %v6025 = vpack.c.b16 %v5986, %v5985
    %v6026 = vpack.c.b16 %v5988, %v5987
    %v6027 = vpack.c.b16 %v5990, %v5989
    %v6028 = vpack.c.b16 %v5992, %v5991
    %v6029 = vpack.c.b16 %v5994, %v5993
    %v6030 = vpack.c.b16 %v5996, %v5995
    %v6031 = vpack.c.b16 %v5998, %v5997
    %v6032 = vpack.c.b16 %v6000, %v5999
    %6065 = vmatprep.subr.bf16.mxu0 0
    %6066 = vmatpush1.bf16.msra.mxu0 %v6001
    %6067 = vmatprep.subr.bf16.mxu0 0
    %6068 = vmatpush1.bf16.msra.mxu0 %v6002
    %6069 = vmatprep.subr.bf16.mxu0 0
    %6070 = vmatpush1.bf16.msra.mxu0 %v6003
    %6071 = vmatprep.subr.bf16.mxu0 0
    %6072 = vmatpush1.bf16.msra.mxu0 %v6004
    %6073 = vmatprep.subr.bf16.mxu0 0
    %6074 = vmatpush1.bf16.msra.mxu0 %v6005
    %6075 = vmatprep.subr.bf16.mxu0 0
    %6076 = vmatpush1.bf16.msra.mxu0 %v6006
    %6077 = vmatprep.subr.bf16.mxu0 0
    %6078 = vmatpush1.bf16.msra.mxu0 %v6007
    %6079 = vmatprep.subr.bf16.mxu0 0
    %6080 = vmatpush1.bf16.msra.mxu0 %v6008
    %6081 = vmatprep.subr.bf16.mxu0 0
    %6082 = vmatpush1.bf16.msra.mxu0 %v6009
    %6083 = vmatprep.subr.bf16.mxu0 0
    %6084 = vmatpush1.bf16.msra.mxu0 %v6010
    %6085 = vmatprep.subr.bf16.mxu0 0
    %6086 = vmatpush1.bf16.msra.mxu0 %v6011
    %6087 = vmatprep.subr.bf16.mxu0 0
    %6088 = vmatpush1.bf16.msra.mxu0 %v6012
    %6089 = vmatprep.subr.bf16.mxu0 0
    %6090 = vmatpush1.bf16.msra.mxu0 %v6013
    %6091 = vmatprep.subr.bf16.mxu0 0
    %6092 = vmatpush1.bf16.msra.mxu0 %v6014
    %6093 = vmatprep.subr.bf16.mxu0 0
    %6094 = vmatpush1.bf16.msra.mxu0 %v6015
    %6095 = vmatprep.subr.bf16.mxu0 0
    %6096 = vmatpush1.bf16.msra.mxu0 %v6016
    %6097 = vmatprep.mubr.bf16.mxu0 %v5858
    %6098 = vmatmul.mubr.bf16.gmra.mrb[0].mxu0 %v5857
    %v6099 = vpop.f32.mrb[0].mxu0
    %v6100 = vadd.f32 %v5871, %v6099
    %v6101 = vpop.f32.mrb[0].mxu0
    %v6102 = vpop.f32.mrb[0].mxu0
    %v6103 = vadd.f32 %v5871, %v6102
    %v6104 = vpop.f32.mrb[0].mxu0
    %6105 = vmatprep.mubr.bf16.mxu0 %v5862
    %6106 = vmatmul.mubr.bf16.gmra.mrb[0].mxu0 %v5861
    %v6107 = vpop.f32.mrb[0].mxu0
    %v6108 = vadd.f32 %v5871, %v6107
    %v6109 = vpop.f32.mrb[0].mxu0
    %v6110 = vpop.f32.mrb[0].mxu0
    %v6111 = vadd.f32 %v5871, %v6110
    %v6112 = vpop.f32.mrb[0].mxu0
    %6113 = vdwg.mxu0
    %6114 = vmatprep.subr.bf16.mxu0 0
    %6115 = vmatpush1.bf16.msra.mxu0 %v6017
    %6116 = vmatprep.subr.bf16.mxu0 0
    %6117 = vmatpush1.bf16.msra.mxu0 %v6018
    %6118 = vmatprep.subr.bf16.mxu0 0
    %6119 = vmatpush1.bf16.msra.mxu0 %v6019
    %6120 = vmatprep.subr.bf16.mxu0 0
    %6121 = vmatpush1.bf16.msra.mxu0 %v6020
    %6122 = vmatprep.subr.bf16.mxu0 0
    %6123 = vmatpush1.bf16.msra.mxu0 %v6021
    %6124 = vmatprep.subr.bf16.mxu0 0
    %6125 = vmatpush1.bf16.msra.mxu0 %v6022
    %6126 = vmatprep.subr.bf16.mxu0 0
    %6127 = vmatpush1.bf16.msra.mxu0 %v6023
    %6128 = vmatprep.subr.bf16.mxu0 0
    %6129 = vmatpush1.bf16.msra.mxu0 %v6024
    %6130 = vmatprep.subr.bf16.mxu0 0
    %6131 = vmatpush1.bf16.msra.mxu0 %v6025
    %6132 = vmatprep.subr.bf16.mxu0 0
    %6133 = vmatpush1.bf16.msra.mxu0 %v6026
    %6134 = vmatprep.subr.bf16.mxu0 0
    %6135 = vmatpush1.bf16.msra.mxu0 %v6027
    %6136 = vmatprep.subr.bf16.mxu0 0
    %6137 = vmatpush1.bf16.msra.mxu0 %v6028
    %6138 = vmatprep.subr.bf16.mxu0 0
    %6139 = vmatpush1.bf16.msra.mxu0 %v6029
    %6140 = vmatprep.subr.bf16.mxu0 0
    %6141 = vmatpush1.bf16.msra.mxu0 %v6030
    %6142 = vmatprep.subr.bf16.mxu0 0
    %6143 = vmatpush1.bf16.msra.mxu0 %v6031
    %6144 = vmatprep.subr.bf16.mxu0 0
    %6145 = vmatpush1.bf16.msra.mxu0 %v6032
    %6146 = vmatprep.mubr.bf16.mxu0 %v5860
    %6147 = vmatmul.mubr.bf16.gmra.mrb[0].mxu0 %v5859
    %v6148 = vpop.f32.mrb[0].mxu0
    %v6149 = vadd.f32 %v6100, %v6148
    %v6150 = vpop.f32.mrb[0].mxu0
    %v6151 = vpop.f32.mrb[0].mxu0
    %v6152 = vadd.f32 %v6103, %v6151
    %v6153 = vpop.f32.mrb[0].mxu0
    %6154 = vmatprep.mubr.bf16.mxu0 %v5864
    %6155 = vmatmul.mubr.bf16.gmra.mrb[0].mxu0 %v5863
    %v6156 = vpop.f32.mrb[0].mxu0
    %v6157 = vadd.f32 %v6108, %v6156
    %v6158 = vpop.f32.mrb[0].mxu0
    %v6159 = vpop.f32.mrb[0].mxu0
    %v6160 = vadd.f32 %v6111, %v6159
    %v6161 = vpop.f32.mrb[0].mxu0
    %6162 = vdwg.mxu0
    %v6163 = vadd.f32 %v5448, %v6149
    %v6164 = vadd.f32 %v5449, %v6152
    %v6165 = vadd.f32 %v5450, %v6157
    %v6166 = vadd.f32 %v5451, %v6160
    %s6167 = scalar_lea.vmem [#allocation19], 3
    %v6168 = vld [vmem:[%s6167] sm:$0x1]
    %s6169 = scalar_lea.vmem [#allocation20], 3
    %v6170 = vld [vmem:[%s6169] sm:$0x1]
    %6171 = vadd.xlane.f32.xlu0 %v6163
    %v6172 = vpop.xlane.xlu0 %6171
    %6173 = vadd.xlane.f32.xlu0 %v6164
    %v6174 = vpop.xlane.xlu0 %6173
    %6175 = vadd.xlane.f32.xlu0 %v6165
    %v6176 = vpop.xlane.xlu0 %6175
    %6177 = vadd.xlane.f32.xlu0 %v6166
    %v6178 = vpop.xlane.xlu0 %6177
    %v6179 = vmul.f32 %v6172, %v893
    %v6180 = vmul.f32 %v6174, %v893
    %v6181 = vmul.f32 %v6176, %v893
    %v6182 = vmul.f32 %v6178, %v893
    %v6183 = vmul.f32 %v6163, %v6163
    %v6184 = vmul.f32 %v6164, %v6164
    %v6185 = vmul.f32 %v6165, %v6165
    %v6186 = vmul.f32 %v6166, %v6166
    %6187 = vadd.xlane.f32.xlu0 %v6183
    %v6188 = vpop.xlane.xlu0 %6187
    %6189 = vadd.xlane.f32.xlu0 %v6184
    %v6190 = vpop.xlane.xlu0 %6189
    %6191 = vadd.xlane.f32.xlu0 %v6185
    %v6192 = vpop.xlane.xlu0 %6191
    %6193 = vadd.xlane.f32.xlu0 %v6186
    %v6194 = vpop.xlane.xlu0 %6193
    %v6195 = vmul.f32 %v6188, %v893
    %v6196 = vmul.f32 %v6190, %v893
    %v6197 = vmul.f32 %v6192, %v893
    %v6198 = vmul.f32 %v6194, %v893
    %v6199 = vmul.f32 %v6179, %v6179
    %v6200 = vmul.f32 %v6180, %v6180
    %v6201 = vmul.f32 %v6181, %v6181
    %v6202 = vmul.f32 %v6182, %v6182
    %v6203 = vsub.f32 %v6195, %v6199
    %v6204 = vsub.f32 %v6196, %v6200
    %v6205 = vsub.f32 %v6197, %v6201
    %v6206 = vsub.f32 %v6198, %v6202
    %v6207 = vsub.f32 %v6163, %v6179
    %v6208 = vsub.f32 %v6164, %v6180
    %v6209 = vsub.f32 %v6165, %v6181
    %v6210 = vsub.f32 %v6166, %v6182
    %v6211 = vadd.f32 %v6203, 1e-05
    %v6212 = vadd.f32 %v6204, 1e-05
    %v6213 = vadd.f32 %v6205, 1e-05
    %v6214 = vadd.f32 %v6206, 1e-05
    %v6215 = vrsqrt.pop %v6211
    %v6216 = vrsqrt.pop %v6212
    %v6217 = vrsqrt.pop %v6213
    %v6218 = vrsqrt.pop %v6214
    %v6219 = vmul.f32 %v6207, %v6215
    %v6220 = vmul.f32 %v6208, %v6216
    %v6221 = vmul.f32 %v6209, %v6217
    %v6222 = vmul.f32 %v6210, %v6218
    %v6224 = vlaneseq
    %v6225 = vshrl.u32 %v6224, 7
    %v6226 = vsub.s32 0, %v6225
    %v6227 = vrot.slane %v6168, %v6226
    %v6229 = vmul.f32 %v6219, %v6227
    %v6230 = vmul.f32 %v6220, %v6227
    %v6231 = vmul.f32 %v6221, %v6227
    %v6232 = vmul.f32 %v6222, %v6227
    %v6234 = vlaneseq
    %v6235 = vshrl.u32 %v6234, 7
    %v6236 = vsub.s32 0, %v6235
    %v6237 = vrot.slane %v6170, %v6236
    %v6239 = vadd.f32 %v6229, %v6237
    %v6240 = vadd.f32 %v6230, %v6237
    %v6241 = vadd.f32 %v6231, %v6237
    %v6242 = vadd.f32 %v6232, %v6237
    %v6243 = vld [vmem:[#allocation22] sm:$0xff]
    %v6244 = vld [vmem:[#allocation22 + $0x8] sm:$0xf]
    %v6245 = vld [vmem:[#allocation22 + $0xc] sm:$0xff]
    %v6246 = vld [vmem:[#allocation22 + $0x14] sm:$0xf]
    %v6247 = vld [vmem:[#allocation22 + $0x18] sm:$0xff]
    %v6248 = vld [vmem:[#allocation22 + $0x20] sm:$0xf]
    %v6249 = vld [vmem:[#allocation22 + $0x24] sm:$0xff]
    %v6250 = vld [vmem:[#allocation22 + $0x2c] sm:$0xf]
    %v6251 = vld [vmem:[#allocation22 + $0x30] sm:$0xff]
    %v6252 = vld [vmem:[#allocation22 + $0x38] sm:$0xf]
    %v6253 = vld [vmem:[#allocation22 + $0x3c] sm:$0xff]
    %v6254 = vld [vmem:[#allocation22 + $0x44] sm:$0xf]
    %v6255 = vld [vmem:[#allocation22 + $0x48] sm:$0xff]
    %v6256 = vld [vmem:[#allocation22 + $0x50] sm:$0xf]
    %v6257 = vld [vmem:[#allocation22 + $0x54] sm:$0xff]
    %v6258 = vld [vmem:[#allocation22 + $0x5c] sm:$0xf]
    %v6259 = vld [vmem:[#allocation22 + $0x60] sm:$0xff]
    %v6260 = vld [vmem:[#allocation22 + $0x68] sm:$0xf]
    %v6261 = vld [vmem:[#allocation22 + $0x6c] sm:$0xff]
    %v6262 = vld [vmem:[#allocation22 + $0x74] sm:$0xf]
    %v6263 = vld [vmem:[#allocation22 + $0x78] sm:$0xff]
    %v6264 = vld [vmem:[#allocation22 + $0x80] sm:$0xf]
    %v6265 = vld [vmem:[#allocation22 + $0x84] sm:$0xff]
    %v6266 = vld [vmem:[#allocation22 + $0x8c] sm:$0xf]
    %v6267 = vld [vmem:[#allocation22 + $0x90] sm:$0xff]
    %v6268 = vld [vmem:[#allocation22 + $0x98] sm:$0xf]
    %v6269 = vld [vmem:[#allocation22 + $0x9c] sm:$0xff]
    %v6270 = vld [vmem:[#allocation22 + $0xa4] sm:$0xf]
    %v6271 = vld [vmem:[#allocation22 + $0xa8] sm:$0xff]
    %v6272 = vld [vmem:[#allocation22 + $0xb0] sm:$0xf]
    %v6273 = vld [vmem:[#allocation22 + $0xb4] sm:$0xff]
    %v6274 = vld [vmem:[#allocation22 + $0xbc] sm:$0xf]
    %v6275 = vpack.c.bf16 %v6240, %v6239
    %v6276 = vpack.c.bf16 %v6242, %v6241
    %v6277 = vld [vmem:[#allocation23] sm:$0x7]
    %v6279 = vlaneseq
    %v6280 = vshrl.u32 %v6279, 7
    %v6281 = vsub.s32 0, %v6280
    %v6282 = vrot.slane %v6277, %v6281
    %v6283 = vlaneseq
    %v6284 = vshrl.u32 %v6283, 7
    %v6285 = vsub.s32 1, %v6284
    %v6286 = vrot.slane %v6277, %v6285
    %v6287 = vlaneseq
    %v6288 = vshrl.u32 %v6287, 7
    %v6289 = vsub.s32 2, %v6288
    %v6290 = vrot.slane %v6277, %v6289
    %v6326 = vunpack.c.l.b16 %v6243
    %v6327 = vunpack.c.h.b16 %v6243
    %v6328 = vunpack.c.l.b16 %v6244
    %v6329 = vunpack.c.l.b16 %v6245
    %v6330 = vunpack.c.h.b16 %v6245
    %v6331 = vunpack.c.l.b16 %v6246
    %v6332 = vunpack.c.l.b16 %v6247
    %v6333 = vunpack.c.h.b16 %v6247
    %v6334 = vunpack.c.l.b16 %v6248
    %v6335 = vunpack.c.l.b16 %v6249
    %v6336 = vunpack.c.h.b16 %v6249
    %v6337 = vunpack.c.l.b16 %v6250
    %v6338 = vunpack.c.l.b16 %v6251
    %v6339 = vunpack.c.h.b16 %v6251
    %v6340 = vunpack.c.l.b16 %v6252
    %v6341 = vunpack.c.l.b16 %v6253
    %v6342 = vunpack.c.h.b16 %v6253
    %v6343 = vunpack.c.l.b16 %v6254
    %v6344 = vunpack.c.l.b16 %v6255
    %v6345 = vunpack.c.h.b16 %v6255
    %v6346 = vunpack.c.l.b16 %v6256
    %v6347 = vunpack.c.l.b16 %v6257
    %v6348 = vunpack.c.h.b16 %v6257
    %v6349 = vunpack.c.l.b16 %v6258
    %v6350 = vunpack.c.l.b16 %v6259
    %v6351 = vunpack.c.h.b16 %v6259
    %v6352 = vunpack.c.l.b16 %v6260
    %v6353 = vunpack.c.l.b16 %v6261
    %v6354 = vunpack.c.h.b16 %v6261
    %v6355 = vunpack.c.l.b16 %v6262
    %v6356 = vunpack.c.l.b16 %v6263
    %v6357 = vunpack.c.h.b16 %v6263
    %v6358 = vunpack.c.l.b16 %v6264
    %v6359 = vunpack.c.l.b16 %v6265
    %v6360 = vunpack.c.h.b16 %v6265
    %v6361 = vunpack.c.l.b16 %v6266
    %v6362 = vunpack.c.l.b16 %v6267
    %v6363 = vunpack.c.h.b16 %v6267
    %v6364 = vunpack.c.l.b16 %v6268
    %v6365 = vunpack.c.l.b16 %v6269
    %v6366 = vunpack.c.h.b16 %v6269
    %v6367 = vunpack.c.l.b16 %v6270
    %v6368 = vunpack.c.l.b16 %v6271
    %v6369 = vunpack.c.h.b16 %v6271
    %v6370 = vunpack.c.l.b16 %v6272
    %v6371 = vunpack.c.l.b16 %v6273
    %v6372 = vunpack.c.h.b16 %v6273
    %v6373 = vunpack.c.l.b16 %v6274
    %v6374 = vpack.c.b16 %v6329, %v6326
    %v6375 = vpack.c.b16 %v6330, %v6327
    %v6376 = vpack.c.b16 %v6331, %v6328
    %v6377 = vpack.c.b16 %v6335, %v6332
    %v6378 = vpack.c.b16 %v6336, %v6333
    %v6379 = vpack.c.b16 %v6337, %v6334
    %v6380 = vpack.c.b16 %v6341, %v6338
    %v6381 = vpack.c.b16 %v6342, %v6339
    %v6382 = vpack.c.b16 %v6343, %v6340
    %v6383 = vpack.c.b16 %v6347, %v6344
    %v6384 = vpack.c.b16 %v6348, %v6345
    %v6385 = vpack.c.b16 %v6349, %v6346
    %v6386 = vpack.c.b16 %v6353, %v6350
    %v6387 = vpack.c.b16 %v6354, %v6351
    %v6388 = vpack.c.b16 %v6355, %v6352
    %v6389 = vpack.c.b16 %v6359, %v6356
    %v6390 = vpack.c.b16 %v6360, %v6357
    %v6391 = vpack.c.b16 %v6361, %v6358
    %v6392 = vpack.c.b16 %v6365, %v6362
    %v6393 = vpack.c.b16 %v6366, %v6363
    %v6394 = vpack.c.b16 %v6367, %v6364
    %v6395 = vpack.c.b16 %v6371, %v6368
    %v6396 = vpack.c.b16 %v6372, %v6369
    %v6397 = vpack.c.b16 %v6373, %v6370
    %6422 = vmatprep.subr.bf16.mxu0 %v6375
    %6423 = vmatpush1.bf16.msra.mxu0 %v6374
    %6424 = vmatprep.subr.bf16.mxu0 %v6378
    %6425 = vmatpush1.bf16.msra.mxu0 %v6377
    %6426 = vmatprep.subr.bf16.mxu0 %v6381
    %6427 = vmatpush1.bf16.msra.mxu0 %v6380
    %6428 = vmatprep.subr.bf16.mxu0 %v6384
    %6429 = vmatpush1.bf16.msra.mxu0 %v6383
    %6430 = vmatprep.subr.bf16.mxu0 %v6387
    %6431 = vmatpush1.bf16.msra.mxu0 %v6386
    %6432 = vmatprep.subr.bf16.mxu0 %v6390
    %6433 = vmatpush1.bf16.msra.mxu0 %v6389
    %6434 = vmatprep.subr.bf16.mxu0 %v6393
    %6435 = vmatpush1.bf16.msra.mxu0 %v6392
    %6436 = vmatprep.subr.bf16.mxu0 %v6396
    %6437 = vmatpush1.bf16.msra.mxu0 %v6395
    %6438 = vmatprep.subr.bf16.mxu0 0
    %6439 = vmatpush1.bf16.msra.mxu0 0
    %6440 = vmatprep.subr.bf16.mxu0 0
    %6441 = vmatpush1.bf16.msra.mxu0 0
    %6442 = vmatprep.subr.bf16.mxu0 0
    %6443 = vmatpush1.bf16.msra.mxu0 0
    %6444 = vmatprep.subr.bf16.mxu0 0
    %6445 = vmatpush1.bf16.msra.mxu0 0
    %6446 = vmatprep.subr.bf16.mxu0 0
    %6447 = vmatpush1.bf16.msra.mxu0 0
    %6448 = vmatprep.subr.bf16.mxu0 0
    %6449 = vmatpush1.bf16.msra.mxu0 0
    %6450 = vmatprep.subr.bf16.mxu0 0
    %6451 = vmatpush1.bf16.msra.mxu0 0
    %6452 = vmatprep.subr.bf16.mxu0 0
    %6453 = vmatpush1.bf16.msra.mxu0 0
    %6454 = vmatprep.mubr.bf16.mxu0 0
    %6455 = vmatmul.mubr.bf16.gmra.mrb[0].mxu0 %v6275
    %v6456 = vpop.f32.mrb[0].mxu0
    %v6457 = vadd.f32 %v6282, %v6456
    %v6458 = vpop.f32.mrb[0].mxu0
    %v6459 = vadd.f32 %v6286, %v6458
    %v6460 = vpop.f32.mrb[0].mxu0
    %v6461 = vadd.f32 %v6282, %v6460
    %v6462 = vpop.f32.mrb[0].mxu0
    %v6463 = vadd.f32 %v6286, %v6462
    %6464 = vmatprep.mubr.bf16.mxu0 0
    %6465 = vmatmul.mubr.bf16.gmra.mrb[0].mxu0 %v6276
    %v6466 = vpop.f32.mrb[0].mxu0
    %v6467 = vadd.f32 %v6282, %v6466
    %v6468 = vpop.f32.mrb[0].mxu0
    %v6469 = vadd.f32 %v6286, %v6468
    %v6470 = vpop.f32.mrb[0].mxu0
    %v6471 = vadd.f32 %v6282, %v6470
    %v6472 = vpop.f32.mrb[0].mxu0
    %v6473 = vadd.f32 %v6286, %v6472
    %6474 = vdwg.mxu0
    %6475 = vmatprep.subr.bf16.mxu0 0
    %6476 = vmatpush1.bf16.msra.mxu0 %v6376
    %6477 = vmatprep.subr.bf16.mxu0 0
    %6478 = vmatpush1.bf16.msra.mxu0 %v6379
    %6479 = vmatprep.subr.bf16.mxu0 0
    %6480 = vmatpush1.bf16.msra.mxu0 %v6382
    %6481 = vmatprep.subr.bf16.mxu0 0
    %6482 = vmatpush1.bf16.msra.mxu0 %v6385
    %6483 = vmatprep.subr.bf16.mxu0 0
    %6484 = vmatpush1.bf16.msra.mxu0 %v6388
    %6485 = vmatprep.subr.bf16.mxu0 0
    %6486 = vmatpush1.bf16.msra.mxu0 %v6391
    %6487 = vmatprep.subr.bf16.mxu0 0
    %6488 = vmatpush1.bf16.msra.mxu0 %v6394
    %6489 = vmatprep.subr.bf16.mxu0 0
    %6490 = vmatpush1.bf16.msra.mxu0 %v6397
    %6491 = vmatprep.subr.bf16.mxu0 0
    %6492 = vmatpush1.bf16.msra.mxu0 0
    %6493 = vmatprep.subr.bf16.mxu0 0
    %6494 = vmatpush1.bf16.msra.mxu0 0
    %6495 = vmatprep.subr.bf16.mxu0 0
    %6496 = vmatpush1.bf16.msra.mxu0 0
    %6497 = vmatprep.subr.bf16.mxu0 0
    %6498 = vmatpush1.bf16.msra.mxu0 0
    %6499 = vmatprep.subr.bf16.mxu0 0
    %6500 = vmatpush1.bf16.msra.mxu0 0
    %6501 = vmatprep.subr.bf16.mxu0 0
    %6502 = vmatpush1.bf16.msra.mxu0 0
    %6503 = vmatprep.subr.bf16.mxu0 0
    %6504 = vmatpush1.bf16.msra.mxu0 0
    %6505 = vmatprep.subr.bf16.mxu0 0
    %6506 = vmatpush1.bf16.msra.mxu0 0
    %6507 = vmatprep.mubr.bf16.mxu0 0
    %6508 = vmatmul.mubr.bf16.gmra.mrb[0].mxu0 %v6275
    %v6509 = vpop.f32.mrb[0].mxu0
    %v6510 = vadd.f32 %v6290, %v6509
    %v6511 = vpop.f32.mrb[0].mxu0
    %v6512 = vpop.f32.mrb[0].mxu0
    %v6513 = vadd.f32 %v6290, %v6512
    %v6514 = vpop.f32.mrb[0].mxu0
    %6515 = vmatprep.mubr.bf16.mxu0 0
    %6516 = vmatmul.mubr.bf16.gmra.mrb[0].mxu0 %v6276
    %v6517 = vpop.f32.mrb[0].mxu0
    %v6518 = vadd.f32 %v6290, %v6517
    %v6519 = vpop.f32.mrb[0].mxu0
    %v6520 = vpop.f32.mrb[0].mxu0
    %v6521 = vadd.f32 %v6290, %v6520
    %v6522 = vpop.f32.mrb[0].mxu0
    %6523 = vdwg.mxu0
    %6524 = vst [vmem:[#allocation25] sm:$0xff] %v6457
    %6525 = vst [vmem:[#allocation25 + $0x8] sm:$0xff] %v6459
    %6526 = vst [vmem:[#allocation25 + $0x10] sm:$0xff] %v6510
    %6527 = vst [vmem:[#allocation25 + $0x18] sm:$0xff] %v6461
    %6528 = vst [vmem:[#allocation25 + $0x20] sm:$0xff] %v6463
    %6529 = vst [vmem:[#allocation25 + $0x28] sm:$0xff] %v6513
    %6530 = vst [vmem:[#allocation25 + $0x30] sm:$0xff] %v6467
    %6531 = vst [vmem:[#allocation25 + $0x38] sm:$0xff] %v6469
    %6532 = vst [vmem:[#allocation25 + $0x40] sm:$0xff] %v6518
    %6533 = vst [vmem:[#allocation25 + $0x48] sm:$0xff] %v6471
    %6534 = vst [vmem:[#allocation25 + $0x50] sm:$0xff] %v6473
    %6535 = vst [vmem:[#allocation25 + $0x58] sm:$0xff] %v6521
    // Predicated region
    $region118: #{simple_transformer_forward.1} parent=1 // pred_check
      _
    $region119: #{simple_transformer_forward.1} parent=1 // pred_check_branch
      %6537 = sbr.rel (0) target = $region121
    $region120: #{simple_transformer_forward.1} parent=1 // pred_region
      %s6539 = ssub.s32 1536, 1536
      %6540 = vsyncadd [#allocation4], %s6539
      %s6541 = sshll.u32 [#allocation25], 4
      %s6542 = int_to_ptr.vmem [resolvable:$true] %s6541
      %6547 = dma.vmem_to_hbm [thread:$0]  %s6542, 1536, %s15, [#allocation4], 384, 384, 24
    $region121: #{simple_transformer_forward.1} parent=1 // pred_fallthru
      _
    // Predicated region
    $region122: #{simple_transformer_forward.1} parent=1 // pred_check
      _
    $region123: #{simple_transformer_forward.1} parent=1 // pred_check_branch
      %6549 = sbr.rel (0) target = $region125
    $region124: #{simple_transformer_forward.1} parent=1 // pred_region
      %6550 = dma.done [#allocation4], 1536
    $region125: #{simple_transformer_forward.1} parent=1 // pred_fallthru
      _
    %6551 = vsyncpa [#allocation3], 1
    %6552 = vsyncpa [#allocation6], 1
    %6553 = vsyncpa [#allocation9], 1
    %6554 = vsyncpa [#allocation12], 1
    %6555 = vsyncpa [#allocation15], 1
    %6556 = vsyncpa [#allocation18], 1
    %6557 = vsyncpa [#allocation21], 1
    %6558 = vsyncpa [#allocation24], 1
    %6559 = vsyncpa [#allocation4], 1

</llo_original>
